<compile_context>
chip_gen: v7x
topology: tpu7x:2x2x1
jax: 0.10.0
libtpu: 0.0.40
codegen_flags: <defaults>
</compile_context>

<pallas_src>
import functools

import jax
import jax.numpy as jnp
import numpy as np
from jax.experimental import pallas as pl
from jax.experimental.pallas import tpu as pltpu


def _silu(v):
    return v * jax.nn.sigmoid(v)


def _const_spec(arr):
    # Full-array block, same block every grid step (loaded once, stays resident).
    zeros = (0,) * arr.ndim
    return pl.BlockSpec(arr.shape, lambda n: zeros)


# "NT" matmul dims: contract the last dim of both operands -> (lhs_rows, rhs_rows).
_NT_DIMS = (((1,), (1,)), ((), ()))


# ---------------------------------------------------------------------------
# Fused MBConv kernel: one grid step == batch_tile samples.
# ---------------------------------------------------------------------------
def mbconv_kernel(*refs, expand, use_residual, k, stride, padding,
                  B, H, W, Ho, Wo, inv_hw, cast):
    idx = 0
    x_ref = refs[idx]; idx += 1                       # (B, H, W, Cin)   NHWC conv input
    xres_ref = None
    if use_residual:
        xres_ref = refs[idx]; idx += 1                # (B, Cin, H*W)    NCHW residual view
    we_ref = None
    if expand:
        we_ref = refs[idx]; idx += 1                  # (9*Cin, hidden)
    vh_ref, wd_ref, se_ref, wpt_ref, vo_ref = refs[idx:idx + 5]; idx += 5
    o_ref = refs[idx]; idx += 1                       # (B, Cout, Ho*Wo) lane-dense output
    xpad_ref = None
    if expand:
        xpad_ref = refs[idx]; idx += 1                # (B, H+2, W+2, Cin)
    hpad_ref = refs[idx]                              # (B, H+2p, W+2p, hidden)

    cin = x_ref.shape[-1]
    hidden = wd_ref.shape[-1]
    R = se_ref.shape[0] // 2
    M1 = Ho * Wo

    def mx(a):
        return a if cast is None else a.astype(cast)

    # ---- expand: 3x3 conv (s=1, p=1) + folded BN + SiLU --------------------
    if expand:
        zr = jnp.zeros((1, W + 2, cin), jnp.float32)
        zc = jnp.zeros((H, 1, cin), jnp.float32)
        for b in range(B):
            # Zero only the 1-wide pad border; the interior is fully overwritten below.
            xpad_ref[b, 0:1, :, :] = zr
            xpad_ref[b, H + 1:H + 2, :, :] = zr
            xpad_ref[b, 1:H + 1, 0:1, :] = zc
            xpad_ref[b, 1:H + 1, W + 1:W + 2, :] = zc
            xpad_ref[b, 1:H + 1, 1:W + 1, :] = x_ref[b]
        # Nine accumulating K=Cin MXU dots (no im2col VMEM scratch round trip).
        h = jnp.zeros((B * H * W, hidden), jnp.float32)
        for t in range(9):
            dy, dx = t // 3, t % 3
            taps = [xpad_ref[b, dy:dy + H, dx:dx + W, :].reshape(H * W, cin)
                    for b in range(B)]
            tap = taps[0] if B == 1 else jnp.concatenate(taps, axis=0)
            h = h + jnp.dot(mx(tap), mx(we_ref[t * cin:(t + 1) * cin, :]),
                            preferred_element_type=jnp.float32)
        h = _silu(h * vh_ref[0:1, :] + vh_ref[1:2, :])        # (B*H*W, hidden)
        off = 2
    else:
        h = x_ref[...].reshape(B * H * W, cin)
        off = 0

    scale_d = vh_ref[off:off + 1, :]
    bias_d = vh_ref[off + 1:off + 2, :]
    b2 = vh_ref[off + 2:off + 3, :]
    wd = wd_ref[...]                                  # (k*k, hidden) depthwise taps
    w1b = se_ref[0:R, :]                              # (R, hidden+1): [w1^T | b1]
    w2 = se_ref[R:2 * R, 0:hidden]                    # (R, hidden)

    # ---- per-sample depthwise k x k conv + BN + SiLU + SqueezeExcitation ---
    dg_parts = []
    for b in range(B):
        h3 = h[b * H * W:(b + 1) * H * W, :].reshape(H, W, hidden)
        Wp = W + 2 * padding
        if padding > 0:
            zr = jnp.zeros((padding, Wp, hidden), jnp.float32)
            zc = jnp.zeros((H, padding, hidden), jnp.float32)
            hpad_ref[b, 0:padding, :, :] = zr
            hpad_ref[b, padding + H:2 * padding + H, :, :] = zr
            hpad_ref[b, padding:padding + H, 0:padding, :] = zc
            hpad_ref[b, padding:padding + H, padding + W:2 * padding + W, :] = zc
        hpad_ref[b, padding:padding + H, padding:padding + W, :] = h3

        acc = jnp.zeros((Ho, Wo, hidden), jnp.float32)
        if stride == 1:
            for dy in range(k):
                for dx in range(k):
                    t = dy * k + dx
                    acc = acc + hpad_ref[b, dy:dy + Ho, dx:dx + Wo, :] * wd[t:t + 1]
        else:
            # TODO(synk): stride>1 decimation path is derived but not exercised by the
            #             stride=1 test below; validate before relying on it.
            hp = hpad_ref[b]
            dec = [[hp[ry::stride, rx::stride, :] for rx in range(stride)]
                   for ry in range(stride)]
            for dy in range(k):
                for dx in range(k):
                    t = dy * k + dx
                    win = dec[dy % stride][dx % stride]
                    acc = acc + (win[dy // stride:dy // stride + Ho,
                                     dx // stride:dx // stride + Wo, :] * wd[t:t + 1])
        d = _silu(acc * scale_d + bias_d)                      # (Ho, Wo, hidden)
        db = d.reshape(M1, hidden)

        # SE: reduced_dim is tiny -> VPU broadcast-multiply + reduce (no MXU matmuls).
        pooled = jnp.sum(db, axis=0, keepdims=True) * inv_hw             # (1, hidden)
        s1 = (jnp.sum(w1b[:, 0:hidden] * pooled, axis=1, keepdims=True)
              + w1b[:, hidden:hidden + 1])                               # (R, 1)
        s1 = _silu(s1)
        s2 = jnp.sum(w2 * s1, axis=0, keepdims=True) + b2                # (1, hidden)
        gate = jax.nn.sigmoid(s2)
        dg_parts.append(db * gate)

    dg = dg_parts[0] if B == 1 else jnp.concatenate(dg_parts, axis=0)    # (B*M1, hidden)

    # ---- 1x1 projection + folded BN, computed channel-major (lane-dense) ---
    # (Cout, hidden) x (B*M1, hidden)^T -> (Cout, B*M1): stored last dim is a large
    # multiple of 128 -> unmasked vst; wrapper NCHW output is then a free reshape.
    yt = jax.lax.dot_general(mx(wpt_ref[...]), mx(dg), _NT_DIMS,
                             preferred_element_type=jnp.float32)
    yt = yt * vo_ref[:, 0:1] + vo_ref[:, 1:2]
    for b in range(B):
        yb = yt[:, b * M1:(b + 1) * M1]
        if use_residual:
            yb = yb + xres_ref[b]          # residual straight from the NCHW input view
        o_ref[b] = yb


# ---------------------------------------------------------------------------
# Parameter init (deterministic, synthetic) + BN folding helpers
# ---------------------------------------------------------------------------
def _fold_bn(conv_bias, gamma, beta, mean, var, eps=1e-5):
    scale = gamma / jnp.sqrt(var + eps)
    bias = (conv_bias - mean) * scale + beta
    return scale.reshape(1, -1), bias.reshape(1, -1)


def init_params(key, in_ch, out_ch, kernel_size, expand_ratio, reduction=4):
    hidden = in_ch * expand_ratio
    reduced = int(in_ch / reduction)
    ks = jax.random.split(key, 24)

    def bn(i, c):
        gamma = 1.0 + 0.1 * jax.random.normal(ks[i], (c,), jnp.float32)
        beta = 0.1 * jax.random.normal(ks[i + 1], (c,), jnp.float32)
        mean = 0.1 * jax.random.normal(ks[i + 2], (c,), jnp.float32)
        var = 1.0 + 0.2 * jax.random.uniform(ks[i + 3], (c,), jnp.float32)
        return gamma, beta, mean, var

    p = {}
    if expand_ratio != 1:
        w_e = 0.2 * jax.random.normal(ks[0], (3, 3, in_ch, hidden), jnp.float32)
        b_e = 0.1 * jax.random.normal(ks[1], (hidden,), jnp.float32)
        p["w_e"] = w_e
        p["scale_e"], p["bias_e"] = _fold_bn(b_e, *bn(2, hidden))

    w_d = 0.2 * jax.random.normal(ks[6], (kernel_size, kernel_size, 1, hidden), jnp.float32)
    b_d = 0.1 * jax.random.normal(ks[7], (hidden,), jnp.float32)
    p["w_d"] = w_d
    p["scale_d"], p["bias_d"] = _fold_bn(b_d, *bn(8, hidden))

    p["w1"] = 0.2 * jax.random.normal(ks[12], (hidden, reduced), jnp.float32)
    p["b1"] = 0.1 * jax.random.normal(ks[13], (1, reduced), jnp.float32)
    p["w2"] = 0.2 * jax.random.normal(ks[14], (reduced, hidden), jnp.float32)
    p["b2"] = 0.1 * jax.random.normal(ks[15], (1, hidden), jnp.float32)

    p["wp"] = 0.2 * jax.random.normal(ks[16], (hidden, out_ch), jnp.float32)
    p["scale_p"], p["bias_p"] = _fold_bn(jnp.zeros((out_ch,), jnp.float32), *bn(17, out_ch))
    return p


# ---------------------------------------------------------------------------
# Wrapper: PyTorch-equivalent forward (NCHW in / NCHW out)
# ---------------------------------------------------------------------------
def inverted_residual_forward(x_nchw, p, *, in_ch, out_ch, kernel_size, stride,
                              padding, expand_ratio, compute_dtype=jnp.float32,
                              batch_tile=None):
    x_nchw = x_nchw.astype(jnp.float32)
    N, _, H, W = x_nchw.shape
    x = jnp.transpose(x_nchw, (0, 2, 3, 1))            # NHWC for the convolutions
    k = kernel_size
    expand = expand_ratio != 1
    hidden = in_ch * expand_ratio
    use_residual = (in_ch == out_ch) and (stride == 1)
    Ho = (H + 2 * padding - k) // stride + 1
    Wo = (W + 2 * padding - k) // stride + 1

    # batch_tile: grow M = batch_tile*H*W while keeping grid >= 2 (v7x megacore / DMA pipelining)
    if batch_tile is None:
        batch_tile = 1
        for cand in (4, 3, 2):
            if N % cand == 0 and N // cand >= 2:
                batch_tile = cand
                break
        if N == 1:
            batch_tile = 1
    assert N % batch_tile == 0
    grid_n = N // batch_tile

    # keep f32 on the MXU path unless explicitly overridden (bf16 only pays off on v6e/v7x)
    cast = None if np.dtype(compute_dtype) == np.dtype(np.float32) else compute_dtype

    # ---- one-time weight repacking (wrapper-side layout plumbing) ----------
    wd2 = p["w_d"].reshape(k * k, hidden)                       # depthwise taps (k*k, hidden)
    R = p["w1"].shape[1]
    w1t = p["w1"].T                                             # (R, hidden)
    se_pack = jnp.concatenate([
        jnp.concatenate([w1t, p["b1"].reshape(-1, 1)], axis=1),              # [w1^T | b1]
        jnp.concatenate([p["w2"], jnp.zeros((R, 1), jnp.float32)], axis=1),  # [w2   | 0 ]
    ], axis=0)                                                  # (2R, hidden+1)
    rows = []
    if expand:
        rows += [p["scale_e"], p["bias_e"]]
    rows += [p["scale_d"], p["bias_d"], p["b2"]]
    vec_h = jnp.concatenate(rows, axis=0)                       # packed (rows, hidden)
    wpt = p["wp"].T                                             # (out_ch, hidden)
    vec_o = jnp.concatenate([p["scale_p"].reshape(-1, 1),
                             p["bias_p"].reshape(-1, 1)], axis=1)   # (out_ch, 2)

    operands = [x]
    in_specs = [pl.BlockSpec((batch_tile, H, W, in_ch), lambda n: (n, 0, 0, 0))]
    if use_residual:
        xres = x_nchw.reshape(N, in_ch, H * W)      # free reshape of the NCHW input
        operands.append(xres)
        in_specs.append(pl.BlockSpec((batch_tile, in_ch, H * W), lambda n: (n, 0, 0)))

    def add_const(arr):
        operands.append(arr)
        in_specs.append(_const_spec(arr))

    if expand:
        add_const(p["w_e"].reshape(9 * in_ch, hidden))          # (9*Cin, hidden)
    for a in (vec_h, wd2, se_pack, wpt, vec_o):
        add_const(a)

    scratch = []
    if expand:
        scratch.append(pltpu.VMEM((batch_tile, H + 2, W + 2, in_ch), jnp.float32))
    scratch.append(pltpu.VMEM((batch_tile, H + 2 * padding, W + 2 * padding, hidden),
                              jnp.float32))

    kernel = functools.partial(
        mbconv_kernel, expand=expand, use_residual=use_residual, k=k,
        stride=stride, padding=padding, B=batch_tile, H=H, W=W, Ho=Ho, Wo=Wo,
        inv_hw=1.0 / float(Ho * Wo), cast=cast)

    y = pl.pallas_call(
        kernel,
        out_shape=jax.ShapeDtypeStruct((N, out_ch, Ho * Wo), jnp.float32),
        grid_spec=pltpu.PrefetchScalarGridSpec(
            num_scalar_prefetch=0,
            grid=(grid_n,),
            in_specs=in_specs,
            out_specs=pl.BlockSpec((batch_tile, out_ch, Ho * Wo), lambda n: (n, 0, 0)),
            scratch_shapes=scratch),
        compiler_params=pltpu.CompilerParams(
            dimension_semantics=("parallel",),          # shards grid across v7x's 2 TCs
            vmem_limit_bytes=32 * 1024 * 1024),
    )(*operands)

    # Output already channel-major -> NCHW is a free reshape (no transpose pass).
    return y.reshape(N, out_ch, Ho, Wo)


# ---------------------------------------------------------------------------
# Pure-JAX reference (for correctness check)
# ---------------------------------------------------------------------------
def reference_forward(x_nchw, p, *, in_ch, out_ch, kernel_size, stride, padding,
                      expand_ratio):
    x = jnp.transpose(x_nchw, (0, 2, 3, 1)).astype(jnp.float32)
    if expand_ratio != 1:
        y = jax.lax.conv_general_dilated(
            x, p["w_e"], (1, 1), ((1, 1), (1, 1)),
            dimension_numbers=("NHWC", "HWIO", "NHWC"))
        y = _silu(y * p["scale_e"] + p["bias_e"])
    else:
        y = x
    C = y.shape[-1]
    d = jax.lax.conv_general_dilated(
        y, p["w_d"], (stride, stride), ((padding, padding), (padding, padding)),
        dimension_numbers=("NHWC", "HWIO", "NHWC"), feature_group_count=C)
    d = _silu(d * p["scale_d"] + p["bias_d"])
    pooled = jnp.mean(d, axis=(1, 2))
    s1 = _silu(pooled @ p["w1"] + p["b1"])
    gate = jax.nn.sigmoid(s1 @ p["w2"] + p["b2"])
    dg = d * gate[:, None, None, :]
    out = jnp.einsum("nhwc,co->nhwo", dg, p["wp"])
    out = out * p["scale_p"] + p["bias_p"]
    if (in_ch == out_ch) and (stride == 1):
        out = out + x
    return jnp.transpose(out, (0, 3, 1, 2))


if __name__ == "__main__":
    # Small config: in=out=8, k=3, s=1, p=1, expand_ratio=4 -> hidden=32, reduced=2.
    # N=4 so batch_tile=2 and grid=2 (exercises the multi-sample path and keeps grid>=2).
    IN_CH, OUT_CH = 8, 8
    K, S, P = 3, 1, 1
    EXPAND_RATIO, REDUCTION = 4, 4
    N, H, W = 4, 16, 16

    key = jax.random.PRNGKey(0)
    k_x, k_p = jax.random.split(key)
    x = jax.random.normal(k_x, (N, IN_CH, H, W), jnp.float32)      # NCHW like PyTorch
    params = init_params(k_p, IN_CH, OUT_CH, K, EXPAND_RATIO, REDUCTION)

    cfg = dict(in_ch=IN_CH, out_ch=OUT_CH, kernel_size=K, stride=S, padding=P,
               expand_ratio=EXPAND_RATIO)

    out = jax.block_until_ready(inverted_residual_forward(x, params, **cfg))
    ref = jax.block_until_ready(reference_forward(x, params, **cfg))

    assert out.shape == (N, OUT_CH, H, W), out.shape
    err = float(jnp.max(jnp.abs(out - ref)))
    assert jnp.allclose(out, ref, rtol=1e-4, atol=1e-4), err

    print("KERNEL_OK")
</pallas_src>

<mosaic_0001>
module attributes {stable_mosaic.version = 11 : i64} {
  func.func @mbconv_kernel(%arg0: i32, %arg1: memref<2x16x16x8xf32, #tpu.memory_space<vmem>>, %arg2: memref<2x8x256xf32, #tpu.memory_space<vmem>>, %arg3: memref<72x32xf32, #tpu.memory_space<vmem>>, %arg4: memref<5x32xf32, #tpu.memory_space<vmem>>, %arg5: memref<9x32xf32, #tpu.memory_space<vmem>>, %arg6: memref<4x33xf32, #tpu.memory_space<vmem>>, %arg7: memref<8x32xf32, #tpu.memory_space<vmem>>, %arg8: memref<8x2xf32, #tpu.memory_space<vmem>>, %arg9: memref<2x8x256xf32, #tpu.memory_space<vmem>>, %arg10: memref<2x18x18x8xf32, #tpu.memory_space<vmem>>, %arg11: memref<2x18x18x32xf32, #tpu.memory_space<vmem>>) attributes {dimension_semantics = [#tpu.dimension_semantics<parallel>], iteration_bounds = array<i64: 2>, scalar_prefetch = 0 : i64, scratch_operands = 2 : i64, tpu.core_type = #tpu.core_type<tc>, window_params = [{transform_indices = @transform_0, window_bounds = array<i64: 2, 16, 16, 8>}, {transform_indices = @transform_1, window_bounds = array<i64: 2, 8, 256>}, {pipeline_mode = #tpu.pipeline_mode<synchronous>, transform_indices = @transform_2, window_bounds = array<i64: 72, 32>}, {pipeline_mode = #tpu.pipeline_mode<synchronous>, transform_indices = @transform_3, window_bounds = array<i64: 5, 32>}, {pipeline_mode = #tpu.pipeline_mode<synchronous>, transform_indices = @transform_4, window_bounds = array<i64: 9, 32>}, {pipeline_mode = #tpu.pipeline_mode<synchronous>, transform_indices = @transform_5, window_bounds = array<i64: 4, 33>}, {pipeline_mode = #tpu.pipeline_mode<synchronous>, transform_indices = @transform_6, window_bounds = array<i64: 8, 32>}, {pipeline_mode = #tpu.pipeline_mode<synchronous>, transform_indices = @transform_7, window_bounds = array<i64: 8, 2>}, {transform_indices = @transform_8, window_bounds = array<i64: 2, 8, 256>}]} {
    %cst = arith.constant 0.000000e+00 : f32
    %0 = vector.broadcast %cst : f32 to vector<1x18x8xf32>
    %cst_0 = arith.constant 0.000000e+00 : f32
    %1 = vector.broadcast %cst_0 : f32 to vector<16x1x8xf32>
    %c0 = arith.constant 0 : index
    %c0_1 = arith.constant 0 : index
    %c0_2 = arith.constant 0 : index
    %c0_3 = arith.constant 0 : index
    %2 = vector.load %arg10[%c0, %c0_1, %c0_2, %c0_3] : memref<2x18x18x8xf32, #tpu.memory_space<vmem>>, vector<1x1x18x8xf32>
    %3 = vector.shape_cast %2 : vector<1x1x18x8xf32> to vector<1x18x8xf32>
    %4 = vector.shape_cast %0 : vector<1x18x8xf32> to vector<1x1x18x8xf32>
    tpu.vector_store %arg10[%c0, %c0_1, %c0_2, %c0_3], %4 {strides = array<i32>} : memref<2x18x18x8xf32, #tpu.memory_space<vmem>>, vector<1x1x18x8xf32>,
    %c0_4 = arith.constant 0 : index
    %c17 = arith.constant 17 : index
    %c0_5 = arith.constant 0 : index
    %c0_6 = arith.constant 0 : index
    %5 = vector.load %arg10[%c0_4, %c17, %c0_5, %c0_6] : memref<2x18x18x8xf32, #tpu.memory_space<vmem>>, vector<1x1x18x8xf32>
    %6 = vector.shape_cast %5 : vector<1x1x18x8xf32> to vector<1x18x8xf32>
    %7 = vector.shape_cast %0 : vector<1x18x8xf32> to vector<1x1x18x8xf32>
    tpu.vector_store %arg10[%c0_4, %c17, %c0_5, %c0_6], %7 {strides = array<i32>} : memref<2x18x18x8xf32, #tpu.memory_space<vmem>>, vector<1x1x18x8xf32>,
    %c0_7 = arith.constant 0 : index
    %c1 = arith.constant 1 : index
    %c0_8 = arith.constant 0 : index
    %c0_9 = arith.constant 0 : index
    %8 = vector.load %arg10[%c0_7, %c1, %c0_8, %c0_9] : memref<2x18x18x8xf32, #tpu.memory_space<vmem>>, vector<1x16x1x8xf32>
    %9 = vector.shape_cast %8 : vector<1x16x1x8xf32> to vector<16x1x8xf32>
    %10 = vector.shape_cast %1 : vector<16x1x8xf32> to vector<1x16x1x8xf32>
    tpu.vector_store %arg10[%c0_7, %c1, %c0_8, %c0_9], %10 {strides = array<i32>} : memref<2x18x18x8xf32, #tpu.memory_space<vmem>>, vector<1x16x1x8xf32>,
    %c0_10 = arith.constant 0 : index
    %c1_11 = arith.constant 1 : index
    %c17_12 = arith.constant 17 : index
    %c0_13 = arith.constant 0 : index
    %11 = vector.load %arg10[%c0_10, %c1_11, %c17_12, %c0_13] : memref<2x18x18x8xf32, #tpu.memory_space<vmem>>, vector<1x16x1x8xf32>
    %12 = vector.shape_cast %11 : vector<1x16x1x8xf32> to vector<16x1x8xf32>
    %13 = vector.shape_cast %1 : vector<16x1x8xf32> to vector<1x16x1x8xf32>
    tpu.vector_store %arg10[%c0_10, %c1_11, %c17_12, %c0_13], %13 {strides = array<i32>} : memref<2x18x18x8xf32, #tpu.memory_space<vmem>>, vector<1x16x1x8xf32>,
    %c0_14 = arith.constant 0 : index
    %c0_15 = arith.constant 0 : index
    %c0_16 = arith.constant 0 : index
    %c0_17 = arith.constant 0 : index
    %14 = vector.load %arg1[%c0_14, %c0_15, %c0_16, %c0_17] : memref<2x16x16x8xf32, #tpu.memory_space<vmem>>, vector<1x16x16x8xf32>
    %15 = vector.shape_cast %14 : vector<1x16x16x8xf32> to vector<16x16x8xf32>
    %c0_18 = arith.constant 0 : index
    %c1_19 = arith.constant 1 : index
    %c1_20 = arith.constant 1 : index
    %c0_21 = arith.constant 0 : index
    %16 = vector.load %arg10[%c0_18, %c1_19, %c1_20, %c0_21] : memref<2x18x18x8xf32, #tpu.memory_space<vmem>>, vector<1x16x16x8xf32>
    %17 = vector.shape_cast %16 : vector<1x16x16x8xf32> to vector<16x16x8xf32>
    %18 = vector.shape_cast %15 : vector<16x16x8xf32> to vector<1x16x16x8xf32>
    tpu.vector_store %arg10[%c0_18, %c1_19, %c1_20, %c0_21], %18 {strides = array<i32>} : memref<2x18x18x8xf32, #tpu.memory_space<vmem>>, vector<1x16x16x8xf32>,
    %c1_22 = arith.constant 1 : index
    %c0_23 = arith.constant 0 : index
    %c0_24 = arith.constant 0 : index
    %c0_25 = arith.constant 0 : index
    %19 = vector.load %arg10[%c1_22, %c0_23, %c0_24, %c0_25] : memref<2x18x18x8xf32, #tpu.memory_space<vmem>>, vector<1x1x18x8xf32>
    %20 = vector.shape_cast %19 : vector<1x1x18x8xf32> to vector<1x18x8xf32>
    %21 = vector.shape_cast %0 : vector<1x18x8xf32> to vector<1x1x18x8xf32>
    tpu.vector_store %arg10[%c1_22, %c0_23, %c0_24, %c0_25], %21 {strides = array<i32>} : memref<2x18x18x8xf32, #tpu.memory_space<vmem>>, vector<1x1x18x8xf32>,
    %c1_26 = arith.constant 1 : index
    %c17_27 = arith.constant 17 : index
    %c0_28 = arith.constant 0 : index
    %c0_29 = arith.constant 0 : index
    %22 = vector.load %arg10[%c1_26, %c17_27, %c0_28, %c0_29] : memref<2x18x18x8xf32, #tpu.memory_space<vmem>>, vector<1x1x18x8xf32>
    %23 = vector.shape_cast %22 : vector<1x1x18x8xf32> to vector<1x18x8xf32>
    %24 = vector.shape_cast %0 : vector<1x18x8xf32> to vector<1x1x18x8xf32>
    tpu.vector_store %arg10[%c1_26, %c17_27, %c0_28, %c0_29], %24 {strides = array<i32>} : memref<2x18x18x8xf32, #tpu.memory_space<vmem>>, vector<1x1x18x8xf32>,
    %c1_30 = arith.constant 1 : index
    %c1_31 = arith.constant 1 : index
    %c0_32 = arith.constant 0 : index
    %c0_33 = arith.constant 0 : index
    %25 = vector.load %arg10[%c1_30, %c1_31, %c0_32, %c0_33] : memref<2x18x18x8xf32, #tpu.memory_space<vmem>>, vector<1x16x1x8xf32>
    %26 = vector.shape_cast %25 : vector<1x16x1x8xf32> to vector<16x1x8xf32>
    %27 = vector.shape_cast %1 : vector<16x1x8xf32> to vector<1x16x1x8xf32>
    tpu.vector_store %arg10[%c1_30, %c1_31, %c0_32, %c0_33], %27 {strides = array<i32>} : memref<2x18x18x8xf32, #tpu.memory_space<vmem>>, vector<1x16x1x8xf32>,
    %c1_34 = arith.constant 1 : index
    %c1_35 = arith.constant 1 : index
    %c17_36 = arith.constant 17 : index
    %c0_37 = arith.constant 0 : index
    %28 = vector.load %arg10[%c1_34, %c1_35, %c17_36, %c0_37] : memref<2x18x18x8xf32, #tpu.memory_space<vmem>>, vector<1x16x1x8xf32>
    %29 = vector.shape_cast %28 : vector<1x16x1x8xf32> to vector<16x1x8xf32>
    %30 = vector.shape_cast %1 : vector<16x1x8xf32> to vector<1x16x1x8xf32>
    tpu.vector_store %arg10[%c1_34, %c1_35, %c17_36, %c0_37], %30 {strides = array<i32>} : memref<2x18x18x8xf32, #tpu.memory_space<vmem>>, vector<1x16x1x8xf32>,
    %c1_38 = arith.constant 1 : index
    %c0_39 = arith.constant 0 : index
    %c0_40 = arith.constant 0 : index
    %c0_41 = arith.constant 0 : index
    %31 = vector.load %arg1[%c1_38, %c0_39, %c0_40, %c0_41] : memref<2x16x16x8xf32, #tpu.memory_space<vmem>>, vector<1x16x16x8xf32>
    %32 = vector.shape_cast %31 : vector<1x16x16x8xf32> to vector<16x16x8xf32>
    %c1_42 = arith.constant 1 : index
    %c1_43 = arith.constant 1 : index
    %c1_44 = arith.constant 1 : index
    %c0_45 = arith.constant 0 : index
    %33 = vector.load %arg10[%c1_42, %c1_43, %c1_44, %c0_45] : memref<2x18x18x8xf32, #tpu.memory_space<vmem>>, vector<1x16x16x8xf32>
    %34 = vector.shape_cast %33 : vector<1x16x16x8xf32> to vector<16x16x8xf32>
    %35 = vector.shape_cast %32 : vector<16x16x8xf32> to vector<1x16x16x8xf32>
    tpu.vector_store %arg10[%c1_42, %c1_43, %c1_44, %c0_45], %35 {strides = array<i32>} : memref<2x18x18x8xf32, #tpu.memory_space<vmem>>, vector<1x16x16x8xf32>,
    %cst_46 = arith.constant 0.000000e+00 : f32
    %36 = vector.broadcast %cst_46 : f32 to vector<512x32xf32>
    %c0_47 = arith.constant 0 : index
    %c0_48 = arith.constant 0 : index
    %c0_49 = arith.constant 0 : index
    %c0_50 = arith.constant 0 : index
    %37 = vector.load %arg10[%c0_47, %c0_48, %c0_49, %c0_50] : memref<2x18x18x8xf32, #tpu.memory_space<vmem>>, vector<1x16x16x8xf32>
    %38 = vector.shape_cast %37 : vector<1x16x16x8xf32> to vector<16x16x8xf32>
    %39 = vector.shape_cast %38 : vector<16x16x8xf32> to vector<256x8xf32>
    %c1_51 = arith.constant 1 : index
    %c0_52 = arith.constant 0 : index
    %c0_53 = arith.constant 0 : index
    %c0_54 = arith.constant 0 : index
    %40 = vector.load %arg10[%c1_51, %c0_52, %c0_53, %c0_54] : memref<2x18x18x8xf32, #tpu.memory_space<vmem>>, vector<1x16x16x8xf32>
    %41 = vector.shape_cast %40 : vector<1x16x16x8xf32> to vector<16x16x8xf32>
    %42 = vector.shape_cast %41 : vector<16x16x8xf32> to vector<256x8xf32>
    %43 = tpu.concatenate %39, %42 in 0 : vector<256x8xf32>, vector<256x8xf32> -> vector<512x8xf32>
    %c0_55 = arith.constant 0 : index
    %c0_56 = arith.constant 0 : index
    %44 = vector.load %arg3[%c0_55, %c0_56] : memref<72x32xf32, #tpu.memory_space<vmem>>, vector<8x32xf32>
    %cst_57 = arith.constant dense<0.000000e+00> : vector<512x32xf32>
    %45 = tpu.matmul %43, %44, %cst_57 {dimension_numbers = #tpu.dot_dimension_numbers<[1], [0], [0], [1], [0, 0, 1, 1], [], []>} : vector<512x8xf32>, vector<8x32xf32>, vector<512x32xf32> -> vector<512x32xf32>
    %46 = arith.addf %36, %45 : vector<512x32xf32>
    %c0_58 = arith.constant 0 : index
    %c0_59 = arith.constant 0 : index
    %c1_60 = arith.constant 1 : index
    %c0_61 = arith.constant 0 : index
    %47 = vector.load %arg10[%c0_58, %c0_59, %c1_60, %c0_61] : memref<2x18x18x8xf32, #tpu.memory_space<vmem>>, vector<1x16x16x8xf32>
    %48 = vector.shape_cast %47 : vector<1x16x16x8xf32> to vector<16x16x8xf32>
    %49 = vector.shape_cast %48 : vector<16x16x8xf32> to vector<256x8xf32>
    %c1_62 = arith.constant 1 : index
    %c0_63 = arith.constant 0 : index
    %c1_64 = arith.constant 1 : index
    %c0_65 = arith.constant 0 : index
    %50 = vector.load %arg10[%c1_62, %c0_63, %c1_64, %c0_65] : memref<2x18x18x8xf32, #tpu.memory_space<vmem>>, vector<1x16x16x8xf32>
    %51 = vector.shape_cast %50 : vector<1x16x16x8xf32> to vector<16x16x8xf32>
    %52 = vector.shape_cast %51 : vector<16x16x8xf32> to vector<256x8xf32>
    %53 = tpu.concatenate %49, %52 in 0 : vector<256x8xf32>, vector<256x8xf32> -> vector<512x8xf32>
    %c8 = arith.constant 8 : index
    %c0_66 = arith.constant 0 : index
    %54 = vector.load %arg3[%c8, %c0_66] : memref<72x32xf32, #tpu.memory_space<vmem>>, vector<8x32xf32>
    %cst_67 = arith.constant dense<0.000000e+00> : vector<512x32xf32>
    %55 = tpu.matmul %53, %54, %cst_67 {dimension_numbers = #tpu.dot_dimension_numbers<[1], [0], [0], [1], [0, 0, 1, 1], [], []>} : vector<512x8xf32>, vector<8x32xf32>, vector<512x32xf32> -> vector<512x32xf32>
    %56 = arith.addf %46, %55 : vector<512x32xf32>
    %c0_68 = arith.constant 0 : index
    %c0_69 = arith.constant 0 : index
    %c2 = arith.constant 2 : index
    %c0_70 = arith.constant 0 : index
    %57 = vector.load %arg10[%c0_68, %c0_69, %c2, %c0_70] : memref<2x18x18x8xf32, #tpu.memory_space<vmem>>, vector<1x16x16x8xf32>
    %58 = vector.shape_cast %57 : vector<1x16x16x8xf32> to vector<16x16x8xf32>
    %59 = vector.shape_cast %58 : vector<16x16x8xf32> to vector<256x8xf32>
    %c1_71 = arith.constant 1 : index
    %c0_72 = arith.constant 0 : index
    %c2_73 = arith.constant 2 : index
    %c0_74 = arith.constant 0 : index
    %60 = vector.load %arg10[%c1_71, %c0_72, %c2_73, %c0_74] : memref<2x18x18x8xf32, #tpu.memory_space<vmem>>, vector<1x16x16x8xf32>
    %61 = vector.shape_cast %60 : vector<1x16x16x8xf32> to vector<16x16x8xf32>
    %62 = vector.shape_cast %61 : vector<16x16x8xf32> to vector<256x8xf32>
    %63 = tpu.concatenate %59, %62 in 0 : vector<256x8xf32>, vector<256x8xf32> -> vector<512x8xf32>
    %c16 = arith.constant 16 : index
    %c0_75 = arith.constant 0 : index
    %64 = vector.load %arg3[%c16, %c0_75] : memref<72x32xf32, #tpu.memory_space<vmem>>, vector<8x32xf32>
    %cst_76 = arith.constant dense<0.000000e+00> : vector<512x32xf32>
    %65 = tpu.matmul %63, %64, %cst_76 {dimension_numbers = #tpu.dot_dimension_numbers<[1], [0], [0], [1], [0, 0, 1, 1], [], []>} : vector<512x8xf32>, vector<8x32xf32>, vector<512x32xf32> -> vector<512x32xf32>
    %66 = arith.addf %56, %65 : vector<512x32xf32>
    %c0_77 = arith.constant 0 : index
    %c1_78 = arith.constant 1 : index
    %c0_79 = arith.constant 0 : index
    %c0_80 = arith.constant 0 : index
    %67 = vector.load %arg10[%c0_77, %c1_78, %c0_79, %c0_80] : memref<2x18x18x8xf32, #tpu.memory_space<vmem>>, vector<1x16x16x8xf32>
    %68 = vector.shape_cast %67 : vector<1x16x16x8xf32> to vector<16x16x8xf32>
    %69 = vector.shape_cast %68 : vector<16x16x8xf32> to vector<256x8xf32>
    %c1_81 = arith.constant 1 : index
    %c1_82 = arith.constant 1 : index
    %c0_83 = arith.constant 0 : index
    %c0_84 = arith.constant 0 : index
    %70 = vector.load %arg10[%c1_81, %c1_82, %c0_83, %c0_84] : memref<2x18x18x8xf32, #tpu.memory_space<vmem>>, vector<1x16x16x8xf32>
    %71 = vector.shape_cast %70 : vector<1x16x16x8xf32> to vector<16x16x8xf32>
    %72 = vector.shape_cast %71 : vector<16x16x8xf32> to vector<256x8xf32>
    %73 = tpu.concatenate %69, %72 in 0 : vector<256x8xf32>, vector<256x8xf32> -> vector<512x8xf32>
    %c24 = arith.constant 24 : index
    %c0_85 = arith.constant 0 : index
    %74 = vector.load %arg3[%c24, %c0_85] : memref<72x32xf32, #tpu.memory_space<vmem>>, vector<8x32xf32>
    %cst_86 = arith.constant dense<0.000000e+00> : vector<512x32xf32>
    %75 = tpu.matmul %73, %74, %cst_86 {dimension_numbers = #tpu.dot_dimension_numbers<[1], [0], [0], [1], [0, 0, 1, 1], [], []>} : vector<512x8xf32>, vector<8x32xf32>, vector<512x32xf32> -> vector<512x32xf32>
    %76 = arith.addf %66, %75 : vector<512x32xf32>
    %c0_87 = arith.constant 0 : index
    %c1_88 = arith.constant 1 : index
    %c1_89 = arith.constant 1 : index
    %c0_90 = arith.constant 0 : index
    %77 = vector.load %arg10[%c0_87, %c1_88, %c1_89, %c0_90] : memref<2x18x18x8xf32, #tpu.memory_space<vmem>>, vector<1x16x16x8xf32>
    %78 = vector.shape_cast %77 : vector<1x16x16x8xf32> to vector<16x16x8xf32>
    %79 = vector.shape_cast %78 : vector<16x16x8xf32> to vector<256x8xf32>
    %c1_91 = arith.constant 1 : index
    %c1_92 = arith.constant 1 : index
    %c1_93 = arith.constant 1 : index
    %c0_94 = arith.constant 0 : index
    %80 = vector.load %arg10[%c1_91, %c1_92, %c1_93, %c0_94] : memref<2x18x18x8xf32, #tpu.memory_space<vmem>>, vector<1x16x16x8xf32>
    %81 = vector.shape_cast %80 : vector<1x16x16x8xf32> to vector<16x16x8xf32>
    %82 = vector.shape_cast %81 : vector<16x16x8xf32> to vector<256x8xf32>
    %83 = tpu.concatenate %79, %82 in 0 : vector<256x8xf32>, vector<256x8xf32> -> vector<512x8xf32>
    %c32 = arith.constant 32 : index
    %c0_95 = arith.constant 0 : index
    %84 = vector.load %arg3[%c32, %c0_95] : memref<72x32xf32, #tpu.memory_space<vmem>>, vector<8x32xf32>
    %cst_96 = arith.constant dense<0.000000e+00> : vector<512x32xf32>
    %85 = tpu.matmul %83, %84, %cst_96 {dimension_numbers = #tpu.dot_dimension_numbers<[1], [0], [0], [1], [0, 0, 1, 1], [], []>} : vector<512x8xf32>, vector<8x32xf32>, vector<512x32xf32> -> vector<512x32xf32>
    %86 = arith.addf %76, %85 : vector<512x32xf32>
    %c0_97 = arith.constant 0 : index
    %c1_98 = arith.constant 1 : index
    %c2_99 = arith.constant 2 : index
    %c0_100 = arith.constant 0 : index
    %87 = vector.load %arg10[%c0_97, %c1_98, %c2_99, %c0_100] : memref<2x18x18x8xf32, #tpu.memory_space<vmem>>, vector<1x16x16x8xf32>
    %88 = vector.shape_cast %87 : vector<1x16x16x8xf32> to vector<16x16x8xf32>
    %89 = vector.shape_cast %88 : vector<16x16x8xf32> to vector<256x8xf32>
    %c1_101 = arith.constant 1 : index
    %c1_102 = arith.constant 1 : index
    %c2_103 = arith.constant 2 : index
    %c0_104 = arith.constant 0 : index
    %90 = vector.load %arg10[%c1_101, %c1_102, %c2_103, %c0_104] : memref<2x18x18x8xf32, #tpu.memory_space<vmem>>, vector<1x16x16x8xf32>
    %91 = vector.shape_cast %90 : vector<1x16x16x8xf32> to vector<16x16x8xf32>
    %92 = vector.shape_cast %91 : vector<16x16x8xf32> to vector<256x8xf32>
    %93 = tpu.concatenate %89, %92 in 0 : vector<256x8xf32>, vector<256x8xf32> -> vector<512x8xf32>
    %c40 = arith.constant 40 : index
    %c0_105 = arith.constant 0 : index
    %94 = vector.load %arg3[%c40, %c0_105] : memref<72x32xf32, #tpu.memory_space<vmem>>, vector<8x32xf32>
    %cst_106 = arith.constant dense<0.000000e+00> : vector<512x32xf32>
    %95 = tpu.matmul %93, %94, %cst_106 {dimension_numbers = #tpu.dot_dimension_numbers<[1], [0], [0], [1], [0, 0, 1, 1], [], []>} : vector<512x8xf32>, vector<8x32xf32>, vector<512x32xf32> -> vector<512x32xf32>
    %96 = arith.addf %86, %95 : vector<512x32xf32>
    %c0_107 = arith.constant 0 : index
    %c2_108 = arith.constant 2 : index
    %c0_109 = arith.constant 0 : index
    %c0_110 = arith.constant 0 : index
    %97 = vector.load %arg10[%c0_107, %c2_108, %c0_109, %c0_110] : memref<2x18x18x8xf32, #tpu.memory_space<vmem>>, vector<1x16x16x8xf32>
    %98 = vector.shape_cast %97 : vector<1x16x16x8xf32> to vector<16x16x8xf32>
    %99 = vector.shape_cast %98 : vector<16x16x8xf32> to vector<256x8xf32>
    %c1_111 = arith.constant 1 : index
    %c2_112 = arith.constant 2 : index
    %c0_113 = arith.constant 0 : index
    %c0_114 = arith.constant 0 : index
    %100 = vector.load %arg10[%c1_111, %c2_112, %c0_113, %c0_114] : memref<2x18x18x8xf32, #tpu.memory_space<vmem>>, vector<1x16x16x8xf32>
    %101 = vector.shape_cast %100 : vector<1x16x16x8xf32> to vector<16x16x8xf32>
    %102 = vector.shape_cast %101 : vector<16x16x8xf32> to vector<256x8xf32>
    %103 = tpu.concatenate %99, %102 in 0 : vector<256x8xf32>, vector<256x8xf32> -> vector<512x8xf32>
    %c48 = arith.constant 48 : index
    %c0_115 = arith.constant 0 : index
    %104 = vector.load %arg3[%c48, %c0_115] : memref<72x32xf32, #tpu.memory_space<vmem>>, vector<8x32xf32>
    %cst_116 = arith.constant dense<0.000000e+00> : vector<512x32xf32>
    %105 = tpu.matmul %103, %104, %cst_116 {dimension_numbers = #tpu.dot_dimension_numbers<[1], [0], [0], [1], [0, 0, 1, 1], [], []>} : vector<512x8xf32>, vector<8x32xf32>, vector<512x32xf32> -> vector<512x32xf32>
    %106 = arith.addf %96, %105 : vector<512x32xf32>
    %c0_117 = arith.constant 0 : index
    %c2_118 = arith.constant 2 : index
    %c1_119 = arith.constant 1 : index
    %c0_120 = arith.constant 0 : index
    %107 = vector.load %arg10[%c0_117, %c2_118, %c1_119, %c0_120] : memref<2x18x18x8xf32, #tpu.memory_space<vmem>>, vector<1x16x16x8xf32>
    %108 = vector.shape_cast %107 : vector<1x16x16x8xf32> to vector<16x16x8xf32>
    %109 = vector.shape_cast %108 : vector<16x16x8xf32> to vector<256x8xf32>
    %c1_121 = arith.constant 1 : index
    %c2_122 = arith.constant 2 : index
    %c1_123 = arith.constant 1 : index
    %c0_124 = arith.constant 0 : index
    %110 = vector.load %arg10[%c1_121, %c2_122, %c1_123, %c0_124] : memref<2x18x18x8xf32, #tpu.memory_space<vmem>>, vector<1x16x16x8xf32>
    %111 = vector.shape_cast %110 : vector<1x16x16x8xf32> to vector<16x16x8xf32>
    %112 = vector.shape_cast %111 : vector<16x16x8xf32> to vector<256x8xf32>
    %113 = tpu.concatenate %109, %112 in 0 : vector<256x8xf32>, vector<256x8xf32> -> vector<512x8xf32>
    %c56 = arith.constant 56 : index
    %c0_125 = arith.constant 0 : index
    %114 = vector.load %arg3[%c56, %c0_125] : memref<72x32xf32, #tpu.memory_space<vmem>>, vector<8x32xf32>
    %cst_126 = arith.constant dense<0.000000e+00> : vector<512x32xf32>
    %115 = tpu.matmul %113, %114, %cst_126 {dimension_numbers = #tpu.dot_dimension_numbers<[1], [0], [0], [1], [0, 0, 1, 1], [], []>} : vector<512x8xf32>, vector<8x32xf32>, vector<512x32xf32> -> vector<512x32xf32>
    %116 = arith.addf %106, %115 : vector<512x32xf32>
    %c0_127 = arith.constant 0 : index
    %c2_128 = arith.constant 2 : index
    %c2_129 = arith.constant 2 : index
    %c0_130 = arith.constant 0 : index
    %117 = vector.load %arg10[%c0_127, %c2_128, %c2_129, %c0_130] : memref<2x18x18x8xf32, #tpu.memory_space<vmem>>, vector<1x16x16x8xf32>
    %118 = vector.shape_cast %117 : vector<1x16x16x8xf32> to vector<16x16x8xf32>
    %119 = vector.shape_cast %118 : vector<16x16x8xf32> to vector<256x8xf32>
    %c1_131 = arith.constant 1 : index
    %c2_132 = arith.constant 2 : index
    %c2_133 = arith.constant 2 : index
    %c0_134 = arith.constant 0 : index
    %120 = vector.load %arg10[%c1_131, %c2_132, %c2_133, %c0_134] : memref<2x18x18x8xf32, #tpu.memory_space<vmem>>, vector<1x16x16x8xf32>
    %121 = vector.shape_cast %120 : vector<1x16x16x8xf32> to vector<16x16x8xf32>
    %122 = vector.shape_cast %121 : vector<16x16x8xf32> to vector<256x8xf32>
    %123 = tpu.concatenate %119, %122 in 0 : vector<256x8xf32>, vector<256x8xf32> -> vector<512x8xf32>
    %c64 = arith.constant 64 : index
    %c0_135 = arith.constant 0 : index
    %124 = vector.load %arg3[%c64, %c0_135] : memref<72x32xf32, #tpu.memory_space<vmem>>, vector<8x32xf32>
    %cst_136 = arith.constant dense<0.000000e+00> : vector<512x32xf32>
    %125 = tpu.matmul %123, %124, %cst_136 {dimension_numbers = #tpu.dot_dimension_numbers<[1], [0], [0], [1], [0, 0, 1, 1], [], []>} : vector<512x8xf32>, vector<8x32xf32>, vector<512x32xf32> -> vector<512x32xf32>
    %126 = arith.addf %116, %125 : vector<512x32xf32>
    %c0_137 = arith.constant 0 : index
    %c0_138 = arith.constant 0 : index
    %127 = vector.load %arg4[%c0_137, %c0_138] : memref<5x32xf32, #tpu.memory_space<vmem>>, vector<1x32xf32>
    %128 = vector.broadcast %127 : vector<1x32xf32> to vector<512x32xf32>
    %129 = arith.mulf %126, %128 : vector<512x32xf32>
    %c1_139 = arith.constant 1 : index
    %c0_140 = arith.constant 0 : index
    %130 = vector.load %arg4[%c1_139, %c0_140] : memref<5x32xf32, #tpu.memory_space<vmem>>, vector<1x32xf32>
    %131 = vector.broadcast %130 : vector<1x32xf32> to vector<512x32xf32>
    %132 = arith.addf %129, %131 : vector<512x32xf32>
    %133 = arith.negf %132 : vector<512x32xf32>
    %134 = math.exp %133 : vector<512x32xf32>
    %cst_141 = arith.constant 1.000000e+00 : f32
    %135 = vector.broadcast %cst_141 : f32 to vector<512x32xf32>
    %136 = arith.addf %135, %134 : vector<512x32xf32>
    %137 = arith.divf %135, %136 : vector<512x32xf32>
    %138 = arith.mulf %132, %137 : vector<512x32xf32>
    %c2_142 = arith.constant 2 : index
    %c0_143 = arith.constant 0 : index
    %139 = vector.load %arg4[%c2_142, %c0_143] : memref<5x32xf32, #tpu.memory_space<vmem>>, vector<1x32xf32>
    %c3 = arith.constant 3 : index
    %c0_144 = arith.constant 0 : index
    %140 = vector.load %arg4[%c3, %c0_144] : memref<5x32xf32, #tpu.memory_space<vmem>>, vector<1x32xf32>
    %c4 = arith.constant 4 : index
    %c0_145 = arith.constant 0 : index
    %141 = vector.load %arg4[%c4, %c0_145] : memref<5x32xf32, #tpu.memory_space<vmem>>, vector<1x32xf32>
    %c0_146 = arith.constant 0 : index
    %c0_147 = arith.constant 0 : index
    %142 = vector.load %arg5[%c0_146, %c0_147] : memref<9x32xf32, #tpu.memory_space<vmem>>, vector<9x32xf32>
    %c0_148 = arith.constant 0 : index
    %c0_149 = arith.constant 0 : index
    %143 = vector.load %arg6[%c0_148, %c0_149] : memref<4x33xf32, #tpu.memory_space<vmem>>, vector<2x33xf32>
    %c2_150 = arith.constant 2 : index
    %c0_151 = arith.constant 0 : index
    %144 = vector.load %arg6[%c2_150, %c0_151] : memref<4x33xf32, #tpu.memory_space<vmem>>, vector<2x32xf32>
    %145 = vector.extract_strided_slice %138 {offsets = [0, 0], sizes = [256, 32], strides = [1, 1]} : vector<512x32xf32> to vector<256x32xf32>
    %146 = vector.shape_cast %145 : vector<256x32xf32> to vector<16x16x32xf32>
    %cst_152 = arith.constant 0.000000e+00 : f32
    %147 = vector.broadcast %cst_152 : f32 to vector<1x18x32xf32>
    %cst_153 = arith.constant 0.000000e+00 : f32
    %148 = vector.broadcast %cst_153 : f32 to vector<16x1x32xf32>
    %c0_154 = arith.constant 0 : index
    %c0_155 = arith.constant 0 : index
    %c0_156 = arith.constant 0 : index
    %c0_157 = arith.constant 0 : index
    %149 = vector.load %arg11[%c0_154, %c0_155, %c0_156, %c0_157] : memref<2x18x18x32xf32, #tpu.memory_space<vmem>>, vector<1x1x18x32xf32>
    %150 = vector.shape_cast %149 : vector<1x1x18x32xf32> to vector<1x18x32xf32>
    %151 = vector.shape_cast %147 : vector<1x18x32xf32> to vector<1x1x18x32xf32>
    tpu.vector_store %arg11[%c0_154, %c0_155, %c0_156, %c0_157], %151 {strides = array<i32>} : memref<2x18x18x32xf32, #tpu.memory_space<vmem>>, vector<1x1x18x32xf32>,
    %c0_158 = arith.constant 0 : index
    %c17_159 = arith.constant 17 : index
    %c0_160 = arith.constant 0 : index
    %c0_161 = arith.constant 0 : index
    %152 = vector.load %arg11[%c0_158, %c17_159, %c0_160, %c0_161] : memref<2x18x18x32xf32, #tpu.memory_space<vmem>>, vector<1x1x18x32xf32>
    %153 = vector.shape_cast %152 : vector<1x1x18x32xf32> to vector<1x18x32xf32>
    %154 = vector.shape_cast %147 : vector<1x18x32xf32> to vector<1x1x18x32xf32>
    tpu.vector_store %arg11[%c0_158, %c17_159, %c0_160, %c0_161], %154 {strides = array<i32>} : memref<2x18x18x32xf32, #tpu.memory_space<vmem>>, vector<1x1x18x32xf32>,
    %c0_162 = arith.constant 0 : index
    %c1_163 = arith.constant 1 : index
    %c0_164 = arith.constant 0 : index
    %c0_165 = arith.constant 0 : index
    %155 = vector.load %arg11[%c0_162, %c1_163, %c0_164, %c0_165] : memref<2x18x18x32xf32, #tpu.memory_space<vmem>>, vector<1x16x1x32xf32>
    %156 = vector.shape_cast %155 : vector<1x16x1x32xf32> to vector<16x1x32xf32>
    %157 = vector.shape_cast %148 : vector<16x1x32xf32> to vector<1x16x1x32xf32>
    tpu.vector_store %arg11[%c0_162, %c1_163, %c0_164, %c0_165], %157 {strides = array<i32>} : memref<2x18x18x32xf32, #tpu.memory_space<vmem>>, vector<1x16x1x32xf32>,
    %c0_166 = arith.constant 0 : index
    %c1_167 = arith.constant 1 : index
    %c17_168 = arith.constant 17 : index
    %c0_169 = arith.constant 0 : index
    %158 = vector.load %arg11[%c0_166, %c1_167, %c17_168, %c0_169] : memref<2x18x18x32xf32, #tpu.memory_space<vmem>>, vector<1x16x1x32xf32>
    %159 = vector.shape_cast %158 : vector<1x16x1x32xf32> to vector<16x1x32xf32>
    %160 = vector.shape_cast %148 : vector<16x1x32xf32> to vector<1x16x1x32xf32>
    tpu.vector_store %arg11[%c0_166, %c1_167, %c17_168, %c0_169], %160 {strides = array<i32>} : memref<2x18x18x32xf32, #tpu.memory_space<vmem>>, vector<1x16x1x32xf32>,
    %c0_170 = arith.constant 0 : index
    %c1_171 = arith.constant 1 : index
    %c1_172 = arith.constant 1 : index
    %c0_173 = arith.constant 0 : index
    %161 = vector.load %arg11[%c0_170, %c1_171, %c1_172, %c0_173] : memref<2x18x18x32xf32, #tpu.memory_space<vmem>>, vector<1x16x16x32xf32>
    %162 = vector.shape_cast %161 : vector<1x16x16x32xf32> to vector<16x16x32xf32>
    %163 = vector.shape_cast %146 : vector<16x16x32xf32> to vector<1x16x16x32xf32>
    tpu.vector_store %arg11[%c0_170, %c1_171, %c1_172, %c0_173], %163 {strides = array<i32>} : memref<2x18x18x32xf32, #tpu.memory_space<vmem>>, vector<1x16x16x32xf32>,
    %cst_174 = arith.constant 0.000000e+00 : f32
    %164 = vector.broadcast %cst_174 : f32 to vector<16x16x32xf32>
    %c0_175 = arith.constant 0 : index
    %c0_176 = arith.constant 0 : index
    %c0_177 = arith.constant 0 : index
    %c0_178 = arith.constant 0 : index
    %165 = vector.load %arg11[%c0_175, %c0_176, %c0_177, %c0_178] : memref<2x18x18x32xf32, #tpu.memory_space<vmem>>, vector<1x16x16x32xf32>
    %166 = vector.shape_cast %165 : vector<1x16x16x32xf32> to vector<16x16x32xf32>
    %167 = vector.extract_strided_slice %142 {offsets = [0, 0], sizes = [1, 32], strides = [1, 1]} : vector<9x32xf32> to vector<1x32xf32>
    %168 = vector.shape_cast %167 : vector<1x32xf32> to vector<1x1x32xf32>
    %169 = vector.broadcast %168 : vector<1x1x32xf32> to vector<16x16x32xf32>
    %170 = arith.mulf %166, %169 : vector<16x16x32xf32>
    %171 = arith.addf %164, %170 : vector<16x16x32xf32>
    %c0_179 = arith.constant 0 : index
    %c0_180 = arith.constant 0 : index
    %c1_181 = arith.constant 1 : index
    %c0_182 = arith.constant 0 : index
    %172 = vector.load %arg11[%c0_179, %c0_180, %c1_181, %c0_182] : memref<2x18x18x32xf32, #tpu.memory_space<vmem>>, vector<1x16x16x32xf32>
    %173 = vector.shape_cast %172 : vector<1x16x16x32xf32> to vector<16x16x32xf32>
    %174 = vector.extract_strided_slice %142 {offsets = [1, 0], sizes = [1, 32], strides = [1, 1]} : vector<9x32xf32> to vector<1x32xf32>
    %175 = vector.shape_cast %174 : vector<1x32xf32> to vector<1x1x32xf32>
    %176 = vector.broadcast %175 : vector<1x1x32xf32> to vector<16x16x32xf32>
    %177 = arith.mulf %173, %176 : vector<16x16x32xf32>
    %178 = arith.addf %171, %177 : vector<16x16x32xf32>
    %c0_183 = arith.constant 0 : index
    %c0_184 = arith.constant 0 : index
    %c2_185 = arith.constant 2 : index
    %c0_186 = arith.constant 0 : index
    %179 = vector.load %arg11[%c0_183, %c0_184, %c2_185, %c0_186] : memref<2x18x18x32xf32, #tpu.memory_space<vmem>>, vector<1x16x16x32xf32>
    %180 = vector.shape_cast %179 : vector<1x16x16x32xf32> to vector<16x16x32xf32>
    %181 = vector.extract_strided_slice %142 {offsets = [2, 0], sizes = [1, 32], strides = [1, 1]} : vector<9x32xf32> to vector<1x32xf32>
    %182 = vector.shape_cast %181 : vector<1x32xf32> to vector<1x1x32xf32>
    %183 = vector.broadcast %182 : vector<1x1x32xf32> to vector<16x16x32xf32>
    %184 = arith.mulf %180, %183 : vector<16x16x32xf32>
    %185 = arith.addf %178, %184 : vector<16x16x32xf32>
    %c0_187 = arith.constant 0 : index
    %c1_188 = arith.constant 1 : index
    %c0_189 = arith.constant 0 : index
    %c0_190 = arith.constant 0 : index
    %186 = vector.load %arg11[%c0_187, %c1_188, %c0_189, %c0_190] : memref<2x18x18x32xf32, #tpu.memory_space<vmem>>, vector<1x16x16x32xf32>
    %187 = vector.shape_cast %186 : vector<1x16x16x32xf32> to vector<16x16x32xf32>
    %188 = vector.extract_strided_slice %142 {offsets = [3, 0], sizes = [1, 32], strides = [1, 1]} : vector<9x32xf32> to vector<1x32xf32>
    %189 = vector.shape_cast %188 : vector<1x32xf32> to vector<1x1x32xf32>
    %190 = vector.broadcast %189 : vector<1x1x32xf32> to vector<16x16x32xf32>
    %191 = arith.mulf %187, %190 : vector<16x16x32xf32>
    %192 = arith.addf %185, %191 : vector<16x16x32xf32>
    %c0_191 = arith.constant 0 : index
    %c1_192 = arith.constant 1 : index
    %c1_193 = arith.constant 1 : index
    %c0_194 = arith.constant 0 : index
    %193 = vector.load %arg11[%c0_191, %c1_192, %c1_193, %c0_194] : memref<2x18x18x32xf32, #tpu.memory_space<vmem>>, vector<1x16x16x32xf32>
    %194 = vector.shape_cast %193 : vector<1x16x16x32xf32> to vector<16x16x32xf32>
    %195 = vector.extract_strided_slice %142 {offsets = [4, 0], sizes = [1, 32], strides = [1, 1]} : vector<9x32xf32> to vector<1x32xf32>
    %196 = vector.shape_cast %195 : vector<1x32xf32> to vector<1x1x32xf32>
    %197 = vector.broadcast %196 : vector<1x1x32xf32> to vector<16x16x32xf32>
    %198 = arith.mulf %194, %197 : vector<16x16x32xf32>
    %199 = arith.addf %192, %198 : vector<16x16x32xf32>
    %c0_195 = arith.constant 0 : index
    %c1_196 = arith.constant 1 : index
    %c2_197 = arith.constant 2 : index
    %c0_198 = arith.constant 0 : index
    %200 = vector.load %arg11[%c0_195, %c1_196, %c2_197, %c0_198] : memref<2x18x18x32xf32, #tpu.memory_space<vmem>>, vector<1x16x16x32xf32>
    %201 = vector.shape_cast %200 : vector<1x16x16x32xf32> to vector<16x16x32xf32>
    %202 = vector.extract_strided_slice %142 {offsets = [5, 0], sizes = [1, 32], strides = [1, 1]} : vector<9x32xf32> to vector<1x32xf32>
    %203 = vector.shape_cast %202 : vector<1x32xf32> to vector<1x1x32xf32>
    %204 = vector.broadcast %203 : vector<1x1x32xf32> to vector<16x16x32xf32>
    %205 = arith.mulf %201, %204 : vector<16x16x32xf32>
    %206 = arith.addf %199, %205 : vector<16x16x32xf32>
    %c0_199 = arith.constant 0 : index
    %c2_200 = arith.constant 2 : index
    %c0_201 = arith.constant 0 : index
    %c0_202 = arith.constant 0 : index
    %207 = vector.load %arg11[%c0_199, %c2_200, %c0_201, %c0_202] : memref<2x18x18x32xf32, #tpu.memory_space<vmem>>, vector<1x16x16x32xf32>
    %208 = vector.shape_cast %207 : vector<1x16x16x32xf32> to vector<16x16x32xf32>
    %209 = vector.extract_strided_slice %142 {offsets = [6, 0], sizes = [1, 32], strides = [1, 1]} : vector<9x32xf32> to vector<1x32xf32>
    %210 = vector.shape_cast %209 : vector<1x32xf32> to vector<1x1x32xf32>
    %211 = vector.broadcast %210 : vector<1x1x32xf32> to vector<16x16x32xf32>
    %212 = arith.mulf %208, %211 : vector<16x16x32xf32>
    %213 = arith.addf %206, %212 : vector<16x16x32xf32>
    %c0_203 = arith.constant 0 : index
    %c2_204 = arith.constant 2 : index
    %c1_205 = arith.constant 1 : index
    %c0_206 = arith.constant 0 : index
    %214 = vector.load %arg11[%c0_203, %c2_204, %c1_205, %c0_206] : memref<2x18x18x32xf32, #tpu.memory_space<vmem>>, vector<1x16x16x32xf32>
    %215 = vector.shape_cast %214 : vector<1x16x16x32xf32> to vector<16x16x32xf32>
    %216 = vector.extract_strided_slice %142 {offsets = [7, 0], sizes = [1, 32], strides = [1, 1]} : vector<9x32xf32> to vector<1x32xf32>
    %217 = vector.shape_cast %216 : vector<1x32xf32> to vector<1x1x32xf32>
    %218 = vector.broadcast %217 : vector<1x1x32xf32> to vector<16x16x32xf32>
    %219 = arith.mulf %215, %218 : vector<16x16x32xf32>
    %220 = arith.addf %213, %219 : vector<16x16x32xf32>
    %c0_207 = arith.constant 0 : index
    %c2_208 = arith.constant 2 : index
    %c2_209 = arith.constant 2 : index
    %c0_210 = arith.constant 0 : index
    %221 = vector.load %arg11[%c0_207, %c2_208, %c2_209, %c0_210] : memref<2x18x18x32xf32, #tpu.memory_space<vmem>>, vector<1x16x16x32xf32>
    %222 = vector.shape_cast %221 : vector<1x16x16x32xf32> to vector<16x16x32xf32>
    %223 = vector.extract_strided_slice %142 {offsets = [8, 0], sizes = [1, 32], strides = [1, 1]} : vector<9x32xf32> to vector<1x32xf32>
    %224 = vector.shape_cast %223 : vector<1x32xf32> to vector<1x1x32xf32>
    %225 = vector.broadcast %224 : vector<1x1x32xf32> to vector<16x16x32xf32>
    %226 = arith.mulf %222, %225 : vector<16x16x32xf32>
    %227 = arith.addf %220, %226 : vector<16x16x32xf32>
    %228 = vector.shape_cast %139 : vector<1x32xf32> to vector<1x1x32xf32>
    %229 = vector.broadcast %228 : vector<1x1x32xf32> to vector<16x16x32xf32>
    %230 = arith.mulf %227, %229 : vector<16x16x32xf32>
    %231 = vector.shape_cast %140 : vector<1x32xf32> to vector<1x1x32xf32>
    %232 = vector.broadcast %231 : vector<1x1x32xf32> to vector<16x16x32xf32>
    %233 = arith.addf %230, %232 : vector<16x16x32xf32>
    %234 = arith.negf %233 : vector<16x16x32xf32>
    %235 = math.exp %234 : vector<16x16x32xf32>
    %cst_211 = arith.constant 1.000000e+00 : f32
    %236 = vector.broadcast %cst_211 : f32 to vector<16x16x32xf32>
    %237 = arith.addf %236, %235 : vector<16x16x32xf32>
    %238 = arith.divf %236, %237 : vector<16x16x32xf32>
    %239 = arith.mulf %233, %238 : vector<16x16x32xf32>
    %240 = vector.shape_cast %239 : vector<16x16x32xf32> to vector<256x32xf32>
    %cst_212 = arith.constant dense<0.000000e+00> : vector<32xf32>
    %241 = vector.multi_reduction <add>, %240, %cst_212 [0] : vector<256x32xf32> to vector<32xf32>
    %242 = vector.shape_cast %241 : vector<32xf32> to vector<1x32xf32>
    %cst_213 = arith.constant 3.906250e-03 : f32
    %243 = vector.broadcast %cst_213 : f32 to vector<1x32xf32>
    %244 = arith.mulf %242, %243 : vector<1x32xf32>
    %245 = vector.extract_strided_slice %143 {offsets = [0, 0], sizes = [2, 32], strides = [1, 1]} : vector<2x33xf32> to vector<2x32xf32>
    %246 = vector.broadcast %244 : vector<1x32xf32> to vector<2x32xf32>
    %247 = arith.mulf %245, %246 : vector<2x32xf32>
    %cst_214 = arith.constant dense<0.000000e+00> : vector<2xf32>
    %248 = vector.multi_reduction <add>, %247, %cst_214 [1] : vector<2x32xf32> to vector<2xf32>
    %249 = vector.shape_cast %248 : vector<2xf32> to vector<2x1xf32>
    %250 = vector.extract_strided_slice %143 {offsets = [0, 32], sizes = [2, 1], strides = [1, 1]} : vector<2x33xf32> to vector<2x1xf32>
    %251 = arith.addf %249, %250 : vector<2x1xf32>
    %252 = arith.negf %251 : vector<2x1xf32>
    %253 = math.exp %252 : vector<2x1xf32>
    %cst_215 = arith.constant 1.000000e+00 : f32
    %254 = vector.broadcast %cst_215 : f32 to vector<2x1xf32>
    %255 = arith.addf %254, %253 : vector<2x1xf32>
    %256 = arith.divf %254, %255 : vector<2x1xf32>
    %257 = arith.mulf %251, %256 : vector<2x1xf32>
    %258 = vector.broadcast %257 : vector<2x1xf32> to vector<2x32xf32>
    %259 = arith.mulf %144, %258 : vector<2x32xf32>
    %cst_216 = arith.constant dense<0.000000e+00> : vector<32xf32>
    %260 = vector.multi_reduction <add>, %259, %cst_216 [0] : vector<2x32xf32> to vector<32xf32>
    %261 = vector.shape_cast %260 : vector<32xf32> to vector<1x32xf32>
    %262 = arith.addf %261, %141 : vector<1x32xf32>
    %263 = arith.negf %262 : vector<1x32xf32>
    %264 = math.exp %263 : vector<1x32xf32>
    %cst_217 = arith.constant 1.000000e+00 : f32
    %265 = vector.broadcast %cst_217 : f32 to vector<1x32xf32>
    %266 = arith.addf %265, %264 : vector<1x32xf32>
    %267 = arith.divf %265, %266 : vector<1x32xf32>
    %268 = vector.broadcast %267 : vector<1x32xf32> to vector<256x32xf32>
    %269 = arith.mulf %240, %268 : vector<256x32xf32>
    %270 = vector.extract_strided_slice %138 {offsets = [256, 0], sizes = [256, 32], strides = [1, 1]} : vector<512x32xf32> to vector<256x32xf32>
    %271 = vector.shape_cast %270 : vector<256x32xf32> to vector<16x16x32xf32>
    %cst_218 = arith.constant 0.000000e+00 : f32
    %272 = vector.broadcast %cst_218 : f32 to vector<1x18x32xf32>
    %cst_219 = arith.constant 0.000000e+00 : f32
    %273 = vector.broadcast %cst_219 : f32 to vector<16x1x32xf32>
    %c1_220 = arith.constant 1 : index
    %c0_221 = arith.constant 0 : index
    %c0_222 = arith.constant 0 : index
    %c0_223 = arith.constant 0 : index
    %274 = vector.load %arg11[%c1_220, %c0_221, %c0_222, %c0_223] : memref<2x18x18x32xf32, #tpu.memory_space<vmem>>, vector<1x1x18x32xf32>
    %275 = vector.shape_cast %274 : vector<1x1x18x32xf32> to vector<1x18x32xf32>
    %276 = vector.shape_cast %272 : vector<1x18x32xf32> to vector<1x1x18x32xf32>
    tpu.vector_store %arg11[%c1_220, %c0_221, %c0_222, %c0_223], %276 {strides = array<i32>} : memref<2x18x18x32xf32, #tpu.memory_space<vmem>>, vector<1x1x18x32xf32>,
    %c1_224 = arith.constant 1 : index
    %c17_225 = arith.constant 17 : index
    %c0_226 = arith.constant 0 : index
    %c0_227 = arith.constant 0 : index
    %277 = vector.load %arg11[%c1_224, %c17_225, %c0_226, %c0_227] : memref<2x18x18x32xf32, #tpu.memory_space<vmem>>, vector<1x1x18x32xf32>
    %278 = vector.shape_cast %277 : vector<1x1x18x32xf32> to vector<1x18x32xf32>
    %279 = vector.shape_cast %272 : vector<1x18x32xf32> to vector<1x1x18x32xf32>
    tpu.vector_store %arg11[%c1_224, %c17_225, %c0_226, %c0_227], %279 {strides = array<i32>} : memref<2x18x18x32xf32, #tpu.memory_space<vmem>>, vector<1x1x18x32xf32>,
    %c1_228 = arith.constant 1 : index
    %c1_229 = arith.constant 1 : index
    %c0_230 = arith.constant 0 : index
    %c0_231 = arith.constant 0 : index
    %280 = vector.load %arg11[%c1_228, %c1_229, %c0_230, %c0_231] : memref<2x18x18x32xf32, #tpu.memory_space<vmem>>, vector<1x16x1x32xf32>
    %281 = vector.shape_cast %280 : vector<1x16x1x32xf32> to vector<16x1x32xf32>
    %282 = vector.shape_cast %273 : vector<16x1x32xf32> to vector<1x16x1x32xf32>
    tpu.vector_store %arg11[%c1_228, %c1_229, %c0_230, %c0_231], %282 {strides = array<i32>} : memref<2x18x18x32xf32, #tpu.memory_space<vmem>>, vector<1x16x1x32xf32>,
    %c1_232 = arith.constant 1 : index
    %c1_233 = arith.constant 1 : index
    %c17_234 = arith.constant 17 : index
    %c0_235 = arith.constant 0 : index
    %283 = vector.load %arg11[%c1_232, %c1_233, %c17_234, %c0_235] : memref<2x18x18x32xf32, #tpu.memory_space<vmem>>, vector<1x16x1x32xf32>
    %284 = vector.shape_cast %283 : vector<1x16x1x32xf32> to vector<16x1x32xf32>
    %285 = vector.shape_cast %273 : vector<16x1x32xf32> to vector<1x16x1x32xf32>
    tpu.vector_store %arg11[%c1_232, %c1_233, %c17_234, %c0_235], %285 {strides = array<i32>} : memref<2x18x18x32xf32, #tpu.memory_space<vmem>>, vector<1x16x1x32xf32>,
    %c1_236 = arith.constant 1 : index
    %c1_237 = arith.constant 1 : index
    %c1_238 = arith.constant 1 : index
    %c0_239 = arith.constant 0 : index
    %286 = vector.load %arg11[%c1_236, %c1_237, %c1_238, %c0_239] : memref<2x18x18x32xf32, #tpu.memory_space<vmem>>, vector<1x16x16x32xf32>
    %287 = vector.shape_cast %286 : vector<1x16x16x32xf32> to vector<16x16x32xf32>
    %288 = vector.shape_cast %271 : vector<16x16x32xf32> to vector<1x16x16x32xf32>
    tpu.vector_store %arg11[%c1_236, %c1_237, %c1_238, %c0_239], %288 {strides = array<i32>} : memref<2x18x18x32xf32, #tpu.memory_space<vmem>>, vector<1x16x16x32xf32>,
    %cst_240 = arith.constant 0.000000e+00 : f32
    %289 = vector.broadcast %cst_240 : f32 to vector<16x16x32xf32>
    %c1_241 = arith.constant 1 : index
    %c0_242 = arith.constant 0 : index
    %c0_243 = arith.constant 0 : index
    %c0_244 = arith.constant 0 : index
    %290 = vector.load %arg11[%c1_241, %c0_242, %c0_243, %c0_244] : memref<2x18x18x32xf32, #tpu.memory_space<vmem>>, vector<1x16x16x32xf32>
    %291 = vector.shape_cast %290 : vector<1x16x16x32xf32> to vector<16x16x32xf32>
    %292 = vector.extract_strided_slice %142 {offsets = [0, 0], sizes = [1, 32], strides = [1, 1]} : vector<9x32xf32> to vector<1x32xf32>
    %293 = vector.shape_cast %292 : vector<1x32xf32> to vector<1x1x32xf32>
    %294 = vector.broadcast %293 : vector<1x1x32xf32> to vector<16x16x32xf32>
    %295 = arith.mulf %291, %294 : vector<16x16x32xf32>
    %296 = arith.addf %289, %295 : vector<16x16x32xf32>
    %c1_245 = arith.constant 1 : index
    %c0_246 = arith.constant 0 : index
    %c1_247 = arith.constant 1 : index
    %c0_248 = arith.constant 0 : index
    %297 = vector.load %arg11[%c1_245, %c0_246, %c1_247, %c0_248] : memref<2x18x18x32xf32, #tpu.memory_space<vmem>>, vector<1x16x16x32xf32>
    %298 = vector.shape_cast %297 : vector<1x16x16x32xf32> to vector<16x16x32xf32>
    %299 = vector.extract_strided_slice %142 {offsets = [1, 0], sizes = [1, 32], strides = [1, 1]} : vector<9x32xf32> to vector<1x32xf32>
    %300 = vector.shape_cast %299 : vector<1x32xf32> to vector<1x1x32xf32>
    %301 = vector.broadcast %300 : vector<1x1x32xf32> to vector<16x16x32xf32>
    %302 = arith.mulf %298, %301 : vector<16x16x32xf32>
    %303 = arith.addf %296, %302 : vector<16x16x32xf32>
    %c1_249 = arith.constant 1 : index
    %c0_250 = arith.constant 0 : index
    %c2_251 = arith.constant 2 : index
    %c0_252 = arith.constant 0 : index
    %304 = vector.load %arg11[%c1_249, %c0_250, %c2_251, %c0_252] : memref<2x18x18x32xf32, #tpu.memory_space<vmem>>, vector<1x16x16x32xf32>
    %305 = vector.shape_cast %304 : vector<1x16x16x32xf32> to vector<16x16x32xf32>
    %306 = vector.extract_strided_slice %142 {offsets = [2, 0], sizes = [1, 32], strides = [1, 1]} : vector<9x32xf32> to vector<1x32xf32>
    %307 = vector.shape_cast %306 : vector<1x32xf32> to vector<1x1x32xf32>
    %308 = vector.broadcast %307 : vector<1x1x32xf32> to vector<16x16x32xf32>
    %309 = arith.mulf %305, %308 : vector<16x16x32xf32>
    %310 = arith.addf %303, %309 : vector<16x16x32xf32>
    %c1_253 = arith.constant 1 : index
    %c1_254 = arith.constant 1 : index
    %c0_255 = arith.constant 0 : index
    %c0_256 = arith.constant 0 : index
    %311 = vector.load %arg11[%c1_253, %c1_254, %c0_255, %c0_256] : memref<2x18x18x32xf32, #tpu.memory_space<vmem>>, vector<1x16x16x32xf32>
    %312 = vector.shape_cast %311 : vector<1x16x16x32xf32> to vector<16x16x32xf32>
    %313 = vector.extract_strided_slice %142 {offsets = [3, 0], sizes = [1, 32], strides = [1, 1]} : vector<9x32xf32> to vector<1x32xf32>
    %314 = vector.shape_cast %313 : vector<1x32xf32> to vector<1x1x32xf32>
    %315 = vector.broadcast %314 : vector<1x1x32xf32> to vector<16x16x32xf32>
    %316 = arith.mulf %312, %315 : vector<16x16x32xf32>
    %317 = arith.addf %310, %316 : vector<16x16x32xf32>
    %c1_257 = arith.constant 1 : index
    %c1_258 = arith.constant 1 : index
    %c1_259 = arith.constant 1 : index
    %c0_260 = arith.constant 0 : index
    %318 = vector.load %arg11[%c1_257, %c1_258, %c1_259, %c0_260] : memref<2x18x18x32xf32, #tpu.memory_space<vmem>>, vector<1x16x16x32xf32>
    %319 = vector.shape_cast %318 : vector<1x16x16x32xf32> to vector<16x16x32xf32>
    %320 = vector.extract_strided_slice %142 {offsets = [4, 0], sizes = [1, 32], strides = [1, 1]} : vector<9x32xf32> to vector<1x32xf32>
    %321 = vector.shape_cast %320 : vector<1x32xf32> to vector<1x1x32xf32>
    %322 = vector.broadcast %321 : vector<1x1x32xf32> to vector<16x16x32xf32>
    %323 = arith.mulf %319, %322 : vector<16x16x32xf32>
    %324 = arith.addf %317, %323 : vector<16x16x32xf32>
    %c1_261 = arith.constant 1 : index
    %c1_262 = arith.constant 1 : index
    %c2_263 = arith.constant 2 : index
    %c0_264 = arith.constant 0 : index
    %325 = vector.load %arg11[%c1_261, %c1_262, %c2_263, %c0_264] : memref<2x18x18x32xf32, #tpu.memory_space<vmem>>, vector<1x16x16x32xf32>
    %326 = vector.shape_cast %325 : vector<1x16x16x32xf32> to vector<16x16x32xf32>
    %327 = vector.extract_strided_slice %142 {offsets = [5, 0], sizes = [1, 32], strides = [1, 1]} : vector<9x32xf32> to vector<1x32xf32>
    %328 = vector.shape_cast %327 : vector<1x32xf32> to vector<1x1x32xf32>
    %329 = vector.broadcast %328 : vector<1x1x32xf32> to vector<16x16x32xf32>
    %330 = arith.mulf %326, %329 : vector<16x16x32xf32>
    %331 = arith.addf %324, %330 : vector<16x16x32xf32>
    %c1_265 = arith.constant 1 : index
    %c2_266 = arith.constant 2 : index
    %c0_267 = arith.constant 0 : index
    %c0_268 = arith.constant 0 : index
    %332 = vector.load %arg11[%c1_265, %c2_266, %c0_267, %c0_268] : memref<2x18x18x32xf32, #tpu.memory_space<vmem>>, vector<1x16x16x32xf32>
    %333 = vector.shape_cast %332 : vector<1x16x16x32xf32> to vector<16x16x32xf32>
    %334 = vector.extract_strided_slice %142 {offsets = [6, 0], sizes = [1, 32], strides = [1, 1]} : vector<9x32xf32> to vector<1x32xf32>
    %335 = vector.shape_cast %334 : vector<1x32xf32> to vector<1x1x32xf32>
    %336 = vector.broadcast %335 : vector<1x1x32xf32> to vector<16x16x32xf32>
    %337 = arith.mulf %333, %336 : vector<16x16x32xf32>
    %338 = arith.addf %331, %337 : vector<16x16x32xf32>
    %c1_269 = arith.constant 1 : index
    %c2_270 = arith.constant 2 : index
    %c1_271 = arith.constant 1 : index
    %c0_272 = arith.constant 0 : index
    %339 = vector.load %arg11[%c1_269, %c2_270, %c1_271, %c0_272] : memref<2x18x18x32xf32, #tpu.memory_space<vmem>>, vector<1x16x16x32xf32>
    %340 = vector.shape_cast %339 : vector<1x16x16x32xf32> to vector<16x16x32xf32>
    %341 = vector.extract_strided_slice %142 {offsets = [7, 0], sizes = [1, 32], strides = [1, 1]} : vector<9x32xf32> to vector<1x32xf32>
    %342 = vector.shape_cast %341 : vector<1x32xf32> to vector<1x1x32xf32>
    %343 = vector.broadcast %342 : vector<1x1x32xf32> to vector<16x16x32xf32>
    %344 = arith.mulf %340, %343 : vector<16x16x32xf32>
    %345 = arith.addf %338, %344 : vector<16x16x32xf32>
    %c1_273 = arith.constant 1 : index
    %c2_274 = arith.constant 2 : index
    %c2_275 = arith.constant 2 : index
    %c0_276 = arith.constant 0 : index
    %346 = vector.load %arg11[%c1_273, %c2_274, %c2_275, %c0_276] : memref<2x18x18x32xf32, #tpu.memory_space<vmem>>, vector<1x16x16x32xf32>
    %347 = vector.shape_cast %346 : vector<1x16x16x32xf32> to vector<16x16x32xf32>
    %348 = vector.extract_strided_slice %142 {offsets = [8, 0], sizes = [1, 32], strides = [1, 1]} : vector<9x32xf32> to vector<1x32xf32>
    %349 = vector.shape_cast %348 : vector<1x32xf32> to vector<1x1x32xf32>
    %350 = vector.broadcast %349 : vector<1x1x32xf32> to vector<16x16x32xf32>
    %351 = arith.mulf %347, %350 : vector<16x16x32xf32>
    %352 = arith.addf %345, %351 : vector<16x16x32xf32>
    %353 = vector.shape_cast %139 : vector<1x32xf32> to vector<1x1x32xf32>
    %354 = vector.broadcast %353 : vector<1x1x32xf32> to vector<16x16x32xf32>
    %355 = arith.mulf %352, %354 : vector<16x16x32xf32>
    %356 = vector.shape_cast %140 : vector<1x32xf32> to vector<1x1x32xf32>
    %357 = vector.broadcast %356 : vector<1x1x32xf32> to vector<16x16x32xf32>
    %358 = arith.addf %355, %357 : vector<16x16x32xf32>
    %359 = arith.negf %358 : vector<16x16x32xf32>
    %360 = math.exp %359 : vector<16x16x32xf32>
    %cst_277 = arith.constant 1.000000e+00 : f32
    %361 = vector.broadcast %cst_277 : f32 to vector<16x16x32xf32>
    %362 = arith.addf %361, %360 : vector<16x16x32xf32>
    %363 = arith.divf %361, %362 : vector<16x16x32xf32>
    %364 = arith.mulf %358, %363 : vector<16x16x32xf32>
    %365 = vector.shape_cast %364 : vector<16x16x32xf32> to vector<256x32xf32>
    %cst_278 = arith.constant dense<0.000000e+00> : vector<32xf32>
    %366 = vector.multi_reduction <add>, %365, %cst_278 [0] : vector<256x32xf32> to vector<32xf32>
    %367 = vector.shape_cast %366 : vector<32xf32> to vector<1x32xf32>
    %cst_279 = arith.constant 3.906250e-03 : f32
    %368 = vector.broadcast %cst_279 : f32 to vector<1x32xf32>
    %369 = arith.mulf %367, %368 : vector<1x32xf32>
    %370 = vector.extract_strided_slice %143 {offsets = [0, 0], sizes = [2, 32], strides = [1, 1]} : vector<2x33xf32> to vector<2x32xf32>
    %371 = vector.broadcast %369 : vector<1x32xf32> to vector<2x32xf32>
    %372 = arith.mulf %370, %371 : vector<2x32xf32>
    %cst_280 = arith.constant dense<0.000000e+00> : vector<2xf32>
    %373 = vector.multi_reduction <add>, %372, %cst_280 [1] : vector<2x32xf32> to vector<2xf32>
    %374 = vector.shape_cast %373 : vector<2xf32> to vector<2x1xf32>
    %375 = vector.extract_strided_slice %143 {offsets = [0, 32], sizes = [2, 1], strides = [1, 1]} : vector<2x33xf32> to vector<2x1xf32>
    %376 = arith.addf %374, %375 : vector<2x1xf32>
    %377 = arith.negf %376 : vector<2x1xf32>
    %378 = math.exp %377 : vector<2x1xf32>
    %cst_281 = arith.constant 1.000000e+00 : f32
    %379 = vector.broadcast %cst_281 : f32 to vector<2x1xf32>
    %380 = arith.addf %379, %378 : vector<2x1xf32>
    %381 = arith.divf %379, %380 : vector<2x1xf32>
    %382 = arith.mulf %376, %381 : vector<2x1xf32>
    %383 = vector.broadcast %382 : vector<2x1xf32> to vector<2x32xf32>
    %384 = arith.mulf %144, %383 : vector<2x32xf32>
    %cst_282 = arith.constant dense<0.000000e+00> : vector<32xf32>
    %385 = vector.multi_reduction <add>, %384, %cst_282 [0] : vector<2x32xf32> to vector<32xf32>
    %386 = vector.shape_cast %385 : vector<32xf32> to vector<1x32xf32>
    %387 = arith.addf %386, %141 : vector<1x32xf32>
    %388 = arith.negf %387 : vector<1x32xf32>
    %389 = math.exp %388 : vector<1x32xf32>
    %cst_283 = arith.constant 1.000000e+00 : f32
    %390 = vector.broadcast %cst_283 : f32 to vector<1x32xf32>
    %391 = arith.addf %390, %389 : vector<1x32xf32>
    %392 = arith.divf %390, %391 : vector<1x32xf32>
    %393 = vector.broadcast %392 : vector<1x32xf32> to vector<256x32xf32>
    %394 = arith.mulf %365, %393 : vector<256x32xf32>
    %395 = tpu.concatenate %269, %394 in 0 : vector<256x32xf32>, vector<256x32xf32> -> vector<512x32xf32>
    %c0_284 = arith.constant 0 : index
    %c0_285 = arith.constant 0 : index
    %396 = vector.load %arg7[%c0_284, %c0_285] : memref<8x32xf32, #tpu.memory_space<vmem>>, vector<8x32xf32>
    %cst_286 = arith.constant dense<0.000000e+00> : vector<8x512xf32>
    %397 = tpu.matmul %396, %395, %cst_286 {dimension_numbers = #tpu.dot_dimension_numbers<[1], [1], [0], [0], [0, 0, 1, 0], [], []>} : vector<8x32xf32>, vector<512x32xf32>, vector<8x512xf32> -> vector<8x512xf32>
    %c0_287 = arith.constant 0 : index
    %c0_288 = arith.constant 0 : index
    %398 = vector.load %arg8[%c0_287, %c0_288] : memref<8x2xf32, #tpu.memory_space<vmem>>, vector<8x1xf32>
    %399 = vector.broadcast %398 : vector<8x1xf32> to vector<8x512xf32>
    %400 = arith.mulf %397, %399 : vector<8x512xf32>
    %c0_289 = arith.constant 0 : index
    %c1_290 = arith.constant 1 : index
    %401 = vector.load %arg8[%c0_289, %c1_290] : memref<8x2xf32, #tpu.memory_space<vmem>>, vector<8x1xf32>
    %402 = vector.broadcast %401 : vector<8x1xf32> to vector<8x512xf32>
    %403 = arith.addf %400, %402 : vector<8x512xf32>
    %404 = vector.extract_strided_slice %403 {offsets = [0, 0], sizes = [8, 256], strides = [1, 1]} : vector<8x512xf32> to vector<8x256xf32>
    %c0_291 = arith.constant 0 : index
    %c0_292 = arith.constant 0 : index
    %c0_293 = arith.constant 0 : index
    %405 = vector.load %arg2[%c0_291, %c0_292, %c0_293] : memref<2x8x256xf32, #tpu.memory_space<vmem>>, vector<1x8x256xf32>
    %406 = vector.shape_cast %405 : vector<1x8x256xf32> to vector<8x256xf32>
    %407 = arith.addf %404, %406 : vector<8x256xf32>
    %c0_294 = arith.constant 0 : index
    %c0_295 = arith.constant 0 : index
    %c0_296 = arith.constant 0 : index
    %408 = vector.load %arg9[%c0_294, %c0_295, %c0_296] : memref<2x8x256xf32, #tpu.memory_space<vmem>>, vector<1x8x256xf32>
    %409 = vector.shape_cast %408 : vector<1x8x256xf32> to vector<8x256xf32>
    %410 = vector.shape_cast %407 : vector<8x256xf32> to vector<1x8x256xf32>
    tpu.vector_store %arg9[%c0_294, %c0_295, %c0_296], %410 {strides = array<i32>} : memref<2x8x256xf32, #tpu.memory_space<vmem>>, vector<1x8x256xf32>,
    %411 = vector.extract_strided_slice %403 {offsets = [0, 256], sizes = [8, 256], strides = [1, 1]} : vector<8x512xf32> to vector<8x256xf32>
    %c1_297 = arith.constant 1 : index
    %c0_298 = arith.constant 0 : index
    %c0_299 = arith.constant 0 : index
    %412 = vector.load %arg2[%c1_297, %c0_298, %c0_299] : memref<2x8x256xf32, #tpu.memory_space<vmem>>, vector<1x8x256xf32>
    %413 = vector.shape_cast %412 : vector<1x8x256xf32> to vector<8x256xf32>
    %414 = arith.addf %411, %413 : vector<8x256xf32>
    %c1_300 = arith.constant 1 : index
    %c0_301 = arith.constant 0 : index
    %c0_302 = arith.constant 0 : index
    %415 = vector.load %arg9[%c1_300, %c0_301, %c0_302] : memref<2x8x256xf32, #tpu.memory_space<vmem>>, vector<1x8x256xf32>
    %416 = vector.shape_cast %415 : vector<1x8x256xf32> to vector<8x256xf32>
    %417 = vector.shape_cast %414 : vector<8x256xf32> to vector<1x8x256xf32>
    tpu.vector_store %arg9[%c1_300, %c0_301, %c0_302], %417 {strides = array<i32>} : memref<2x8x256xf32, #tpu.memory_space<vmem>>, vector<1x8x256xf32>,
    return
  }
  func.func @transform_0(%arg0: i32) -> (i32, i32, i32, i32) {
    %c0_i32 = arith.constant 0 : i32
    %c0_i32_0 = arith.constant 0 : i32
    %c0_i32_1 = arith.constant 0 : i32
    %c0_i32_2 = arith.constant 0 : i32
    return %arg0, %c0_i32, %c0_i32_0, %c0_i32_1 : i32, i32, i32, i32
  }
  func.func @transform_1(%arg0: i32) -> (i32, i32, i32) {
    %c0_i32 = arith.constant 0 : i32
    %c0_i32_0 = arith.constant 0 : i32
    %c0_i32_1 = arith.constant 0 : i32
    return %arg0, %c0_i32, %c0_i32_0 : i32, i32, i32
  }
  func.func @transform_2(%arg0: i32) -> (i32, i32) {
    %c0_i32 = arith.constant 0 : i32
    %c0_i32_0 = arith.constant 0 : i32
    %c0_i32_1 = arith.constant 0 : i32
    return %c0_i32, %c0_i32_0 : i32, i32
  }
  func.func @transform_3(%arg0: i32) -> (i32, i32) {
    %c0_i32 = arith.constant 0 : i32
    %c0_i32_0 = arith.constant 0 : i32
    %c0_i32_1 = arith.constant 0 : i32
    return %c0_i32, %c0_i32_0 : i32, i32
  }
  func.func @transform_4(%arg0: i32) -> (i32, i32) {
    %c0_i32 = arith.constant 0 : i32
    %c0_i32_0 = arith.constant 0 : i32
    %c0_i32_1 = arith.constant 0 : i32
    return %c0_i32, %c0_i32_0 : i32, i32
  }
  func.func @transform_5(%arg0: i32) -> (i32, i32) {
    %c0_i32 = arith.constant 0 : i32
    %c0_i32_0 = arith.constant 0 : i32
    %c0_i32_1 = arith.constant 0 : i32
    return %c0_i32, %c0_i32_0 : i32, i32
  }
  func.func @transform_6(%arg0: i32) -> (i32, i32) {
    %c0_i32 = arith.constant 0 : i32
    %c0_i32_0 = arith.constant 0 : i32
    %c0_i32_1 = arith.constant 0 : i32
    return %c0_i32, %c0_i32_0 : i32, i32
  }
  func.func @transform_7(%arg0: i32) -> (i32, i32) {
    %c0_i32 = arith.constant 0 : i32
    %c0_i32_0 = arith.constant 0 : i32
    %c0_i32_1 = arith.constant 0 : i32
    return %c0_i32, %c0_i32_0 : i32, i32
  }
  func.func @transform_8(%arg0: i32) -> (i32, i32, i32) {
    %c0_i32 = arith.constant 0 : i32
    %c0_i32_0 = arith.constant 0 : i32
    %c0_i32_1 = arith.constant 0 : i32
    return %arg0, %c0_i32, %c0_i32_0 : i32, i32, i32
  }
}

</mosaic_0001>

<llo_original>
// kernel: tpu_custom_call.1
$region0: #{tpu_custom_call.1}
  #allocation0 [shape = 'u32[]', space=smem, size = 0x4, offset = 0x4, fixed_abs, tag = 'smem constant byte address 0x4 - core index']
  #allocation1 [shape = 'u32[144,128]{1,0:T(1,128)}', space=vmem, size = 0x12000, scoped, tag = 'internal scratch']
  #allocation2 [shape = 'f32[2,18,18,8]{3,2,1,0:T(8,128)}', space=vmem, size = 0x6c000, scoped, tag = 'scratch operand']
  #allocation3 [shape = 'f32[2,18,18,32]{3,2,1,0:T(8,128)}', space=vmem, size = 0x6c000, scoped, tag = 'scratch operand']
  %s0 = inlined_call_operand.vmem [shape: f32[4,16,16,8], index: 0, kind: input, shape index: {}]
  %s1 = inlined_call_operand.vmem [shape: f32[4,8,256], index: 1, kind: input, shape index: {}]
  %s2 = inlined_call_operand.vmem [shape: f32[72,32], index: 2, kind: input, shape index: {}]
  %s3 = inlined_call_operand.vmem [shape: f32[5,32], index: 3, kind: input, shape index: {}]
  %s4 = inlined_call_operand.vmem [shape: f32[9,32], index: 4, kind: input, shape index: {}]
  %s5 = inlined_call_operand.vmem [shape: f32[4,33], index: 5, kind: input, shape index: {}]
  %s6 = inlined_call_operand.vmem [shape: f32[8,32], index: 6, kind: input, shape index: {}]
  %s7 = inlined_call_operand.vmem [shape: f32[8,2], index: 7, kind: input, shape index: {}]
  %s8 = inlined_call_operand.hbm [shape: f32[4,8,256], index: 8, kind: output, shape index: {}]
  %s9 = sld [smem:[#allocation0]]
  $region65: #{tpu_custom_call.1} parent=0
    _
  %s11 = ssub.s32 1, %s9
  %s12 = scalar_select 0, %s11, %s9
  $region1: #{tpu_custom_call.1} parent=0
    #allocation4 [shape = 'u8[32768]{0}', space=vmem, size = 0x8000, scoped, tag = 'output window, operand 0']
    #allocation5 [shape = 's32[2]{0}', space=sflag, size = 0x8, scoped, tag = 'scoped memory for tpu_custom_call.1']
    %13 = vsyncpa [#allocation5], 0
    %s14 = scalar_lea.sflag [#allocation5], 1
    %15 = vsyncpa %s14, 0
    loop: start=0, step=1, limit=4
    $region2: #{tpu_custom_call.1} parent=1 // loop_pre_header
      _
    $region3: #{tpu_custom_call.1} parent=1 // loop_header
      %s17 = sphi 0, %s21
      %p18 = scmp.ge.s32.totalorder %s17, 4
      %s27 = sphi 0, %s29
      %s30 = sphi 0, %s27
      %s31 = sphi 0, %s30
      %s47 = sphi 0, %s31
      %s53 = sphi 0, %s55
      %s56 = sphi 0, %s53
      %s57 = sphi 0, %s56
      %s73 = sphi 0, %s57
      %s77 = sphi 0, %s77
      %s79 = sphi 0, %s77
      %s80 = sphi 0, %s79
      %s94 = sphi 0, %s80
      %s98 = sphi 0, %s98
      %s100 = sphi 0, %s98
      %s101 = sphi 0, %s100
      %s115 = sphi 0, %s101
      %s119 = sphi 0, %s119
      %s121 = sphi 0, %s119
      %s122 = sphi 0, %s121
      %s136 = sphi 0, %s122
      %s140 = sphi 0, %s140
      %s142 = sphi 0, %s140
      %s143 = sphi 0, %s142
      %s157 = sphi 0, %s143
      %s161 = sphi 0, %s161
      %s163 = sphi 0, %s161
      %s164 = sphi 0, %s163
      %s178 = sphi 0, %s164
      %s182 = sphi 0, %s182
      %s184 = sphi 0, %s182
      %s185 = sphi 0, %s184
      %s199 = sphi 0, %s185
      %s205 = sphi 0, %s207
      %s208 = sphi 0, %s205
      %s209 = sphi 0, %s208
      %s225 = sphi 0, %s209
    $region4: #{tpu_custom_call.1} parent=1 // loop_header_branch
      %20 = sbr.rel (%p18) target = $region8
    $region5: #{tpu_custom_call.1} parent=1 // loop_body
      %s22 = ssub.s32 %s17, 1
      %s23 = ssub.s32 %s17, 2
      %s24 = sadd.s32 %s17, 1
      %s25 = ssub.s32 %s17, %s24
      %p26 = scmp.eq.s32.totalorder %s25, 0
      %s28 = sadd.s32 %s27, 1
      %s29 = scalar_select %p26, %s27, %s28
      %p32 = pneg %p26
      %p33 = scmp.eq.s32.totalorder %s17, 1
      %p34 = por %p32, %p33
      %p35 = scmp.ne.s32.totalorder %s27, %s30
      %p36 = scmp.eq.s32.totalorder %s17, 0
      %p37 = por %p35, %p36
      %p38 = scmp.ne.s32.totalorder %s27, %s30
      %p39 = scmp.eq.s32.totalorder %s22, 1
      %p40 = por %p38, %p39
      %p41 = scmp.ne.s32.totalorder %s30, %s31
      %p42 = scmp.eq.s32.totalorder %s22, 0
      %p43 = por %p41, %p42
      %p44 = scmp.ne.s32.totalorder %s30, %s31
      %p45 = scmp.eq.s32.totalorder %s23, 1
      %p46 = por %p44, %p45
      %p48 = scmp.ne.s32.totalorder %s31, %s47
      %p49 = scmp.eq.s32.totalorder %s23, 0
      %p50 = por %p48, %p49
      %s51 = ssub.s32 %s17, %s24
      %p52 = scmp.eq.s32.totalorder %s51, 0
      %s54 = sadd.s32 %s53, 1
      %s55 = scalar_select %p52, %s53, %s54
      %p58 = pneg %p52
      %p59 = scmp.eq.s32.totalorder %s17, 1
      %p60 = por %p58, %p59
      %p61 = scmp.ne.s32.totalorder %s53, %s56
      %p62 = scmp.eq.s32.totalorder %s17, 0
      %p63 = por %p61, %p62
      %p64 = scmp.ne.s32.totalorder %s53, %s56
      %p65 = scmp.eq.s32.totalorder %s22, 1
      %p66 = por %p64, %p65
      %p67 = scmp.ne.s32.totalorder %s56, %s57
      %p68 = scmp.eq.s32.totalorder %s22, 0
      %p69 = por %p67, %p68
      %p70 = scmp.ne.s32.totalorder %s56, %s57
      %p71 = scmp.eq.s32.totalorder %s23, 1
      %p72 = por %p70, %p71
      %p74 = scmp.ne.s32.totalorder %s57, %s73
      %p75 = scmp.eq.s32.totalorder %s23, 0
      %p76 = por %p74, %p75
      %s78 = sadd.s32 %s77, 1
      %p81 = scmp.eq.s32.totalorder %s17, 1
      %p82 = scmp.ne.s32.totalorder %s77, %s79
      %p83 = scmp.eq.s32.totalorder %s17, 0
      %p84 = por %p82, %p83
      %p85 = scmp.ne.s32.totalorder %s77, %s79
      %p86 = scmp.eq.s32.totalorder %s22, 1
      %p87 = por %p85, %p86
      %p88 = scmp.ne.s32.totalorder %s79, %s80
      %p89 = scmp.eq.s32.totalorder %s22, 0
      %p90 = por %p88, %p89
      %p91 = scmp.ne.s32.totalorder %s79, %s80
      %p92 = scmp.eq.s32.totalorder %s23, 1
      %p93 = por %p91, %p92
      %p95 = scmp.ne.s32.totalorder %s80, %s94
      %p96 = scmp.eq.s32.totalorder %s23, 0
      %p97 = por %p95, %p96
      %s99 = sadd.s32 %s98, 1
      %p102 = scmp.eq.s32.totalorder %s17, 1
      %p103 = scmp.ne.s32.totalorder %s98, %s100
      %p104 = scmp.eq.s32.totalorder %s17, 0
      %p105 = por %p103, %p104
      %p106 = scmp.ne.s32.totalorder %s98, %s100
      %p107 = scmp.eq.s32.totalorder %s22, 1
      %p108 = por %p106, %p107
      %p109 = scmp.ne.s32.totalorder %s100, %s101
      %p110 = scmp.eq.s32.totalorder %s22, 0
      %p111 = por %p109, %p110
      %p112 = scmp.ne.s32.totalorder %s100, %s101
      %p113 = scmp.eq.s32.totalorder %s23, 1
      %p114 = por %p112, %p113
      %p116 = scmp.ne.s32.totalorder %s101, %s115
      %p117 = scmp.eq.s32.totalorder %s23, 0
      %p118 = por %p116, %p117
      %s120 = sadd.s32 %s119, 1
      %p123 = scmp.eq.s32.totalorder %s17, 1
      %p124 = scmp.ne.s32.totalorder %s119, %s121
      %p125 = scmp.eq.s32.totalorder %s17, 0
      %p126 = por %p124, %p125
      %p127 = scmp.ne.s32.totalorder %s119, %s121
      %p128 = scmp.eq.s32.totalorder %s22, 1
      %p129 = por %p127, %p128
      %p130 = scmp.ne.s32.totalorder %s121, %s122
      %p131 = scmp.eq.s32.totalorder %s22, 0
      %p132 = por %p130, %p131
      %p133 = scmp.ne.s32.totalorder %s121, %s122
      %p134 = scmp.eq.s32.totalorder %s23, 1
      %p135 = por %p133, %p134
      %p137 = scmp.ne.s32.totalorder %s122, %s136
      %p138 = scmp.eq.s32.totalorder %s23, 0
      %p139 = por %p137, %p138
      %s141 = sadd.s32 %s140, 1
      %p144 = scmp.eq.s32.totalorder %s17, 1
      %p145 = scmp.ne.s32.totalorder %s140, %s142
      %p146 = scmp.eq.s32.totalorder %s17, 0
      %p147 = por %p145, %p146
      %p148 = scmp.ne.s32.totalorder %s140, %s142
      %p149 = scmp.eq.s32.totalorder %s22, 1
      %p150 = por %p148, %p149
      %p151 = scmp.ne.s32.totalorder %s142, %s143
      %p152 = scmp.eq.s32.totalorder %s22, 0
      %p153 = por %p151, %p152
      %p154 = scmp.ne.s32.totalorder %s142, %s143
      %p155 = scmp.eq.s32.totalorder %s23, 1
      %p156 = por %p154, %p155
      %p158 = scmp.ne.s32.totalorder %s143, %s157
      %p159 = scmp.eq.s32.totalorder %s23, 0
      %p160 = por %p158, %p159
      %s162 = sadd.s32 %s161, 1
      %p165 = scmp.eq.s32.totalorder %s17, 1
      %p166 = scmp.ne.s32.totalorder %s161, %s163
      %p167 = scmp.eq.s32.totalorder %s17, 0
      %p168 = por %p166, %p167
      %p169 = scmp.ne.s32.totalorder %s161, %s163
      %p170 = scmp.eq.s32.totalorder %s22, 1
      %p171 = por %p169, %p170
      %p172 = scmp.ne.s32.totalorder %s163, %s164
      %p173 = scmp.eq.s32.totalorder %s22, 0
      %p174 = por %p172, %p173
      %p175 = scmp.ne.s32.totalorder %s163, %s164
      %p176 = scmp.eq.s32.totalorder %s23, 1
      %p177 = por %p175, %p176
      %p179 = scmp.ne.s32.totalorder %s164, %s178
      %p180 = scmp.eq.s32.totalorder %s23, 0
      %p181 = por %p179, %p180
      %s183 = sadd.s32 %s182, 1
      %p186 = scmp.eq.s32.totalorder %s17, 1
      %p187 = scmp.ne.s32.totalorder %s182, %s184
      %p188 = scmp.eq.s32.totalorder %s17, 0
      %p189 = por %p187, %p188
      %p190 = scmp.ne.s32.totalorder %s182, %s184
      %p191 = scmp.eq.s32.totalorder %s22, 1
      %p192 = por %p190, %p191
      %p193 = scmp.ne.s32.totalorder %s184, %s185
      %p194 = scmp.eq.s32.totalorder %s22, 0
      %p195 = por %p193, %p194
      %p196 = scmp.ne.s32.totalorder %s184, %s185
      %p197 = scmp.eq.s32.totalorder %s23, 1
      %p198 = por %p196, %p197
      %p200 = scmp.ne.s32.totalorder %s185, %s199
      %p201 = scmp.eq.s32.totalorder %s23, 0
      %p202 = por %p200, %p201
      %s203 = ssub.s32 %s17, %s24
      %p204 = scmp.eq.s32.totalorder %s203, 0
      %s206 = sadd.s32 %s205, 1
      %s207 = scalar_select %p204, %s205, %s206
      %p210 = pneg %p204
      %p211 = scmp.eq.s32.totalorder %s17, 1
      %p212 = por %p210, %p211
      %p213 = scmp.ne.s32.totalorder %s205, %s208
      %p214 = scmp.eq.s32.totalorder %s17, 0
      %p215 = por %p213, %p214
      %p216 = scmp.ne.s32.totalorder %s205, %s208
      %p217 = scmp.eq.s32.totalorder %s22, 1
      %p218 = por %p216, %p217
      %p219 = scmp.ne.s32.totalorder %s208, %s209
      %p220 = scmp.eq.s32.totalorder %s22, 0
      %p221 = por %p219, %p220
      %p222 = scmp.ne.s32.totalorder %s208, %s209
      %p223 = scmp.eq.s32.totalorder %s23, 1
      %p224 = por %p222, %p223
      %p226 = scmp.ne.s32.totalorder %s209, %s225
      %p227 = scmp.eq.s32.totalorder %s23, 0
      %p228 = por %p226, %p227
      %p229 = scmp.le.s32.totalorder 1, %s17
      %p230 = scmp.lt.s32.totalorder %s17, 3
      %p231 = pnand %p229, %p230
      %p232 = pneg %p231
      // Predicated region
      $region9: #{tpu_custom_call.1} parent=5 // pred_check
        _
      $region10: #{tpu_custom_call.1} parent=5 // pred_check_branch
        %234 = sbr.rel (%p231) target = $region12
      $region11: #{tpu_custom_call.1} parent=5 // pred_region
        %s235 = ssub.s32 %s17, 1
        // Predicated region
        $region13: #{tpu_custom_call.1} parent=11 // pred_check
          %p236 = pneg %p90
        $region14: #{tpu_custom_call.1} parent=11 // pred_check_branch
          %238 = sbr.rel (%p236) target = $region16
        $region15: #{tpu_custom_call.1} parent=11 // pred_region
          _
        $region16: #{tpu_custom_call.1} parent=11 // pred_fallthru
          _
        // Predicated region
        $region17: #{tpu_custom_call.1} parent=11 // pred_check
          %p239 = pneg %p111
        $region18: #{tpu_custom_call.1} parent=11 // pred_check_branch
          %241 = sbr.rel (%p239) target = $region20
        $region19: #{tpu_custom_call.1} parent=11 // pred_region
          _
        $region20: #{tpu_custom_call.1} parent=11 // pred_fallthru
          _
        // Predicated region
        $region21: #{tpu_custom_call.1} parent=11 // pred_check
          %p242 = pneg %p132
        $region22: #{tpu_custom_call.1} parent=11 // pred_check_branch
          %244 = sbr.rel (%p242) target = $region24
        $region23: #{tpu_custom_call.1} parent=11 // pred_region
          _
        $region24: #{tpu_custom_call.1} parent=11 // pred_fallthru
          _
        // Predicated region
        $region25: #{tpu_custom_call.1} parent=11 // pred_check
          %p245 = pneg %p153
        $region26: #{tpu_custom_call.1} parent=11 // pred_check_branch
          %247 = sbr.rel (%p245) target = $region28
        $region27: #{tpu_custom_call.1} parent=11 // pred_region
          _
        $region28: #{tpu_custom_call.1} parent=11 // pred_fallthru
          _
        // Predicated region
        $region29: #{tpu_custom_call.1} parent=11 // pred_check
          %p248 = pneg %p174
        $region30: #{tpu_custom_call.1} parent=11 // pred_check_branch
          %250 = sbr.rel (%p248) target = $region32
        $region31: #{tpu_custom_call.1} parent=11 // pred_region
          _
        $region32: #{tpu_custom_call.1} parent=11 // pred_fallthru
          _
        // Predicated region
        $region33: #{tpu_custom_call.1} parent=11 // pred_check
          %p251 = pneg %p195
        $region34: #{tpu_custom_call.1} parent=11 // pred_check_branch
          %253 = sbr.rel (%p251) target = $region36
        $region35: #{tpu_custom_call.1} parent=11 // pred_region
          _
        $region36: #{tpu_custom_call.1} parent=11 // pred_fallthru
          _
      $region12: #{tpu_custom_call.1} parent=5 // pred_fallthru
        _
      %p254 = scmp.lt.s32.totalorder %s17, 2
      // Predicated region
      $region37: #{tpu_custom_call.1} parent=5 // pred_check
        %p255 = pneg %p254
      $region38: #{tpu_custom_call.1} parent=5 // pred_check_branch
        %257 = sbr.rel (%p255) target = $region40
      $region39: #{tpu_custom_call.1} parent=5 // pred_region
        // Predicated region
        $region41: #{tpu_custom_call.1} parent=39 // pred_check
          %p258 = pneg %p37
        $region42: #{tpu_custom_call.1} parent=39 // pred_check_branch
          %260 = sbr.rel (%p258) target = $region44
        $region43: #{tpu_custom_call.1} parent=39 // pred_region
          %s261 = smul.u32 2, %s17
          %p262 = scmp.lt.s32.totalorder %s261, 3
          %s263 = scalar_select %p262, %s261, 3
          %s264 = smul.addr %s263, 32
          %s265 = smul.addr %s264, 8
          %s266 = scalar_lea.vmem %s0, %s265
          %s267 = smul.u32 2, %s17
        $region44: #{tpu_custom_call.1} parent=39 // pred_fallthru
          _
        // Predicated region
        $region45: #{tpu_custom_call.1} parent=39 // pred_check
          %p268 = pneg %p63
        $region46: #{tpu_custom_call.1} parent=39 // pred_check_branch
          %270 = sbr.rel (%p268) target = $region48
        $region47: #{tpu_custom_call.1} parent=39 // pred_region
          %s271 = smul.u32 2, %s17
          %p272 = scmp.lt.s32.totalorder %s271, 3
          %s273 = scalar_select %p272, %s271, 3
          %s274 = smul.addr %s273, 2
          %s275 = smul.addr %s274, 8
          %s276 = scalar_lea.vmem %s1, %s275
          %s277 = smul.u32 2, %s17
        $region48: #{tpu_custom_call.1} parent=39 // pred_fallthru
          _
      $region40: #{tpu_custom_call.1} parent=5 // pred_fallthru
        _
      %p278 = scmp.le.s32.totalorder 1, %s17
      %p279 = scmp.lt.s32.totalorder %s17, 3
      %p280 = pnand %p278, %p279
      %p281 = pneg %p280
      // Predicated region
      $region49: #{tpu_custom_call.1} parent=5 // pred_check
        _
      $region50: #{tpu_custom_call.1} parent=5 // pred_check_branch
        %283 = sbr.rel (%p280) target = $region52
      $region51: #{tpu_custom_call.1} parent=5 // pred_region
        %s284 = ssub.s32 %s17, 1
        %s285 = smul.u32 2, %s22
        %p286 = scmp.lt.s32.totalorder %s285, 3
        %s287 = scalar_select %p286, %s285, 3
        %s288 = smul.addr %s287, 32
        %s289 = smul.addr %s288, 8
        %s290 = scalar_lea.vmem %s0, %s289
        %p291 = pneg %p43
        %p292 = pneg %p40
        %s293 = smul.u32 2, %s22
        %p294 = scmp.lt.s32.totalorder %s293, 3
        %s295 = scalar_select %p294, %s293, 3
        %s296 = smul.addr %s295, 2
        %s297 = smul.addr %s296, 8
        %s298 = scalar_lea.vmem %s1, %s297
        %p299 = pneg %p69
        %p300 = pneg %p66
        %p301 = pneg %p90
        %p302 = pneg %p87
        %p303 = pneg %p111
        %p304 = pneg %p108
        %p305 = pneg %p132
        %p306 = pneg %p129
        %p307 = pneg %p153
        %p308 = pneg %p150
        %p309 = pneg %p174
        %p310 = pneg %p171
        %p311 = pneg %p195
        %p312 = pneg %p192
        %p313 = pneg %p221
        %p314 = pneg %p218
        %s315 = sand.u32 %s208, 1
        %s316 = scalar_lea.sflag [#allocation5], %s315
        %s317 = sand.u32 %s208, 1
        %s318 = smul.addr %s317, 32
        %s319 = scalar_lea.vmem [#allocation4], %s318
        %s320 = smul.u32 2, %s22
        %p321 = scmp.lt.s32.totalorder %s320, 3
        %s322 = scalar_select %p321, %s320, 3
        %s323 = smul.addr %s322, 32
        %s324 = smul.addr %s323, 8
        %s325 = scalar_lea.vmem %s0, %s324
        %s326 = smul.u32 2, %s22
        %s327 = smul.u32 2, %s22
        %p328 = scmp.lt.s32.totalorder %s327, 3
        %s329 = scalar_select %p328, %s327, 3
        %s330 = smul.addr %s329, 2
        %s331 = smul.addr %s330, 8
        %s332 = scalar_lea.vmem %s1, %s331
        %s333 = smul.u32 2, %s22
        %s334 = smul.u32 2, %s22
        %vm335 = vcmask 64512
        %336 = vst.msk [vmem:[#allocation2] sm:$0xff] %vm335, 0.0
        %337 = vst.msk [vmem:[#allocation2 + $0x8] sm:$0xff] %vm335, 0.0
        %vm338 = vcmask 58368
        %339 = vst.msk [vmem:[#allocation2 + $0x10] sm:$0x3] %vm338, 0.0
        %s340 = scalar_lea.vmem [#allocation2], 408
        %341 = vst.msk [vmem:[%s340] sm:$0xff] %vm335, 0.0
        %342 = vst.msk [vmem:[%s340 + $0x8] sm:$0xff] %vm335, 0.0
        %343 = vst.msk [vmem:[%s340 + $0x10] sm:$0x3] %vm338, 0.0
        %s344 = scalar_lea.vmem [#allocation2], 24
        %vm345 = vcmask 57344
        %346 = vst.msk [vmem:[%s344] sm:$0x1] %vm345, 0.0
        %347 = vst.msk [vmem:[%s344 + $0x18] sm:$0x1] %vm345, 0.0
        %348 = vst.msk [vmem:[%s344 + $0x30] sm:$0x1] %vm345, 0.0
        %349 = vst.msk [vmem:[%s344 + $0x48] sm:$0x1] %vm345, 0.0
        %350 = vst.msk [vmem:[%s344 + $0x60] sm:$0x1] %vm345, 0.0
        %351 = vst.msk [vmem:[%s344 + $0x78] sm:$0x1] %vm345, 0.0
        %352 = vst.msk [vmem:[%s344 + $0x90] sm:$0x1] %vm345, 0.0
        %353 = vst.msk [vmem:[%s344 + $0xa8] sm:$0x1] %vm345, 0.0
        %354 = vst.msk [vmem:[%s344 + $0xc0] sm:$0x1] %vm345, 0.0
        %355 = vst.msk [vmem:[%s344 + $0xd8] sm:$0x1] %vm345, 0.0
        %356 = vst.msk [vmem:[%s344 + $0xf0] sm:$0x1] %vm345, 0.0
        %357 = vst.msk [vmem:[%s344 + $0x108] sm:$0x1] %vm345, 0.0
        %358 = vst.msk [vmem:[%s344 + $0x120] sm:$0x1] %vm345, 0.0
        %359 = vst.msk [vmem:[%s344 + $0x138] sm:$0x1] %vm345, 0.0
        %360 = vst.msk [vmem:[%s344 + $0x150] sm:$0x1] %vm345, 0.0
        %361 = vst.msk [vmem:[%s344 + $0x168] sm:$0x1] %vm345, 0.0
        %362 = vst.msk [vmem:[%s344 + $0x11] sm:$0x1] %vm345, 0.0
        %363 = vst.msk [vmem:[%s344 + $0x29] sm:$0x1] %vm345, 0.0
        %364 = vst.msk [vmem:[%s344 + $0x41] sm:$0x1] %vm345, 0.0
        %365 = vst.msk [vmem:[%s344 + $0x59] sm:$0x1] %vm345, 0.0
        %366 = vst.msk [vmem:[%s344 + $0x71] sm:$0x1] %vm345, 0.0
        %367 = vst.msk [vmem:[%s344 + $0x89] sm:$0x1] %vm345, 0.0
        %368 = vst.msk [vmem:[%s344 + $0xa1] sm:$0x1] %vm345, 0.0
        %369 = vst.msk [vmem:[%s344 + $0xb9] sm:$0x1] %vm345, 0.0
        %370 = vst.msk [vmem:[%s344 + $0xd1] sm:$0x1] %vm345, 0.0
        %371 = vst.msk [vmem:[%s344 + $0xe9] sm:$0x1] %vm345, 0.0
        %372 = vst.msk [vmem:[%s344 + $0x101] sm:$0x1] %vm345, 0.0
        %373 = vst.msk [vmem:[%s344 + $0x119] sm:$0x1] %vm345, 0.0
        %374 = vst.msk [vmem:[%s344 + $0x131] sm:$0x1] %vm345, 0.0
        %375 = vst.msk [vmem:[%s344 + $0x149] sm:$0x1] %vm345, 0.0
        %376 = vst.msk [vmem:[%s344 + $0x161] sm:$0x1] %vm345, 0.0
        %377 = vst.msk [vmem:[%s344 + $0x179] sm:$0x1] %vm345, 0.0
        %v378 = vld [vmem:[%s325] sm:$0xff]
        %v379 = vld [vmem:[%s325 + $0x8] sm:$0xff]
        %v380 = vld [vmem:[%s325 + $0x10] sm:$0xff]
        %v381 = vld [vmem:[%s325 + $0x18] sm:$0xff]
        %v382 = vld [vmem:[%s325 + $0x20] sm:$0xff]
        %v383 = vld [vmem:[%s325 + $0x28] sm:$0xff]
        %v384 = vld [vmem:[%s325 + $0x30] sm:$0xff]
        %v385 = vld [vmem:[%s325 + $0x38] sm:$0xff]
        %v386 = vld [vmem:[%s325 + $0x40] sm:$0xff]
        %v387 = vld [vmem:[%s325 + $0x48] sm:$0xff]
        %v388 = vld [vmem:[%s325 + $0x50] sm:$0xff]
        %v389 = vld [vmem:[%s325 + $0x58] sm:$0xff]
        %v390 = vld [vmem:[%s325 + $0x60] sm:$0xff]
        %v391 = vld [vmem:[%s325 + $0x68] sm:$0xff]
        %v392 = vld [vmem:[%s325 + $0x70] sm:$0xff]
        %v393 = vld [vmem:[%s325 + $0x78] sm:$0xff]
        %v394 = vld [vmem:[%s325 + $0x80] sm:$0xff]
        %v395 = vld [vmem:[%s325 + $0x88] sm:$0xff]
        %v396 = vld [vmem:[%s325 + $0x90] sm:$0xff]
        %v397 = vld [vmem:[%s325 + $0x98] sm:$0xff]
        %v398 = vld [vmem:[%s325 + $0xa0] sm:$0xff]
        %v399 = vld [vmem:[%s325 + $0xa8] sm:$0xff]
        %v400 = vld [vmem:[%s325 + $0xb0] sm:$0xff]
        %v401 = vld [vmem:[%s325 + $0xb8] sm:$0xff]
        %v402 = vld [vmem:[%s325 + $0xc0] sm:$0xff]
        %v403 = vld [vmem:[%s325 + $0xc8] sm:$0xff]
        %v404 = vld [vmem:[%s325 + $0xd0] sm:$0xff]
        %v405 = vld [vmem:[%s325 + $0xd8] sm:$0xff]
        %v406 = vld [vmem:[%s325 + $0xe0] sm:$0xff]
        %v407 = vld [vmem:[%s325 + $0xe8] sm:$0xff]
        %v408 = vld [vmem:[%s325 + $0xf0] sm:$0xff]
        %v409 = vld [vmem:[%s325 + $0xf8] sm:$0xff]
        %410 = vst.msk [vmem:[%s344 + $0x1] sm:$0xff] %vm335, %v378
        %411 = vst.msk [vmem:[%s344 + $0x9] sm:$0xff] %vm335, %v379
        %412 = vst.msk [vmem:[%s344 + $0x19] sm:$0xff] %vm335, %v380
        %413 = vst.msk [vmem:[%s344 + $0x21] sm:$0xff] %vm335, %v381
        %414 = vst.msk [vmem:[%s344 + $0x31] sm:$0xff] %vm335, %v382
        %415 = vst.msk [vmem:[%s344 + $0x39] sm:$0xff] %vm335, %v383
        %416 = vst.msk [vmem:[%s344 + $0x49] sm:$0xff] %vm335, %v384
        %417 = vst.msk [vmem:[%s344 + $0x51] sm:$0xff] %vm335, %v385
        %418 = vst.msk [vmem:[%s344 + $0x61] sm:$0xff] %vm335, %v386
        %419 = vst.msk [vmem:[%s344 + $0x69] sm:$0xff] %vm335, %v387
        %420 = vst.msk [vmem:[%s344 + $0x79] sm:$0xff] %vm335, %v388
        %421 = vst.msk [vmem:[%s344 + $0x81] sm:$0xff] %vm335, %v389
        %422 = vst.msk [vmem:[%s344 + $0x91] sm:$0xff] %vm335, %v390
        %423 = vst.msk [vmem:[%s344 + $0x99] sm:$0xff] %vm335, %v391
        %424 = vst.msk [vmem:[%s344 + $0xa9] sm:$0xff] %vm335, %v392
        %425 = vst.msk [vmem:[%s344 + $0xb1] sm:$0xff] %vm335, %v393
        %426 = vst.msk [vmem:[%s344 + $0xc1] sm:$0xff] %vm335, %v394
        %427 = vst.msk [vmem:[%s344 + $0xc9] sm:$0xff] %vm335, %v395
        %428 = vst.msk [vmem:[%s344 + $0xd9] sm:$0xff] %vm335, %v396
        %429 = vst.msk [vmem:[%s344 + $0xe1] sm:$0xff] %vm335, %v397
        %430 = vst.msk [vmem:[%s344 + $0xf1] sm:$0xff] %vm335, %v398
        %431 = vst.msk [vmem:[%s344 + $0xf9] sm:$0xff] %vm335, %v399
        %432 = vst.msk [vmem:[%s344 + $0x109] sm:$0xff] %vm335, %v400
        %433 = vst.msk [vmem:[%s344 + $0x111] sm:$0xff] %vm335, %v401
        %434 = vst.msk [vmem:[%s344 + $0x121] sm:$0xff] %vm335, %v402
        %435 = vst.msk [vmem:[%s344 + $0x129] sm:$0xff] %vm335, %v403
        %436 = vst.msk [vmem:[%s344 + $0x139] sm:$0xff] %vm335, %v404
        %437 = vst.msk [vmem:[%s344 + $0x141] sm:$0xff] %vm335, %v405
        %438 = vst.msk [vmem:[%s344 + $0x151] sm:$0xff] %vm335, %v406
        %439 = vst.msk [vmem:[%s344 + $0x159] sm:$0xff] %vm335, %v407
        %440 = vst.msk [vmem:[%s344 + $0x169] sm:$0xff] %vm335, %v408
        %441 = vst.msk [vmem:[%s344 + $0x171] sm:$0xff] %vm335, %v409
        %s442 = scalar_lea.vmem [#allocation2], 432
        %443 = vst.msk [vmem:[%s442] sm:$0xff] %vm335, 0.0
        %444 = vst.msk [vmem:[%s442 + $0x8] sm:$0xff] %vm335, 0.0
        %445 = vst.msk [vmem:[%s442 + $0x10] sm:$0x3] %vm338, 0.0
        %s446 = scalar_lea.vmem [#allocation2], 840
        %447 = vst.msk [vmem:[%s446] sm:$0xff] %vm335, 0.0
        %448 = vst.msk [vmem:[%s446 + $0x8] sm:$0xff] %vm335, 0.0
        %449 = vst.msk [vmem:[%s446 + $0x10] sm:$0x3] %vm338, 0.0
        %s450 = scalar_lea.vmem [#allocation2], 456
        %451 = vst.msk [vmem:[%s450] sm:$0x1] %vm345, 0.0
        %452 = vst.msk [vmem:[%s450 + $0x18] sm:$0x1] %vm345, 0.0
        %453 = vst.msk [vmem:[%s450 + $0x30] sm:$0x1] %vm345, 0.0
        %454 = vst.msk [vmem:[%s450 + $0x48] sm:$0x1] %vm345, 0.0
        %455 = vst.msk [vmem:[%s450 + $0x60] sm:$0x1] %vm345, 0.0
        %456 = vst.msk [vmem:[%s450 + $0x78] sm:$0x1] %vm345, 0.0
        %457 = vst.msk [vmem:[%s450 + $0x90] sm:$0x1] %vm345, 0.0
        %458 = vst.msk [vmem:[%s450 + $0xa8] sm:$0x1] %vm345, 0.0
        %459 = vst.msk [vmem:[%s450 + $0xc0] sm:$0x1] %vm345, 0.0
        %460 = vst.msk [vmem:[%s450 + $0xd8] sm:$0x1] %vm345, 0.0
        %461 = vst.msk [vmem:[%s450 + $0xf0] sm:$0x1] %vm345, 0.0
        %462 = vst.msk [vmem:[%s450 + $0x108] sm:$0x1] %vm345, 0.0
        %463 = vst.msk [vmem:[%s450 + $0x120] sm:$0x1] %vm345, 0.0
        %464 = vst.msk [vmem:[%s450 + $0x138] sm:$0x1] %vm345, 0.0
        %465 = vst.msk [vmem:[%s450 + $0x150] sm:$0x1] %vm345, 0.0
        %466 = vst.msk [vmem:[%s450 + $0x168] sm:$0x1] %vm345, 0.0
        %467 = vst.msk [vmem:[%s450 + $0x11] sm:$0x1] %vm345, 0.0
        %468 = vst.msk [vmem:[%s450 + $0x29] sm:$0x1] %vm345, 0.0
        %469 = vst.msk [vmem:[%s450 + $0x41] sm:$0x1] %vm345, 0.0
        %470 = vst.msk [vmem:[%s450 + $0x59] sm:$0x1] %vm345, 0.0
        %471 = vst.msk [vmem:[%s450 + $0x71] sm:$0x1] %vm345, 0.0
        %472 = vst.msk [vmem:[%s450 + $0x89] sm:$0x1] %vm345, 0.0
        %473 = vst.msk [vmem:[%s450 + $0xa1] sm:$0x1] %vm345, 0.0
        %474 = vst.msk [vmem:[%s450 + $0xb9] sm:$0x1] %vm345, 0.0
        %475 = vst.msk [vmem:[%s450 + $0xd1] sm:$0x1] %vm345, 0.0
        %476 = vst.msk [vmem:[%s450 + $0xe9] sm:$0x1] %vm345, 0.0
        %477 = vst.msk [vmem:[%s450 + $0x101] sm:$0x1] %vm345, 0.0
        %478 = vst.msk [vmem:[%s450 + $0x119] sm:$0x1] %vm345, 0.0
        %479 = vst.msk [vmem:[%s450 + $0x131] sm:$0x1] %vm345, 0.0
        %480 = vst.msk [vmem:[%s450 + $0x149] sm:$0x1] %vm345, 0.0
        %481 = vst.msk [vmem:[%s450 + $0x161] sm:$0x1] %vm345, 0.0
        %482 = vst.msk [vmem:[%s450 + $0x179] sm:$0x1] %vm345, 0.0
        %s483 = scalar_lea.vmem %s325, 256
        %v484 = vld [vmem:[%s483] sm:$0xff]
        %v485 = vld [vmem:[%s483 + $0x8] sm:$0xff]
        %v486 = vld [vmem:[%s483 + $0x10] sm:$0xff]
        %v487 = vld [vmem:[%s483 + $0x18] sm:$0xff]
        %v488 = vld [vmem:[%s483 + $0x20] sm:$0xff]
        %v489 = vld [vmem:[%s483 + $0x28] sm:$0xff]
        %v490 = vld [vmem:[%s483 + $0x30] sm:$0xff]
        %v491 = vld [vmem:[%s483 + $0x38] sm:$0xff]
        %v492 = vld [vmem:[%s483 + $0x40] sm:$0xff]
        %v493 = vld [vmem:[%s483 + $0x48] sm:$0xff]
        %v494 = vld [vmem:[%s483 + $0x50] sm:$0xff]
        %v495 = vld [vmem:[%s483 + $0x58] sm:$0xff]
        %v496 = vld [vmem:[%s483 + $0x60] sm:$0xff]
        %v497 = vld [vmem:[%s483 + $0x68] sm:$0xff]
        %v498 = vld [vmem:[%s483 + $0x70] sm:$0xff]
        %v499 = vld [vmem:[%s483 + $0x78] sm:$0xff]
        %v500 = vld [vmem:[%s483 + $0x80] sm:$0xff]
        %v501 = vld [vmem:[%s483 + $0x88] sm:$0xff]
        %v502 = vld [vmem:[%s483 + $0x90] sm:$0xff]
        %v503 = vld [vmem:[%s483 + $0x98] sm:$0xff]
        %v504 = vld [vmem:[%s483 + $0xa0] sm:$0xff]
        %v505 = vld [vmem:[%s483 + $0xa8] sm:$0xff]
        %v506 = vld [vmem:[%s483 + $0xb0] sm:$0xff]
        %v507 = vld [vmem:[%s483 + $0xb8] sm:$0xff]
        %v508 = vld [vmem:[%s483 + $0xc0] sm:$0xff]
        %v509 = vld [vmem:[%s483 + $0xc8] sm:$0xff]
        %v510 = vld [vmem:[%s483 + $0xd0] sm:$0xff]
        %v511 = vld [vmem:[%s483 + $0xd8] sm:$0xff]
        %v512 = vld [vmem:[%s483 + $0xe0] sm:$0xff]
        %v513 = vld [vmem:[%s483 + $0xe8] sm:$0xff]
        %v514 = vld [vmem:[%s483 + $0xf0] sm:$0xff]
        %v515 = vld [vmem:[%s483 + $0xf8] sm:$0xff]
        %516 = vst.msk [vmem:[%s450 + $0x1] sm:$0xff] %vm335, %v484
        %517 = vst.msk [vmem:[%s450 + $0x9] sm:$0xff] %vm335, %v485
        %518 = vst.msk [vmem:[%s450 + $0x19] sm:$0xff] %vm335, %v486
        %519 = vst.msk [vmem:[%s450 + $0x21] sm:$0xff] %vm335, %v487
        %520 = vst.msk [vmem:[%s450 + $0x31] sm:$0xff] %vm335, %v488
        %521 = vst.msk [vmem:[%s450 + $0x39] sm:$0xff] %vm335, %v489
        %522 = vst.msk [vmem:[%s450 + $0x49] sm:$0xff] %vm335, %v490
        %523 = vst.msk [vmem:[%s450 + $0x51] sm:$0xff] %vm335, %v491
        %524 = vst.msk [vmem:[%s450 + $0x61] sm:$0xff] %vm335, %v492
        %525 = vst.msk [vmem:[%s450 + $0x69] sm:$0xff] %vm335, %v493
        %526 = vst.msk [vmem:[%s450 + $0x79] sm:$0xff] %vm335, %v494
        %527 = vst.msk [vmem:[%s450 + $0x81] sm:$0xff] %vm335, %v495
        %528 = vst.msk [vmem:[%s450 + $0x91] sm:$0xff] %vm335, %v496
        %529 = vst.msk [vmem:[%s450 + $0x99] sm:$0xff] %vm335, %v497
        %530 = vst.msk [vmem:[%s450 + $0xa9] sm:$0xff] %vm335, %v498
        %531 = vst.msk [vmem:[%s450 + $0xb1] sm:$0xff] %vm335, %v499
        %532 = vst.msk [vmem:[%s450 + $0xc1] sm:$0xff] %vm335, %v500
        %533 = vst.msk [vmem:[%s450 + $0xc9] sm:$0xff] %vm335, %v501
        %534 = vst.msk [vmem:[%s450 + $0xd9] sm:$0xff] %vm335, %v502
        %535 = vst.msk [vmem:[%s450 + $0xe1] sm:$0xff] %vm335, %v503
        %536 = vst.msk [vmem:[%s450 + $0xf1] sm:$0xff] %vm335, %v504
        %537 = vst.msk [vmem:[%s450 + $0xf9] sm:$0xff] %vm335, %v505
        %538 = vst.msk [vmem:[%s450 + $0x109] sm:$0xff] %vm335, %v506
        %539 = vst.msk [vmem:[%s450 + $0x111] sm:$0xff] %vm335, %v507
        %540 = vst.msk [vmem:[%s450 + $0x121] sm:$0xff] %vm335, %v508
        %541 = vst.msk [vmem:[%s450 + $0x129] sm:$0xff] %vm335, %v509
        %542 = vst.msk [vmem:[%s450 + $0x139] sm:$0xff] %vm335, %v510
        %543 = vst.msk [vmem:[%s450 + $0x141] sm:$0xff] %vm335, %v511
        %544 = vst.msk [vmem:[%s450 + $0x151] sm:$0xff] %vm335, %v512
        %545 = vst.msk [vmem:[%s450 + $0x159] sm:$0xff] %vm335, %v513
        %546 = vst.msk [vmem:[%s450 + $0x169] sm:$0xff] %vm335, %v514
        %547 = vst.msk [vmem:[%s450 + $0x171] sm:$0xff] %vm335, %v515
        %v548 = vld [vmem:[#allocation2] sm:$0xff]
        %v549 = vld [vmem:[#allocation2 + $0x8] sm:$0xff]
        %v550 = vld [vmem:[#allocation2 + $0x18] sm:$0xff]
        %v551 = vld [vmem:[#allocation2 + $0x20] sm:$0xff]
        %v552 = vld [vmem:[#allocation2 + $0x30] sm:$0xff]
        %v553 = vld [vmem:[#allocation2 + $0x38] sm:$0xff]
        %v554 = vld [vmem:[#allocation2 + $0x48] sm:$0xff]
        %v555 = vld [vmem:[#allocation2 + $0x50] sm:$0xff]
        %v556 = vld [vmem:[#allocation2 + $0x60] sm:$0xff]
        %v557 = vld [vmem:[#allocation2 + $0x68] sm:$0xff]
        %v558 = vld [vmem:[#allocation2 + $0x78] sm:$0xff]
        %v559 = vld [vmem:[#allocation2 + $0x80] sm:$0xff]
        %v560 = vld [vmem:[#allocation2 + $0x90] sm:$0xff]
        %v561 = vld [vmem:[#allocation2 + $0x98] sm:$0xff]
        %v562 = vld [vmem:[#allocation2 + $0xa8] sm:$0xff]
        %v563 = vld [vmem:[#allocation2 + $0xb0] sm:$0xff]
        %v564 = vld [vmem:[#allocation2 + $0xc0] sm:$0xff]
        %v565 = vld [vmem:[#allocation2 + $0xc8] sm:$0xff]
        %v566 = vld [vmem:[#allocation2 + $0xd8] sm:$0xff]
        %v567 = vld [vmem:[#allocation2 + $0xe0] sm:$0xff]
        %v568 = vld [vmem:[#allocation2 + $0xf0] sm:$0xff]
        %v569 = vld [vmem:[#allocation2 + $0xf8] sm:$0xff]
        %v570 = vld [vmem:[#allocation2 + $0x108] sm:$0xff]
        %v571 = vld [vmem:[#allocation2 + $0x110] sm:$0xff]
        %v572 = vld [vmem:[#allocation2 + $0x120] sm:$0xff]
        %v573 = vld [vmem:[#allocation2 + $0x128] sm:$0xff]
        %v574 = vld [vmem:[#allocation2 + $0x138] sm:$0xff]
        %v575 = vld [vmem:[#allocation2 + $0x140] sm:$0xff]
        %v576 = vld [vmem:[#allocation2 + $0x150] sm:$0xff]
        %v577 = vld [vmem:[#allocation2 + $0x158] sm:$0xff]
        %v578 = vld [vmem:[#allocation2 + $0x168] sm:$0xff]
        %v579 = vld [vmem:[#allocation2 + $0x170] sm:$0xff]
        %v580 = vld [vmem:[%s442] sm:$0xff]
        %v581 = vld [vmem:[%s442 + $0x8] sm:$0xff]
        %v582 = vld [vmem:[%s442 + $0x18] sm:$0xff]
        %v583 = vld [vmem:[%s442 + $0x20] sm:$0xff]
        %v584 = vld [vmem:[%s442 + $0x30] sm:$0xff]
        %v585 = vld [vmem:[%s442 + $0x38] sm:$0xff]
        %v586 = vld [vmem:[%s442 + $0x48] sm:$0xff]
        %v587 = vld [vmem:[%s442 + $0x50] sm:$0xff]
        %v588 = vld [vmem:[%s442 + $0x60] sm:$0xff]
        %v589 = vld [vmem:[%s442 + $0x68] sm:$0xff]
        %v590 = vld [vmem:[%s442 + $0x78] sm:$0xff]
        %v591 = vld [vmem:[%s442 + $0x80] sm:$0xff]
        %v592 = vld [vmem:[%s442 + $0x90] sm:$0xff]
        %v593 = vld [vmem:[%s442 + $0x98] sm:$0xff]
        %v594 = vld [vmem:[%s442 + $0xa8] sm:$0xff]
        %v595 = vld [vmem:[%s442 + $0xb0] sm:$0xff]
        %v596 = vld [vmem:[%s442 + $0xc0] sm:$0xff]
        %v597 = vld [vmem:[%s442 + $0xc8] sm:$0xff]
        %v598 = vld [vmem:[%s442 + $0xd8] sm:$0xff]
        %v599 = vld [vmem:[%s442 + $0xe0] sm:$0xff]
        %v600 = vld [vmem:[%s442 + $0xf0] sm:$0xff]
        %v601 = vld [vmem:[%s442 + $0xf8] sm:$0xff]
        %v602 = vld [vmem:[%s442 + $0x108] sm:$0xff]
        %v603 = vld [vmem:[%s442 + $0x110] sm:$0xff]
        %v604 = vld [vmem:[%s442 + $0x120] sm:$0xff]
        %v605 = vld [vmem:[%s442 + $0x128] sm:$0xff]
        %v606 = vld [vmem:[%s442 + $0x138] sm:$0xff]
        %v607 = vld [vmem:[%s442 + $0x140] sm:$0xff]
        %v608 = vld [vmem:[%s442 + $0x150] sm:$0xff]
        %v609 = vld [vmem:[%s442 + $0x158] sm:$0xff]
        %v610 = vld [vmem:[%s442 + $0x168] sm:$0xff]
        %v611 = vld [vmem:[%s442 + $0x170] sm:$0xff]
        %v612 = vld [vmem:[%s2] sm:$0xff]
        %v613 = vld [vmem:[#allocation2 + $0x1] sm:$0xff]
        %v614 = vld [vmem:[#allocation2 + $0x9] sm:$0xff]
        %v615 = vld [vmem:[#allocation2 + $0x19] sm:$0xff]
        %v616 = vld [vmem:[#allocation2 + $0x21] sm:$0xff]
        %v617 = vld [vmem:[#allocation2 + $0x31] sm:$0xff]
        %v618 = vld [vmem:[#allocation2 + $0x39] sm:$0xff]
        %v619 = vld [vmem:[#allocation2 + $0x49] sm:$0xff]
        %v620 = vld [vmem:[#allocation2 + $0x51] sm:$0xff]
        %v621 = vld [vmem:[#allocation2 + $0x61] sm:$0xff]
        %v622 = vld [vmem:[#allocation2 + $0x69] sm:$0xff]
        %v623 = vld [vmem:[#allocation2 + $0x79] sm:$0xff]
        %v624 = vld [vmem:[#allocation2 + $0x81] sm:$0xff]
        %v625 = vld [vmem:[#allocation2 + $0x91] sm:$0xff]
        %v626 = vld [vmem:[#allocation2 + $0x99] sm:$0xff]
        %v627 = vld [vmem:[#allocation2 + $0xa9] sm:$0xff]
        %v628 = vld [vmem:[#allocation2 + $0xb1] sm:$0xff]
        %v629 = vld [vmem:[#allocation2 + $0xc1] sm:$0xff]
        %v630 = vld [vmem:[#allocation2 + $0xc9] sm:$0xff]
        %v631 = vld [vmem:[#allocation2 + $0xd9] sm:$0xff]
        %v632 = vld [vmem:[#allocation2 + $0xe1] sm:$0xff]
        %v633 = vld [vmem:[#allocation2 + $0xf1] sm:$0xff]
        %v634 = vld [vmem:[#allocation2 + $0xf9] sm:$0xff]
        %v635 = vld [vmem:[#allocation2 + $0x109] sm:$0xff]
        %v636 = vld [vmem:[#allocation2 + $0x111] sm:$0xff]
        %v637 = vld [vmem:[#allocation2 + $0x121] sm:$0xff]
        %v638 = vld [vmem:[#allocation2 + $0x129] sm:$0xff]
        %v639 = vld [vmem:[#allocation2 + $0x139] sm:$0xff]
        %v640 = vld [vmem:[#allocation2 + $0x141] sm:$0xff]
        %v641 = vld [vmem:[#allocation2 + $0x151] sm:$0xff]
        %v642 = vld [vmem:[#allocation2 + $0x159] sm:$0xff]
        %v643 = vld [vmem:[#allocation2 + $0x169] sm:$0xff]
        %v644 = vld [vmem:[#allocation2 + $0x171] sm:$0xff]
        %v645 = vld [vmem:[%s442 + $0x1] sm:$0xff]
        %v646 = vld [vmem:[%s442 + $0x9] sm:$0xff]
        %v647 = vld [vmem:[%s442 + $0x19] sm:$0xff]
        %v648 = vld [vmem:[%s442 + $0x21] sm:$0xff]
        %v649 = vld [vmem:[%s442 + $0x31] sm:$0xff]
        %v650 = vld [vmem:[%s442 + $0x39] sm:$0xff]
        %v651 = vld [vmem:[%s442 + $0x49] sm:$0xff]
        %v652 = vld [vmem:[%s442 + $0x51] sm:$0xff]
        %v653 = vld [vmem:[%s442 + $0x61] sm:$0xff]
        %v654 = vld [vmem:[%s442 + $0x69] sm:$0xff]
        %v655 = vld [vmem:[%s442 + $0x79] sm:$0xff]
        %v656 = vld [vmem:[%s442 + $0x81] sm:$0xff]
        %v657 = vld [vmem:[%s442 + $0x91] sm:$0xff]
        %v658 = vld [vmem:[%s442 + $0x99] sm:$0xff]
        %v659 = vld [vmem:[%s442 + $0xa9] sm:$0xff]
        %v660 = vld [vmem:[%s442 + $0xb1] sm:$0xff]
        %v661 = vld [vmem:[%s442 + $0xc1] sm:$0xff]
        %v662 = vld [vmem:[%s442 + $0xc9] sm:$0xff]
        %v663 = vld [vmem:[%s442 + $0xd9] sm:$0xff]
        %v664 = vld [vmem:[%s442 + $0xe1] sm:$0xff]
        %v665 = vld [vmem:[%s442 + $0xf1] sm:$0xff]
        %v666 = vld [vmem:[%s442 + $0xf9] sm:$0xff]
        %v667 = vld [vmem:[%s442 + $0x109] sm:$0xff]
        %v668 = vld [vmem:[%s442 + $0x111] sm:$0xff]
        %v669 = vld [vmem:[%s442 + $0x121] sm:$0xff]
        %v670 = vld [vmem:[%s442 + $0x129] sm:$0xff]
        %v671 = vld [vmem:[%s442 + $0x139] sm:$0xff]
        %v672 = vld [vmem:[%s442 + $0x141] sm:$0xff]
        %v673 = vld [vmem:[%s442 + $0x151] sm:$0xff]
        %v674 = vld [vmem:[%s442 + $0x159] sm:$0xff]
        %v675 = vld [vmem:[%s442 + $0x169] sm:$0xff]
        %v676 = vld [vmem:[%s442 + $0x171] sm:$0xff]
        %v677 = vld [vmem:[%s2 + $0x8] sm:$0xff]
        %v679 = vsel %vm335, %v613, 0
        %v682 = vsel %vm335, %v614, 0
        %v685 = vsel %vm335, %v615, 0
        %v688 = vsel %vm335, %v616, 0
        %v691 = vsel %vm335, %v617, 0
        %v694 = vsel %vm335, %v618, 0
        %v697 = vsel %vm335, %v619, 0
        %v700 = vsel %vm335, %v620, 0
        %v703 = vsel %vm335, %v621, 0
        %v706 = vsel %vm335, %v622, 0
        %v709 = vsel %vm335, %v623, 0
        %v712 = vsel %vm335, %v624, 0
        %v715 = vsel %vm335, %v625, 0
        %v718 = vsel %vm335, %v626, 0
        %v721 = vsel %vm335, %v627, 0
        %v724 = vsel %vm335, %v628, 0
        %v727 = vsel %vm335, %v629, 0
        %v730 = vsel %vm335, %v630, 0
        %v733 = vsel %vm335, %v631, 0
        %v736 = vsel %vm335, %v632, 0
        %v739 = vsel %vm335, %v633, 0
        %v742 = vsel %vm335, %v634, 0
        %v745 = vsel %vm335, %v635, 0
        %v748 = vsel %vm335, %v636, 0
        %v751 = vsel %vm335, %v637, 0
        %v754 = vsel %vm335, %v638, 0
        %v757 = vsel %vm335, %v639, 0
        %v760 = vsel %vm335, %v640, 0
        %v763 = vsel %vm335, %v641, 0
        %v766 = vsel %vm335, %v642, 0
        %v769 = vsel %vm335, %v643, 0
        %v772 = vsel %vm335, %v644, 0
        %v775 = vsel %vm335, %v645, 0
        %v778 = vsel %vm335, %v646, 0
        %v781 = vsel %vm335, %v647, 0
        %v784 = vsel %vm335, %v648, 0
        %v787 = vsel %vm335, %v649, 0
        %v790 = vsel %vm335, %v650, 0
        %v793 = vsel %vm335, %v651, 0
        %v796 = vsel %vm335, %v652, 0
        %v799 = vsel %vm335, %v653, 0
        %v802 = vsel %vm335, %v654, 0
        %v805 = vsel %vm335, %v655, 0
        %v808 = vsel %vm335, %v656, 0
        %v811 = vsel %vm335, %v657, 0
        %v814 = vsel %vm335, %v658, 0
        %v817 = vsel %vm335, %v659, 0
        %v820 = vsel %vm335, %v660, 0
        %v823 = vsel %vm335, %v661, 0
        %v826 = vsel %vm335, %v662, 0
        %v829 = vsel %vm335, %v663, 0
        %v832 = vsel %vm335, %v664, 0
        %v835 = vsel %vm335, %v665, 0
        %v838 = vsel %vm335, %v666, 0
        %v841 = vsel %vm335, %v667, 0
        %v844 = vsel %vm335, %v668, 0
        %v847 = vsel %vm335, %v669, 0
        %v850 = vsel %vm335, %v670, 0
        %v853 = vsel %vm335, %v671, 0
        %v856 = vsel %vm335, %v672, 0
        %v859 = vsel %vm335, %v673, 0
        %v862 = vsel %vm335, %v674, 0
        %v865 = vsel %vm335, %v675, 0
        %v868 = vsel %vm335, %v676, 0
        %870 = vmatprep.subr.mxu0 0.0
        %871 = vmatpush1.msra.mxu0 %v677
        %872 = vmatprep.subr.mxu0 0.0
        %873 = vmatpush1.msra.mxu0 0.0
        %874 = vmatprep.subr.mxu0 0.0
        %875 = vmatpush1.msra.mxu0 0.0
        %876 = vmatprep.subr.mxu0 0.0
        %877 = vmatpush1.msra.mxu0 0.0
        %878 = vmatprep.subr.mxu0 0.0
        %879 = vmatpush1.msra.mxu0 0.0
        %880 = vmatprep.subr.mxu0 0.0
        %881 = vmatpush1.msra.mxu0 0.0
        %882 = vmatprep.subr.mxu0 0.0
        %883 = vmatpush1.msra.mxu0 0.0
        %884 = vmatprep.subr.mxu0 0.0
        %885 = vmatpush1.msra.mxu0 0.0
        %886 = vmatprep.subr.mxu0 0.0
        %887 = vmatpush1.msra.mxu0 0.0
        %888 = vmatprep.subr.mxu0 0.0
        %889 = vmatpush1.msra.mxu0 0.0
        %890 = vmatprep.subr.mxu0 0.0
        %891 = vmatpush1.msra.mxu0 0.0
        %892 = vmatprep.subr.mxu0 0.0
        %893 = vmatpush1.msra.mxu0 0.0
        %894 = vmatprep.subr.mxu0 0.0
        %895 = vmatpush1.msra.mxu0 0.0
        %896 = vmatprep.subr.mxu0 0.0
        %897 = vmatpush1.msra.mxu0 0.0
        %898 = vmatprep.subr.mxu0 0.0
        %899 = vmatpush1.msra.mxu0 0.0
        %900 = vmatprep.subr.mxu0 0.0
        %901 = vmatpush1.msra.mxu0 0.0
        %902 = vmatprep.subr.mxu0 0.0
        %903 = vmatpush1.msra.mxu0 0.0
        %904 = vmatprep.subr.mxu0 0.0
        %905 = vmatpush1.msra.mxu0 0.0
        %906 = vmatprep.subr.mxu0 0.0
        %907 = vmatpush1.msra.mxu0 0.0
        %908 = vmatprep.subr.mxu0 0.0
        %909 = vmatpush1.msra.mxu0 0.0
        %910 = vmatprep.subr.mxu0 0.0
        %911 = vmatpush1.msra.mxu0 0.0
        %912 = vmatprep.subr.mxu0 0.0
        %913 = vmatpush1.msra.mxu0 0.0
        %914 = vmatprep.subr.mxu0 0.0
        %915 = vmatpush1.msra.mxu0 0.0
        %916 = vmatprep.subr.mxu0 0.0
        %917 = vmatpush1.msra.mxu0 0.0
        %918 = vmatprep.subr.mxu0 0.0
        %919 = vmatpush1.msra.mxu0 0.0
        %920 = vmatprep.subr.mxu0 0.0
        %921 = vmatpush1.msra.mxu0 0.0
        %922 = vmatprep.subr.mxu0 0.0
        %923 = vmatpush1.msra.mxu0 0.0
        %924 = vmatprep.subr.mxu0 0.0
        %925 = vmatpush1.msra.mxu0 0.0
        %926 = vmatprep.subr.mxu0 0.0
        %927 = vmatpush1.msra.mxu0 0.0
        %928 = vmatprep.subr.mxu0 0.0
        %929 = vmatpush1.msra.mxu0 0.0
        %930 = vmatprep.subr.mxu0 0.0
        %931 = vmatpush1.msra.mxu0 0.0
        %932 = vmatprep.subr.mxu0 0.0
        %933 = vmatpush1.msra.mxu0 0.0
        %934 = vmatprep.mubr.f32.mxu0 0.0
        %935 = vmatmul.mubr.f32.gmra.mrb[0].mxu0 %v679
        %v936 = vpop.f32.mrb[0].mxu0
        %v937 = vadd.f32 0.0, %v936
        %v938 = vpop.f32.mrb[0].mxu0
        %939 = vmatprep.mubr.f32.mxu0 0.0
        %940 = vmatmul.mubr.f32.gmra.mrb[0].mxu0 %v682
        %v941 = vpop.f32.mrb[0].mxu0
        %v942 = vadd.f32 0.0, %v941
        %v943 = vpop.f32.mrb[0].mxu0
        %944 = vmatprep.mubr.f32.mxu0 0.0
        %945 = vmatmul.mubr.f32.gmra.mrb[0].mxu0 %v685
        %v946 = vpop.f32.mrb[0].mxu0
        %v947 = vadd.f32 0.0, %v946
        %v948 = vpop.f32.mrb[0].mxu0
        %949 = vmatprep.mubr.f32.mxu0 0.0
        %950 = vmatmul.mubr.f32.gmra.mrb[0].mxu0 %v688
        %v951 = vpop.f32.mrb[0].mxu0
        %v952 = vadd.f32 0.0, %v951
        %v953 = vpop.f32.mrb[0].mxu0
        %954 = vmatprep.mubr.f32.mxu0 0.0
        %955 = vmatmul.mubr.f32.gmra.mrb[0].mxu0 %v691
        %v956 = vpop.f32.mrb[0].mxu0
        %v957 = vadd.f32 0.0, %v956
        %v958 = vpop.f32.mrb[0].mxu0
        %959 = vmatprep.mubr.f32.mxu0 0.0
        %960 = vmatmul.mubr.f32.gmra.mrb[0].mxu0 %v694
        %v961 = vpop.f32.mrb[0].mxu0
        %v962 = vadd.f32 0.0, %v961
        %v963 = vpop.f32.mrb[0].mxu0
        %964 = vmatprep.mubr.f32.mxu0 0.0
        %965 = vmatmul.mubr.f32.gmra.mrb[0].mxu0 %v697
        %v966 = vpop.f32.mrb[0].mxu0
        %v967 = vadd.f32 0.0, %v966
        %v968 = vpop.f32.mrb[0].mxu0
        %969 = vmatprep.mubr.f32.mxu0 0.0
        %970 = vmatmul.mubr.f32.gmra.mrb[0].mxu0 %v700
        %v971 = vpop.f32.mrb[0].mxu0
        %v972 = vadd.f32 0.0, %v971
        %v973 = vpop.f32.mrb[0].mxu0
        %974 = vmatprep.mubr.f32.mxu0 0.0
        %975 = vmatmul.mubr.f32.gmra.mrb[0].mxu0 %v703
        %v976 = vpop.f32.mrb[0].mxu0
        %v977 = vadd.f32 0.0, %v976
        %v978 = vpop.f32.mrb[0].mxu0
        %979 = vmatprep.mubr.f32.mxu0 0.0
        %980 = vmatmul.mubr.f32.gmra.mrb[0].mxu0 %v706
        %v981 = vpop.f32.mrb[0].mxu0
        %v982 = vadd.f32 0.0, %v981
        %v983 = vpop.f32.mrb[0].mxu0
        %984 = vmatprep.mubr.f32.mxu0 0.0
        %985 = vmatmul.mubr.f32.gmra.mrb[0].mxu0 %v709
        %v986 = vpop.f32.mrb[0].mxu0
        %v987 = vadd.f32 0.0, %v986
        %v988 = vpop.f32.mrb[0].mxu0
        %989 = vmatprep.mubr.f32.mxu0 0.0
        %990 = vmatmul.mubr.f32.gmra.mrb[0].mxu0 %v712
        %v991 = vpop.f32.mrb[0].mxu0
        %v992 = vadd.f32 0.0, %v991
        %v993 = vpop.f32.mrb[0].mxu0
        %994 = vmatprep.mubr.f32.mxu0 0.0
        %995 = vmatmul.mubr.f32.gmra.mrb[0].mxu0 %v715
        %v996 = vpop.f32.mrb[0].mxu0
        %v997 = vadd.f32 0.0, %v996
        %v998 = vpop.f32.mrb[0].mxu0
        %999 = vmatprep.mubr.f32.mxu0 0.0
        %1000 = vmatmul.mubr.f32.gmra.mrb[0].mxu0 %v718
        %v1001 = vpop.f32.mrb[0].mxu0
        %v1002 = vadd.f32 0.0, %v1001
        %v1003 = vpop.f32.mrb[0].mxu0
        %1004 = vmatprep.mubr.f32.mxu0 0.0
        %1005 = vmatmul.mubr.f32.gmra.mrb[0].mxu0 %v721
        %v1006 = vpop.f32.mrb[0].mxu0
        %v1007 = vadd.f32 0.0, %v1006
        %v1008 = vpop.f32.mrb[0].mxu0
        %1009 = vmatprep.mubr.f32.mxu0 0.0
        %1010 = vmatmul.mubr.f32.gmra.mrb[0].mxu0 %v724
        %v1011 = vpop.f32.mrb[0].mxu0
        %v1012 = vadd.f32 0.0, %v1011
        %v1013 = vpop.f32.mrb[0].mxu0
        %1014 = vmatprep.mubr.f32.mxu0 0.0
        %1015 = vmatmul.mubr.f32.gmra.mrb[0].mxu0 %v727
        %v1016 = vpop.f32.mrb[0].mxu0
        %v1017 = vadd.f32 0.0, %v1016
        %v1018 = vpop.f32.mrb[0].mxu0
        %1019 = vmatprep.mubr.f32.mxu0 0.0
        %1020 = vmatmul.mubr.f32.gmra.mrb[0].mxu0 %v730
        %v1021 = vpop.f32.mrb[0].mxu0
        %v1022 = vadd.f32 0.0, %v1021
        %v1023 = vpop.f32.mrb[0].mxu0
        %1024 = vmatprep.mubr.f32.mxu0 0.0
        %1025 = vmatmul.mubr.f32.gmra.mrb[0].mxu0 %v733
        %v1026 = vpop.f32.mrb[0].mxu0
        %v1027 = vadd.f32 0.0, %v1026
        %v1028 = vpop.f32.mrb[0].mxu0
        %1029 = vmatprep.mubr.f32.mxu0 0.0
        %1030 = vmatmul.mubr.f32.gmra.mrb[0].mxu0 %v736
        %v1031 = vpop.f32.mrb[0].mxu0
        %v1032 = vadd.f32 0.0, %v1031
        %v1033 = vpop.f32.mrb[0].mxu0
        %1034 = vmatprep.mubr.f32.mxu0 0.0
        %1035 = vmatmul.mubr.f32.gmra.mrb[0].mxu0 %v739
        %v1036 = vpop.f32.mrb[0].mxu0
        %v1037 = vadd.f32 0.0, %v1036
        %v1038 = vpop.f32.mrb[0].mxu0
        %1039 = vmatprep.mubr.f32.mxu0 0.0
        %1040 = vmatmul.mubr.f32.gmra.mrb[0].mxu0 %v742
        %v1041 = vpop.f32.mrb[0].mxu0
        %v1042 = vadd.f32 0.0, %v1041
        %v1043 = vpop.f32.mrb[0].mxu0
        %1044 = vmatprep.mubr.f32.mxu0 0.0
        %1045 = vmatmul.mubr.f32.gmra.mrb[0].mxu0 %v745
        %v1046 = vpop.f32.mrb[0].mxu0
        %v1047 = vadd.f32 0.0, %v1046
        %v1048 = vpop.f32.mrb[0].mxu0
        %1049 = vmatprep.mubr.f32.mxu0 0.0
        %1050 = vmatmul.mubr.f32.gmra.mrb[0].mxu0 %v748
        %v1051 = vpop.f32.mrb[0].mxu0
        %v1052 = vadd.f32 0.0, %v1051
        %v1053 = vpop.f32.mrb[0].mxu0
        %1054 = vmatprep.mubr.f32.mxu0 0.0
        %1055 = vmatmul.mubr.f32.gmra.mrb[0].mxu0 %v751
        %v1056 = vpop.f32.mrb[0].mxu0
        %v1057 = vadd.f32 0.0, %v1056
        %v1058 = vpop.f32.mrb[0].mxu0
        %1059 = vmatprep.mubr.f32.mxu0 0.0
        %1060 = vmatmul.mubr.f32.gmra.mrb[0].mxu0 %v754
        %v1061 = vpop.f32.mrb[0].mxu0
        %v1062 = vadd.f32 0.0, %v1061
        %v1063 = vpop.f32.mrb[0].mxu0
        %1064 = vmatprep.mubr.f32.mxu0 0.0
        %1065 = vmatmul.mubr.f32.gmra.mrb[0].mxu0 %v757
        %v1066 = vpop.f32.mrb[0].mxu0
        %v1067 = vadd.f32 0.0, %v1066
        %v1068 = vpop.f32.mrb[0].mxu0
        %1069 = vmatprep.mubr.f32.mxu0 0.0
        %1070 = vmatmul.mubr.f32.gmra.mrb[0].mxu0 %v760
        %v1071 = vpop.f32.mrb[0].mxu0
        %v1072 = vadd.f32 0.0, %v1071
        %v1073 = vpop.f32.mrb[0].mxu0
        %1074 = vmatprep.mubr.f32.mxu0 0.0
        %1075 = vmatmul.mubr.f32.gmra.mrb[0].mxu0 %v763
        %v1076 = vpop.f32.mrb[0].mxu0
        %v1077 = vadd.f32 0.0, %v1076
        %v1078 = vpop.f32.mrb[0].mxu0
        %1079 = vmatprep.mubr.f32.mxu0 0.0
        %1080 = vmatmul.mubr.f32.gmra.mrb[0].mxu0 %v766
        %v1081 = vpop.f32.mrb[0].mxu0
        %v1082 = vadd.f32 0.0, %v1081
        %v1083 = vpop.f32.mrb[0].mxu0
        %1084 = vmatprep.mubr.f32.mxu0 0.0
        %1085 = vmatmul.mubr.f32.gmra.mrb[0].mxu0 %v769
        %v1086 = vpop.f32.mrb[0].mxu0
        %v1087 = vadd.f32 0.0, %v1086
        %v1088 = vpop.f32.mrb[0].mxu0
        %1089 = vmatprep.mubr.f32.mxu0 0.0
        %1090 = vmatmul.mubr.f32.gmra.mrb[0].mxu0 %v772
        %v1091 = vpop.f32.mrb[0].mxu0
        %v1092 = vadd.f32 0.0, %v1091
        %v1093 = vpop.f32.mrb[0].mxu0
        %1094 = vmatprep.mubr.f32.mxu0 0.0
        %1095 = vmatmul.mubr.f32.gmra.mrb[0].mxu0 %v775
        %v1096 = vpop.f32.mrb[0].mxu0
        %v1097 = vadd.f32 0.0, %v1096
        %v1098 = vpop.f32.mrb[0].mxu0
        %1099 = vmatprep.mubr.f32.mxu0 0.0
        %1100 = vmatmul.mubr.f32.gmra.mrb[0].mxu0 %v778
        %v1101 = vpop.f32.mrb[0].mxu0
        %v1102 = vadd.f32 0.0, %v1101
        %v1103 = vpop.f32.mrb[0].mxu0
        %1104 = vmatprep.mubr.f32.mxu0 0.0
        %1105 = vmatmul.mubr.f32.gmra.mrb[0].mxu0 %v781
        %v1106 = vpop.f32.mrb[0].mxu0
        %v1107 = vadd.f32 0.0, %v1106
        %v1108 = vpop.f32.mrb[0].mxu0
        %1109 = vmatprep.mubr.f32.mxu0 0.0
        %1110 = vmatmul.mubr.f32.gmra.mrb[0].mxu0 %v784
        %v1111 = vpop.f32.mrb[0].mxu0
        %v1112 = vadd.f32 0.0, %v1111
        %v1113 = vpop.f32.mrb[0].mxu0
        %1114 = vmatprep.mubr.f32.mxu0 0.0
        %1115 = vmatmul.mubr.f32.gmra.mrb[0].mxu0 %v787
        %v1116 = vpop.f32.mrb[0].mxu0
        %v1117 = vadd.f32 0.0, %v1116
        %v1118 = vpop.f32.mrb[0].mxu0
        %1119 = vmatprep.mubr.f32.mxu0 0.0
        %1120 = vmatmul.mubr.f32.gmra.mrb[0].mxu0 %v790
        %v1121 = vpop.f32.mrb[0].mxu0
        %v1122 = vadd.f32 0.0, %v1121
        %v1123 = vpop.f32.mrb[0].mxu0
        %1124 = vmatprep.mubr.f32.mxu0 0.0
        %1125 = vmatmul.mubr.f32.gmra.mrb[0].mxu0 %v793
        %v1126 = vpop.f32.mrb[0].mxu0
        %v1127 = vadd.f32 0.0, %v1126
        %v1128 = vpop.f32.mrb[0].mxu0
        %1129 = vmatprep.mubr.f32.mxu0 0.0
        %1130 = vmatmul.mubr.f32.gmra.mrb[0].mxu0 %v796
        %v1131 = vpop.f32.mrb[0].mxu0
        %v1132 = vadd.f32 0.0, %v1131
        %v1133 = vpop.f32.mrb[0].mxu0
        %1134 = vmatprep.mubr.f32.mxu0 0.0
        %1135 = vmatmul.mubr.f32.gmra.mrb[0].mxu0 %v799
        %v1136 = vpop.f32.mrb[0].mxu0
        %v1137 = vadd.f32 0.0, %v1136
        %v1138 = vpop.f32.mrb[0].mxu0
        %1139 = vmatprep.mubr.f32.mxu0 0.0
        %1140 = vmatmul.mubr.f32.gmra.mrb[0].mxu0 %v802
        %v1141 = vpop.f32.mrb[0].mxu0
        %v1142 = vadd.f32 0.0, %v1141
        %v1143 = vpop.f32.mrb[0].mxu0
        %1144 = vmatprep.mubr.f32.mxu0 0.0
        %1145 = vmatmul.mubr.f32.gmra.mrb[0].mxu0 %v805
        %v1146 = vpop.f32.mrb[0].mxu0
        %v1147 = vadd.f32 0.0, %v1146
        %v1148 = vpop.f32.mrb[0].mxu0
        %1149 = vmatprep.mubr.f32.mxu0 0.0
        %1150 = vmatmul.mubr.f32.gmra.mrb[0].mxu0 %v808
        %v1151 = vpop.f32.mrb[0].mxu0
        %v1152 = vadd.f32 0.0, %v1151
        %v1153 = vpop.f32.mrb[0].mxu0
        %1154 = vmatprep.mubr.f32.mxu0 0.0
        %1155 = vmatmul.mubr.f32.gmra.mrb[0].mxu0 %v811
        %v1156 = vpop.f32.mrb[0].mxu0
        %v1157 = vadd.f32 0.0, %v1156
        %v1158 = vpop.f32.mrb[0].mxu0
        %1159 = vmatprep.mubr.f32.mxu0 0.0
        %1160 = vmatmul.mubr.f32.gmra.mrb[0].mxu0 %v814
        %v1161 = vpop.f32.mrb[0].mxu0
        %v1162 = vadd.f32 0.0, %v1161
        %v1163 = vpop.f32.mrb[0].mxu0
        %1164 = vmatprep.mubr.f32.mxu0 0.0
        %1165 = vmatmul.mubr.f32.gmra.mrb[0].mxu0 %v817
        %v1166 = vpop.f32.mrb[0].mxu0
        %v1167 = vadd.f32 0.0, %v1166
        %v1168 = vpop.f32.mrb[0].mxu0
        %1169 = vmatprep.mubr.f32.mxu0 0.0
        %1170 = vmatmul.mubr.f32.gmra.mrb[0].mxu0 %v820
        %v1171 = vpop.f32.mrb[0].mxu0
        %v1172 = vadd.f32 0.0, %v1171
        %v1173 = vpop.f32.mrb[0].mxu0
        %1174 = vmatprep.mubr.f32.mxu0 0.0
        %1175 = vmatmul.mubr.f32.gmra.mrb[0].mxu0 %v823
        %v1176 = vpop.f32.mrb[0].mxu0
        %v1177 = vadd.f32 0.0, %v1176
        %v1178 = vpop.f32.mrb[0].mxu0
        %1179 = vmatprep.mubr.f32.mxu0 0.0
        %1180 = vmatmul.mubr.f32.gmra.mrb[0].mxu0 %v826
        %v1181 = vpop.f32.mrb[0].mxu0
        %v1182 = vadd.f32 0.0, %v1181
        %v1183 = vpop.f32.mrb[0].mxu0
        %1184 = vmatprep.mubr.f32.mxu0 0.0
        %1185 = vmatmul.mubr.f32.gmra.mrb[0].mxu0 %v829
        %v1186 = vpop.f32.mrb[0].mxu0
        %v1187 = vadd.f32 0.0, %v1186
        %v1188 = vpop.f32.mrb[0].mxu0
        %1189 = vmatprep.mubr.f32.mxu0 0.0
        %1190 = vmatmul.mubr.f32.gmra.mrb[0].mxu0 %v832
        %v1191 = vpop.f32.mrb[0].mxu0
        %v1192 = vadd.f32 0.0, %v1191
        %v1193 = vpop.f32.mrb[0].mxu0
        %1194 = vmatprep.mubr.f32.mxu0 0.0
        %1195 = vmatmul.mubr.f32.gmra.mrb[0].mxu0 %v835
        %v1196 = vpop.f32.mrb[0].mxu0
        %v1197 = vadd.f32 0.0, %v1196
        %v1198 = vpop.f32.mrb[0].mxu0
        %1199 = vmatprep.mubr.f32.mxu0 0.0
        %1200 = vmatmul.mubr.f32.gmra.mrb[0].mxu0 %v838
        %v1201 = vpop.f32.mrb[0].mxu0
        %v1202 = vadd.f32 0.0, %v1201
        %v1203 = vpop.f32.mrb[0].mxu0
        %1204 = vmatprep.mubr.f32.mxu0 0.0
        %1205 = vmatmul.mubr.f32.gmra.mrb[0].mxu0 %v841
        %v1206 = vpop.f32.mrb[0].mxu0
        %v1207 = vadd.f32 0.0, %v1206
        %v1208 = vpop.f32.mrb[0].mxu0
        %1209 = vmatprep.mubr.f32.mxu0 0.0
        %1210 = vmatmul.mubr.f32.gmra.mrb[0].mxu0 %v844
        %v1211 = vpop.f32.mrb[0].mxu0
        %v1212 = vadd.f32 0.0, %v1211
        %v1213 = vpop.f32.mrb[0].mxu0
        %1214 = vmatprep.mubr.f32.mxu0 0.0
        %1215 = vmatmul.mubr.f32.gmra.mrb[0].mxu0 %v847
        %v1216 = vpop.f32.mrb[0].mxu0
        %v1217 = vadd.f32 0.0, %v1216
        %v1218 = vpop.f32.mrb[0].mxu0
        %1219 = vmatprep.mubr.f32.mxu0 0.0
        %1220 = vmatmul.mubr.f32.gmra.mrb[0].mxu0 %v850
        %v1221 = vpop.f32.mrb[0].mxu0
        %v1222 = vadd.f32 0.0, %v1221
        %v1223 = vpop.f32.mrb[0].mxu0
        %1224 = vmatprep.mubr.f32.mxu0 0.0
        %1225 = vmatmul.mubr.f32.gmra.mrb[0].mxu0 %v853
        %v1226 = vpop.f32.mrb[0].mxu0
        %v1227 = vadd.f32 0.0, %v1226
        %v1228 = vpop.f32.mrb[0].mxu0
        %1229 = vmatprep.mubr.f32.mxu0 0.0
        %1230 = vmatmul.mubr.f32.gmra.mrb[0].mxu0 %v856
        %v1231 = vpop.f32.mrb[0].mxu0
        %v1232 = vadd.f32 0.0, %v1231
        %v1233 = vpop.f32.mrb[0].mxu0
        %1234 = vmatprep.mubr.f32.mxu0 0.0
        %1235 = vmatmul.mubr.f32.gmra.mrb[0].mxu0 %v859
        %v1236 = vpop.f32.mrb[0].mxu0
        %v1237 = vadd.f32 0.0, %v1236
        %v1238 = vpop.f32.mrb[0].mxu0
        %1239 = vmatprep.mubr.f32.mxu0 0.0
        %1240 = vmatmul.mubr.f32.gmra.mrb[0].mxu0 %v862
        %v1241 = vpop.f32.mrb[0].mxu0
        %v1242 = vadd.f32 0.0, %v1241
        %v1243 = vpop.f32.mrb[0].mxu0
        %1244 = vmatprep.mubr.f32.mxu0 0.0
        %1245 = vmatmul.mubr.f32.gmra.mrb[0].mxu0 %v865
        %v1246 = vpop.f32.mrb[0].mxu0
        %v1247 = vadd.f32 0.0, %v1246
        %v1248 = vpop.f32.mrb[0].mxu0
        %1249 = vmatprep.mubr.f32.mxu0 0.0
        %1250 = vmatmul.mubr.f32.gmra.mrb[0].mxu0 %v868
        %v1251 = vpop.f32.mrb[0].mxu0
        %v1252 = vadd.f32 0.0, %v1251
        %v1253 = vpop.f32.mrb[0].mxu0
        %1254 = vdwg.mxu0
        %v1256 = vsel %vm335, %v548, 0
        %v1259 = vsel %vm335, %v549, 0
        %v1262 = vsel %vm335, %v550, 0
        %v1265 = vsel %vm335, %v551, 0
        %v1268 = vsel %vm335, %v552, 0
        %v1271 = vsel %vm335, %v553, 0
        %v1274 = vsel %vm335, %v554, 0
        %v1277 = vsel %vm335, %v555, 0
        %v1280 = vsel %vm335, %v556, 0
        %v1283 = vsel %vm335, %v557, 0
        %v1286 = vsel %vm335, %v558, 0
        %v1289 = vsel %vm335, %v559, 0
        %v1292 = vsel %vm335, %v560, 0
        %v1295 = vsel %vm335, %v561, 0
        %v1298 = vsel %vm335, %v562, 0
        %v1301 = vsel %vm335, %v563, 0
        %v1304 = vsel %vm335, %v564, 0
        %v1307 = vsel %vm335, %v565, 0
        %v1310 = vsel %vm335, %v566, 0
        %v1313 = vsel %vm335, %v567, 0
        %v1316 = vsel %vm335, %v568, 0
        %v1319 = vsel %vm335, %v569, 0
        %v1322 = vsel %vm335, %v570, 0
        %v1325 = vsel %vm335, %v571, 0
        %v1328 = vsel %vm335, %v572, 0
        %v1331 = vsel %vm335, %v573, 0
        %v1334 = vsel %vm335, %v574, 0
        %v1337 = vsel %vm335, %v575, 0
        %v1340 = vsel %vm335, %v576, 0
        %v1343 = vsel %vm335, %v577, 0
        %v1346 = vsel %vm335, %v578, 0
        %v1349 = vsel %vm335, %v579, 0
        %v1352 = vsel %vm335, %v580, 0
        %v1355 = vsel %vm335, %v581, 0
        %v1358 = vsel %vm335, %v582, 0
        %v1361 = vsel %vm335, %v583, 0
        %v1364 = vsel %vm335, %v584, 0
        %v1367 = vsel %vm335, %v585, 0
        %v1370 = vsel %vm335, %v586, 0
        %v1373 = vsel %vm335, %v587, 0
        %v1376 = vsel %vm335, %v588, 0
        %v1379 = vsel %vm335, %v589, 0
        %v1382 = vsel %vm335, %v590, 0
        %v1385 = vsel %vm335, %v591, 0
        %v1388 = vsel %vm335, %v592, 0
        %v1391 = vsel %vm335, %v593, 0
        %v1394 = vsel %vm335, %v594, 0
        %v1397 = vsel %vm335, %v595, 0
        %v1400 = vsel %vm335, %v596, 0
        %v1403 = vsel %vm335, %v597, 0
        %v1406 = vsel %vm335, %v598, 0
        %v1409 = vsel %vm335, %v599, 0
        %v1412 = vsel %vm335, %v600, 0
        %v1415 = vsel %vm335, %v601, 0
        %v1418 = vsel %vm335, %v602, 0
        %v1421 = vsel %vm335, %v603, 0
        %v1424 = vsel %vm335, %v604, 0
        %v1427 = vsel %vm335, %v605, 0
        %v1430 = vsel %vm335, %v606, 0
        %v1433 = vsel %vm335, %v607, 0
        %v1436 = vsel %vm335, %v608, 0
        %v1439 = vsel %vm335, %v609, 0
        %v1442 = vsel %vm335, %v610, 0
        %v1445 = vsel %vm335, %v611, 0
        %1447 = vmatprep.subr.mxu0 0.0
        %1448 = vmatpush1.msra.mxu0 %v612
        %1449 = vmatprep.subr.mxu0 0.0
        %1450 = vmatpush1.msra.mxu0 0.0
        %1451 = vmatprep.subr.mxu0 0.0
        %1452 = vmatpush1.msra.mxu0 0.0
        %1453 = vmatprep.subr.mxu0 0.0
        %1454 = vmatpush1.msra.mxu0 0.0
        %1455 = vmatprep.subr.mxu0 0.0
        %1456 = vmatpush1.msra.mxu0 0.0
        %1457 = vmatprep.subr.mxu0 0.0
        %1458 = vmatpush1.msra.mxu0 0.0
        %1459 = vmatprep.subr.mxu0 0.0
        %1460 = vmatpush1.msra.mxu0 0.0
        %1461 = vmatprep.subr.mxu0 0.0
        %1462 = vmatpush1.msra.mxu0 0.0
        %1463 = vmatprep.subr.mxu0 0.0
        %1464 = vmatpush1.msra.mxu0 0.0
        %1465 = vmatprep.subr.mxu0 0.0
        %1466 = vmatpush1.msra.mxu0 0.0
        %1467 = vmatprep.subr.mxu0 0.0
        %1468 = vmatpush1.msra.mxu0 0.0
        %1469 = vmatprep.subr.mxu0 0.0
        %1470 = vmatpush1.msra.mxu0 0.0
        %1471 = vmatprep.subr.mxu0 0.0
        %1472 = vmatpush1.msra.mxu0 0.0
        %1473 = vmatprep.subr.mxu0 0.0
        %1474 = vmatpush1.msra.mxu0 0.0
        %1475 = vmatprep.subr.mxu0 0.0
        %1476 = vmatpush1.msra.mxu0 0.0
        %1477 = vmatprep.subr.mxu0 0.0
        %1478 = vmatpush1.msra.mxu0 0.0
        %1479 = vmatprep.subr.mxu0 0.0
        %1480 = vmatpush1.msra.mxu0 0.0
        %1481 = vmatprep.subr.mxu0 0.0
        %1482 = vmatpush1.msra.mxu0 0.0
        %1483 = vmatprep.subr.mxu0 0.0
        %1484 = vmatpush1.msra.mxu0 0.0
        %1485 = vmatprep.subr.mxu0 0.0
        %1486 = vmatpush1.msra.mxu0 0.0
        %1487 = vmatprep.subr.mxu0 0.0
        %1488 = vmatpush1.msra.mxu0 0.0
        %1489 = vmatprep.subr.mxu0 0.0
        %1490 = vmatpush1.msra.mxu0 0.0
        %1491 = vmatprep.subr.mxu0 0.0
        %1492 = vmatpush1.msra.mxu0 0.0
        %1493 = vmatprep.subr.mxu0 0.0
        %1494 = vmatpush1.msra.mxu0 0.0
        %1495 = vmatprep.subr.mxu0 0.0
        %1496 = vmatpush1.msra.mxu0 0.0
        %1497 = vmatprep.subr.mxu0 0.0
        %1498 = vmatpush1.msra.mxu0 0.0
        %1499 = vmatprep.subr.mxu0 0.0
        %1500 = vmatpush1.msra.mxu0 0.0
        %1501 = vmatprep.subr.mxu0 0.0
        %1502 = vmatpush1.msra.mxu0 0.0
        %1503 = vmatprep.subr.mxu0 0.0
        %1504 = vmatpush1.msra.mxu0 0.0
        %1505 = vmatprep.subr.mxu0 0.0
        %1506 = vmatpush1.msra.mxu0 0.0
        %1507 = vmatprep.subr.mxu0 0.0
        %1508 = vmatpush1.msra.mxu0 0.0
        %1509 = vmatprep.subr.mxu0 0.0
        %1510 = vmatpush1.msra.mxu0 0.0
        %1511 = vmatprep.mubr.f32.mxu0 0.0
        %1512 = vmatmul.mubr.f32.gmra.mrb[0].mxu0 %v1256
        %v1513 = vpop.f32.mrb[0].mxu0
        %v1514 = vadd.f32 %v937, %v1513
        %v1515 = vpop.f32.mrb[0].mxu0
        %1516 = vmatprep.mubr.f32.mxu0 0.0
        %1517 = vmatmul.mubr.f32.gmra.mrb[0].mxu0 %v1259
        %v1518 = vpop.f32.mrb[0].mxu0
        %v1519 = vadd.f32 %v942, %v1518
        %v1520 = vpop.f32.mrb[0].mxu0
        %1521 = vmatprep.mubr.f32.mxu0 0.0
        %1522 = vmatmul.mubr.f32.gmra.mrb[0].mxu0 %v1262
        %v1523 = vpop.f32.mrb[0].mxu0
        %v1524 = vadd.f32 %v947, %v1523
        %v1525 = vpop.f32.mrb[0].mxu0
        %1526 = vmatprep.mubr.f32.mxu0 0.0
        %1527 = vmatmul.mubr.f32.gmra.mrb[0].mxu0 %v1265
        %v1528 = vpop.f32.mrb[0].mxu0
        %v1529 = vadd.f32 %v952, %v1528
        %v1530 = vpop.f32.mrb[0].mxu0
        %1531 = vmatprep.mubr.f32.mxu0 0.0
        %1532 = vmatmul.mubr.f32.gmra.mrb[0].mxu0 %v1268
        %v1533 = vpop.f32.mrb[0].mxu0
        %v1534 = vadd.f32 %v957, %v1533
        %v1535 = vpop.f32.mrb[0].mxu0
        %1536 = vmatprep.mubr.f32.mxu0 0.0
        %1537 = vmatmul.mubr.f32.gmra.mrb[0].mxu0 %v1271
        %v1538 = vpop.f32.mrb[0].mxu0
        %v1539 = vadd.f32 %v962, %v1538
        %v1540 = vpop.f32.mrb[0].mxu0
        %1541 = vmatprep.mubr.f32.mxu0 0.0
        %1542 = vmatmul.mubr.f32.gmra.mrb[0].mxu0 %v1274
        %v1543 = vpop.f32.mrb[0].mxu0
        %v1544 = vadd.f32 %v967, %v1543
        %v1545 = vpop.f32.mrb[0].mxu0
        %1546 = vmatprep.mubr.f32.mxu0 0.0
        %1547 = vmatmul.mubr.f32.gmra.mrb[0].mxu0 %v1277
        %v1548 = vpop.f32.mrb[0].mxu0
        %v1549 = vadd.f32 %v972, %v1548
        %v1550 = vpop.f32.mrb[0].mxu0
        %1551 = vmatprep.mubr.f32.mxu0 0.0
        %1552 = vmatmul.mubr.f32.gmra.mrb[0].mxu0 %v1280
        %v1553 = vpop.f32.mrb[0].mxu0
        %v1554 = vadd.f32 %v977, %v1553
        %v1555 = vpop.f32.mrb[0].mxu0
        %1556 = vmatprep.mubr.f32.mxu0 0.0
        %1557 = vmatmul.mubr.f32.gmra.mrb[0].mxu0 %v1283
        %v1558 = vpop.f32.mrb[0].mxu0
        %v1559 = vadd.f32 %v982, %v1558
        %v1560 = vpop.f32.mrb[0].mxu0
        %1561 = vmatprep.mubr.f32.mxu0 0.0
        %1562 = vmatmul.mubr.f32.gmra.mrb[0].mxu0 %v1286
        %v1563 = vpop.f32.mrb[0].mxu0
        %v1564 = vadd.f32 %v987, %v1563
        %v1565 = vpop.f32.mrb[0].mxu0
        %1566 = vmatprep.mubr.f32.mxu0 0.0
        %1567 = vmatmul.mubr.f32.gmra.mrb[0].mxu0 %v1289
        %v1568 = vpop.f32.mrb[0].mxu0
        %v1569 = vadd.f32 %v992, %v1568
        %v1570 = vpop.f32.mrb[0].mxu0
        %1571 = vmatprep.mubr.f32.mxu0 0.0
        %1572 = vmatmul.mubr.f32.gmra.mrb[0].mxu0 %v1292
        %v1573 = vpop.f32.mrb[0].mxu0
        %v1574 = vadd.f32 %v997, %v1573
        %v1575 = vpop.f32.mrb[0].mxu0
        %1576 = vmatprep.mubr.f32.mxu0 0.0
        %1577 = vmatmul.mubr.f32.gmra.mrb[0].mxu0 %v1295
        %v1578 = vpop.f32.mrb[0].mxu0
        %v1579 = vadd.f32 %v1002, %v1578
        %v1580 = vpop.f32.mrb[0].mxu0
        %1581 = vmatprep.mubr.f32.mxu0 0.0
        %1582 = vmatmul.mubr.f32.gmra.mrb[0].mxu0 %v1298
        %v1583 = vpop.f32.mrb[0].mxu0
        %v1584 = vadd.f32 %v1007, %v1583
        %v1585 = vpop.f32.mrb[0].mxu0
        %1586 = vmatprep.mubr.f32.mxu0 0.0
        %1587 = vmatmul.mubr.f32.gmra.mrb[0].mxu0 %v1301
        %v1588 = vpop.f32.mrb[0].mxu0
        %v1589 = vadd.f32 %v1012, %v1588
        %v1590 = vpop.f32.mrb[0].mxu0
        %1591 = vmatprep.mubr.f32.mxu0 0.0
        %1592 = vmatmul.mubr.f32.gmra.mrb[0].mxu0 %v1304
        %v1593 = vpop.f32.mrb[0].mxu0
        %v1594 = vadd.f32 %v1017, %v1593
        %v1595 = vpop.f32.mrb[0].mxu0
        %1596 = vmatprep.mubr.f32.mxu0 0.0
        %1597 = vmatmul.mubr.f32.gmra.mrb[0].mxu0 %v1307
        %v1598 = vpop.f32.mrb[0].mxu0
        %v1599 = vadd.f32 %v1022, %v1598
        %v1600 = vpop.f32.mrb[0].mxu0
        %1601 = vmatprep.mubr.f32.mxu0 0.0
        %1602 = vmatmul.mubr.f32.gmra.mrb[0].mxu0 %v1310
        %v1603 = vpop.f32.mrb[0].mxu0
        %v1604 = vadd.f32 %v1027, %v1603
        %v1605 = vpop.f32.mrb[0].mxu0
        %1606 = vmatprep.mubr.f32.mxu0 0.0
        %1607 = vmatmul.mubr.f32.gmra.mrb[0].mxu0 %v1313
        %v1608 = vpop.f32.mrb[0].mxu0
        %v1609 = vadd.f32 %v1032, %v1608
        %v1610 = vpop.f32.mrb[0].mxu0
        %1611 = vmatprep.mubr.f32.mxu0 0.0
        %1612 = vmatmul.mubr.f32.gmra.mrb[0].mxu0 %v1316
        %v1613 = vpop.f32.mrb[0].mxu0
        %v1614 = vadd.f32 %v1037, %v1613
        %v1615 = vpop.f32.mrb[0].mxu0
        %1616 = vmatprep.mubr.f32.mxu0 0.0
        %1617 = vmatmul.mubr.f32.gmra.mrb[0].mxu0 %v1319
        %v1618 = vpop.f32.mrb[0].mxu0
        %v1619 = vadd.f32 %v1042, %v1618
        %v1620 = vpop.f32.mrb[0].mxu0
        %1621 = vmatprep.mubr.f32.mxu0 0.0
        %1622 = vmatmul.mubr.f32.gmra.mrb[0].mxu0 %v1322
        %v1623 = vpop.f32.mrb[0].mxu0
        %v1624 = vadd.f32 %v1047, %v1623
        %v1625 = vpop.f32.mrb[0].mxu0
        %1626 = vmatprep.mubr.f32.mxu0 0.0
        %1627 = vmatmul.mubr.f32.gmra.mrb[0].mxu0 %v1325
        %v1628 = vpop.f32.mrb[0].mxu0
        %v1629 = vadd.f32 %v1052, %v1628
        %v1630 = vpop.f32.mrb[0].mxu0
        %1631 = vmatprep.mubr.f32.mxu0 0.0
        %1632 = vmatmul.mubr.f32.gmra.mrb[0].mxu0 %v1328
        %v1633 = vpop.f32.mrb[0].mxu0
        %v1634 = vadd.f32 %v1057, %v1633
        %v1635 = vpop.f32.mrb[0].mxu0
        %1636 = vmatprep.mubr.f32.mxu0 0.0
        %1637 = vmatmul.mubr.f32.gmra.mrb[0].mxu0 %v1331
        %v1638 = vpop.f32.mrb[0].mxu0
        %v1639 = vadd.f32 %v1062, %v1638
        %v1640 = vpop.f32.mrb[0].mxu0
        %1641 = vmatprep.mubr.f32.mxu0 0.0
        %1642 = vmatmul.mubr.f32.gmra.mrb[0].mxu0 %v1334
        %v1643 = vpop.f32.mrb[0].mxu0
        %v1644 = vadd.f32 %v1067, %v1643
        %v1645 = vpop.f32.mrb[0].mxu0
        %1646 = vmatprep.mubr.f32.mxu0 0.0
        %1647 = vmatmul.mubr.f32.gmra.mrb[0].mxu0 %v1337
        %v1648 = vpop.f32.mrb[0].mxu0
        %v1649 = vadd.f32 %v1072, %v1648
        %v1650 = vpop.f32.mrb[0].mxu0
        %1651 = vmatprep.mubr.f32.mxu0 0.0
        %1652 = vmatmul.mubr.f32.gmra.mrb[0].mxu0 %v1340
        %v1653 = vpop.f32.mrb[0].mxu0
        %v1654 = vadd.f32 %v1077, %v1653
        %v1655 = vpop.f32.mrb[0].mxu0
        %1656 = vmatprep.mubr.f32.mxu0 0.0
        %1657 = vmatmul.mubr.f32.gmra.mrb[0].mxu0 %v1343
        %v1658 = vpop.f32.mrb[0].mxu0
        %v1659 = vadd.f32 %v1082, %v1658
        %v1660 = vpop.f32.mrb[0].mxu0
        %1661 = vmatprep.mubr.f32.mxu0 0.0
        %1662 = vmatmul.mubr.f32.gmra.mrb[0].mxu0 %v1346
        %v1663 = vpop.f32.mrb[0].mxu0
        %v1664 = vadd.f32 %v1087, %v1663
        %v1665 = vpop.f32.mrb[0].mxu0
        %1666 = vmatprep.mubr.f32.mxu0 0.0
        %1667 = vmatmul.mubr.f32.gmra.mrb[0].mxu0 %v1349
        %v1668 = vpop.f32.mrb[0].mxu0
        %v1669 = vadd.f32 %v1092, %v1668
        %v1670 = vpop.f32.mrb[0].mxu0
        %1671 = vmatprep.mubr.f32.mxu0 0.0
        %1672 = vmatmul.mubr.f32.gmra.mrb[0].mxu0 %v1352
        %v1673 = vpop.f32.mrb[0].mxu0
        %v1674 = vadd.f32 %v1097, %v1673
        %v1675 = vpop.f32.mrb[0].mxu0
        %1676 = vmatprep.mubr.f32.mxu0 0.0
        %1677 = vmatmul.mubr.f32.gmra.mrb[0].mxu0 %v1355
        %v1678 = vpop.f32.mrb[0].mxu0
        %v1679 = vadd.f32 %v1102, %v1678
        %v1680 = vpop.f32.mrb[0].mxu0
        %1681 = vmatprep.mubr.f32.mxu0 0.0
        %1682 = vmatmul.mubr.f32.gmra.mrb[0].mxu0 %v1358
        %v1683 = vpop.f32.mrb[0].mxu0
        %v1684 = vadd.f32 %v1107, %v1683
        %v1685 = vpop.f32.mrb[0].mxu0
        %1686 = vmatprep.mubr.f32.mxu0 0.0
        %1687 = vmatmul.mubr.f32.gmra.mrb[0].mxu0 %v1361
        %v1688 = vpop.f32.mrb[0].mxu0
        %v1689 = vadd.f32 %v1112, %v1688
        %v1690 = vpop.f32.mrb[0].mxu0
        %1691 = vmatprep.mubr.f32.mxu0 0.0
        %1692 = vmatmul.mubr.f32.gmra.mrb[0].mxu0 %v1364
        %v1693 = vpop.f32.mrb[0].mxu0
        %v1694 = vadd.f32 %v1117, %v1693
        %v1695 = vpop.f32.mrb[0].mxu0
        %1696 = vmatprep.mubr.f32.mxu0 0.0
        %1697 = vmatmul.mubr.f32.gmra.mrb[0].mxu0 %v1367
        %v1698 = vpop.f32.mrb[0].mxu0
        %v1699 = vadd.f32 %v1122, %v1698
        %v1700 = vpop.f32.mrb[0].mxu0
        %1701 = vmatprep.mubr.f32.mxu0 0.0
        %1702 = vmatmul.mubr.f32.gmra.mrb[0].mxu0 %v1370
        %v1703 = vpop.f32.mrb[0].mxu0
        %v1704 = vadd.f32 %v1127, %v1703
        %v1705 = vpop.f32.mrb[0].mxu0
        %1706 = vmatprep.mubr.f32.mxu0 0.0
        %1707 = vmatmul.mubr.f32.gmra.mrb[0].mxu0 %v1373
        %v1708 = vpop.f32.mrb[0].mxu0
        %v1709 = vadd.f32 %v1132, %v1708
        %v1710 = vpop.f32.mrb[0].mxu0
        %1711 = vmatprep.mubr.f32.mxu0 0.0
        %1712 = vmatmul.mubr.f32.gmra.mrb[0].mxu0 %v1376
        %v1713 = vpop.f32.mrb[0].mxu0
        %v1714 = vadd.f32 %v1137, %v1713
        %v1715 = vpop.f32.mrb[0].mxu0
        %1716 = vmatprep.mubr.f32.mxu0 0.0
        %1717 = vmatmul.mubr.f32.gmra.mrb[0].mxu0 %v1379
        %v1718 = vpop.f32.mrb[0].mxu0
        %v1719 = vadd.f32 %v1142, %v1718
        %v1720 = vpop.f32.mrb[0].mxu0
        %1721 = vmatprep.mubr.f32.mxu0 0.0
        %1722 = vmatmul.mubr.f32.gmra.mrb[0].mxu0 %v1382
        %v1723 = vpop.f32.mrb[0].mxu0
        %v1724 = vadd.f32 %v1147, %v1723
        %v1725 = vpop.f32.mrb[0].mxu0
        %1726 = vmatprep.mubr.f32.mxu0 0.0
        %1727 = vmatmul.mubr.f32.gmra.mrb[0].mxu0 %v1385
        %v1728 = vpop.f32.mrb[0].mxu0
        %v1729 = vadd.f32 %v1152, %v1728
        %v1730 = vpop.f32.mrb[0].mxu0
        %1731 = vmatprep.mubr.f32.mxu0 0.0
        %1732 = vmatmul.mubr.f32.gmra.mrb[0].mxu0 %v1388
        %v1733 = vpop.f32.mrb[0].mxu0
        %v1734 = vadd.f32 %v1157, %v1733
        %v1735 = vpop.f32.mrb[0].mxu0
        %1736 = vmatprep.mubr.f32.mxu0 0.0
        %1737 = vmatmul.mubr.f32.gmra.mrb[0].mxu0 %v1391
        %v1738 = vpop.f32.mrb[0].mxu0
        %v1739 = vadd.f32 %v1162, %v1738
        %v1740 = vpop.f32.mrb[0].mxu0
        %1741 = vmatprep.mubr.f32.mxu0 0.0
        %1742 = vmatmul.mubr.f32.gmra.mrb[0].mxu0 %v1394
        %v1743 = vpop.f32.mrb[0].mxu0
        %v1744 = vadd.f32 %v1167, %v1743
        %v1745 = vpop.f32.mrb[0].mxu0
        %1746 = vmatprep.mubr.f32.mxu0 0.0
        %1747 = vmatmul.mubr.f32.gmra.mrb[0].mxu0 %v1397
        %v1748 = vpop.f32.mrb[0].mxu0
        %v1749 = vadd.f32 %v1172, %v1748
        %v1750 = vpop.f32.mrb[0].mxu0
        %1751 = vmatprep.mubr.f32.mxu0 0.0
        %1752 = vmatmul.mubr.f32.gmra.mrb[0].mxu0 %v1400
        %v1753 = vpop.f32.mrb[0].mxu0
        %v1754 = vadd.f32 %v1177, %v1753
        %v1755 = vpop.f32.mrb[0].mxu0
        %1756 = vmatprep.mubr.f32.mxu0 0.0
        %1757 = vmatmul.mubr.f32.gmra.mrb[0].mxu0 %v1403
        %v1758 = vpop.f32.mrb[0].mxu0
        %v1759 = vadd.f32 %v1182, %v1758
        %v1760 = vpop.f32.mrb[0].mxu0
        %1761 = vmatprep.mubr.f32.mxu0 0.0
        %1762 = vmatmul.mubr.f32.gmra.mrb[0].mxu0 %v1406
        %v1763 = vpop.f32.mrb[0].mxu0
        %v1764 = vadd.f32 %v1187, %v1763
        %v1765 = vpop.f32.mrb[0].mxu0
        %1766 = vmatprep.mubr.f32.mxu0 0.0
        %1767 = vmatmul.mubr.f32.gmra.mrb[0].mxu0 %v1409
        %v1768 = vpop.f32.mrb[0].mxu0
        %v1769 = vadd.f32 %v1192, %v1768
        %v1770 = vpop.f32.mrb[0].mxu0
        %1771 = vmatprep.mubr.f32.mxu0 0.0
        %1772 = vmatmul.mubr.f32.gmra.mrb[0].mxu0 %v1412
        %v1773 = vpop.f32.mrb[0].mxu0
        %v1774 = vadd.f32 %v1197, %v1773
        %v1775 = vpop.f32.mrb[0].mxu0
        %1776 = vmatprep.mubr.f32.mxu0 0.0
        %1777 = vmatmul.mubr.f32.gmra.mrb[0].mxu0 %v1415
        %v1778 = vpop.f32.mrb[0].mxu0
        %v1779 = vadd.f32 %v1202, %v1778
        %v1780 = vpop.f32.mrb[0].mxu0
        %1781 = vmatprep.mubr.f32.mxu0 0.0
        %1782 = vmatmul.mubr.f32.gmra.mrb[0].mxu0 %v1418
        %v1783 = vpop.f32.mrb[0].mxu0
        %v1784 = vadd.f32 %v1207, %v1783
        %v1785 = vpop.f32.mrb[0].mxu0
        %1786 = vmatprep.mubr.f32.mxu0 0.0
        %1787 = vmatmul.mubr.f32.gmra.mrb[0].mxu0 %v1421
        %v1788 = vpop.f32.mrb[0].mxu0
        %v1789 = vadd.f32 %v1212, %v1788
        %v1790 = vpop.f32.mrb[0].mxu0
        %1791 = vmatprep.mubr.f32.mxu0 0.0
        %1792 = vmatmul.mubr.f32.gmra.mrb[0].mxu0 %v1424
        %v1793 = vpop.f32.mrb[0].mxu0
        %v1794 = vadd.f32 %v1217, %v1793
        %v1795 = vpop.f32.mrb[0].mxu0
        %1796 = vmatprep.mubr.f32.mxu0 0.0
        %1797 = vmatmul.mubr.f32.gmra.mrb[0].mxu0 %v1427
        %v1798 = vpop.f32.mrb[0].mxu0
        %v1799 = vadd.f32 %v1222, %v1798
        %v1800 = vpop.f32.mrb[0].mxu0
        %1801 = vmatprep.mubr.f32.mxu0 0.0
        %1802 = vmatmul.mubr.f32.gmra.mrb[0].mxu0 %v1430
        %v1803 = vpop.f32.mrb[0].mxu0
        %v1804 = vadd.f32 %v1227, %v1803
        %v1805 = vpop.f32.mrb[0].mxu0
        %1806 = vmatprep.mubr.f32.mxu0 0.0
        %1807 = vmatmul.mubr.f32.gmra.mrb[0].mxu0 %v1433
        %v1808 = vpop.f32.mrb[0].mxu0
        %v1809 = vadd.f32 %v1232, %v1808
        %v1810 = vpop.f32.mrb[0].mxu0
        %1811 = vmatprep.mubr.f32.mxu0 0.0
        %1812 = vmatmul.mubr.f32.gmra.mrb[0].mxu0 %v1436
        %v1813 = vpop.f32.mrb[0].mxu0
        %v1814 = vadd.f32 %v1237, %v1813
        %v1815 = vpop.f32.mrb[0].mxu0
        %1816 = vmatprep.mubr.f32.mxu0 0.0
        %1817 = vmatmul.mubr.f32.gmra.mrb[0].mxu0 %v1439
        %v1818 = vpop.f32.mrb[0].mxu0
        %v1819 = vadd.f32 %v1242, %v1818
        %v1820 = vpop.f32.mrb[0].mxu0
        %1821 = vmatprep.mubr.f32.mxu0 0.0
        %1822 = vmatmul.mubr.f32.gmra.mrb[0].mxu0 %v1442
        %v1823 = vpop.f32.mrb[0].mxu0
        %v1824 = vadd.f32 %v1247, %v1823
        %v1825 = vpop.f32.mrb[0].mxu0
        %1826 = vmatprep.mubr.f32.mxu0 0.0
        %1827 = vmatmul.mubr.f32.gmra.mrb[0].mxu0 %v1445
        %v1828 = vpop.f32.mrb[0].mxu0
        %v1829 = vadd.f32 %v1252, %v1828
        %v1830 = vpop.f32.mrb[0].mxu0
        %1831 = vdwg.mxu0
        %v1832 = vld [vmem:[#allocation2 + $0x2] sm:$0xff]
        %v1833 = vld [vmem:[#allocation2 + $0xa] sm:$0xff]
        %v1834 = vld [vmem:[#allocation2 + $0x1a] sm:$0xff]
        %v1835 = vld [vmem:[#allocation2 + $0x22] sm:$0xff]
        %v1836 = vld [vmem:[#allocation2 + $0x32] sm:$0xff]
        %v1837 = vld [vmem:[#allocation2 + $0x3a] sm:$0xff]
        %v1838 = vld [vmem:[#allocation2 + $0x4a] sm:$0xff]
        %v1839 = vld [vmem:[#allocation2 + $0x52] sm:$0xff]
        %v1840 = vld [vmem:[#allocation2 + $0x62] sm:$0xff]
        %v1841 = vld [vmem:[#allocation2 + $0x6a] sm:$0xff]
        %v1842 = vld [vmem:[#allocation2 + $0x7a] sm:$0xff]
        %v1843 = vld [vmem:[#allocation2 + $0x82] sm:$0xff]
        %v1844 = vld [vmem:[#allocation2 + $0x92] sm:$0xff]
        %v1845 = vld [vmem:[#allocation2 + $0x9a] sm:$0xff]
        %v1846 = vld [vmem:[#allocation2 + $0xaa] sm:$0xff]
        %v1847 = vld [vmem:[#allocation2 + $0xb2] sm:$0xff]
        %v1848 = vld [vmem:[#allocation2 + $0xc2] sm:$0xff]
        %v1849 = vld [vmem:[#allocation2 + $0xca] sm:$0xff]
        %v1850 = vld [vmem:[#allocation2 + $0xda] sm:$0xff]
        %v1851 = vld [vmem:[#allocation2 + $0xe2] sm:$0xff]
        %v1852 = vld [vmem:[#allocation2 + $0xf2] sm:$0xff]
        %v1853 = vld [vmem:[#allocation2 + $0xfa] sm:$0xff]
        %v1854 = vld [vmem:[#allocation2 + $0x10a] sm:$0xff]
        %v1855 = vld [vmem:[#allocation2 + $0x112] sm:$0xff]
        %v1856 = vld [vmem:[#allocation2 + $0x122] sm:$0xff]
        %v1857 = vld [vmem:[#allocation2 + $0x12a] sm:$0xff]
        %v1858 = vld [vmem:[#allocation2 + $0x13a] sm:$0xff]
        %v1859 = vld [vmem:[#allocation2 + $0x142] sm:$0xff]
        %v1860 = vld [vmem:[#allocation2 + $0x152] sm:$0xff]
        %v1861 = vld [vmem:[#allocation2 + $0x15a] sm:$0xff]
        %v1862 = vld [vmem:[#allocation2 + $0x16a] sm:$0xff]
        %v1863 = vld [vmem:[#allocation2 + $0x172] sm:$0xff]
        %v1864 = vld [vmem:[%s442 + $0x2] sm:$0xff]
        %v1865 = vld [vmem:[%s442 + $0xa] sm:$0xff]
        %v1866 = vld [vmem:[%s442 + $0x1a] sm:$0xff]
        %v1867 = vld [vmem:[%s442 + $0x22] sm:$0xff]
        %v1868 = vld [vmem:[%s442 + $0x32] sm:$0xff]
        %v1869 = vld [vmem:[%s442 + $0x3a] sm:$0xff]
        %v1870 = vld [vmem:[%s442 + $0x4a] sm:$0xff]
        %v1871 = vld [vmem:[%s442 + $0x52] sm:$0xff]
        %v1872 = vld [vmem:[%s442 + $0x62] sm:$0xff]
        %v1873 = vld [vmem:[%s442 + $0x6a] sm:$0xff]
        %v1874 = vld [vmem:[%s442 + $0x7a] sm:$0xff]
        %v1875 = vld [vmem:[%s442 + $0x82] sm:$0xff]
        %v1876 = vld [vmem:[%s442 + $0x92] sm:$0xff]
        %v1877 = vld [vmem:[%s442 + $0x9a] sm:$0xff]
        %v1878 = vld [vmem:[%s442 + $0xaa] sm:$0xff]
        %v1879 = vld [vmem:[%s442 + $0xb2] sm:$0xff]
        %v1880 = vld [vmem:[%s442 + $0xc2] sm:$0xff]
        %v1881 = vld [vmem:[%s442 + $0xca] sm:$0xff]
        %v1882 = vld [vmem:[%s442 + $0xda] sm:$0xff]
        %v1883 = vld [vmem:[%s442 + $0xe2] sm:$0xff]
        %v1884 = vld [vmem:[%s442 + $0xf2] sm:$0xff]
        %v1885 = vld [vmem:[%s442 + $0xfa] sm:$0xff]
        %v1886 = vld [vmem:[%s442 + $0x10a] sm:$0xff]
        %v1887 = vld [vmem:[%s442 + $0x112] sm:$0xff]
        %v1888 = vld [vmem:[%s442 + $0x122] sm:$0xff]
        %v1889 = vld [vmem:[%s442 + $0x12a] sm:$0xff]
        %v1890 = vld [vmem:[%s442 + $0x13a] sm:$0xff]
        %v1891 = vld [vmem:[%s442 + $0x142] sm:$0xff]
        %v1892 = vld [vmem:[%s442 + $0x152] sm:$0xff]
        %v1893 = vld [vmem:[%s442 + $0x15a] sm:$0xff]
        %v1894 = vld [vmem:[%s442 + $0x16a] sm:$0xff]
        %v1895 = vld [vmem:[%s442 + $0x172] sm:$0xff]
        %v1896 = vld [vmem:[%s2 + $0x10] sm:$0xff]
        %v1898 = vsel %vm335, %v1832, 0
        %v1901 = vsel %vm335, %v1833, 0
        %v1904 = vsel %vm335, %v1834, 0
        %v1907 = vsel %vm335, %v1835, 0
        %v1910 = vsel %vm335, %v1836, 0
        %v1913 = vsel %vm335, %v1837, 0
        %v1916 = vsel %vm335, %v1838, 0
        %v1919 = vsel %vm335, %v1839, 0
        %v1922 = vsel %vm335, %v1840, 0
        %v1925 = vsel %vm335, %v1841, 0
        %v1928 = vsel %vm335, %v1842, 0
        %v1931 = vsel %vm335, %v1843, 0
        %v1934 = vsel %vm335, %v1844, 0
        %v1937 = vsel %vm335, %v1845, 0
        %v1940 = vsel %vm335, %v1846, 0
        %v1943 = vsel %vm335, %v1847, 0
        %v1946 = vsel %vm335, %v1848, 0
        %v1949 = vsel %vm335, %v1849, 0
        %v1952 = vsel %vm335, %v1850, 0
        %v1955 = vsel %vm335, %v1851, 0
        %v1958 = vsel %vm335, %v1852, 0
        %v1961 = vsel %vm335, %v1853, 0
        %v1964 = vsel %vm335, %v1854, 0
        %v1967 = vsel %vm335, %v1855, 0
        %v1970 = vsel %vm335, %v1856, 0
        %v1973 = vsel %vm335, %v1857, 0
        %v1976 = vsel %vm335, %v1858, 0
        %v1979 = vsel %vm335, %v1859, 0
        %v1982 = vsel %vm335, %v1860, 0
        %v1985 = vsel %vm335, %v1861, 0
        %v1988 = vsel %vm335, %v1862, 0
        %v1991 = vsel %vm335, %v1863, 0
        %v1994 = vsel %vm335, %v1864, 0
        %v1997 = vsel %vm335, %v1865, 0
        %v2000 = vsel %vm335, %v1866, 0
        %v2003 = vsel %vm335, %v1867, 0
        %v2006 = vsel %vm335, %v1868, 0
        %v2009 = vsel %vm335, %v1869, 0
        %v2012 = vsel %vm335, %v1870, 0
        %v2015 = vsel %vm335, %v1871, 0
        %v2018 = vsel %vm335, %v1872, 0
        %v2021 = vsel %vm335, %v1873, 0
        %v2024 = vsel %vm335, %v1874, 0
        %v2027 = vsel %vm335, %v1875, 0
        %v2030 = vsel %vm335, %v1876, 0
        %v2033 = vsel %vm335, %v1877, 0
        %v2036 = vsel %vm335, %v1878, 0
        %v2039 = vsel %vm335, %v1879, 0
        %v2042 = vsel %vm335, %v1880, 0
        %v2045 = vsel %vm335, %v1881, 0
        %v2048 = vsel %vm335, %v1882, 0
        %v2051 = vsel %vm335, %v1883, 0
        %v2054 = vsel %vm335, %v1884, 0
        %v2057 = vsel %vm335, %v1885, 0
        %v2060 = vsel %vm335, %v1886, 0
        %v2063 = vsel %vm335, %v1887, 0
        %v2066 = vsel %vm335, %v1888, 0
        %v2069 = vsel %vm335, %v1889, 0
        %v2072 = vsel %vm335, %v1890, 0
        %v2075 = vsel %vm335, %v1891, 0
        %v2078 = vsel %vm335, %v1892, 0
        %v2081 = vsel %vm335, %v1893, 0
        %v2084 = vsel %vm335, %v1894, 0
        %v2087 = vsel %vm335, %v1895, 0
        %2089 = vmatprep.subr.mxu0 0.0
        %2090 = vmatpush1.msra.mxu0 %v1896
        %2091 = vmatprep.subr.mxu0 0.0
        %2092 = vmatpush1.msra.mxu0 0.0
        %2093 = vmatprep.subr.mxu0 0.0
        %2094 = vmatpush1.msra.mxu0 0.0
        %2095 = vmatprep.subr.mxu0 0.0
        %2096 = vmatpush1.msra.mxu0 0.0
        %2097 = vmatprep.subr.mxu0 0.0
        %2098 = vmatpush1.msra.mxu0 0.0
        %2099 = vmatprep.subr.mxu0 0.0
        %2100 = vmatpush1.msra.mxu0 0.0
        %2101 = vmatprep.subr.mxu0 0.0
        %2102 = vmatpush1.msra.mxu0 0.0
        %2103 = vmatprep.subr.mxu0 0.0
        %2104 = vmatpush1.msra.mxu0 0.0
        %2105 = vmatprep.subr.mxu0 0.0
        %2106 = vmatpush1.msra.mxu0 0.0
        %2107 = vmatprep.subr.mxu0 0.0
        %2108 = vmatpush1.msra.mxu0 0.0
        %2109 = vmatprep.subr.mxu0 0.0
        %2110 = vmatpush1.msra.mxu0 0.0
        %2111 = vmatprep.subr.mxu0 0.0
        %2112 = vmatpush1.msra.mxu0 0.0
        %2113 = vmatprep.subr.mxu0 0.0
        %2114 = vmatpush1.msra.mxu0 0.0
        %2115 = vmatprep.subr.mxu0 0.0
        %2116 = vmatpush1.msra.mxu0 0.0
        %2117 = vmatprep.subr.mxu0 0.0
        %2118 = vmatpush1.msra.mxu0 0.0
        %2119 = vmatprep.subr.mxu0 0.0
        %2120 = vmatpush1.msra.mxu0 0.0
        %2121 = vmatprep.subr.mxu0 0.0
        %2122 = vmatpush1.msra.mxu0 0.0
        %2123 = vmatprep.subr.mxu0 0.0
        %2124 = vmatpush1.msra.mxu0 0.0
        %2125 = vmatprep.subr.mxu0 0.0
        %2126 = vmatpush1.msra.mxu0 0.0
        %2127 = vmatprep.subr.mxu0 0.0
        %2128 = vmatpush1.msra.mxu0 0.0
        %2129 = vmatprep.subr.mxu0 0.0
        %2130 = vmatpush1.msra.mxu0 0.0
        %2131 = vmatprep.subr.mxu0 0.0
        %2132 = vmatpush1.msra.mxu0 0.0
        %2133 = vmatprep.subr.mxu0 0.0
        %2134 = vmatpush1.msra.mxu0 0.0
        %2135 = vmatprep.subr.mxu0 0.0
        %2136 = vmatpush1.msra.mxu0 0.0
        %2137 = vmatprep.subr.mxu0 0.0
        %2138 = vmatpush1.msra.mxu0 0.0
        %2139 = vmatprep.subr.mxu0 0.0
        %2140 = vmatpush1.msra.mxu0 0.0
        %2141 = vmatprep.subr.mxu0 0.0
        %2142 = vmatpush1.msra.mxu0 0.0
        %2143 = vmatprep.subr.mxu0 0.0
        %2144 = vmatpush1.msra.mxu0 0.0
        %2145 = vmatprep.subr.mxu0 0.0
        %2146 = vmatpush1.msra.mxu0 0.0
        %2147 = vmatprep.subr.mxu0 0.0
        %2148 = vmatpush1.msra.mxu0 0.0
        %2149 = vmatprep.subr.mxu0 0.0
        %2150 = vmatpush1.msra.mxu0 0.0
        %2151 = vmatprep.subr.mxu0 0.0
        %2152 = vmatpush1.msra.mxu0 0.0
        %2153 = vmatprep.mubr.f32.mxu0 0.0
        %2154 = vmatmul.mubr.f32.gmra.mrb[0].mxu0 %v1898
        %v2155 = vpop.f32.mrb[0].mxu0
        %v2156 = vadd.f32 0.0, %v2155
        %v2157 = vpop.f32.mrb[0].mxu0
        %2158 = vmatprep.mubr.f32.mxu0 0.0
        %2159 = vmatmul.mubr.f32.gmra.mrb[0].mxu0 %v1901
        %v2160 = vpop.f32.mrb[0].mxu0
        %v2161 = vadd.f32 0.0, %v2160
        %v2162 = vpop.f32.mrb[0].mxu0
        %2163 = vmatprep.mubr.f32.mxu0 0.0
        %2164 = vmatmul.mubr.f32.gmra.mrb[0].mxu0 %v1904
        %v2165 = vpop.f32.mrb[0].mxu0
        %v2166 = vadd.f32 0.0, %v2165
        %v2167 = vpop.f32.mrb[0].mxu0
        %2168 = vmatprep.mubr.f32.mxu0 0.0
        %2169 = vmatmul.mubr.f32.gmra.mrb[0].mxu0 %v1907
        %v2170 = vpop.f32.mrb[0].mxu0
        %v2171 = vadd.f32 0.0, %v2170
        %v2172 = vpop.f32.mrb[0].mxu0
        %2173 = vmatprep.mubr.f32.mxu0 0.0
        %2174 = vmatmul.mubr.f32.gmra.mrb[0].mxu0 %v1910
        %v2175 = vpop.f32.mrb[0].mxu0
        %v2176 = vadd.f32 0.0, %v2175
        %v2177 = vpop.f32.mrb[0].mxu0
        %2178 = vmatprep.mubr.f32.mxu0 0.0
        %2179 = vmatmul.mubr.f32.gmra.mrb[0].mxu0 %v1913
        %v2180 = vpop.f32.mrb[0].mxu0
        %v2181 = vadd.f32 0.0, %v2180
        %v2182 = vpop.f32.mrb[0].mxu0
        %2183 = vmatprep.mubr.f32.mxu0 0.0
        %2184 = vmatmul.mubr.f32.gmra.mrb[0].mxu0 %v1916
        %v2185 = vpop.f32.mrb[0].mxu0
        %v2186 = vadd.f32 0.0, %v2185
        %v2187 = vpop.f32.mrb[0].mxu0
        %2188 = vmatprep.mubr.f32.mxu0 0.0
        %2189 = vmatmul.mubr.f32.gmra.mrb[0].mxu0 %v1919
        %v2190 = vpop.f32.mrb[0].mxu0
        %v2191 = vadd.f32 0.0, %v2190
        %v2192 = vpop.f32.mrb[0].mxu0
        %2193 = vmatprep.mubr.f32.mxu0 0.0
        %2194 = vmatmul.mubr.f32.gmra.mrb[0].mxu0 %v1922
        %v2195 = vpop.f32.mrb[0].mxu0
        %v2196 = vadd.f32 0.0, %v2195
        %v2197 = vpop.f32.mrb[0].mxu0
        %2198 = vmatprep.mubr.f32.mxu0 0.0
        %2199 = vmatmul.mubr.f32.gmra.mrb[0].mxu0 %v1925
        %v2200 = vpop.f32.mrb[0].mxu0
        %v2201 = vadd.f32 0.0, %v2200
        %v2202 = vpop.f32.mrb[0].mxu0
        %2203 = vmatprep.mubr.f32.mxu0 0.0
        %2204 = vmatmul.mubr.f32.gmra.mrb[0].mxu0 %v1928
        %v2205 = vpop.f32.mrb[0].mxu0
        %v2206 = vadd.f32 0.0, %v2205
        %v2207 = vpop.f32.mrb[0].mxu0
        %2208 = vmatprep.mubr.f32.mxu0 0.0
        %2209 = vmatmul.mubr.f32.gmra.mrb[0].mxu0 %v1931
        %v2210 = vpop.f32.mrb[0].mxu0
        %v2211 = vadd.f32 0.0, %v2210
        %v2212 = vpop.f32.mrb[0].mxu0
        %2213 = vmatprep.mubr.f32.mxu0 0.0
        %2214 = vmatmul.mubr.f32.gmra.mrb[0].mxu0 %v1934
        %v2215 = vpop.f32.mrb[0].mxu0
        %v2216 = vadd.f32 0.0, %v2215
        %v2217 = vpop.f32.mrb[0].mxu0
        %2218 = vmatprep.mubr.f32.mxu0 0.0
        %2219 = vmatmul.mubr.f32.gmra.mrb[0].mxu0 %v1937
        %v2220 = vpop.f32.mrb[0].mxu0
        %v2221 = vadd.f32 0.0, %v2220
        %v2222 = vpop.f32.mrb[0].mxu0
        %2223 = vmatprep.mubr.f32.mxu0 0.0
        %2224 = vmatmul.mubr.f32.gmra.mrb[0].mxu0 %v1940
        %v2225 = vpop.f32.mrb[0].mxu0
        %v2226 = vadd.f32 0.0, %v2225
        %v2227 = vpop.f32.mrb[0].mxu0
        %2228 = vmatprep.mubr.f32.mxu0 0.0
        %2229 = vmatmul.mubr.f32.gmra.mrb[0].mxu0 %v1943
        %v2230 = vpop.f32.mrb[0].mxu0
        %v2231 = vadd.f32 0.0, %v2230
        %v2232 = vpop.f32.mrb[0].mxu0
        %2233 = vmatprep.mubr.f32.mxu0 0.0
        %2234 = vmatmul.mubr.f32.gmra.mrb[0].mxu0 %v1946
        %v2235 = vpop.f32.mrb[0].mxu0
        %v2236 = vadd.f32 0.0, %v2235
        %v2237 = vpop.f32.mrb[0].mxu0
        %2238 = vmatprep.mubr.f32.mxu0 0.0
        %2239 = vmatmul.mubr.f32.gmra.mrb[0].mxu0 %v1949
        %v2240 = vpop.f32.mrb[0].mxu0
        %v2241 = vadd.f32 0.0, %v2240
        %v2242 = vpop.f32.mrb[0].mxu0
        %2243 = vmatprep.mubr.f32.mxu0 0.0
        %2244 = vmatmul.mubr.f32.gmra.mrb[0].mxu0 %v1952
        %v2245 = vpop.f32.mrb[0].mxu0
        %v2246 = vadd.f32 0.0, %v2245
        %v2247 = vpop.f32.mrb[0].mxu0
        %2248 = vmatprep.mubr.f32.mxu0 0.0
        %2249 = vmatmul.mubr.f32.gmra.mrb[0].mxu0 %v1955
        %v2250 = vpop.f32.mrb[0].mxu0
        %v2251 = vadd.f32 0.0, %v2250
        %v2252 = vpop.f32.mrb[0].mxu0
        %2253 = vmatprep.mubr.f32.mxu0 0.0
        %2254 = vmatmul.mubr.f32.gmra.mrb[0].mxu0 %v1958
        %v2255 = vpop.f32.mrb[0].mxu0
        %v2256 = vadd.f32 0.0, %v2255
        %v2257 = vpop.f32.mrb[0].mxu0
        %2258 = vmatprep.mubr.f32.mxu0 0.0
        %2259 = vmatmul.mubr.f32.gmra.mrb[0].mxu0 %v1961
        %v2260 = vpop.f32.mrb[0].mxu0
        %v2261 = vadd.f32 0.0, %v2260
        %v2262 = vpop.f32.mrb[0].mxu0
        %2263 = vmatprep.mubr.f32.mxu0 0.0
        %2264 = vmatmul.mubr.f32.gmra.mrb[0].mxu0 %v1964
        %v2265 = vpop.f32.mrb[0].mxu0
        %v2266 = vadd.f32 0.0, %v2265
        %v2267 = vpop.f32.mrb[0].mxu0
        %2268 = vmatprep.mubr.f32.mxu0 0.0
        %2269 = vmatmul.mubr.f32.gmra.mrb[0].mxu0 %v1967
        %v2270 = vpop.f32.mrb[0].mxu0
        %v2271 = vadd.f32 0.0, %v2270
        %v2272 = vpop.f32.mrb[0].mxu0
        %2273 = vmatprep.mubr.f32.mxu0 0.0
        %2274 = vmatmul.mubr.f32.gmra.mrb[0].mxu0 %v1970
        %v2275 = vpop.f32.mrb[0].mxu0
        %v2276 = vadd.f32 0.0, %v2275
        %v2277 = vpop.f32.mrb[0].mxu0
        %2278 = vmatprep.mubr.f32.mxu0 0.0
        %2279 = vmatmul.mubr.f32.gmra.mrb[0].mxu0 %v1973
        %v2280 = vpop.f32.mrb[0].mxu0
        %v2281 = vadd.f32 0.0, %v2280
        %v2282 = vpop.f32.mrb[0].mxu0
        %2283 = vmatprep.mubr.f32.mxu0 0.0
        %2284 = vmatmul.mubr.f32.gmra.mrb[0].mxu0 %v1976
        %v2285 = vpop.f32.mrb[0].mxu0
        %v2286 = vadd.f32 0.0, %v2285
        %v2287 = vpop.f32.mrb[0].mxu0
        %2288 = vmatprep.mubr.f32.mxu0 0.0
        %2289 = vmatmul.mubr.f32.gmra.mrb[0].mxu0 %v1979
        %v2290 = vpop.f32.mrb[0].mxu0
        %v2291 = vadd.f32 0.0, %v2290
        %v2292 = vpop.f32.mrb[0].mxu0
        %2293 = vmatprep.mubr.f32.mxu0 0.0
        %2294 = vmatmul.mubr.f32.gmra.mrb[0].mxu0 %v1982
        %v2295 = vpop.f32.mrb[0].mxu0
        %v2296 = vadd.f32 0.0, %v2295
        %v2297 = vpop.f32.mrb[0].mxu0
        %2298 = vmatprep.mubr.f32.mxu0 0.0
        %2299 = vmatmul.mubr.f32.gmra.mrb[0].mxu0 %v1985
        %v2300 = vpop.f32.mrb[0].mxu0
        %v2301 = vadd.f32 0.0, %v2300
        %v2302 = vpop.f32.mrb[0].mxu0
        %2303 = vmatprep.mubr.f32.mxu0 0.0
        %2304 = vmatmul.mubr.f32.gmra.mrb[0].mxu0 %v1988
        %v2305 = vpop.f32.mrb[0].mxu0
        %v2306 = vadd.f32 0.0, %v2305
        %v2307 = vpop.f32.mrb[0].mxu0
        %2308 = vmatprep.mubr.f32.mxu0 0.0
        %2309 = vmatmul.mubr.f32.gmra.mrb[0].mxu0 %v1991
        %v2310 = vpop.f32.mrb[0].mxu0
        %v2311 = vadd.f32 0.0, %v2310
        %v2312 = vpop.f32.mrb[0].mxu0
        %2313 = vmatprep.mubr.f32.mxu0 0.0
        %2314 = vmatmul.mubr.f32.gmra.mrb[0].mxu0 %v1994
        %v2315 = vpop.f32.mrb[0].mxu0
        %v2316 = vadd.f32 0.0, %v2315
        %v2317 = vpop.f32.mrb[0].mxu0
        %2318 = vmatprep.mubr.f32.mxu0 0.0
        %2319 = vmatmul.mubr.f32.gmra.mrb[0].mxu0 %v1997
        %v2320 = vpop.f32.mrb[0].mxu0
        %v2321 = vadd.f32 0.0, %v2320
        %v2322 = vpop.f32.mrb[0].mxu0
        %2323 = vmatprep.mubr.f32.mxu0 0.0
        %2324 = vmatmul.mubr.f32.gmra.mrb[0].mxu0 %v2000
        %v2325 = vpop.f32.mrb[0].mxu0
        %v2326 = vadd.f32 0.0, %v2325
        %v2327 = vpop.f32.mrb[0].mxu0
        %2328 = vmatprep.mubr.f32.mxu0 0.0
        %2329 = vmatmul.mubr.f32.gmra.mrb[0].mxu0 %v2003
        %v2330 = vpop.f32.mrb[0].mxu0
        %v2331 = vadd.f32 0.0, %v2330
        %v2332 = vpop.f32.mrb[0].mxu0
        %2333 = vmatprep.mubr.f32.mxu0 0.0
        %2334 = vmatmul.mubr.f32.gmra.mrb[0].mxu0 %v2006
        %v2335 = vpop.f32.mrb[0].mxu0
        %v2336 = vadd.f32 0.0, %v2335
        %v2337 = vpop.f32.mrb[0].mxu0
        %2338 = vmatprep.mubr.f32.mxu0 0.0
        %2339 = vmatmul.mubr.f32.gmra.mrb[0].mxu0 %v2009
        %v2340 = vpop.f32.mrb[0].mxu0
        %v2341 = vadd.f32 0.0, %v2340
        %v2342 = vpop.f32.mrb[0].mxu0
        %2343 = vmatprep.mubr.f32.mxu0 0.0
        %2344 = vmatmul.mubr.f32.gmra.mrb[0].mxu0 %v2012
        %v2345 = vpop.f32.mrb[0].mxu0
        %v2346 = vadd.f32 0.0, %v2345
        %v2347 = vpop.f32.mrb[0].mxu0
        %2348 = vmatprep.mubr.f32.mxu0 0.0
        %2349 = vmatmul.mubr.f32.gmra.mrb[0].mxu0 %v2015
        %v2350 = vpop.f32.mrb[0].mxu0
        %v2351 = vadd.f32 0.0, %v2350
        %v2352 = vpop.f32.mrb[0].mxu0
        %2353 = vmatprep.mubr.f32.mxu0 0.0
        %2354 = vmatmul.mubr.f32.gmra.mrb[0].mxu0 %v2018
        %v2355 = vpop.f32.mrb[0].mxu0
        %v2356 = vadd.f32 0.0, %v2355
        %v2357 = vpop.f32.mrb[0].mxu0
        %2358 = vmatprep.mubr.f32.mxu0 0.0
        %2359 = vmatmul.mubr.f32.gmra.mrb[0].mxu0 %v2021
        %v2360 = vpop.f32.mrb[0].mxu0
        %v2361 = vadd.f32 0.0, %v2360
        %v2362 = vpop.f32.mrb[0].mxu0
        %2363 = vmatprep.mubr.f32.mxu0 0.0
        %2364 = vmatmul.mubr.f32.gmra.mrb[0].mxu0 %v2024
        %v2365 = vpop.f32.mrb[0].mxu0
        %v2366 = vadd.f32 0.0, %v2365
        %v2367 = vpop.f32.mrb[0].mxu0
        %2368 = vmatprep.mubr.f32.mxu0 0.0
        %2369 = vmatmul.mubr.f32.gmra.mrb[0].mxu0 %v2027
        %v2370 = vpop.f32.mrb[0].mxu0
        %v2371 = vadd.f32 0.0, %v2370
        %v2372 = vpop.f32.mrb[0].mxu0
        %2373 = vmatprep.mubr.f32.mxu0 0.0
        %2374 = vmatmul.mubr.f32.gmra.mrb[0].mxu0 %v2030
        %v2375 = vpop.f32.mrb[0].mxu0
        %v2376 = vadd.f32 0.0, %v2375
        %v2377 = vpop.f32.mrb[0].mxu0
        %2378 = vmatprep.mubr.f32.mxu0 0.0
        %2379 = vmatmul.mubr.f32.gmra.mrb[0].mxu0 %v2033
        %v2380 = vpop.f32.mrb[0].mxu0
        %v2381 = vadd.f32 0.0, %v2380
        %v2382 = vpop.f32.mrb[0].mxu0
        %2383 = vmatprep.mubr.f32.mxu0 0.0
        %2384 = vmatmul.mubr.f32.gmra.mrb[0].mxu0 %v2036
        %v2385 = vpop.f32.mrb[0].mxu0
        %v2386 = vadd.f32 0.0, %v2385
        %v2387 = vpop.f32.mrb[0].mxu0
        %2388 = vmatprep.mubr.f32.mxu0 0.0
        %2389 = vmatmul.mubr.f32.gmra.mrb[0].mxu0 %v2039
        %v2390 = vpop.f32.mrb[0].mxu0
        %v2391 = vadd.f32 0.0, %v2390
        %v2392 = vpop.f32.mrb[0].mxu0
        %2393 = vmatprep.mubr.f32.mxu0 0.0
        %2394 = vmatmul.mubr.f32.gmra.mrb[0].mxu0 %v2042
        %v2395 = vpop.f32.mrb[0].mxu0
        %v2396 = vadd.f32 0.0, %v2395
        %v2397 = vpop.f32.mrb[0].mxu0
        %2398 = vmatprep.mubr.f32.mxu0 0.0
        %2399 = vmatmul.mubr.f32.gmra.mrb[0].mxu0 %v2045
        %v2400 = vpop.f32.mrb[0].mxu0
        %v2401 = vadd.f32 0.0, %v2400
        %v2402 = vpop.f32.mrb[0].mxu0
        %2403 = vmatprep.mubr.f32.mxu0 0.0
        %2404 = vmatmul.mubr.f32.gmra.mrb[0].mxu0 %v2048
        %v2405 = vpop.f32.mrb[0].mxu0
        %v2406 = vadd.f32 0.0, %v2405
        %v2407 = vpop.f32.mrb[0].mxu0
        %2408 = vmatprep.mubr.f32.mxu0 0.0
        %2409 = vmatmul.mubr.f32.gmra.mrb[0].mxu0 %v2051
        %v2410 = vpop.f32.mrb[0].mxu0
        %v2411 = vadd.f32 0.0, %v2410
        %v2412 = vpop.f32.mrb[0].mxu0
        %2413 = vmatprep.mubr.f32.mxu0 0.0
        %2414 = vmatmul.mubr.f32.gmra.mrb[0].mxu0 %v2054
        %v2415 = vpop.f32.mrb[0].mxu0
        %v2416 = vadd.f32 0.0, %v2415
        %v2417 = vpop.f32.mrb[0].mxu0
        %2418 = vmatprep.mubr.f32.mxu0 0.0
        %2419 = vmatmul.mubr.f32.gmra.mrb[0].mxu0 %v2057
        %v2420 = vpop.f32.mrb[0].mxu0
        %v2421 = vadd.f32 0.0, %v2420
        %v2422 = vpop.f32.mrb[0].mxu0
        %2423 = vmatprep.mubr.f32.mxu0 0.0
        %2424 = vmatmul.mubr.f32.gmra.mrb[0].mxu0 %v2060
        %v2425 = vpop.f32.mrb[0].mxu0
        %v2426 = vadd.f32 0.0, %v2425
        %v2427 = vpop.f32.mrb[0].mxu0
        %2428 = vmatprep.mubr.f32.mxu0 0.0
        %2429 = vmatmul.mubr.f32.gmra.mrb[0].mxu0 %v2063
        %v2430 = vpop.f32.mrb[0].mxu0
        %v2431 = vadd.f32 0.0, %v2430
        %v2432 = vpop.f32.mrb[0].mxu0
        %2433 = vmatprep.mubr.f32.mxu0 0.0
        %2434 = vmatmul.mubr.f32.gmra.mrb[0].mxu0 %v2066
        %v2435 = vpop.f32.mrb[0].mxu0
        %v2436 = vadd.f32 0.0, %v2435
        %v2437 = vpop.f32.mrb[0].mxu0
        %2438 = vmatprep.mubr.f32.mxu0 0.0
        %2439 = vmatmul.mubr.f32.gmra.mrb[0].mxu0 %v2069
        %v2440 = vpop.f32.mrb[0].mxu0
        %v2441 = vadd.f32 0.0, %v2440
        %v2442 = vpop.f32.mrb[0].mxu0
        %2443 = vmatprep.mubr.f32.mxu0 0.0
        %2444 = vmatmul.mubr.f32.gmra.mrb[0].mxu0 %v2072
        %v2445 = vpop.f32.mrb[0].mxu0
        %v2446 = vadd.f32 0.0, %v2445
        %v2447 = vpop.f32.mrb[0].mxu0
        %2448 = vmatprep.mubr.f32.mxu0 0.0
        %2449 = vmatmul.mubr.f32.gmra.mrb[0].mxu0 %v2075
        %v2450 = vpop.f32.mrb[0].mxu0
        %v2451 = vadd.f32 0.0, %v2450
        %v2452 = vpop.f32.mrb[0].mxu0
        %2453 = vmatprep.mubr.f32.mxu0 0.0
        %2454 = vmatmul.mubr.f32.gmra.mrb[0].mxu0 %v2078
        %v2455 = vpop.f32.mrb[0].mxu0
        %v2456 = vadd.f32 0.0, %v2455
        %v2457 = vpop.f32.mrb[0].mxu0
        %2458 = vmatprep.mubr.f32.mxu0 0.0
        %2459 = vmatmul.mubr.f32.gmra.mrb[0].mxu0 %v2081
        %v2460 = vpop.f32.mrb[0].mxu0
        %v2461 = vadd.f32 0.0, %v2460
        %v2462 = vpop.f32.mrb[0].mxu0
        %2463 = vmatprep.mubr.f32.mxu0 0.0
        %2464 = vmatmul.mubr.f32.gmra.mrb[0].mxu0 %v2084
        %v2465 = vpop.f32.mrb[0].mxu0
        %v2466 = vadd.f32 0.0, %v2465
        %v2467 = vpop.f32.mrb[0].mxu0
        %2468 = vmatprep.mubr.f32.mxu0 0.0
        %2469 = vmatmul.mubr.f32.gmra.mrb[0].mxu0 %v2087
        %v2470 = vpop.f32.mrb[0].mxu0
        %v2471 = vadd.f32 0.0, %v2470
        %v2472 = vpop.f32.mrb[0].mxu0
        %2473 = vdwg.mxu0
        %v2474 = vadd.f32 %v1514, %v2156
        %v2475 = vadd.f32 %v1519, %v2161
        %v2476 = vadd.f32 %v1524, %v2166
        %v2477 = vadd.f32 %v1529, %v2171
        %v2478 = vadd.f32 %v1534, %v2176
        %v2479 = vadd.f32 %v1539, %v2181
        %v2480 = vadd.f32 %v1544, %v2186
        %v2481 = vadd.f32 %v1549, %v2191
        %v2482 = vadd.f32 %v1554, %v2196
        %v2483 = vadd.f32 %v1559, %v2201
        %v2484 = vadd.f32 %v1564, %v2206
        %v2485 = vadd.f32 %v1569, %v2211
        %v2486 = vadd.f32 %v1574, %v2216
        %v2487 = vadd.f32 %v1579, %v2221
        %v2488 = vadd.f32 %v1584, %v2226
        %v2489 = vadd.f32 %v1589, %v2231
        %v2490 = vadd.f32 %v1594, %v2236
        %v2491 = vadd.f32 %v1599, %v2241
        %v2492 = vadd.f32 %v1604, %v2246
        %v2493 = vadd.f32 %v1609, %v2251
        %v2494 = vadd.f32 %v1614, %v2256
        %v2495 = vadd.f32 %v1619, %v2261
        %v2496 = vadd.f32 %v1624, %v2266
        %v2497 = vadd.f32 %v1629, %v2271
        %v2498 = vadd.f32 %v1634, %v2276
        %v2499 = vadd.f32 %v1639, %v2281
        %v2500 = vadd.f32 %v1644, %v2286
        %v2501 = vadd.f32 %v1649, %v2291
        %v2502 = vadd.f32 %v1654, %v2296
        %v2503 = vadd.f32 %v1659, %v2301
        %v2504 = vadd.f32 %v1664, %v2306
        %v2505 = vadd.f32 %v1669, %v2311
        %v2506 = vadd.f32 %v1674, %v2316
        %v2507 = vadd.f32 %v1679, %v2321
        %v2508 = vadd.f32 %v1684, %v2326
        %v2509 = vadd.f32 %v1689, %v2331
        %v2510 = vadd.f32 %v1694, %v2336
        %v2511 = vadd.f32 %v1699, %v2341
        %v2512 = vadd.f32 %v1704, %v2346
        %v2513 = vadd.f32 %v1709, %v2351
        %v2514 = vadd.f32 %v1714, %v2356
        %v2515 = vadd.f32 %v1719, %v2361
        %v2516 = vadd.f32 %v1724, %v2366
        %v2517 = vadd.f32 %v1729, %v2371
        %v2518 = vadd.f32 %v1734, %v2376
        %v2519 = vadd.f32 %v1739, %v2381
        %v2520 = vadd.f32 %v1744, %v2386
        %v2521 = vadd.f32 %v1749, %v2391
        %v2522 = vadd.f32 %v1754, %v2396
        %v2523 = vadd.f32 %v1759, %v2401
        %v2524 = vadd.f32 %v1764, %v2406
        %v2525 = vadd.f32 %v1769, %v2411
        %v2526 = vadd.f32 %v1774, %v2416
        %v2527 = vadd.f32 %v1779, %v2421
        %v2528 = vadd.f32 %v1784, %v2426
        %v2529 = vadd.f32 %v1789, %v2431
        %v2530 = vadd.f32 %v1794, %v2436
        %v2531 = vadd.f32 %v1799, %v2441
        %v2532 = vadd.f32 %v1804, %v2446
        %v2533 = vadd.f32 %v1809, %v2451
        %v2534 = vadd.f32 %v1814, %v2456
        %v2535 = vadd.f32 %v1819, %v2461
        %v2536 = vadd.f32 %v1824, %v2466
        %v2537 = vadd.f32 %v1829, %v2471
        %v2538 = vld [vmem:[%s344] sm:$0xff]
        %v2539 = vld [vmem:[%s344 + $0x8] sm:$0xff]
        %v2540 = vld [vmem:[%s344 + $0x18] sm:$0xff]
        %v2541 = vld [vmem:[%s344 + $0x20] sm:$0xff]
        %v2542 = vld [vmem:[%s344 + $0x30] sm:$0xff]
        %v2543 = vld [vmem:[%s344 + $0x38] sm:$0xff]
        %v2544 = vld [vmem:[%s344 + $0x48] sm:$0xff]
        %v2545 = vld [vmem:[%s344 + $0x50] sm:$0xff]
        %v2546 = vld [vmem:[%s344 + $0x60] sm:$0xff]
        %v2547 = vld [vmem:[%s344 + $0x68] sm:$0xff]
        %v2548 = vld [vmem:[%s344 + $0x78] sm:$0xff]
        %v2549 = vld [vmem:[%s344 + $0x80] sm:$0xff]
        %v2550 = vld [vmem:[%s344 + $0x90] sm:$0xff]
        %v2551 = vld [vmem:[%s344 + $0x98] sm:$0xff]
        %v2552 = vld [vmem:[%s344 + $0xa8] sm:$0xff]
        %v2553 = vld [vmem:[%s344 + $0xb0] sm:$0xff]
        %v2554 = vld [vmem:[%s344 + $0xc0] sm:$0xff]
        %v2555 = vld [vmem:[%s344 + $0xc8] sm:$0xff]
        %v2556 = vld [vmem:[%s344 + $0xd8] sm:$0xff]
        %v2557 = vld [vmem:[%s344 + $0xe0] sm:$0xff]
        %v2558 = vld [vmem:[%s344 + $0xf0] sm:$0xff]
        %v2559 = vld [vmem:[%s344 + $0xf8] sm:$0xff]
        %v2560 = vld [vmem:[%s344 + $0x108] sm:$0xff]
        %v2561 = vld [vmem:[%s344 + $0x110] sm:$0xff]
        %v2562 = vld [vmem:[%s344 + $0x120] sm:$0xff]
        %v2563 = vld [vmem:[%s344 + $0x128] sm:$0xff]
        %v2564 = vld [vmem:[%s344 + $0x138] sm:$0xff]
        %v2565 = vld [vmem:[%s344 + $0x140] sm:$0xff]
        %v2566 = vld [vmem:[%s344 + $0x150] sm:$0xff]
        %v2567 = vld [vmem:[%s344 + $0x158] sm:$0xff]
        %v2568 = vld [vmem:[%s344 + $0x168] sm:$0xff]
        %v2569 = vld [vmem:[%s344 + $0x170] sm:$0xff]
        %v2570 = vld [vmem:[%s450] sm:$0xff]
        %v2571 = vld [vmem:[%s450 + $0x8] sm:$0xff]
        %v2572 = vld [vmem:[%s450 + $0x18] sm:$0xff]
        %v2573 = vld [vmem:[%s450 + $0x20] sm:$0xff]
        %v2574 = vld [vmem:[%s450 + $0x30] sm:$0xff]
        %v2575 = vld [vmem:[%s450 + $0x38] sm:$0xff]
        %v2576 = vld [vmem:[%s450 + $0x48] sm:$0xff]
        %v2577 = vld [vmem:[%s450 + $0x50] sm:$0xff]
        %v2578 = vld [vmem:[%s450 + $0x60] sm:$0xff]
        %v2579 = vld [vmem:[%s450 + $0x68] sm:$0xff]
        %v2580 = vld [vmem:[%s450 + $0x78] sm:$0xff]
        %v2581 = vld [vmem:[%s450 + $0x80] sm:$0xff]
        %v2582 = vld [vmem:[%s450 + $0x90] sm:$0xff]
        %v2583 = vld [vmem:[%s450 + $0x98] sm:$0xff]
        %v2584 = vld [vmem:[%s450 + $0xa8] sm:$0xff]
        %v2585 = vld [vmem:[%s450 + $0xb0] sm:$0xff]
        %v2586 = vld [vmem:[%s450 + $0xc0] sm:$0xff]
        %v2587 = vld [vmem:[%s450 + $0xc8] sm:$0xff]
        %v2588 = vld [vmem:[%s450 + $0xd8] sm:$0xff]
        %v2589 = vld [vmem:[%s450 + $0xe0] sm:$0xff]
        %v2590 = vld [vmem:[%s450 + $0xf0] sm:$0xff]
        %v2591 = vld [vmem:[%s450 + $0xf8] sm:$0xff]
        %v2592 = vld [vmem:[%s450 + $0x108] sm:$0xff]
        %v2593 = vld [vmem:[%s450 + $0x110] sm:$0xff]
        %v2594 = vld [vmem:[%s450 + $0x120] sm:$0xff]
        %v2595 = vld [vmem:[%s450 + $0x128] sm:$0xff]
        %v2596 = vld [vmem:[%s450 + $0x138] sm:$0xff]
        %v2597 = vld [vmem:[%s450 + $0x140] sm:$0xff]
        %v2598 = vld [vmem:[%s450 + $0x150] sm:$0xff]
        %v2599 = vld [vmem:[%s450 + $0x158] sm:$0xff]
        %v2600 = vld [vmem:[%s450 + $0x168] sm:$0xff]
        %v2601 = vld [vmem:[%s450 + $0x170] sm:$0xff]
        %v2602 = vld [vmem:[%s2 + $0x18] sm:$0xff]
        %v2604 = vsel %vm335, %v2538, 0
        %v2607 = vsel %vm335, %v2539, 0
        %v2610 = vsel %vm335, %v2540, 0
        %v2613 = vsel %vm335, %v2541, 0
        %v2616 = vsel %vm335, %v2542, 0
        %v2619 = vsel %vm335, %v2543, 0
        %v2622 = vsel %vm335, %v2544, 0
        %v2625 = vsel %vm335, %v2545, 0
        %v2628 = vsel %vm335, %v2546, 0
        %v2631 = vsel %vm335, %v2547, 0
        %v2634 = vsel %vm335, %v2548, 0
        %v2637 = vsel %vm335, %v2549, 0
        %v2640 = vsel %vm335, %v2550, 0
        %v2643 = vsel %vm335, %v2551, 0
        %v2646 = vsel %vm335, %v2552, 0
        %v2649 = vsel %vm335, %v2553, 0
        %v2652 = vsel %vm335, %v2554, 0
        %v2655 = vsel %vm335, %v2555, 0
        %v2658 = vsel %vm335, %v2556, 0
        %v2661 = vsel %vm335, %v2557, 0
        %v2664 = vsel %vm335, %v2558, 0
        %v2667 = vsel %vm335, %v2559, 0
        %v2670 = vsel %vm335, %v2560, 0
        %v2673 = vsel %vm335, %v2561, 0
        %v2676 = vsel %vm335, %v2562, 0
        %v2679 = vsel %vm335, %v2563, 0
        %v2682 = vsel %vm335, %v2564, 0
        %v2685 = vsel %vm335, %v2565, 0
        %v2688 = vsel %vm335, %v2566, 0
        %v2691 = vsel %vm335, %v2567, 0
        %v2694 = vsel %vm335, %v2568, 0
        %v2697 = vsel %vm335, %v2569, 0
        %v2700 = vsel %vm335, %v2570, 0
        %v2703 = vsel %vm335, %v2571, 0
        %v2706 = vsel %vm335, %v2572, 0
        %v2709 = vsel %vm335, %v2573, 0
        %v2712 = vsel %vm335, %v2574, 0
        %v2715 = vsel %vm335, %v2575, 0
        %v2718 = vsel %vm335, %v2576, 0
        %v2721 = vsel %vm335, %v2577, 0
        %v2724 = vsel %vm335, %v2578, 0
        %v2727 = vsel %vm335, %v2579, 0
        %v2730 = vsel %vm335, %v2580, 0
        %v2733 = vsel %vm335, %v2581, 0
        %v2736 = vsel %vm335, %v2582, 0
        %v2739 = vsel %vm335, %v2583, 0
        %v2742 = vsel %vm335, %v2584, 0
        %v2745 = vsel %vm335, %v2585, 0
        %v2748 = vsel %vm335, %v2586, 0
        %v2751 = vsel %vm335, %v2587, 0
        %v2754 = vsel %vm335, %v2588, 0
        %v2757 = vsel %vm335, %v2589, 0
        %v2760 = vsel %vm335, %v2590, 0
        %v2763 = vsel %vm335, %v2591, 0
        %v2766 = vsel %vm335, %v2592, 0
        %v2769 = vsel %vm335, %v2593, 0
        %v2772 = vsel %vm335, %v2594, 0
        %v2775 = vsel %vm335, %v2595, 0
        %v2778 = vsel %vm335, %v2596, 0
        %v2781 = vsel %vm335, %v2597, 0
        %v2784 = vsel %vm335, %v2598, 0
        %v2787 = vsel %vm335, %v2599, 0
        %v2790 = vsel %vm335, %v2600, 0
        %v2793 = vsel %vm335, %v2601, 0
        %2795 = vmatprep.subr.mxu0 0.0
        %2796 = vmatpush1.msra.mxu0 %v2602
        %2797 = vmatprep.subr.mxu0 0.0
        %2798 = vmatpush1.msra.mxu0 0.0
        %2799 = vmatprep.subr.mxu0 0.0
        %2800 = vmatpush1.msra.mxu0 0.0
        %2801 = vmatprep.subr.mxu0 0.0
        %2802 = vmatpush1.msra.mxu0 0.0
        %2803 = vmatprep.subr.mxu0 0.0
        %2804 = vmatpush1.msra.mxu0 0.0
        %2805 = vmatprep.subr.mxu0 0.0
        %2806 = vmatpush1.msra.mxu0 0.0
        %2807 = vmatprep.subr.mxu0 0.0
        %2808 = vmatpush1.msra.mxu0 0.0
        %2809 = vmatprep.subr.mxu0 0.0
        %2810 = vmatpush1.msra.mxu0 0.0
        %2811 = vmatprep.subr.mxu0 0.0
        %2812 = vmatpush1.msra.mxu0 0.0
        %2813 = vmatprep.subr.mxu0 0.0
        %2814 = vmatpush1.msra.mxu0 0.0
        %2815 = vmatprep.subr.mxu0 0.0
        %2816 = vmatpush1.msra.mxu0 0.0
        %2817 = vmatprep.subr.mxu0 0.0
        %2818 = vmatpush1.msra.mxu0 0.0
        %2819 = vmatprep.subr.mxu0 0.0
        %2820 = vmatpush1.msra.mxu0 0.0
        %2821 = vmatprep.subr.mxu0 0.0
        %2822 = vmatpush1.msra.mxu0 0.0
        %2823 = vmatprep.subr.mxu0 0.0
        %2824 = vmatpush1.msra.mxu0 0.0
        %2825 = vmatprep.subr.mxu0 0.0
        %2826 = vmatpush1.msra.mxu0 0.0
        %2827 = vmatprep.subr.mxu0 0.0
        %2828 = vmatpush1.msra.mxu0 0.0
        %2829 = vmatprep.subr.mxu0 0.0
        %2830 = vmatpush1.msra.mxu0 0.0
        %2831 = vmatprep.subr.mxu0 0.0
        %2832 = vmatpush1.msra.mxu0 0.0
        %2833 = vmatprep.subr.mxu0 0.0
        %2834 = vmatpush1.msra.mxu0 0.0
        %2835 = vmatprep.subr.mxu0 0.0
        %2836 = vmatpush1.msra.mxu0 0.0
        %2837 = vmatprep.subr.mxu0 0.0
        %2838 = vmatpush1.msra.mxu0 0.0
        %2839 = vmatprep.subr.mxu0 0.0
        %2840 = vmatpush1.msra.mxu0 0.0
        %2841 = vmatprep.subr.mxu0 0.0
        %2842 = vmatpush1.msra.mxu0 0.0
        %2843 = vmatprep.subr.mxu0 0.0
        %2844 = vmatpush1.msra.mxu0 0.0
        %2845 = vmatprep.subr.mxu0 0.0
        %2846 = vmatpush1.msra.mxu0 0.0
        %2847 = vmatprep.subr.mxu0 0.0
        %2848 = vmatpush1.msra.mxu0 0.0
        %2849 = vmatprep.subr.mxu0 0.0
        %2850 = vmatpush1.msra.mxu0 0.0
        %2851 = vmatprep.subr.mxu0 0.0
        %2852 = vmatpush1.msra.mxu0 0.0
        %2853 = vmatprep.subr.mxu0 0.0
        %2854 = vmatpush1.msra.mxu0 0.0
        %2855 = vmatprep.subr.mxu0 0.0
        %2856 = vmatpush1.msra.mxu0 0.0
        %2857 = vmatprep.subr.mxu0 0.0
        %2858 = vmatpush1.msra.mxu0 0.0
        %2859 = vmatprep.mubr.f32.mxu0 0.0
        %2860 = vmatmul.mubr.f32.gmra.mrb[0].mxu0 %v2604
        %v2861 = vpop.f32.mrb[0].mxu0
        %v2862 = vadd.f32 0.0, %v2861
        %v2863 = vpop.f32.mrb[0].mxu0
        %2864 = vmatprep.mubr.f32.mxu0 0.0
        %2865 = vmatmul.mubr.f32.gmra.mrb[0].mxu0 %v2607
        %v2866 = vpop.f32.mrb[0].mxu0
        %v2867 = vadd.f32 0.0, %v2866
        %v2868 = vpop.f32.mrb[0].mxu0
        %2869 = vmatprep.mubr.f32.mxu0 0.0
        %2870 = vmatmul.mubr.f32.gmra.mrb[0].mxu0 %v2610
        %v2871 = vpop.f32.mrb[0].mxu0
        %v2872 = vadd.f32 0.0, %v2871
        %v2873 = vpop.f32.mrb[0].mxu0
        %2874 = vmatprep.mubr.f32.mxu0 0.0
        %2875 = vmatmul.mubr.f32.gmra.mrb[0].mxu0 %v2613
        %v2876 = vpop.f32.mrb[0].mxu0
        %v2877 = vadd.f32 0.0, %v2876
        %v2878 = vpop.f32.mrb[0].mxu0
        %2879 = vmatprep.mubr.f32.mxu0 0.0
        %2880 = vmatmul.mubr.f32.gmra.mrb[0].mxu0 %v2616
        %v2881 = vpop.f32.mrb[0].mxu0
        %v2882 = vadd.f32 0.0, %v2881
        %v2883 = vpop.f32.mrb[0].mxu0
        %2884 = vmatprep.mubr.f32.mxu0 0.0
        %2885 = vmatmul.mubr.f32.gmra.mrb[0].mxu0 %v2619
        %v2886 = vpop.f32.mrb[0].mxu0
        %v2887 = vadd.f32 0.0, %v2886
        %v2888 = vpop.f32.mrb[0].mxu0
        %2889 = vmatprep.mubr.f32.mxu0 0.0
        %2890 = vmatmul.mubr.f32.gmra.mrb[0].mxu0 %v2622
        %v2891 = vpop.f32.mrb[0].mxu0
        %v2892 = vadd.f32 0.0, %v2891
        %v2893 = vpop.f32.mrb[0].mxu0
        %2894 = vmatprep.mubr.f32.mxu0 0.0
        %2895 = vmatmul.mubr.f32.gmra.mrb[0].mxu0 %v2625
        %v2896 = vpop.f32.mrb[0].mxu0
        %v2897 = vadd.f32 0.0, %v2896
        %v2898 = vpop.f32.mrb[0].mxu0
        %2899 = vmatprep.mubr.f32.mxu0 0.0
        %2900 = vmatmul.mubr.f32.gmra.mrb[0].mxu0 %v2628
        %v2901 = vpop.f32.mrb[0].mxu0
        %v2902 = vadd.f32 0.0, %v2901
        %v2903 = vpop.f32.mrb[0].mxu0
        %2904 = vmatprep.mubr.f32.mxu0 0.0
        %2905 = vmatmul.mubr.f32.gmra.mrb[0].mxu0 %v2631
        %v2906 = vpop.f32.mrb[0].mxu0
        %v2907 = vadd.f32 0.0, %v2906
        %v2908 = vpop.f32.mrb[0].mxu0
        %2909 = vmatprep.mubr.f32.mxu0 0.0
        %2910 = vmatmul.mubr.f32.gmra.mrb[0].mxu0 %v2634
        %v2911 = vpop.f32.mrb[0].mxu0
        %v2912 = vadd.f32 0.0, %v2911
        %v2913 = vpop.f32.mrb[0].mxu0
        %2914 = vmatprep.mubr.f32.mxu0 0.0
        %2915 = vmatmul.mubr.f32.gmra.mrb[0].mxu0 %v2637
        %v2916 = vpop.f32.mrb[0].mxu0
        %v2917 = vadd.f32 0.0, %v2916
        %v2918 = vpop.f32.mrb[0].mxu0
        %2919 = vmatprep.mubr.f32.mxu0 0.0
        %2920 = vmatmul.mubr.f32.gmra.mrb[0].mxu0 %v2640
        %v2921 = vpop.f32.mrb[0].mxu0
        %v2922 = vadd.f32 0.0, %v2921
        %v2923 = vpop.f32.mrb[0].mxu0
        %2924 = vmatprep.mubr.f32.mxu0 0.0
        %2925 = vmatmul.mubr.f32.gmra.mrb[0].mxu0 %v2643
        %v2926 = vpop.f32.mrb[0].mxu0
        %v2927 = vadd.f32 0.0, %v2926
        %v2928 = vpop.f32.mrb[0].mxu0
        %2929 = vmatprep.mubr.f32.mxu0 0.0
        %2930 = vmatmul.mubr.f32.gmra.mrb[0].mxu0 %v2646
        %v2931 = vpop.f32.mrb[0].mxu0
        %v2932 = vadd.f32 0.0, %v2931
        %v2933 = vpop.f32.mrb[0].mxu0
        %2934 = vmatprep.mubr.f32.mxu0 0.0
        %2935 = vmatmul.mubr.f32.gmra.mrb[0].mxu0 %v2649
        %v2936 = vpop.f32.mrb[0].mxu0
        %v2937 = vadd.f32 0.0, %v2936
        %v2938 = vpop.f32.mrb[0].mxu0
        %2939 = vmatprep.mubr.f32.mxu0 0.0
        %2940 = vmatmul.mubr.f32.gmra.mrb[0].mxu0 %v2652
        %v2941 = vpop.f32.mrb[0].mxu0
        %v2942 = vadd.f32 0.0, %v2941
        %v2943 = vpop.f32.mrb[0].mxu0
        %2944 = vmatprep.mubr.f32.mxu0 0.0
        %2945 = vmatmul.mubr.f32.gmra.mrb[0].mxu0 %v2655
        %v2946 = vpop.f32.mrb[0].mxu0
        %v2947 = vadd.f32 0.0, %v2946
        %v2948 = vpop.f32.mrb[0].mxu0
        %2949 = vmatprep.mubr.f32.mxu0 0.0
        %2950 = vmatmul.mubr.f32.gmra.mrb[0].mxu0 %v2658
        %v2951 = vpop.f32.mrb[0].mxu0
        %v2952 = vadd.f32 0.0, %v2951
        %v2953 = vpop.f32.mrb[0].mxu0
        %2954 = vmatprep.mubr.f32.mxu0 0.0
        %2955 = vmatmul.mubr.f32.gmra.mrb[0].mxu0 %v2661
        %v2956 = vpop.f32.mrb[0].mxu0
        %v2957 = vadd.f32 0.0, %v2956
        %v2958 = vpop.f32.mrb[0].mxu0
        %2959 = vmatprep.mubr.f32.mxu0 0.0
        %2960 = vmatmul.mubr.f32.gmra.mrb[0].mxu0 %v2664
        %v2961 = vpop.f32.mrb[0].mxu0
        %v2962 = vadd.f32 0.0, %v2961
        %v2963 = vpop.f32.mrb[0].mxu0
        %2964 = vmatprep.mubr.f32.mxu0 0.0
        %2965 = vmatmul.mubr.f32.gmra.mrb[0].mxu0 %v2667
        %v2966 = vpop.f32.mrb[0].mxu0
        %v2967 = vadd.f32 0.0, %v2966
        %v2968 = vpop.f32.mrb[0].mxu0
        %2969 = vmatprep.mubr.f32.mxu0 0.0
        %2970 = vmatmul.mubr.f32.gmra.mrb[0].mxu0 %v2670
        %v2971 = vpop.f32.mrb[0].mxu0
        %v2972 = vadd.f32 0.0, %v2971
        %v2973 = vpop.f32.mrb[0].mxu0
        %2974 = vmatprep.mubr.f32.mxu0 0.0
        %2975 = vmatmul.mubr.f32.gmra.mrb[0].mxu0 %v2673
        %v2976 = vpop.f32.mrb[0].mxu0
        %v2977 = vadd.f32 0.0, %v2976
        %v2978 = vpop.f32.mrb[0].mxu0
        %2979 = vmatprep.mubr.f32.mxu0 0.0
        %2980 = vmatmul.mubr.f32.gmra.mrb[0].mxu0 %v2676
        %v2981 = vpop.f32.mrb[0].mxu0
        %v2982 = vadd.f32 0.0, %v2981
        %v2983 = vpop.f32.mrb[0].mxu0
        %2984 = vmatprep.mubr.f32.mxu0 0.0
        %2985 = vmatmul.mubr.f32.gmra.mrb[0].mxu0 %v2679
        %v2986 = vpop.f32.mrb[0].mxu0
        %v2987 = vadd.f32 0.0, %v2986
        %v2988 = vpop.f32.mrb[0].mxu0
        %2989 = vmatprep.mubr.f32.mxu0 0.0
        %2990 = vmatmul.mubr.f32.gmra.mrb[0].mxu0 %v2682
        %v2991 = vpop.f32.mrb[0].mxu0
        %v2992 = vadd.f32 0.0, %v2991
        %v2993 = vpop.f32.mrb[0].mxu0
        %2994 = vmatprep.mubr.f32.mxu0 0.0
        %2995 = vmatmul.mubr.f32.gmra.mrb[0].mxu0 %v2685
        %v2996 = vpop.f32.mrb[0].mxu0
        %v2997 = vadd.f32 0.0, %v2996
        %v2998 = vpop.f32.mrb[0].mxu0
        %2999 = vmatprep.mubr.f32.mxu0 0.0
        %3000 = vmatmul.mubr.f32.gmra.mrb[0].mxu0 %v2688
        %v3001 = vpop.f32.mrb[0].mxu0
        %v3002 = vadd.f32 0.0, %v3001
        %v3003 = vpop.f32.mrb[0].mxu0
        %3004 = vmatprep.mubr.f32.mxu0 0.0
        %3005 = vmatmul.mubr.f32.gmra.mrb[0].mxu0 %v2691
        %v3006 = vpop.f32.mrb[0].mxu0
        %v3007 = vadd.f32 0.0, %v3006
        %v3008 = vpop.f32.mrb[0].mxu0
        %3009 = vmatprep.mubr.f32.mxu0 0.0
        %3010 = vmatmul.mubr.f32.gmra.mrb[0].mxu0 %v2694
        %v3011 = vpop.f32.mrb[0].mxu0
        %v3012 = vadd.f32 0.0, %v3011
        %v3013 = vpop.f32.mrb[0].mxu0
        %3014 = vmatprep.mubr.f32.mxu0 0.0
        %3015 = vmatmul.mubr.f32.gmra.mrb[0].mxu0 %v2697
        %v3016 = vpop.f32.mrb[0].mxu0
        %v3017 = vadd.f32 0.0, %v3016
        %v3018 = vpop.f32.mrb[0].mxu0
        %3019 = vmatprep.mubr.f32.mxu0 0.0
        %3020 = vmatmul.mubr.f32.gmra.mrb[0].mxu0 %v2700
        %v3021 = vpop.f32.mrb[0].mxu0
        %v3022 = vadd.f32 0.0, %v3021
        %v3023 = vpop.f32.mrb[0].mxu0
        %3024 = vmatprep.mubr.f32.mxu0 0.0
        %3025 = vmatmul.mubr.f32.gmra.mrb[0].mxu0 %v2703
        %v3026 = vpop.f32.mrb[0].mxu0
        %v3027 = vadd.f32 0.0, %v3026
        %v3028 = vpop.f32.mrb[0].mxu0
        %3029 = vmatprep.mubr.f32.mxu0 0.0
        %3030 = vmatmul.mubr.f32.gmra.mrb[0].mxu0 %v2706
        %v3031 = vpop.f32.mrb[0].mxu0
        %v3032 = vadd.f32 0.0, %v3031
        %v3033 = vpop.f32.mrb[0].mxu0
        %3034 = vmatprep.mubr.f32.mxu0 0.0
        %3035 = vmatmul.mubr.f32.gmra.mrb[0].mxu0 %v2709
        %v3036 = vpop.f32.mrb[0].mxu0
        %v3037 = vadd.f32 0.0, %v3036
        %v3038 = vpop.f32.mrb[0].mxu0
        %3039 = vmatprep.mubr.f32.mxu0 0.0
        %3040 = vmatmul.mubr.f32.gmra.mrb[0].mxu0 %v2712
        %v3041 = vpop.f32.mrb[0].mxu0
        %v3042 = vadd.f32 0.0, %v3041
        %v3043 = vpop.f32.mrb[0].mxu0
        %3044 = vmatprep.mubr.f32.mxu0 0.0
        %3045 = vmatmul.mubr.f32.gmra.mrb[0].mxu0 %v2715
        %v3046 = vpop.f32.mrb[0].mxu0
        %v3047 = vadd.f32 0.0, %v3046
        %v3048 = vpop.f32.mrb[0].mxu0
        %3049 = vmatprep.mubr.f32.mxu0 0.0
        %3050 = vmatmul.mubr.f32.gmra.mrb[0].mxu0 %v2718
        %v3051 = vpop.f32.mrb[0].mxu0
        %v3052 = vadd.f32 0.0, %v3051
        %v3053 = vpop.f32.mrb[0].mxu0
        %3054 = vmatprep.mubr.f32.mxu0 0.0
        %3055 = vmatmul.mubr.f32.gmra.mrb[0].mxu0 %v2721
        %v3056 = vpop.f32.mrb[0].mxu0
        %v3057 = vadd.f32 0.0, %v3056
        %v3058 = vpop.f32.mrb[0].mxu0
        %3059 = vmatprep.mubr.f32.mxu0 0.0
        %3060 = vmatmul.mubr.f32.gmra.mrb[0].mxu0 %v2724
        %v3061 = vpop.f32.mrb[0].mxu0
        %v3062 = vadd.f32 0.0, %v3061
        %v3063 = vpop.f32.mrb[0].mxu0
        %3064 = vmatprep.mubr.f32.mxu0 0.0
        %3065 = vmatmul.mubr.f32.gmra.mrb[0].mxu0 %v2727
        %v3066 = vpop.f32.mrb[0].mxu0
        %v3067 = vadd.f32 0.0, %v3066
        %v3068 = vpop.f32.mrb[0].mxu0
        %3069 = vmatprep.mubr.f32.mxu0 0.0
        %3070 = vmatmul.mubr.f32.gmra.mrb[0].mxu0 %v2730
        %v3071 = vpop.f32.mrb[0].mxu0
        %v3072 = vadd.f32 0.0, %v3071
        %v3073 = vpop.f32.mrb[0].mxu0
        %3074 = vmatprep.mubr.f32.mxu0 0.0
        %3075 = vmatmul.mubr.f32.gmra.mrb[0].mxu0 %v2733
        %v3076 = vpop.f32.mrb[0].mxu0
        %v3077 = vadd.f32 0.0, %v3076
        %v3078 = vpop.f32.mrb[0].mxu0
        %3079 = vmatprep.mubr.f32.mxu0 0.0
        %3080 = vmatmul.mubr.f32.gmra.mrb[0].mxu0 %v2736
        %v3081 = vpop.f32.mrb[0].mxu0
        %v3082 = vadd.f32 0.0, %v3081
        %v3083 = vpop.f32.mrb[0].mxu0
        %3084 = vmatprep.mubr.f32.mxu0 0.0
        %3085 = vmatmul.mubr.f32.gmra.mrb[0].mxu0 %v2739
        %v3086 = vpop.f32.mrb[0].mxu0
        %v3087 = vadd.f32 0.0, %v3086
        %v3088 = vpop.f32.mrb[0].mxu0
        %3089 = vmatprep.mubr.f32.mxu0 0.0
        %3090 = vmatmul.mubr.f32.gmra.mrb[0].mxu0 %v2742
        %v3091 = vpop.f32.mrb[0].mxu0
        %v3092 = vadd.f32 0.0, %v3091
        %v3093 = vpop.f32.mrb[0].mxu0
        %3094 = vmatprep.mubr.f32.mxu0 0.0
        %3095 = vmatmul.mubr.f32.gmra.mrb[0].mxu0 %v2745
        %v3096 = vpop.f32.mrb[0].mxu0
        %v3097 = vadd.f32 0.0, %v3096
        %v3098 = vpop.f32.mrb[0].mxu0
        %3099 = vmatprep.mubr.f32.mxu0 0.0
        %3100 = vmatmul.mubr.f32.gmra.mrb[0].mxu0 %v2748
        %v3101 = vpop.f32.mrb[0].mxu0
        %v3102 = vadd.f32 0.0, %v3101
        %v3103 = vpop.f32.mrb[0].mxu0
        %3104 = vmatprep.mubr.f32.mxu0 0.0
        %3105 = vmatmul.mubr.f32.gmra.mrb[0].mxu0 %v2751
        %v3106 = vpop.f32.mrb[0].mxu0
        %v3107 = vadd.f32 0.0, %v3106
        %v3108 = vpop.f32.mrb[0].mxu0
        %3109 = vmatprep.mubr.f32.mxu0 0.0
        %3110 = vmatmul.mubr.f32.gmra.mrb[0].mxu0 %v2754
        %v3111 = vpop.f32.mrb[0].mxu0
        %v3112 = vadd.f32 0.0, %v3111
        %v3113 = vpop.f32.mrb[0].mxu0
        %3114 = vmatprep.mubr.f32.mxu0 0.0
        %3115 = vmatmul.mubr.f32.gmra.mrb[0].mxu0 %v2757
        %v3116 = vpop.f32.mrb[0].mxu0
        %v3117 = vadd.f32 0.0, %v3116
        %v3118 = vpop.f32.mrb[0].mxu0
        %3119 = vmatprep.mubr.f32.mxu0 0.0
        %3120 = vmatmul.mubr.f32.gmra.mrb[0].mxu0 %v2760
        %v3121 = vpop.f32.mrb[0].mxu0
        %v3122 = vadd.f32 0.0, %v3121
        %v3123 = vpop.f32.mrb[0].mxu0
        %3124 = vmatprep.mubr.f32.mxu0 0.0
        %3125 = vmatmul.mubr.f32.gmra.mrb[0].mxu0 %v2763
        %v3126 = vpop.f32.mrb[0].mxu0
        %v3127 = vadd.f32 0.0, %v3126
        %v3128 = vpop.f32.mrb[0].mxu0
        %3129 = vmatprep.mubr.f32.mxu0 0.0
        %3130 = vmatmul.mubr.f32.gmra.mrb[0].mxu0 %v2766
        %v3131 = vpop.f32.mrb[0].mxu0
        %v3132 = vadd.f32 0.0, %v3131
        %v3133 = vpop.f32.mrb[0].mxu0
        %3134 = vmatprep.mubr.f32.mxu0 0.0
        %3135 = vmatmul.mubr.f32.gmra.mrb[0].mxu0 %v2769
        %v3136 = vpop.f32.mrb[0].mxu0
        %v3137 = vadd.f32 0.0, %v3136
        %v3138 = vpop.f32.mrb[0].mxu0
        %3139 = vmatprep.mubr.f32.mxu0 0.0
        %3140 = vmatmul.mubr.f32.gmra.mrb[0].mxu0 %v2772
        %v3141 = vpop.f32.mrb[0].mxu0
        %v3142 = vadd.f32 0.0, %v3141
        %v3143 = vpop.f32.mrb[0].mxu0
        %3144 = vmatprep.mubr.f32.mxu0 0.0
        %3145 = vmatmul.mubr.f32.gmra.mrb[0].mxu0 %v2775
        %v3146 = vpop.f32.mrb[0].mxu0
        %v3147 = vadd.f32 0.0, %v3146
        %v3148 = vpop.f32.mrb[0].mxu0
        %3149 = vmatprep.mubr.f32.mxu0 0.0
        %3150 = vmatmul.mubr.f32.gmra.mrb[0].mxu0 %v2778
        %v3151 = vpop.f32.mrb[0].mxu0
        %v3152 = vadd.f32 0.0, %v3151
        %v3153 = vpop.f32.mrb[0].mxu0
        %3154 = vmatprep.mubr.f32.mxu0 0.0
        %3155 = vmatmul.mubr.f32.gmra.mrb[0].mxu0 %v2781
        %v3156 = vpop.f32.mrb[0].mxu0
        %v3157 = vadd.f32 0.0, %v3156
        %v3158 = vpop.f32.mrb[0].mxu0
        %3159 = vmatprep.mubr.f32.mxu0 0.0
        %3160 = vmatmul.mubr.f32.gmra.mrb[0].mxu0 %v2784
        %v3161 = vpop.f32.mrb[0].mxu0
        %v3162 = vadd.f32 0.0, %v3161
        %v3163 = vpop.f32.mrb[0].mxu0
        %3164 = vmatprep.mubr.f32.mxu0 0.0
        %3165 = vmatmul.mubr.f32.gmra.mrb[0].mxu0 %v2787
        %v3166 = vpop.f32.mrb[0].mxu0
        %v3167 = vadd.f32 0.0, %v3166
        %v3168 = vpop.f32.mrb[0].mxu0
        %3169 = vmatprep.mubr.f32.mxu0 0.0
        %3170 = vmatmul.mubr.f32.gmra.mrb[0].mxu0 %v2790
        %v3171 = vpop.f32.mrb[0].mxu0
        %v3172 = vadd.f32 0.0, %v3171
        %v3173 = vpop.f32.mrb[0].mxu0
        %3174 = vmatprep.mubr.f32.mxu0 0.0
        %3175 = vmatmul.mubr.f32.gmra.mrb[0].mxu0 %v2793
        %v3176 = vpop.f32.mrb[0].mxu0
        %v3177 = vadd.f32 0.0, %v3176
        %v3178 = vpop.f32.mrb[0].mxu0
        %3179 = vdwg.mxu0
        %v3180 = vadd.f32 %v2474, %v2862
        %v3181 = vadd.f32 %v2475, %v2867
        %v3182 = vadd.f32 %v2476, %v2872
        %v3183 = vadd.f32 %v2477, %v2877
        %v3184 = vadd.f32 %v2478, %v2882
        %v3185 = vadd.f32 %v2479, %v2887
        %v3186 = vadd.f32 %v2480, %v2892
        %v3187 = vadd.f32 %v2481, %v2897
        %v3188 = vadd.f32 %v2482, %v2902
        %v3189 = vadd.f32 %v2483, %v2907
        %v3190 = vadd.f32 %v2484, %v2912
        %v3191 = vadd.f32 %v2485, %v2917
        %v3192 = vadd.f32 %v2486, %v2922
        %v3193 = vadd.f32 %v2487, %v2927
        %v3194 = vadd.f32 %v2488, %v2932
        %v3195 = vadd.f32 %v2489, %v2937
        %v3196 = vadd.f32 %v2490, %v2942
        %v3197 = vadd.f32 %v2491, %v2947
        %v3198 = vadd.f32 %v2492, %v2952
        %v3199 = vadd.f32 %v2493, %v2957
        %v3200 = vadd.f32 %v2494, %v2962
        %v3201 = vadd.f32 %v2495, %v2967
        %v3202 = vadd.f32 %v2496, %v2972
        %v3203 = vadd.f32 %v2497, %v2977
        %v3204 = vadd.f32 %v2498, %v2982
        %v3205 = vadd.f32 %v2499, %v2987
        %v3206 = vadd.f32 %v2500, %v2992
        %v3207 = vadd.f32 %v2501, %v2997
        %v3208 = vadd.f32 %v2502, %v3002
        %v3209 = vadd.f32 %v2503, %v3007
        %v3210 = vadd.f32 %v2504, %v3012
        %v3211 = vadd.f32 %v2505, %v3017
        %v3212 = vadd.f32 %v2506, %v3022
        %v3213 = vadd.f32 %v2507, %v3027
        %v3214 = vadd.f32 %v2508, %v3032
        %v3215 = vadd.f32 %v2509, %v3037
        %v3216 = vadd.f32 %v2510, %v3042
        %v3217 = vadd.f32 %v2511, %v3047
        %v3218 = vadd.f32 %v2512, %v3052
        %v3219 = vadd.f32 %v2513, %v3057
        %v3220 = vadd.f32 %v2514, %v3062
        %v3221 = vadd.f32 %v2515, %v3067
        %v3222 = vadd.f32 %v2516, %v3072
        %v3223 = vadd.f32 %v2517, %v3077
        %v3224 = vadd.f32 %v2518, %v3082
        %v3225 = vadd.f32 %v2519, %v3087
        %v3226 = vadd.f32 %v2520, %v3092
        %v3227 = vadd.f32 %v2521, %v3097
        %v3228 = vadd.f32 %v2522, %v3102
        %v3229 = vadd.f32 %v2523, %v3107
        %v3230 = vadd.f32 %v2524, %v3112
        %v3231 = vadd.f32 %v2525, %v3117
        %v3232 = vadd.f32 %v2526, %v3122
        %v3233 = vadd.f32 %v2527, %v3127
        %v3234 = vadd.f32 %v2528, %v3132
        %v3235 = vadd.f32 %v2529, %v3137
        %v3236 = vadd.f32 %v2530, %v3142
        %v3237 = vadd.f32 %v2531, %v3147
        %v3238 = vadd.f32 %v2532, %v3152
        %v3239 = vadd.f32 %v2533, %v3157
        %v3240 = vadd.f32 %v2534, %v3162
        %v3241 = vadd.f32 %v2535, %v3167
        %v3242 = vadd.f32 %v2536, %v3172
        %v3243 = vadd.f32 %v2537, %v3177
        %v3244 = vld [vmem:[%s344 + $0x1] sm:$0xff]
        %v3245 = vld [vmem:[%s344 + $0x9] sm:$0xff]
        %v3246 = vld [vmem:[%s344 + $0x19] sm:$0xff]
        %v3247 = vld [vmem:[%s344 + $0x21] sm:$0xff]
        %v3248 = vld [vmem:[%s344 + $0x31] sm:$0xff]
        %v3249 = vld [vmem:[%s344 + $0x39] sm:$0xff]
        %v3250 = vld [vmem:[%s344 + $0x49] sm:$0xff]
        %v3251 = vld [vmem:[%s344 + $0x51] sm:$0xff]
        %v3252 = vld [vmem:[%s344 + $0x61] sm:$0xff]
        %v3253 = vld [vmem:[%s344 + $0x69] sm:$0xff]
        %v3254 = vld [vmem:[%s344 + $0x79] sm:$0xff]
        %v3255 = vld [vmem:[%s344 + $0x81] sm:$0xff]
        %v3256 = vld [vmem:[%s344 + $0x91] sm:$0xff]
        %v3257 = vld [vmem:[%s344 + $0x99] sm:$0xff]
        %v3258 = vld [vmem:[%s344 + $0xa9] sm:$0xff]
        %v3259 = vld [vmem:[%s344 + $0xb1] sm:$0xff]
        %v3260 = vld [vmem:[%s344 + $0xc1] sm:$0xff]
        %v3261 = vld [vmem:[%s344 + $0xc9] sm:$0xff]
        %v3262 = vld [vmem:[%s344 + $0xd9] sm:$0xff]
        %v3263 = vld [vmem:[%s344 + $0xe1] sm:$0xff]
        %v3264 = vld [vmem:[%s344 + $0xf1] sm:$0xff]
        %v3265 = vld [vmem:[%s344 + $0xf9] sm:$0xff]
        %v3266 = vld [vmem:[%s344 + $0x109] sm:$0xff]
        %v3267 = vld [vmem:[%s344 + $0x111] sm:$0xff]
        %v3268 = vld [vmem:[%s344 + $0x121] sm:$0xff]
        %v3269 = vld [vmem:[%s344 + $0x129] sm:$0xff]
        %v3270 = vld [vmem:[%s344 + $0x139] sm:$0xff]
        %v3271 = vld [vmem:[%s344 + $0x141] sm:$0xff]
        %v3272 = vld [vmem:[%s344 + $0x151] sm:$0xff]
        %v3273 = vld [vmem:[%s344 + $0x159] sm:$0xff]
        %v3274 = vld [vmem:[%s344 + $0x169] sm:$0xff]
        %v3275 = vld [vmem:[%s344 + $0x171] sm:$0xff]
        %v3276 = vld [vmem:[%s450 + $0x1] sm:$0xff]
        %v3277 = vld [vmem:[%s450 + $0x9] sm:$0xff]
        %v3278 = vld [vmem:[%s450 + $0x19] sm:$0xff]
        %v3279 = vld [vmem:[%s450 + $0x21] sm:$0xff]
        %v3280 = vld [vmem:[%s450 + $0x31] sm:$0xff]
        %v3281 = vld [vmem:[%s450 + $0x39] sm:$0xff]
        %v3282 = vld [vmem:[%s450 + $0x49] sm:$0xff]
        %v3283 = vld [vmem:[%s450 + $0x51] sm:$0xff]
        %v3284 = vld [vmem:[%s450 + $0x61] sm:$0xff]
        %v3285 = vld [vmem:[%s450 + $0x69] sm:$0xff]
        %v3286 = vld [vmem:[%s450 + $0x79] sm:$0xff]
        %v3287 = vld [vmem:[%s450 + $0x81] sm:$0xff]
        %v3288 = vld [vmem:[%s450 + $0x91] sm:$0xff]
        %v3289 = vld [vmem:[%s450 + $0x99] sm:$0xff]
        %v3290 = vld [vmem:[%s450 + $0xa9] sm:$0xff]
        %v3291 = vld [vmem:[%s450 + $0xb1] sm:$0xff]
        %v3292 = vld [vmem:[%s450 + $0xc1] sm:$0xff]
        %v3293 = vld [vmem:[%s450 + $0xc9] sm:$0xff]
        %v3294 = vld [vmem:[%s450 + $0xd9] sm:$0xff]
        %v3295 = vld [vmem:[%s450 + $0xe1] sm:$0xff]
        %v3296 = vld [vmem:[%s450 + $0xf1] sm:$0xff]
        %v3297 = vld [vmem:[%s450 + $0xf9] sm:$0xff]
        %v3298 = vld [vmem:[%s450 + $0x109] sm:$0xff]
        %v3299 = vld [vmem:[%s450 + $0x111] sm:$0xff]
        %v3300 = vld [vmem:[%s450 + $0x121] sm:$0xff]
        %v3301 = vld [vmem:[%s450 + $0x129] sm:$0xff]
        %v3302 = vld [vmem:[%s450 + $0x139] sm:$0xff]
        %v3303 = vld [vmem:[%s450 + $0x141] sm:$0xff]
        %v3304 = vld [vmem:[%s450 + $0x151] sm:$0xff]
        %v3305 = vld [vmem:[%s450 + $0x159] sm:$0xff]
        %v3306 = vld [vmem:[%s450 + $0x169] sm:$0xff]
        %v3307 = vld [vmem:[%s450 + $0x171] sm:$0xff]
        %v3308 = vld [vmem:[%s2 + $0x20] sm:$0xff]
        %v3310 = vsel %vm335, %v3244, 0
        %v3313 = vsel %vm335, %v3245, 0
        %v3316 = vsel %vm335, %v3246, 0
        %v3319 = vsel %vm335, %v3247, 0
        %v3322 = vsel %vm335, %v3248, 0
        %v3325 = vsel %vm335, %v3249, 0
        %v3328 = vsel %vm335, %v3250, 0
        %v3331 = vsel %vm335, %v3251, 0
        %v3334 = vsel %vm335, %v3252, 0
        %v3337 = vsel %vm335, %v3253, 0
        %v3340 = vsel %vm335, %v3254, 0
        %v3343 = vsel %vm335, %v3255, 0
        %v3346 = vsel %vm335, %v3256, 0
        %v3349 = vsel %vm335, %v3257, 0
        %v3352 = vsel %vm335, %v3258, 0
        %v3355 = vsel %vm335, %v3259, 0
        %v3358 = vsel %vm335, %v3260, 0
        %v3361 = vsel %vm335, %v3261, 0
        %v3364 = vsel %vm335, %v3262, 0
        %v3367 = vsel %vm335, %v3263, 0
        %v3370 = vsel %vm335, %v3264, 0
        %v3373 = vsel %vm335, %v3265, 0
        %v3376 = vsel %vm335, %v3266, 0
        %v3379 = vsel %vm335, %v3267, 0
        %v3382 = vsel %vm335, %v3268, 0
        %v3385 = vsel %vm335, %v3269, 0
        %v3388 = vsel %vm335, %v3270, 0
        %v3391 = vsel %vm335, %v3271, 0
        %v3394 = vsel %vm335, %v3272, 0
        %v3397 = vsel %vm335, %v3273, 0
        %v3400 = vsel %vm335, %v3274, 0
        %v3403 = vsel %vm335, %v3275, 0
        %v3406 = vsel %vm335, %v3276, 0
        %v3409 = vsel %vm335, %v3277, 0
        %v3412 = vsel %vm335, %v3278, 0
        %v3415 = vsel %vm335, %v3279, 0
        %v3418 = vsel %vm335, %v3280, 0
        %v3421 = vsel %vm335, %v3281, 0
        %v3424 = vsel %vm335, %v3282, 0
        %v3427 = vsel %vm335, %v3283, 0
        %v3430 = vsel %vm335, %v3284, 0
        %v3433 = vsel %vm335, %v3285, 0
        %v3436 = vsel %vm335, %v3286, 0
        %v3439 = vsel %vm335, %v3287, 0
        %v3442 = vsel %vm335, %v3288, 0
        %v3445 = vsel %vm335, %v3289, 0
        %v3448 = vsel %vm335, %v3290, 0
        %v3451 = vsel %vm335, %v3291, 0
        %v3454 = vsel %vm335, %v3292, 0
        %v3457 = vsel %vm335, %v3293, 0
        %v3460 = vsel %vm335, %v3294, 0
        %v3463 = vsel %vm335, %v3295, 0
        %v3466 = vsel %vm335, %v3296, 0
        %v3469 = vsel %vm335, %v3297, 0
        %v3472 = vsel %vm335, %v3298, 0
        %v3475 = vsel %vm335, %v3299, 0
        %v3478 = vsel %vm335, %v3300, 0
        %v3481 = vsel %vm335, %v3301, 0
        %v3484 = vsel %vm335, %v3302, 0
        %v3487 = vsel %vm335, %v3303, 0
        %v3490 = vsel %vm335, %v3304, 0
        %v3493 = vsel %vm335, %v3305, 0
        %v3496 = vsel %vm335, %v3306, 0
        %v3499 = vsel %vm335, %v3307, 0
        %3501 = vmatprep.subr.mxu0 0.0
        %3502 = vmatpush1.msra.mxu0 %v3308
        %3503 = vmatprep.subr.mxu0 0.0
        %3504 = vmatpush1.msra.mxu0 0.0
        %3505 = vmatprep.subr.mxu0 0.0
        %3506 = vmatpush1.msra.mxu0 0.0
        %3507 = vmatprep.subr.mxu0 0.0
        %3508 = vmatpush1.msra.mxu0 0.0
        %3509 = vmatprep.subr.mxu0 0.0
        %3510 = vmatpush1.msra.mxu0 0.0
        %3511 = vmatprep.subr.mxu0 0.0
        %3512 = vmatpush1.msra.mxu0 0.0
        %3513 = vmatprep.subr.mxu0 0.0
        %3514 = vmatpush1.msra.mxu0 0.0
        %3515 = vmatprep.subr.mxu0 0.0
        %3516 = vmatpush1.msra.mxu0 0.0
        %3517 = vmatprep.subr.mxu0 0.0
        %3518 = vmatpush1.msra.mxu0 0.0
        %3519 = vmatprep.subr.mxu0 0.0
        %3520 = vmatpush1.msra.mxu0 0.0
        %3521 = vmatprep.subr.mxu0 0.0
        %3522 = vmatpush1.msra.mxu0 0.0
        %3523 = vmatprep.subr.mxu0 0.0
        %3524 = vmatpush1.msra.mxu0 0.0
        %3525 = vmatprep.subr.mxu0 0.0
        %3526 = vmatpush1.msra.mxu0 0.0
        %3527 = vmatprep.subr.mxu0 0.0
        %3528 = vmatpush1.msra.mxu0 0.0
        %3529 = vmatprep.subr.mxu0 0.0
        %3530 = vmatpush1.msra.mxu0 0.0
        %3531 = vmatprep.subr.mxu0 0.0
        %3532 = vmatpush1.msra.mxu0 0.0
        %3533 = vmatprep.subr.mxu0 0.0
        %3534 = vmatpush1.msra.mxu0 0.0
        %3535 = vmatprep.subr.mxu0 0.0
        %3536 = vmatpush1.msra.mxu0 0.0
        %3537 = vmatprep.subr.mxu0 0.0
        %3538 = vmatpush1.msra.mxu0 0.0
        %3539 = vmatprep.subr.mxu0 0.0
        %3540 = vmatpush1.msra.mxu0 0.0
        %3541 = vmatprep.subr.mxu0 0.0
        %3542 = vmatpush1.msra.mxu0 0.0
        %3543 = vmatprep.subr.mxu0 0.0
        %3544 = vmatpush1.msra.mxu0 0.0
        %3545 = vmatprep.subr.mxu0 0.0
        %3546 = vmatpush1.msra.mxu0 0.0
        %3547 = vmatprep.subr.mxu0 0.0
        %3548 = vmatpush1.msra.mxu0 0.0
        %3549 = vmatprep.subr.mxu0 0.0
        %3550 = vmatpush1.msra.mxu0 0.0
        %3551 = vmatprep.subr.mxu0 0.0
        %3552 = vmatpush1.msra.mxu0 0.0
        %3553 = vmatprep.subr.mxu0 0.0
        %3554 = vmatpush1.msra.mxu0 0.0
        %3555 = vmatprep.subr.mxu0 0.0
        %3556 = vmatpush1.msra.mxu0 0.0
        %3557 = vmatprep.subr.mxu0 0.0
        %3558 = vmatpush1.msra.mxu0 0.0
        %3559 = vmatprep.subr.mxu0 0.0
        %3560 = vmatpush1.msra.mxu0 0.0
        %3561 = vmatprep.subr.mxu0 0.0
        %3562 = vmatpush1.msra.mxu0 0.0
        %3563 = vmatprep.subr.mxu0 0.0
        %3564 = vmatpush1.msra.mxu0 0.0
        %3565 = vmatprep.mubr.f32.mxu0 0.0
        %3566 = vmatmul.mubr.f32.gmra.mrb[0].mxu0 %v3310
        %v3567 = vpop.f32.mrb[0].mxu0
        %v3568 = vadd.f32 0.0, %v3567
        %v3569 = vpop.f32.mrb[0].mxu0
        %3570 = vmatprep.mubr.f32.mxu0 0.0
        %3571 = vmatmul.mubr.f32.gmra.mrb[0].mxu0 %v3313
        %v3572 = vpop.f32.mrb[0].mxu0
        %v3573 = vadd.f32 0.0, %v3572
        %v3574 = vpop.f32.mrb[0].mxu0
        %3575 = vmatprep.mubr.f32.mxu0 0.0
        %3576 = vmatmul.mubr.f32.gmra.mrb[0].mxu0 %v3316
        %v3577 = vpop.f32.mrb[0].mxu0
        %v3578 = vadd.f32 0.0, %v3577
        %v3579 = vpop.f32.mrb[0].mxu0
        %3580 = vmatprep.mubr.f32.mxu0 0.0
        %3581 = vmatmul.mubr.f32.gmra.mrb[0].mxu0 %v3319
        %v3582 = vpop.f32.mrb[0].mxu0
        %v3583 = vadd.f32 0.0, %v3582
        %v3584 = vpop.f32.mrb[0].mxu0
        %3585 = vmatprep.mubr.f32.mxu0 0.0
        %3586 = vmatmul.mubr.f32.gmra.mrb[0].mxu0 %v3322
        %v3587 = vpop.f32.mrb[0].mxu0
        %v3588 = vadd.f32 0.0, %v3587
        %v3589 = vpop.f32.mrb[0].mxu0
        %3590 = vmatprep.mubr.f32.mxu0 0.0
        %3591 = vmatmul.mubr.f32.gmra.mrb[0].mxu0 %v3325
        %v3592 = vpop.f32.mrb[0].mxu0
        %v3593 = vadd.f32 0.0, %v3592
        %v3594 = vpop.f32.mrb[0].mxu0
        %3595 = vmatprep.mubr.f32.mxu0 0.0
        %3596 = vmatmul.mubr.f32.gmra.mrb[0].mxu0 %v3328
        %v3597 = vpop.f32.mrb[0].mxu0
        %v3598 = vadd.f32 0.0, %v3597
        %v3599 = vpop.f32.mrb[0].mxu0
        %3600 = vmatprep.mubr.f32.mxu0 0.0
        %3601 = vmatmul.mubr.f32.gmra.mrb[0].mxu0 %v3331
        %v3602 = vpop.f32.mrb[0].mxu0
        %v3603 = vadd.f32 0.0, %v3602
        %v3604 = vpop.f32.mrb[0].mxu0
        %3605 = vmatprep.mubr.f32.mxu0 0.0
        %3606 = vmatmul.mubr.f32.gmra.mrb[0].mxu0 %v3334
        %v3607 = vpop.f32.mrb[0].mxu0
        %v3608 = vadd.f32 0.0, %v3607
        %v3609 = vpop.f32.mrb[0].mxu0
        %3610 = vmatprep.mubr.f32.mxu0 0.0
        %3611 = vmatmul.mubr.f32.gmra.mrb[0].mxu0 %v3337
        %v3612 = vpop.f32.mrb[0].mxu0
        %v3613 = vadd.f32 0.0, %v3612
        %v3614 = vpop.f32.mrb[0].mxu0
        %3615 = vmatprep.mubr.f32.mxu0 0.0
        %3616 = vmatmul.mubr.f32.gmra.mrb[0].mxu0 %v3340
        %v3617 = vpop.f32.mrb[0].mxu0
        %v3618 = vadd.f32 0.0, %v3617
        %v3619 = vpop.f32.mrb[0].mxu0
        %3620 = vmatprep.mubr.f32.mxu0 0.0
        %3621 = vmatmul.mubr.f32.gmra.mrb[0].mxu0 %v3343
        %v3622 = vpop.f32.mrb[0].mxu0
        %v3623 = vadd.f32 0.0, %v3622
        %v3624 = vpop.f32.mrb[0].mxu0
        %3625 = vmatprep.mubr.f32.mxu0 0.0
        %3626 = vmatmul.mubr.f32.gmra.mrb[0].mxu0 %v3346
        %v3627 = vpop.f32.mrb[0].mxu0
        %v3628 = vadd.f32 0.0, %v3627
        %v3629 = vpop.f32.mrb[0].mxu0
        %3630 = vmatprep.mubr.f32.mxu0 0.0
        %3631 = vmatmul.mubr.f32.gmra.mrb[0].mxu0 %v3349
        %v3632 = vpop.f32.mrb[0].mxu0
        %v3633 = vadd.f32 0.0, %v3632
        %v3634 = vpop.f32.mrb[0].mxu0
        %3635 = vmatprep.mubr.f32.mxu0 0.0
        %3636 = vmatmul.mubr.f32.gmra.mrb[0].mxu0 %v3352
        %v3637 = vpop.f32.mrb[0].mxu0
        %v3638 = vadd.f32 0.0, %v3637
        %v3639 = vpop.f32.mrb[0].mxu0
        %3640 = vmatprep.mubr.f32.mxu0 0.0
        %3641 = vmatmul.mubr.f32.gmra.mrb[0].mxu0 %v3355
        %v3642 = vpop.f32.mrb[0].mxu0
        %v3643 = vadd.f32 0.0, %v3642
        %v3644 = vpop.f32.mrb[0].mxu0
        %3645 = vmatprep.mubr.f32.mxu0 0.0
        %3646 = vmatmul.mubr.f32.gmra.mrb[0].mxu0 %v3358
        %v3647 = vpop.f32.mrb[0].mxu0
        %v3648 = vadd.f32 0.0, %v3647
        %v3649 = vpop.f32.mrb[0].mxu0
        %3650 = vmatprep.mubr.f32.mxu0 0.0
        %3651 = vmatmul.mubr.f32.gmra.mrb[0].mxu0 %v3361
        %v3652 = vpop.f32.mrb[0].mxu0
        %v3653 = vadd.f32 0.0, %v3652
        %v3654 = vpop.f32.mrb[0].mxu0
        %3655 = vmatprep.mubr.f32.mxu0 0.0
        %3656 = vmatmul.mubr.f32.gmra.mrb[0].mxu0 %v3364
        %v3657 = vpop.f32.mrb[0].mxu0
        %v3658 = vadd.f32 0.0, %v3657
        %v3659 = vpop.f32.mrb[0].mxu0
        %3660 = vmatprep.mubr.f32.mxu0 0.0
        %3661 = vmatmul.mubr.f32.gmra.mrb[0].mxu0 %v3367
        %v3662 = vpop.f32.mrb[0].mxu0
        %v3663 = vadd.f32 0.0, %v3662
        %v3664 = vpop.f32.mrb[0].mxu0
        %3665 = vmatprep.mubr.f32.mxu0 0.0
        %3666 = vmatmul.mubr.f32.gmra.mrb[0].mxu0 %v3370
        %v3667 = vpop.f32.mrb[0].mxu0
        %v3668 = vadd.f32 0.0, %v3667
        %v3669 = vpop.f32.mrb[0].mxu0
        %3670 = vmatprep.mubr.f32.mxu0 0.0
        %3671 = vmatmul.mubr.f32.gmra.mrb[0].mxu0 %v3373
        %v3672 = vpop.f32.mrb[0].mxu0
        %v3673 = vadd.f32 0.0, %v3672
        %v3674 = vpop.f32.mrb[0].mxu0
        %3675 = vmatprep.mubr.f32.mxu0 0.0
        %3676 = vmatmul.mubr.f32.gmra.mrb[0].mxu0 %v3376
        %v3677 = vpop.f32.mrb[0].mxu0
        %v3678 = vadd.f32 0.0, %v3677
        %v3679 = vpop.f32.mrb[0].mxu0
        %3680 = vmatprep.mubr.f32.mxu0 0.0
        %3681 = vmatmul.mubr.f32.gmra.mrb[0].mxu0 %v3379
        %v3682 = vpop.f32.mrb[0].mxu0
        %v3683 = vadd.f32 0.0, %v3682
        %v3684 = vpop.f32.mrb[0].mxu0
        %3685 = vmatprep.mubr.f32.mxu0 0.0
        %3686 = vmatmul.mubr.f32.gmra.mrb[0].mxu0 %v3382
        %v3687 = vpop.f32.mrb[0].mxu0
        %v3688 = vadd.f32 0.0, %v3687
        %v3689 = vpop.f32.mrb[0].mxu0
        %3690 = vmatprep.mubr.f32.mxu0 0.0
        %3691 = vmatmul.mubr.f32.gmra.mrb[0].mxu0 %v3385
        %v3692 = vpop.f32.mrb[0].mxu0
        %v3693 = vadd.f32 0.0, %v3692
        %v3694 = vpop.f32.mrb[0].mxu0
        %3695 = vmatprep.mubr.f32.mxu0 0.0
        %3696 = vmatmul.mubr.f32.gmra.mrb[0].mxu0 %v3388
        %v3697 = vpop.f32.mrb[0].mxu0
        %v3698 = vadd.f32 0.0, %v3697
        %v3699 = vpop.f32.mrb[0].mxu0
        %3700 = vmatprep.mubr.f32.mxu0 0.0
        %3701 = vmatmul.mubr.f32.gmra.mrb[0].mxu0 %v3391
        %v3702 = vpop.f32.mrb[0].mxu0
        %v3703 = vadd.f32 0.0, %v3702
        %v3704 = vpop.f32.mrb[0].mxu0
        %3705 = vmatprep.mubr.f32.mxu0 0.0
        %3706 = vmatmul.mubr.f32.gmra.mrb[0].mxu0 %v3394
        %v3707 = vpop.f32.mrb[0].mxu0
        %v3708 = vadd.f32 0.0, %v3707
        %v3709 = vpop.f32.mrb[0].mxu0
        %3710 = vmatprep.mubr.f32.mxu0 0.0
        %3711 = vmatmul.mubr.f32.gmra.mrb[0].mxu0 %v3397
        %v3712 = vpop.f32.mrb[0].mxu0
        %v3713 = vadd.f32 0.0, %v3712
        %v3714 = vpop.f32.mrb[0].mxu0
        %3715 = vmatprep.mubr.f32.mxu0 0.0
        %3716 = vmatmul.mubr.f32.gmra.mrb[0].mxu0 %v3400
        %v3717 = vpop.f32.mrb[0].mxu0
        %v3718 = vadd.f32 0.0, %v3717
        %v3719 = vpop.f32.mrb[0].mxu0
        %3720 = vmatprep.mubr.f32.mxu0 0.0
        %3721 = vmatmul.mubr.f32.gmra.mrb[0].mxu0 %v3403
        %v3722 = vpop.f32.mrb[0].mxu0
        %v3723 = vadd.f32 0.0, %v3722
        %v3724 = vpop.f32.mrb[0].mxu0
        %3725 = vmatprep.mubr.f32.mxu0 0.0
        %3726 = vmatmul.mubr.f32.gmra.mrb[0].mxu0 %v3406
        %v3727 = vpop.f32.mrb[0].mxu0
        %v3728 = vadd.f32 0.0, %v3727
        %v3729 = vpop.f32.mrb[0].mxu0
        %3730 = vmatprep.mubr.f32.mxu0 0.0
        %3731 = vmatmul.mubr.f32.gmra.mrb[0].mxu0 %v3409
        %v3732 = vpop.f32.mrb[0].mxu0
        %v3733 = vadd.f32 0.0, %v3732
        %v3734 = vpop.f32.mrb[0].mxu0
        %3735 = vmatprep.mubr.f32.mxu0 0.0
        %3736 = vmatmul.mubr.f32.gmra.mrb[0].mxu0 %v3412
        %v3737 = vpop.f32.mrb[0].mxu0
        %v3738 = vadd.f32 0.0, %v3737
        %v3739 = vpop.f32.mrb[0].mxu0
        %3740 = vmatprep.mubr.f32.mxu0 0.0
        %3741 = vmatmul.mubr.f32.gmra.mrb[0].mxu0 %v3415
        %v3742 = vpop.f32.mrb[0].mxu0
        %v3743 = vadd.f32 0.0, %v3742
        %v3744 = vpop.f32.mrb[0].mxu0
        %3745 = vmatprep.mubr.f32.mxu0 0.0
        %3746 = vmatmul.mubr.f32.gmra.mrb[0].mxu0 %v3418
        %v3747 = vpop.f32.mrb[0].mxu0
        %v3748 = vadd.f32 0.0, %v3747
        %v3749 = vpop.f32.mrb[0].mxu0
        %3750 = vmatprep.mubr.f32.mxu0 0.0
        %3751 = vmatmul.mubr.f32.gmra.mrb[0].mxu0 %v3421
        %v3752 = vpop.f32.mrb[0].mxu0
        %v3753 = vadd.f32 0.0, %v3752
        %v3754 = vpop.f32.mrb[0].mxu0
        %3755 = vmatprep.mubr.f32.mxu0 0.0
        %3756 = vmatmul.mubr.f32.gmra.mrb[0].mxu0 %v3424
        %v3757 = vpop.f32.mrb[0].mxu0
        %v3758 = vadd.f32 0.0, %v3757
        %v3759 = vpop.f32.mrb[0].mxu0
        %3760 = vmatprep.mubr.f32.mxu0 0.0
        %3761 = vmatmul.mubr.f32.gmra.mrb[0].mxu0 %v3427
        %v3762 = vpop.f32.mrb[0].mxu0
        %v3763 = vadd.f32 0.0, %v3762
        %v3764 = vpop.f32.mrb[0].mxu0
        %3765 = vmatprep.mubr.f32.mxu0 0.0
        %3766 = vmatmul.mubr.f32.gmra.mrb[0].mxu0 %v3430
        %v3767 = vpop.f32.mrb[0].mxu0
        %v3768 = vadd.f32 0.0, %v3767
        %v3769 = vpop.f32.mrb[0].mxu0
        %3770 = vmatprep.mubr.f32.mxu0 0.0
        %3771 = vmatmul.mubr.f32.gmra.mrb[0].mxu0 %v3433
        %v3772 = vpop.f32.mrb[0].mxu0
        %v3773 = vadd.f32 0.0, %v3772
        %v3774 = vpop.f32.mrb[0].mxu0
        %3775 = vmatprep.mubr.f32.mxu0 0.0
        %3776 = vmatmul.mubr.f32.gmra.mrb[0].mxu0 %v3436
        %v3777 = vpop.f32.mrb[0].mxu0
        %v3778 = vadd.f32 0.0, %v3777
        %v3779 = vpop.f32.mrb[0].mxu0
        %3780 = vmatprep.mubr.f32.mxu0 0.0
        %3781 = vmatmul.mubr.f32.gmra.mrb[0].mxu0 %v3439
        %v3782 = vpop.f32.mrb[0].mxu0
        %v3783 = vadd.f32 0.0, %v3782
        %v3784 = vpop.f32.mrb[0].mxu0
        %3785 = vmatprep.mubr.f32.mxu0 0.0
        %3786 = vmatmul.mubr.f32.gmra.mrb[0].mxu0 %v3442
        %v3787 = vpop.f32.mrb[0].mxu0
        %v3788 = vadd.f32 0.0, %v3787
        %v3789 = vpop.f32.mrb[0].mxu0
        %3790 = vmatprep.mubr.f32.mxu0 0.0
        %3791 = vmatmul.mubr.f32.gmra.mrb[0].mxu0 %v3445
        %v3792 = vpop.f32.mrb[0].mxu0
        %v3793 = vadd.f32 0.0, %v3792
        %v3794 = vpop.f32.mrb[0].mxu0
        %3795 = vmatprep.mubr.f32.mxu0 0.0
        %3796 = vmatmul.mubr.f32.gmra.mrb[0].mxu0 %v3448
        %v3797 = vpop.f32.mrb[0].mxu0
        %v3798 = vadd.f32 0.0, %v3797
        %v3799 = vpop.f32.mrb[0].mxu0
        %3800 = vmatprep.mubr.f32.mxu0 0.0
        %3801 = vmatmul.mubr.f32.gmra.mrb[0].mxu0 %v3451
        %v3802 = vpop.f32.mrb[0].mxu0
        %v3803 = vadd.f32 0.0, %v3802
        %v3804 = vpop.f32.mrb[0].mxu0
        %3805 = vmatprep.mubr.f32.mxu0 0.0
        %3806 = vmatmul.mubr.f32.gmra.mrb[0].mxu0 %v3454
        %v3807 = vpop.f32.mrb[0].mxu0
        %v3808 = vadd.f32 0.0, %v3807
        %v3809 = vpop.f32.mrb[0].mxu0
        %3810 = vmatprep.mubr.f32.mxu0 0.0
        %3811 = vmatmul.mubr.f32.gmra.mrb[0].mxu0 %v3457
        %v3812 = vpop.f32.mrb[0].mxu0
        %v3813 = vadd.f32 0.0, %v3812
        %v3814 = vpop.f32.mrb[0].mxu0
        %3815 = vmatprep.mubr.f32.mxu0 0.0
        %3816 = vmatmul.mubr.f32.gmra.mrb[0].mxu0 %v3460
        %v3817 = vpop.f32.mrb[0].mxu0
        %v3818 = vadd.f32 0.0, %v3817
        %v3819 = vpop.f32.mrb[0].mxu0
        %3820 = vmatprep.mubr.f32.mxu0 0.0
        %3821 = vmatmul.mubr.f32.gmra.mrb[0].mxu0 %v3463
        %v3822 = vpop.f32.mrb[0].mxu0
        %v3823 = vadd.f32 0.0, %v3822
        %v3824 = vpop.f32.mrb[0].mxu0
        %3825 = vmatprep.mubr.f32.mxu0 0.0
        %3826 = vmatmul.mubr.f32.gmra.mrb[0].mxu0 %v3466
        %v3827 = vpop.f32.mrb[0].mxu0
        %v3828 = vadd.f32 0.0, %v3827
        %v3829 = vpop.f32.mrb[0].mxu0
        %3830 = vmatprep.mubr.f32.mxu0 0.0
        %3831 = vmatmul.mubr.f32.gmra.mrb[0].mxu0 %v3469
        %v3832 = vpop.f32.mrb[0].mxu0
        %v3833 = vadd.f32 0.0, %v3832
        %v3834 = vpop.f32.mrb[0].mxu0
        %3835 = vmatprep.mubr.f32.mxu0 0.0
        %3836 = vmatmul.mubr.f32.gmra.mrb[0].mxu0 %v3472
        %v3837 = vpop.f32.mrb[0].mxu0
        %v3838 = vadd.f32 0.0, %v3837
        %v3839 = vpop.f32.mrb[0].mxu0
        %3840 = vmatprep.mubr.f32.mxu0 0.0
        %3841 = vmatmul.mubr.f32.gmra.mrb[0].mxu0 %v3475
        %v3842 = vpop.f32.mrb[0].mxu0
        %v3843 = vadd.f32 0.0, %v3842
        %v3844 = vpop.f32.mrb[0].mxu0
        %3845 = vmatprep.mubr.f32.mxu0 0.0
        %3846 = vmatmul.mubr.f32.gmra.mrb[0].mxu0 %v3478
        %v3847 = vpop.f32.mrb[0].mxu0
        %v3848 = vadd.f32 0.0, %v3847
        %v3849 = vpop.f32.mrb[0].mxu0
        %3850 = vmatprep.mubr.f32.mxu0 0.0
        %3851 = vmatmul.mubr.f32.gmra.mrb[0].mxu0 %v3481
        %v3852 = vpop.f32.mrb[0].mxu0
        %v3853 = vadd.f32 0.0, %v3852
        %v3854 = vpop.f32.mrb[0].mxu0
        %3855 = vmatprep.mubr.f32.mxu0 0.0
        %3856 = vmatmul.mubr.f32.gmra.mrb[0].mxu0 %v3484
        %v3857 = vpop.f32.mrb[0].mxu0
        %v3858 = vadd.f32 0.0, %v3857
        %v3859 = vpop.f32.mrb[0].mxu0
        %3860 = vmatprep.mubr.f32.mxu0 0.0
        %3861 = vmatmul.mubr.f32.gmra.mrb[0].mxu0 %v3487
        %v3862 = vpop.f32.mrb[0].mxu0
        %v3863 = vadd.f32 0.0, %v3862
        %v3864 = vpop.f32.mrb[0].mxu0
        %3865 = vmatprep.mubr.f32.mxu0 0.0
        %3866 = vmatmul.mubr.f32.gmra.mrb[0].mxu0 %v3490
        %v3867 = vpop.f32.mrb[0].mxu0
        %v3868 = vadd.f32 0.0, %v3867
        %v3869 = vpop.f32.mrb[0].mxu0
        %3870 = vmatprep.mubr.f32.mxu0 0.0
        %3871 = vmatmul.mubr.f32.gmra.mrb[0].mxu0 %v3493
        %v3872 = vpop.f32.mrb[0].mxu0
        %v3873 = vadd.f32 0.0, %v3872
        %v3874 = vpop.f32.mrb[0].mxu0
        %3875 = vmatprep.mubr.f32.mxu0 0.0
        %3876 = vmatmul.mubr.f32.gmra.mrb[0].mxu0 %v3496
        %v3877 = vpop.f32.mrb[0].mxu0
        %v3878 = vadd.f32 0.0, %v3877
        %v3879 = vpop.f32.mrb[0].mxu0
        %3880 = vmatprep.mubr.f32.mxu0 0.0
        %3881 = vmatmul.mubr.f32.gmra.mrb[0].mxu0 %v3499
        %v3882 = vpop.f32.mrb[0].mxu0
        %v3883 = vadd.f32 0.0, %v3882
        %v3884 = vpop.f32.mrb[0].mxu0
        %3885 = vdwg.mxu0
        %v3886 = vadd.f32 %v3180, %v3568
        %v3887 = vadd.f32 %v3181, %v3573
        %v3888 = vadd.f32 %v3182, %v3578
        %v3889 = vadd.f32 %v3183, %v3583
        %v3890 = vadd.f32 %v3184, %v3588
        %v3891 = vadd.f32 %v3185, %v3593
        %v3892 = vadd.f32 %v3186, %v3598
        %v3893 = vadd.f32 %v3187, %v3603
        %v3894 = vadd.f32 %v3188, %v3608
        %v3895 = vadd.f32 %v3189, %v3613
        %v3896 = vadd.f32 %v3190, %v3618
        %v3897 = vadd.f32 %v3191, %v3623
        %v3898 = vadd.f32 %v3192, %v3628
        %v3899 = vadd.f32 %v3193, %v3633
        %v3900 = vadd.f32 %v3194, %v3638
        %v3901 = vadd.f32 %v3195, %v3643
        %v3902 = vadd.f32 %v3196, %v3648
        %v3903 = vadd.f32 %v3197, %v3653
        %v3904 = vadd.f32 %v3198, %v3658
        %v3905 = vadd.f32 %v3199, %v3663
        %v3906 = vadd.f32 %v3200, %v3668
        %v3907 = vadd.f32 %v3201, %v3673
        %v3908 = vadd.f32 %v3202, %v3678
        %v3909 = vadd.f32 %v3203, %v3683
        %v3910 = vadd.f32 %v3204, %v3688
        %v3911 = vadd.f32 %v3205, %v3693
        %v3912 = vadd.f32 %v3206, %v3698
        %v3913 = vadd.f32 %v3207, %v3703
        %v3914 = vadd.f32 %v3208, %v3708
        %v3915 = vadd.f32 %v3209, %v3713
        %v3916 = vadd.f32 %v3210, %v3718
        %v3917 = vadd.f32 %v3211, %v3723
        %v3918 = vadd.f32 %v3212, %v3728
        %v3919 = vadd.f32 %v3213, %v3733
        %v3920 = vadd.f32 %v3214, %v3738
        %v3921 = vadd.f32 %v3215, %v3743
        %v3922 = vadd.f32 %v3216, %v3748
        %v3923 = vadd.f32 %v3217, %v3753
        %v3924 = vadd.f32 %v3218, %v3758
        %v3925 = vadd.f32 %v3219, %v3763
        %v3926 = vadd.f32 %v3220, %v3768
        %v3927 = vadd.f32 %v3221, %v3773
        %v3928 = vadd.f32 %v3222, %v3778
        %v3929 = vadd.f32 %v3223, %v3783
        %v3930 = vadd.f32 %v3224, %v3788
        %v3931 = vadd.f32 %v3225, %v3793
        %v3932 = vadd.f32 %v3226, %v3798
        %v3933 = vadd.f32 %v3227, %v3803
        %v3934 = vadd.f32 %v3228, %v3808
        %v3935 = vadd.f32 %v3229, %v3813
        %v3936 = vadd.f32 %v3230, %v3818
        %v3937 = vadd.f32 %v3231, %v3823
        %v3938 = vadd.f32 %v3232, %v3828
        %v3939 = vadd.f32 %v3233, %v3833
        %v3940 = vadd.f32 %v3234, %v3838
        %v3941 = vadd.f32 %v3235, %v3843
        %v3942 = vadd.f32 %v3236, %v3848
        %v3943 = vadd.f32 %v3237, %v3853
        %v3944 = vadd.f32 %v3238, %v3858
        %v3945 = vadd.f32 %v3239, %v3863
        %v3946 = vadd.f32 %v3240, %v3868
        %v3947 = vadd.f32 %v3241, %v3873
        %v3948 = vadd.f32 %v3242, %v3878
        %v3949 = vadd.f32 %v3243, %v3883
        %v3950 = vld [vmem:[%s344 + $0x2] sm:$0xff]
        %v3951 = vld [vmem:[%s344 + $0xa] sm:$0xff]
        %v3952 = vld [vmem:[%s344 + $0x1a] sm:$0xff]
        %v3953 = vld [vmem:[%s344 + $0x22] sm:$0xff]
        %v3954 = vld [vmem:[%s344 + $0x32] sm:$0xff]
        %v3955 = vld [vmem:[%s344 + $0x3a] sm:$0xff]
        %v3956 = vld [vmem:[%s344 + $0x4a] sm:$0xff]
        %v3957 = vld [vmem:[%s344 + $0x52] sm:$0xff]
        %v3958 = vld [vmem:[%s344 + $0x62] sm:$0xff]
        %v3959 = vld [vmem:[%s344 + $0x6a] sm:$0xff]
        %v3960 = vld [vmem:[%s344 + $0x7a] sm:$0xff]
        %v3961 = vld [vmem:[%s344 + $0x82] sm:$0xff]
        %v3962 = vld [vmem:[%s344 + $0x92] sm:$0xff]
        %v3963 = vld [vmem:[%s344 + $0x9a] sm:$0xff]
        %v3964 = vld [vmem:[%s344 + $0xaa] sm:$0xff]
        %v3965 = vld [vmem:[%s344 + $0xb2] sm:$0xff]
        %v3966 = vld [vmem:[%s344 + $0xc2] sm:$0xff]
        %v3967 = vld [vmem:[%s344 + $0xca] sm:$0xff]
        %v3968 = vld [vmem:[%s344 + $0xda] sm:$0xff]
        %v3969 = vld [vmem:[%s344 + $0xe2] sm:$0xff]
        %v3970 = vld [vmem:[%s344 + $0xf2] sm:$0xff]
        %v3971 = vld [vmem:[%s344 + $0xfa] sm:$0xff]
        %v3972 = vld [vmem:[%s344 + $0x10a] sm:$0xff]
        %v3973 = vld [vmem:[%s344 + $0x112] sm:$0xff]
        %v3974 = vld [vmem:[%s344 + $0x122] sm:$0xff]
        %v3975 = vld [vmem:[%s344 + $0x12a] sm:$0xff]
        %v3976 = vld [vmem:[%s344 + $0x13a] sm:$0xff]
        %v3977 = vld [vmem:[%s344 + $0x142] sm:$0xff]
        %v3978 = vld [vmem:[%s344 + $0x152] sm:$0xff]
        %v3979 = vld [vmem:[%s344 + $0x15a] sm:$0xff]
        %v3980 = vld [vmem:[%s344 + $0x16a] sm:$0xff]
        %v3981 = vld [vmem:[%s344 + $0x172] sm:$0xff]
        %v3982 = vld [vmem:[%s450 + $0x2] sm:$0xff]
        %v3983 = vld [vmem:[%s450 + $0xa] sm:$0xff]
        %v3984 = vld [vmem:[%s450 + $0x1a] sm:$0xff]
        %v3985 = vld [vmem:[%s450 + $0x22] sm:$0xff]
        %v3986 = vld [vmem:[%s450 + $0x32] sm:$0xff]
        %v3987 = vld [vmem:[%s450 + $0x3a] sm:$0xff]
        %v3988 = vld [vmem:[%s450 + $0x4a] sm:$0xff]
        %v3989 = vld [vmem:[%s450 + $0x52] sm:$0xff]
        %v3990 = vld [vmem:[%s450 + $0x62] sm:$0xff]
        %v3991 = vld [vmem:[%s450 + $0x6a] sm:$0xff]
        %v3992 = vld [vmem:[%s450 + $0x7a] sm:$0xff]
        %v3993 = vld [vmem:[%s450 + $0x82] sm:$0xff]
        %v3994 = vld [vmem:[%s450 + $0x92] sm:$0xff]
        %v3995 = vld [vmem:[%s450 + $0x9a] sm:$0xff]
        %v3996 = vld [vmem:[%s450 + $0xaa] sm:$0xff]
        %v3997 = vld [vmem:[%s450 + $0xb2] sm:$0xff]
        %v3998 = vld [vmem:[%s450 + $0xc2] sm:$0xff]
        %v3999 = vld [vmem:[%s450 + $0xca] sm:$0xff]
        %v4000 = vld [vmem:[%s450 + $0xda] sm:$0xff]
        %v4001 = vld [vmem:[%s450 + $0xe2] sm:$0xff]
        %v4002 = vld [vmem:[%s450 + $0xf2] sm:$0xff]
        %v4003 = vld [vmem:[%s450 + $0xfa] sm:$0xff]
        %v4004 = vld [vmem:[%s450 + $0x10a] sm:$0xff]
        %v4005 = vld [vmem:[%s450 + $0x112] sm:$0xff]
        %v4006 = vld [vmem:[%s450 + $0x122] sm:$0xff]
        %v4007 = vld [vmem:[%s450 + $0x12a] sm:$0xff]
        %v4008 = vld [vmem:[%s450 + $0x13a] sm:$0xff]
        %v4009 = vld [vmem:[%s450 + $0x142] sm:$0xff]
        %v4010 = vld [vmem:[%s450 + $0x152] sm:$0xff]
        %v4011 = vld [vmem:[%s450 + $0x15a] sm:$0xff]
        %v4012 = vld [vmem:[%s450 + $0x16a] sm:$0xff]
        %v4013 = vld [vmem:[%s450 + $0x172] sm:$0xff]
        %v4014 = vld [vmem:[%s2 + $0x28] sm:$0xff]
        %v4016 = vsel %vm335, %v3950, 0
        %v4019 = vsel %vm335, %v3951, 0
        %v4022 = vsel %vm335, %v3952, 0
        %v4025 = vsel %vm335, %v3953, 0
        %v4028 = vsel %vm335, %v3954, 0
        %v4031 = vsel %vm335, %v3955, 0
        %v4034 = vsel %vm335, %v3956, 0
        %v4037 = vsel %vm335, %v3957, 0
        %v4040 = vsel %vm335, %v3958, 0
        %v4043 = vsel %vm335, %v3959, 0
        %v4046 = vsel %vm335, %v3960, 0
        %v4049 = vsel %vm335, %v3961, 0
        %v4052 = vsel %vm335, %v3962, 0
        %v4055 = vsel %vm335, %v3963, 0
        %v4058 = vsel %vm335, %v3964, 0
        %v4061 = vsel %vm335, %v3965, 0
        %v4064 = vsel %vm335, %v3966, 0
        %v4067 = vsel %vm335, %v3967, 0
        %v4070 = vsel %vm335, %v3968, 0
        %v4073 = vsel %vm335, %v3969, 0
        %v4076 = vsel %vm335, %v3970, 0
        %v4079 = vsel %vm335, %v3971, 0
        %v4082 = vsel %vm335, %v3972, 0
        %v4085 = vsel %vm335, %v3973, 0
        %v4088 = vsel %vm335, %v3974, 0
        %v4091 = vsel %vm335, %v3975, 0
        %v4094 = vsel %vm335, %v3976, 0
        %v4097 = vsel %vm335, %v3977, 0
        %v4100 = vsel %vm335, %v3978, 0
        %v4103 = vsel %vm335, %v3979, 0
        %v4106 = vsel %vm335, %v3980, 0
        %v4109 = vsel %vm335, %v3981, 0
        %v4112 = vsel %vm335, %v3982, 0
        %v4115 = vsel %vm335, %v3983, 0
        %v4118 = vsel %vm335, %v3984, 0
        %v4121 = vsel %vm335, %v3985, 0
        %v4124 = vsel %vm335, %v3986, 0
        %v4127 = vsel %vm335, %v3987, 0
        %v4130 = vsel %vm335, %v3988, 0
        %v4133 = vsel %vm335, %v3989, 0
        %v4136 = vsel %vm335, %v3990, 0
        %v4139 = vsel %vm335, %v3991, 0
        %v4142 = vsel %vm335, %v3992, 0
        %v4145 = vsel %vm335, %v3993, 0
        %v4148 = vsel %vm335, %v3994, 0
        %v4151 = vsel %vm335, %v3995, 0
        %v4154 = vsel %vm335, %v3996, 0
        %v4157 = vsel %vm335, %v3997, 0
        %v4160 = vsel %vm335, %v3998, 0
        %v4163 = vsel %vm335, %v3999, 0
        %v4166 = vsel %vm335, %v4000, 0
        %v4169 = vsel %vm335, %v4001, 0
        %v4172 = vsel %vm335, %v4002, 0
        %v4175 = vsel %vm335, %v4003, 0
        %v4178 = vsel %vm335, %v4004, 0
        %v4181 = vsel %vm335, %v4005, 0
        %v4184 = vsel %vm335, %v4006, 0
        %v4187 = vsel %vm335, %v4007, 0
        %v4190 = vsel %vm335, %v4008, 0
        %v4193 = vsel %vm335, %v4009, 0
        %v4196 = vsel %vm335, %v4010, 0
        %v4199 = vsel %vm335, %v4011, 0
        %v4202 = vsel %vm335, %v4012, 0
        %v4205 = vsel %vm335, %v4013, 0
        %4207 = vmatprep.subr.mxu0 0.0
        %4208 = vmatpush1.msra.mxu0 %v4014
        %4209 = vmatprep.subr.mxu0 0.0
        %4210 = vmatpush1.msra.mxu0 0.0
        %4211 = vmatprep.subr.mxu0 0.0
        %4212 = vmatpush1.msra.mxu0 0.0
        %4213 = vmatprep.subr.mxu0 0.0
        %4214 = vmatpush1.msra.mxu0 0.0
        %4215 = vmatprep.subr.mxu0 0.0
        %4216 = vmatpush1.msra.mxu0 0.0
        %4217 = vmatprep.subr.mxu0 0.0
        %4218 = vmatpush1.msra.mxu0 0.0
        %4219 = vmatprep.subr.mxu0 0.0
        %4220 = vmatpush1.msra.mxu0 0.0
        %4221 = vmatprep.subr.mxu0 0.0
        %4222 = vmatpush1.msra.mxu0 0.0
        %4223 = vmatprep.subr.mxu0 0.0
        %4224 = vmatpush1.msra.mxu0 0.0
        %4225 = vmatprep.subr.mxu0 0.0
        %4226 = vmatpush1.msra.mxu0 0.0
        %4227 = vmatprep.subr.mxu0 0.0
        %4228 = vmatpush1.msra.mxu0 0.0
        %4229 = vmatprep.subr.mxu0 0.0
        %4230 = vmatpush1.msra.mxu0 0.0
        %4231 = vmatprep.subr.mxu0 0.0
        %4232 = vmatpush1.msra.mxu0 0.0
        %4233 = vmatprep.subr.mxu0 0.0
        %4234 = vmatpush1.msra.mxu0 0.0
        %4235 = vmatprep.subr.mxu0 0.0
        %4236 = vmatpush1.msra.mxu0 0.0
        %4237 = vmatprep.subr.mxu0 0.0
        %4238 = vmatpush1.msra.mxu0 0.0
        %4239 = vmatprep.subr.mxu0 0.0
        %4240 = vmatpush1.msra.mxu0 0.0
        %4241 = vmatprep.subr.mxu0 0.0
        %4242 = vmatpush1.msra.mxu0 0.0
        %4243 = vmatprep.subr.mxu0 0.0
        %4244 = vmatpush1.msra.mxu0 0.0
        %4245 = vmatprep.subr.mxu0 0.0
        %4246 = vmatpush1.msra.mxu0 0.0
        %4247 = vmatprep.subr.mxu0 0.0
        %4248 = vmatpush1.msra.mxu0 0.0
        %4249 = vmatprep.subr.mxu0 0.0
        %4250 = vmatpush1.msra.mxu0 0.0
        %4251 = vmatprep.subr.mxu0 0.0
        %4252 = vmatpush1.msra.mxu0 0.0
        %4253 = vmatprep.subr.mxu0 0.0
        %4254 = vmatpush1.msra.mxu0 0.0
        %4255 = vmatprep.subr.mxu0 0.0
        %4256 = vmatpush1.msra.mxu0 0.0
        %4257 = vmatprep.subr.mxu0 0.0
        %4258 = vmatpush1.msra.mxu0 0.0
        %4259 = vmatprep.subr.mxu0 0.0
        %4260 = vmatpush1.msra.mxu0 0.0
        %4261 = vmatprep.subr.mxu0 0.0
        %4262 = vmatpush1.msra.mxu0 0.0
        %4263 = vmatprep.subr.mxu0 0.0
        %4264 = vmatpush1.msra.mxu0 0.0
        %4265 = vmatprep.subr.mxu0 0.0
        %4266 = vmatpush1.msra.mxu0 0.0
        %4267 = vmatprep.subr.mxu0 0.0
        %4268 = vmatpush1.msra.mxu0 0.0
        %4269 = vmatprep.subr.mxu0 0.0
        %4270 = vmatpush1.msra.mxu0 0.0
        %4271 = vmatprep.mubr.f32.mxu0 0.0
        %4272 = vmatmul.mubr.f32.gmra.mrb[0].mxu0 %v4016
        %v4273 = vpop.f32.mrb[0].mxu0
        %v4274 = vadd.f32 0.0, %v4273
        %v4275 = vpop.f32.mrb[0].mxu0
        %4276 = vmatprep.mubr.f32.mxu0 0.0
        %4277 = vmatmul.mubr.f32.gmra.mrb[0].mxu0 %v4019
        %v4278 = vpop.f32.mrb[0].mxu0
        %v4279 = vadd.f32 0.0, %v4278
        %v4280 = vpop.f32.mrb[0].mxu0
        %4281 = vmatprep.mubr.f32.mxu0 0.0
        %4282 = vmatmul.mubr.f32.gmra.mrb[0].mxu0 %v4022
        %v4283 = vpop.f32.mrb[0].mxu0
        %v4284 = vadd.f32 0.0, %v4283
        %v4285 = vpop.f32.mrb[0].mxu0
        %4286 = vmatprep.mubr.f32.mxu0 0.0
        %4287 = vmatmul.mubr.f32.gmra.mrb[0].mxu0 %v4025
        %v4288 = vpop.f32.mrb[0].mxu0
        %v4289 = vadd.f32 0.0, %v4288
        %v4290 = vpop.f32.mrb[0].mxu0
        %4291 = vmatprep.mubr.f32.mxu0 0.0
        %4292 = vmatmul.mubr.f32.gmra.mrb[0].mxu0 %v4028
        %v4293 = vpop.f32.mrb[0].mxu0
        %v4294 = vadd.f32 0.0, %v4293
        %v4295 = vpop.f32.mrb[0].mxu0
        %4296 = vmatprep.mubr.f32.mxu0 0.0
        %4297 = vmatmul.mubr.f32.gmra.mrb[0].mxu0 %v4031
        %v4298 = vpop.f32.mrb[0].mxu0
        %v4299 = vadd.f32 0.0, %v4298
        %v4300 = vpop.f32.mrb[0].mxu0
        %4301 = vmatprep.mubr.f32.mxu0 0.0
        %4302 = vmatmul.mubr.f32.gmra.mrb[0].mxu0 %v4034
        %v4303 = vpop.f32.mrb[0].mxu0
        %v4304 = vadd.f32 0.0, %v4303
        %v4305 = vpop.f32.mrb[0].mxu0
        %4306 = vmatprep.mubr.f32.mxu0 0.0
        %4307 = vmatmul.mubr.f32.gmra.mrb[0].mxu0 %v4037
        %v4308 = vpop.f32.mrb[0].mxu0
        %v4309 = vadd.f32 0.0, %v4308
        %v4310 = vpop.f32.mrb[0].mxu0
        %4311 = vmatprep.mubr.f32.mxu0 0.0
        %4312 = vmatmul.mubr.f32.gmra.mrb[0].mxu0 %v4040
        %v4313 = vpop.f32.mrb[0].mxu0
        %v4314 = vadd.f32 0.0, %v4313
        %v4315 = vpop.f32.mrb[0].mxu0
        %4316 = vmatprep.mubr.f32.mxu0 0.0
        %4317 = vmatmul.mubr.f32.gmra.mrb[0].mxu0 %v4043
        %v4318 = vpop.f32.mrb[0].mxu0
        %v4319 = vadd.f32 0.0, %v4318
        %v4320 = vpop.f32.mrb[0].mxu0
        %4321 = vmatprep.mubr.f32.mxu0 0.0
        %4322 = vmatmul.mubr.f32.gmra.mrb[0].mxu0 %v4046
        %v4323 = vpop.f32.mrb[0].mxu0
        %v4324 = vadd.f32 0.0, %v4323
        %v4325 = vpop.f32.mrb[0].mxu0
        %4326 = vmatprep.mubr.f32.mxu0 0.0
        %4327 = vmatmul.mubr.f32.gmra.mrb[0].mxu0 %v4049
        %v4328 = vpop.f32.mrb[0].mxu0
        %v4329 = vadd.f32 0.0, %v4328
        %v4330 = vpop.f32.mrb[0].mxu0
        %4331 = vmatprep.mubr.f32.mxu0 0.0
        %4332 = vmatmul.mubr.f32.gmra.mrb[0].mxu0 %v4052
        %v4333 = vpop.f32.mrb[0].mxu0
        %v4334 = vadd.f32 0.0, %v4333
        %v4335 = vpop.f32.mrb[0].mxu0
        %4336 = vmatprep.mubr.f32.mxu0 0.0
        %4337 = vmatmul.mubr.f32.gmra.mrb[0].mxu0 %v4055
        %v4338 = vpop.f32.mrb[0].mxu0
        %v4339 = vadd.f32 0.0, %v4338
        %v4340 = vpop.f32.mrb[0].mxu0
        %4341 = vmatprep.mubr.f32.mxu0 0.0
        %4342 = vmatmul.mubr.f32.gmra.mrb[0].mxu0 %v4058
        %v4343 = vpop.f32.mrb[0].mxu0
        %v4344 = vadd.f32 0.0, %v4343
        %v4345 = vpop.f32.mrb[0].mxu0
        %4346 = vmatprep.mubr.f32.mxu0 0.0
        %4347 = vmatmul.mubr.f32.gmra.mrb[0].mxu0 %v4061
        %v4348 = vpop.f32.mrb[0].mxu0
        %v4349 = vadd.f32 0.0, %v4348
        %v4350 = vpop.f32.mrb[0].mxu0
        %4351 = vmatprep.mubr.f32.mxu0 0.0
        %4352 = vmatmul.mubr.f32.gmra.mrb[0].mxu0 %v4064
        %v4353 = vpop.f32.mrb[0].mxu0
        %v4354 = vadd.f32 0.0, %v4353
        %v4355 = vpop.f32.mrb[0].mxu0
        %4356 = vmatprep.mubr.f32.mxu0 0.0
        %4357 = vmatmul.mubr.f32.gmra.mrb[0].mxu0 %v4067
        %v4358 = vpop.f32.mrb[0].mxu0
        %v4359 = vadd.f32 0.0, %v4358
        %v4360 = vpop.f32.mrb[0].mxu0
        %4361 = vmatprep.mubr.f32.mxu0 0.0
        %4362 = vmatmul.mubr.f32.gmra.mrb[0].mxu0 %v4070
        %v4363 = vpop.f32.mrb[0].mxu0
        %v4364 = vadd.f32 0.0, %v4363
        %v4365 = vpop.f32.mrb[0].mxu0
        %4366 = vmatprep.mubr.f32.mxu0 0.0
        %4367 = vmatmul.mubr.f32.gmra.mrb[0].mxu0 %v4073
        %v4368 = vpop.f32.mrb[0].mxu0
        %v4369 = vadd.f32 0.0, %v4368
        %v4370 = vpop.f32.mrb[0].mxu0
        %4371 = vmatprep.mubr.f32.mxu0 0.0
        %4372 = vmatmul.mubr.f32.gmra.mrb[0].mxu0 %v4076
        %v4373 = vpop.f32.mrb[0].mxu0
        %v4374 = vadd.f32 0.0, %v4373
        %v4375 = vpop.f32.mrb[0].mxu0
        %4376 = vmatprep.mubr.f32.mxu0 0.0
        %4377 = vmatmul.mubr.f32.gmra.mrb[0].mxu0 %v4079
        %v4378 = vpop.f32.mrb[0].mxu0
        %v4379 = vadd.f32 0.0, %v4378
        %v4380 = vpop.f32.mrb[0].mxu0
        %4381 = vmatprep.mubr.f32.mxu0 0.0
        %4382 = vmatmul.mubr.f32.gmra.mrb[0].mxu0 %v4082
        %v4383 = vpop.f32.mrb[0].mxu0
        %v4384 = vadd.f32 0.0, %v4383
        %v4385 = vpop.f32.mrb[0].mxu0
        %4386 = vmatprep.mubr.f32.mxu0 0.0
        %4387 = vmatmul.mubr.f32.gmra.mrb[0].mxu0 %v4085
        %v4388 = vpop.f32.mrb[0].mxu0
        %v4389 = vadd.f32 0.0, %v4388
        %v4390 = vpop.f32.mrb[0].mxu0
        %4391 = vmatprep.mubr.f32.mxu0 0.0
        %4392 = vmatmul.mubr.f32.gmra.mrb[0].mxu0 %v4088
        %v4393 = vpop.f32.mrb[0].mxu0
        %v4394 = vadd.f32 0.0, %v4393
        %v4395 = vpop.f32.mrb[0].mxu0
        %4396 = vmatprep.mubr.f32.mxu0 0.0
        %4397 = vmatmul.mubr.f32.gmra.mrb[0].mxu0 %v4091
        %v4398 = vpop.f32.mrb[0].mxu0
        %v4399 = vadd.f32 0.0, %v4398
        %v4400 = vpop.f32.mrb[0].mxu0
        %4401 = vmatprep.mubr.f32.mxu0 0.0
        %4402 = vmatmul.mubr.f32.gmra.mrb[0].mxu0 %v4094
        %v4403 = vpop.f32.mrb[0].mxu0
        %v4404 = vadd.f32 0.0, %v4403
        %v4405 = vpop.f32.mrb[0].mxu0
        %4406 = vmatprep.mubr.f32.mxu0 0.0
        %4407 = vmatmul.mubr.f32.gmra.mrb[0].mxu0 %v4097
        %v4408 = vpop.f32.mrb[0].mxu0
        %v4409 = vadd.f32 0.0, %v4408
        %v4410 = vpop.f32.mrb[0].mxu0
        %4411 = vmatprep.mubr.f32.mxu0 0.0
        %4412 = vmatmul.mubr.f32.gmra.mrb[0].mxu0 %v4100
        %v4413 = vpop.f32.mrb[0].mxu0
        %v4414 = vadd.f32 0.0, %v4413
        %v4415 = vpop.f32.mrb[0].mxu0
        %4416 = vmatprep.mubr.f32.mxu0 0.0
        %4417 = vmatmul.mubr.f32.gmra.mrb[0].mxu0 %v4103
        %v4418 = vpop.f32.mrb[0].mxu0
        %v4419 = vadd.f32 0.0, %v4418
        %v4420 = vpop.f32.mrb[0].mxu0
        %4421 = vmatprep.mubr.f32.mxu0 0.0
        %4422 = vmatmul.mubr.f32.gmra.mrb[0].mxu0 %v4106
        %v4423 = vpop.f32.mrb[0].mxu0
        %v4424 = vadd.f32 0.0, %v4423
        %v4425 = vpop.f32.mrb[0].mxu0
        %4426 = vmatprep.mubr.f32.mxu0 0.0
        %4427 = vmatmul.mubr.f32.gmra.mrb[0].mxu0 %v4109
        %v4428 = vpop.f32.mrb[0].mxu0
        %v4429 = vadd.f32 0.0, %v4428
        %v4430 = vpop.f32.mrb[0].mxu0
        %4431 = vmatprep.mubr.f32.mxu0 0.0
        %4432 = vmatmul.mubr.f32.gmra.mrb[0].mxu0 %v4112
        %v4433 = vpop.f32.mrb[0].mxu0
        %v4434 = vadd.f32 0.0, %v4433
        %v4435 = vpop.f32.mrb[0].mxu0
        %4436 = vmatprep.mubr.f32.mxu0 0.0
        %4437 = vmatmul.mubr.f32.gmra.mrb[0].mxu0 %v4115
        %v4438 = vpop.f32.mrb[0].mxu0
        %v4439 = vadd.f32 0.0, %v4438
        %v4440 = vpop.f32.mrb[0].mxu0
        %4441 = vmatprep.mubr.f32.mxu0 0.0
        %4442 = vmatmul.mubr.f32.gmra.mrb[0].mxu0 %v4118
        %v4443 = vpop.f32.mrb[0].mxu0
        %v4444 = vadd.f32 0.0, %v4443
        %v4445 = vpop.f32.mrb[0].mxu0
        %4446 = vmatprep.mubr.f32.mxu0 0.0
        %4447 = vmatmul.mubr.f32.gmra.mrb[0].mxu0 %v4121
        %v4448 = vpop.f32.mrb[0].mxu0
        %v4449 = vadd.f32 0.0, %v4448
        %v4450 = vpop.f32.mrb[0].mxu0
        %4451 = vmatprep.mubr.f32.mxu0 0.0
        %4452 = vmatmul.mubr.f32.gmra.mrb[0].mxu0 %v4124
        %v4453 = vpop.f32.mrb[0].mxu0
        %v4454 = vadd.f32 0.0, %v4453
        %v4455 = vpop.f32.mrb[0].mxu0
        %4456 = vmatprep.mubr.f32.mxu0 0.0
        %4457 = vmatmul.mubr.f32.gmra.mrb[0].mxu0 %v4127
        %v4458 = vpop.f32.mrb[0].mxu0
        %v4459 = vadd.f32 0.0, %v4458
        %v4460 = vpop.f32.mrb[0].mxu0
        %4461 = vmatprep.mubr.f32.mxu0 0.0
        %4462 = vmatmul.mubr.f32.gmra.mrb[0].mxu0 %v4130
        %v4463 = vpop.f32.mrb[0].mxu0
        %v4464 = vadd.f32 0.0, %v4463
        %v4465 = vpop.f32.mrb[0].mxu0
        %4466 = vmatprep.mubr.f32.mxu0 0.0
        %4467 = vmatmul.mubr.f32.gmra.mrb[0].mxu0 %v4133
        %v4468 = vpop.f32.mrb[0].mxu0
        %v4469 = vadd.f32 0.0, %v4468
        %v4470 = vpop.f32.mrb[0].mxu0
        %4471 = vmatprep.mubr.f32.mxu0 0.0
        %4472 = vmatmul.mubr.f32.gmra.mrb[0].mxu0 %v4136
        %v4473 = vpop.f32.mrb[0].mxu0
        %v4474 = vadd.f32 0.0, %v4473
        %v4475 = vpop.f32.mrb[0].mxu0
        %4476 = vmatprep.mubr.f32.mxu0 0.0
        %4477 = vmatmul.mubr.f32.gmra.mrb[0].mxu0 %v4139
        %v4478 = vpop.f32.mrb[0].mxu0
        %v4479 = vadd.f32 0.0, %v4478
        %v4480 = vpop.f32.mrb[0].mxu0
        %4481 = vmatprep.mubr.f32.mxu0 0.0
        %4482 = vmatmul.mubr.f32.gmra.mrb[0].mxu0 %v4142
        %v4483 = vpop.f32.mrb[0].mxu0
        %v4484 = vadd.f32 0.0, %v4483
        %v4485 = vpop.f32.mrb[0].mxu0
        %4486 = vmatprep.mubr.f32.mxu0 0.0
        %4487 = vmatmul.mubr.f32.gmra.mrb[0].mxu0 %v4145
        %v4488 = vpop.f32.mrb[0].mxu0
        %v4489 = vadd.f32 0.0, %v4488
        %v4490 = vpop.f32.mrb[0].mxu0
        %4491 = vmatprep.mubr.f32.mxu0 0.0
        %4492 = vmatmul.mubr.f32.gmra.mrb[0].mxu0 %v4148
        %v4493 = vpop.f32.mrb[0].mxu0
        %v4494 = vadd.f32 0.0, %v4493
        %v4495 = vpop.f32.mrb[0].mxu0
        %4496 = vmatprep.mubr.f32.mxu0 0.0
        %4497 = vmatmul.mubr.f32.gmra.mrb[0].mxu0 %v4151
        %v4498 = vpop.f32.mrb[0].mxu0
        %v4499 = vadd.f32 0.0, %v4498
        %v4500 = vpop.f32.mrb[0].mxu0
        %4501 = vmatprep.mubr.f32.mxu0 0.0
        %4502 = vmatmul.mubr.f32.gmra.mrb[0].mxu0 %v4154
        %v4503 = vpop.f32.mrb[0].mxu0
        %v4504 = vadd.f32 0.0, %v4503
        %v4505 = vpop.f32.mrb[0].mxu0
        %4506 = vmatprep.mubr.f32.mxu0 0.0
        %4507 = vmatmul.mubr.f32.gmra.mrb[0].mxu0 %v4157
        %v4508 = vpop.f32.mrb[0].mxu0
        %v4509 = vadd.f32 0.0, %v4508
        %v4510 = vpop.f32.mrb[0].mxu0
        %4511 = vmatprep.mubr.f32.mxu0 0.0
        %4512 = vmatmul.mubr.f32.gmra.mrb[0].mxu0 %v4160
        %v4513 = vpop.f32.mrb[0].mxu0
        %v4514 = vadd.f32 0.0, %v4513
        %v4515 = vpop.f32.mrb[0].mxu0
        %4516 = vmatprep.mubr.f32.mxu0 0.0
        %4517 = vmatmul.mubr.f32.gmra.mrb[0].mxu0 %v4163
        %v4518 = vpop.f32.mrb[0].mxu0
        %v4519 = vadd.f32 0.0, %v4518
        %v4520 = vpop.f32.mrb[0].mxu0
        %4521 = vmatprep.mubr.f32.mxu0 0.0
        %4522 = vmatmul.mubr.f32.gmra.mrb[0].mxu0 %v4166
        %v4523 = vpop.f32.mrb[0].mxu0
        %v4524 = vadd.f32 0.0, %v4523
        %v4525 = vpop.f32.mrb[0].mxu0
        %4526 = vmatprep.mubr.f32.mxu0 0.0
        %4527 = vmatmul.mubr.f32.gmra.mrb[0].mxu0 %v4169
        %v4528 = vpop.f32.mrb[0].mxu0
        %v4529 = vadd.f32 0.0, %v4528
        %v4530 = vpop.f32.mrb[0].mxu0
        %4531 = vmatprep.mubr.f32.mxu0 0.0
        %4532 = vmatmul.mubr.f32.gmra.mrb[0].mxu0 %v4172
        %v4533 = vpop.f32.mrb[0].mxu0
        %v4534 = vadd.f32 0.0, %v4533
        %v4535 = vpop.f32.mrb[0].mxu0
        %4536 = vmatprep.mubr.f32.mxu0 0.0
        %4537 = vmatmul.mubr.f32.gmra.mrb[0].mxu0 %v4175
        %v4538 = vpop.f32.mrb[0].mxu0
        %v4539 = vadd.f32 0.0, %v4538
        %v4540 = vpop.f32.mrb[0].mxu0
        %4541 = vmatprep.mubr.f32.mxu0 0.0
        %4542 = vmatmul.mubr.f32.gmra.mrb[0].mxu0 %v4178
        %v4543 = vpop.f32.mrb[0].mxu0
        %v4544 = vadd.f32 0.0, %v4543
        %v4545 = vpop.f32.mrb[0].mxu0
        %4546 = vmatprep.mubr.f32.mxu0 0.0
        %4547 = vmatmul.mubr.f32.gmra.mrb[0].mxu0 %v4181
        %v4548 = vpop.f32.mrb[0].mxu0
        %v4549 = vadd.f32 0.0, %v4548
        %v4550 = vpop.f32.mrb[0].mxu0
        %4551 = vmatprep.mubr.f32.mxu0 0.0
        %4552 = vmatmul.mubr.f32.gmra.mrb[0].mxu0 %v4184
        %v4553 = vpop.f32.mrb[0].mxu0
        %v4554 = vadd.f32 0.0, %v4553
        %v4555 = vpop.f32.mrb[0].mxu0
        %4556 = vmatprep.mubr.f32.mxu0 0.0
        %4557 = vmatmul.mubr.f32.gmra.mrb[0].mxu0 %v4187
        %v4558 = vpop.f32.mrb[0].mxu0
        %v4559 = vadd.f32 0.0, %v4558
        %v4560 = vpop.f32.mrb[0].mxu0
        %4561 = vmatprep.mubr.f32.mxu0 0.0
        %4562 = vmatmul.mubr.f32.gmra.mrb[0].mxu0 %v4190
        %v4563 = vpop.f32.mrb[0].mxu0
        %v4564 = vadd.f32 0.0, %v4563
        %v4565 = vpop.f32.mrb[0].mxu0
        %4566 = vmatprep.mubr.f32.mxu0 0.0
        %4567 = vmatmul.mubr.f32.gmra.mrb[0].mxu0 %v4193
        %v4568 = vpop.f32.mrb[0].mxu0
        %v4569 = vadd.f32 0.0, %v4568
        %v4570 = vpop.f32.mrb[0].mxu0
        %4571 = vmatprep.mubr.f32.mxu0 0.0
        %4572 = vmatmul.mubr.f32.gmra.mrb[0].mxu0 %v4196
        %v4573 = vpop.f32.mrb[0].mxu0
        %v4574 = vadd.f32 0.0, %v4573
        %v4575 = vpop.f32.mrb[0].mxu0
        %4576 = vmatprep.mubr.f32.mxu0 0.0
        %4577 = vmatmul.mubr.f32.gmra.mrb[0].mxu0 %v4199
        %v4578 = vpop.f32.mrb[0].mxu0
        %v4579 = vadd.f32 0.0, %v4578
        %v4580 = vpop.f32.mrb[0].mxu0
        %4581 = vmatprep.mubr.f32.mxu0 0.0
        %4582 = vmatmul.mubr.f32.gmra.mrb[0].mxu0 %v4202
        %v4583 = vpop.f32.mrb[0].mxu0
        %v4584 = vadd.f32 0.0, %v4583
        %v4585 = vpop.f32.mrb[0].mxu0
        %4586 = vmatprep.mubr.f32.mxu0 0.0
        %4587 = vmatmul.mubr.f32.gmra.mrb[0].mxu0 %v4205
        %v4588 = vpop.f32.mrb[0].mxu0
        %v4589 = vadd.f32 0.0, %v4588
        %v4590 = vpop.f32.mrb[0].mxu0
        %4591 = vdwg.mxu0
        %v4592 = vadd.f32 %v3886, %v4274
        %v4593 = vadd.f32 %v3887, %v4279
        %v4594 = vadd.f32 %v3888, %v4284
        %v4595 = vadd.f32 %v3889, %v4289
        %v4596 = vadd.f32 %v3890, %v4294
        %v4597 = vadd.f32 %v3891, %v4299
        %v4598 = vadd.f32 %v3892, %v4304
        %v4599 = vadd.f32 %v3893, %v4309
        %v4600 = vadd.f32 %v3894, %v4314
        %v4601 = vadd.f32 %v3895, %v4319
        %v4602 = vadd.f32 %v3896, %v4324
        %v4603 = vadd.f32 %v3897, %v4329
        %v4604 = vadd.f32 %v3898, %v4334
        %v4605 = vadd.f32 %v3899, %v4339
        %v4606 = vadd.f32 %v3900, %v4344
        %v4607 = vadd.f32 %v3901, %v4349
        %v4608 = vadd.f32 %v3902, %v4354
        %v4609 = vadd.f32 %v3903, %v4359
        %v4610 = vadd.f32 %v3904, %v4364
        %v4611 = vadd.f32 %v3905, %v4369
        %v4612 = vadd.f32 %v3906, %v4374
        %v4613 = vadd.f32 %v3907, %v4379
        %v4614 = vadd.f32 %v3908, %v4384
        %v4615 = vadd.f32 %v3909, %v4389
        %v4616 = vadd.f32 %v3910, %v4394
        %v4617 = vadd.f32 %v3911, %v4399
        %v4618 = vadd.f32 %v3912, %v4404
        %v4619 = vadd.f32 %v3913, %v4409
        %v4620 = vadd.f32 %v3914, %v4414
        %v4621 = vadd.f32 %v3915, %v4419
        %v4622 = vadd.f32 %v3916, %v4424
        %v4623 = vadd.f32 %v3917, %v4429
        %v4624 = vadd.f32 %v3918, %v4434
        %v4625 = vadd.f32 %v3919, %v4439
        %v4626 = vadd.f32 %v3920, %v4444
        %v4627 = vadd.f32 %v3921, %v4449
        %v4628 = vadd.f32 %v3922, %v4454
        %v4629 = vadd.f32 %v3923, %v4459
        %v4630 = vadd.f32 %v3924, %v4464
        %v4631 = vadd.f32 %v3925, %v4469
        %v4632 = vadd.f32 %v3926, %v4474
        %v4633 = vadd.f32 %v3927, %v4479
        %v4634 = vadd.f32 %v3928, %v4484
        %v4635 = vadd.f32 %v3929, %v4489
        %v4636 = vadd.f32 %v3930, %v4494
        %v4637 = vadd.f32 %v3931, %v4499
        %v4638 = vadd.f32 %v3932, %v4504
        %v4639 = vadd.f32 %v3933, %v4509
        %v4640 = vadd.f32 %v3934, %v4514
        %v4641 = vadd.f32 %v3935, %v4519
        %v4642 = vadd.f32 %v3936, %v4524
        %v4643 = vadd.f32 %v3937, %v4529
        %v4644 = vadd.f32 %v3938, %v4534
        %v4645 = vadd.f32 %v3939, %v4539
        %v4646 = vadd.f32 %v3940, %v4544
        %v4647 = vadd.f32 %v3941, %v4549
        %v4648 = vadd.f32 %v3942, %v4554
        %v4649 = vadd.f32 %v3943, %v4559
        %v4650 = vadd.f32 %v3944, %v4564
        %v4651 = vadd.f32 %v3945, %v4569
        %v4652 = vadd.f32 %v3946, %v4574
        %v4653 = vadd.f32 %v3947, %v4579
        %v4654 = vadd.f32 %v3948, %v4584
        %v4655 = vadd.f32 %v3949, %v4589
        %s4656 = scalar_lea.vmem [#allocation2], 48
        %v4657 = vld [vmem:[%s4656] sm:$0xff]
        %v4658 = vld [vmem:[%s4656 + $0x8] sm:$0xff]
        %v4659 = vld [vmem:[%s4656 + $0x18] sm:$0xff]
        %v4660 = vld [vmem:[%s4656 + $0x20] sm:$0xff]
        %v4661 = vld [vmem:[%s4656 + $0x30] sm:$0xff]
        %v4662 = vld [vmem:[%s4656 + $0x38] sm:$0xff]
        %v4663 = vld [vmem:[%s4656 + $0x48] sm:$0xff]
        %v4664 = vld [vmem:[%s4656 + $0x50] sm:$0xff]
        %v4665 = vld [vmem:[%s4656 + $0x60] sm:$0xff]
        %v4666 = vld [vmem:[%s4656 + $0x68] sm:$0xff]
        %v4667 = vld [vmem:[%s4656 + $0x78] sm:$0xff]
        %v4668 = vld [vmem:[%s4656 + $0x80] sm:$0xff]
        %v4669 = vld [vmem:[%s4656 + $0x90] sm:$0xff]
        %v4670 = vld [vmem:[%s4656 + $0x98] sm:$0xff]
        %v4671 = vld [vmem:[%s4656 + $0xa8] sm:$0xff]
        %v4672 = vld [vmem:[%s4656 + $0xb0] sm:$0xff]
        %v4673 = vld [vmem:[%s4656 + $0xc0] sm:$0xff]
        %v4674 = vld [vmem:[%s4656 + $0xc8] sm:$0xff]
        %v4675 = vld [vmem:[%s4656 + $0xd8] sm:$0xff]
        %v4676 = vld [vmem:[%s4656 + $0xe0] sm:$0xff]
        %v4677 = vld [vmem:[%s4656 + $0xf0] sm:$0xff]
        %v4678 = vld [vmem:[%s4656 + $0xf8] sm:$0xff]
        %v4679 = vld [vmem:[%s4656 + $0x108] sm:$0xff]
        %v4680 = vld [vmem:[%s4656 + $0x110] sm:$0xff]
        %v4681 = vld [vmem:[%s4656 + $0x120] sm:$0xff]
        %v4682 = vld [vmem:[%s4656 + $0x128] sm:$0xff]
        %v4683 = vld [vmem:[%s4656 + $0x138] sm:$0xff]
        %v4684 = vld [vmem:[%s4656 + $0x140] sm:$0xff]
        %v4685 = vld [vmem:[%s4656 + $0x150] sm:$0xff]
        %v4686 = vld [vmem:[%s4656 + $0x158] sm:$0xff]
        %v4687 = vld [vmem:[%s4656 + $0x168] sm:$0xff]
        %v4688 = vld [vmem:[%s4656 + $0x170] sm:$0xff]
        %s4689 = scalar_lea.vmem [#allocation2], 480
        %v4690 = vld [vmem:[%s4689] sm:$0xff]
        %v4691 = vld [vmem:[%s4689 + $0x8] sm:$0xff]
        %v4692 = vld [vmem:[%s4689 + $0x18] sm:$0xff]
        %v4693 = vld [vmem:[%s4689 + $0x20] sm:$0xff]
        %v4694 = vld [vmem:[%s4689 + $0x30] sm:$0xff]
        %v4695 = vld [vmem:[%s4689 + $0x38] sm:$0xff]
        %v4696 = vld [vmem:[%s4689 + $0x48] sm:$0xff]
        %v4697 = vld [vmem:[%s4689 + $0x50] sm:$0xff]
        %v4698 = vld [vmem:[%s4689 + $0x60] sm:$0xff]
        %v4699 = vld [vmem:[%s4689 + $0x68] sm:$0xff]
        %v4700 = vld [vmem:[%s4689 + $0x78] sm:$0xff]
        %v4701 = vld [vmem:[%s4689 + $0x80] sm:$0xff]
        %v4702 = vld [vmem:[%s4689 + $0x90] sm:$0xff]
        %v4703 = vld [vmem:[%s4689 + $0x98] sm:$0xff]
        %v4704 = vld [vmem:[%s4689 + $0xa8] sm:$0xff]
        %v4705 = vld [vmem:[%s4689 + $0xb0] sm:$0xff]
        %v4706 = vld [vmem:[%s4689 + $0xc0] sm:$0xff]
        %v4707 = vld [vmem:[%s4689 + $0xc8] sm:$0xff]
        %v4708 = vld [vmem:[%s4689 + $0xd8] sm:$0xff]
        %v4709 = vld [vmem:[%s4689 + $0xe0] sm:$0xff]
        %v4710 = vld [vmem:[%s4689 + $0xf0] sm:$0xff]
        %v4711 = vld [vmem:[%s4689 + $0xf8] sm:$0xff]
        %v4712 = vld [vmem:[%s4689 + $0x108] sm:$0xff]
        %v4713 = vld [vmem:[%s4689 + $0x110] sm:$0xff]
        %v4714 = vld [vmem:[%s4689 + $0x120] sm:$0xff]
        %v4715 = vld [vmem:[%s4689 + $0x128] sm:$0xff]
        %v4716 = vld [vmem:[%s4689 + $0x138] sm:$0xff]
        %v4717 = vld [vmem:[%s4689 + $0x140] sm:$0xff]
        %v4718 = vld [vmem:[%s4689 + $0x150] sm:$0xff]
        %v4719 = vld [vmem:[%s4689 + $0x158] sm:$0xff]
        %v4720 = vld [vmem:[%s4689 + $0x168] sm:$0xff]
        %v4721 = vld [vmem:[%s4689 + $0x170] sm:$0xff]
        %v4722 = vld [vmem:[%s2 + $0x30] sm:$0xff]
        %v4724 = vsel %vm335, %v4657, 0
        %v4727 = vsel %vm335, %v4658, 0
        %v4730 = vsel %vm335, %v4659, 0
        %v4733 = vsel %vm335, %v4660, 0
        %v4736 = vsel %vm335, %v4661, 0
        %v4739 = vsel %vm335, %v4662, 0
        %v4742 = vsel %vm335, %v4663, 0
        %v4745 = vsel %vm335, %v4664, 0
        %v4748 = vsel %vm335, %v4665, 0
        %v4751 = vsel %vm335, %v4666, 0
        %v4754 = vsel %vm335, %v4667, 0
        %v4757 = vsel %vm335, %v4668, 0
        %v4760 = vsel %vm335, %v4669, 0
        %v4763 = vsel %vm335, %v4670, 0
        %v4766 = vsel %vm335, %v4671, 0
        %v4769 = vsel %vm335, %v4672, 0
        %v4772 = vsel %vm335, %v4673, 0
        %v4775 = vsel %vm335, %v4674, 0
        %v4778 = vsel %vm335, %v4675, 0
        %v4781 = vsel %vm335, %v4676, 0
        %v4784 = vsel %vm335, %v4677, 0
        %v4787 = vsel %vm335, %v4678, 0
        %v4790 = vsel %vm335, %v4679, 0
        %v4793 = vsel %vm335, %v4680, 0
        %v4796 = vsel %vm335, %v4681, 0
        %v4799 = vsel %vm335, %v4682, 0
        %v4802 = vsel %vm335, %v4683, 0
        %v4805 = vsel %vm335, %v4684, 0
        %v4808 = vsel %vm335, %v4685, 0
        %v4811 = vsel %vm335, %v4686, 0
        %v4814 = vsel %vm335, %v4687, 0
        %v4817 = vsel %vm335, %v4688, 0
        %v4820 = vsel %vm335, %v4690, 0
        %v4823 = vsel %vm335, %v4691, 0
        %v4826 = vsel %vm335, %v4692, 0
        %v4829 = vsel %vm335, %v4693, 0
        %v4832 = vsel %vm335, %v4694, 0
        %v4835 = vsel %vm335, %v4695, 0
        %v4838 = vsel %vm335, %v4696, 0
        %v4841 = vsel %vm335, %v4697, 0
        %v4844 = vsel %vm335, %v4698, 0
        %v4847 = vsel %vm335, %v4699, 0
        %v4850 = vsel %vm335, %v4700, 0
        %v4853 = vsel %vm335, %v4701, 0
        %v4856 = vsel %vm335, %v4702, 0
        %v4859 = vsel %vm335, %v4703, 0
        %v4862 = vsel %vm335, %v4704, 0
        %v4865 = vsel %vm335, %v4705, 0
        %v4868 = vsel %vm335, %v4706, 0
        %v4871 = vsel %vm335, %v4707, 0
        %v4874 = vsel %vm335, %v4708, 0
        %v4877 = vsel %vm335, %v4709, 0
        %v4880 = vsel %vm335, %v4710, 0
        %v4883 = vsel %vm335, %v4711, 0
        %v4886 = vsel %vm335, %v4712, 0
        %v4889 = vsel %vm335, %v4713, 0
        %v4892 = vsel %vm335, %v4714, 0
        %v4895 = vsel %vm335, %v4715, 0
        %v4898 = vsel %vm335, %v4716, 0
        %v4901 = vsel %vm335, %v4717, 0
        %v4904 = vsel %vm335, %v4718, 0
        %v4907 = vsel %vm335, %v4719, 0
        %v4910 = vsel %vm335, %v4720, 0
        %v4913 = vsel %vm335, %v4721, 0
        %4915 = vmatprep.subr.mxu0 0.0
        %4916 = vmatpush1.msra.mxu0 %v4722
        %4917 = vmatprep.subr.mxu0 0.0
        %4918 = vmatpush1.msra.mxu0 0.0
        %4919 = vmatprep.subr.mxu0 0.0
        %4920 = vmatpush1.msra.mxu0 0.0
        %4921 = vmatprep.subr.mxu0 0.0
        %4922 = vmatpush1.msra.mxu0 0.0
        %4923 = vmatprep.subr.mxu0 0.0
        %4924 = vmatpush1.msra.mxu0 0.0
        %4925 = vmatprep.subr.mxu0 0.0
        %4926 = vmatpush1.msra.mxu0 0.0
        %4927 = vmatprep.subr.mxu0 0.0
        %4928 = vmatpush1.msra.mxu0 0.0
        %4929 = vmatprep.subr.mxu0 0.0
        %4930 = vmatpush1.msra.mxu0 0.0
        %4931 = vmatprep.subr.mxu0 0.0
        %4932 = vmatpush1.msra.mxu0 0.0
        %4933 = vmatprep.subr.mxu0 0.0
        %4934 = vmatpush1.msra.mxu0 0.0
        %4935 = vmatprep.subr.mxu0 0.0
        %4936 = vmatpush1.msra.mxu0 0.0
        %4937 = vmatprep.subr.mxu0 0.0
        %4938 = vmatpush1.msra.mxu0 0.0
        %4939 = vmatprep.subr.mxu0 0.0
        %4940 = vmatpush1.msra.mxu0 0.0
        %4941 = vmatprep.subr.mxu0 0.0
        %4942 = vmatpush1.msra.mxu0 0.0
        %4943 = vmatprep.subr.mxu0 0.0
        %4944 = vmatpush1.msra.mxu0 0.0
        %4945 = vmatprep.subr.mxu0 0.0
        %4946 = vmatpush1.msra.mxu0 0.0
        %4947 = vmatprep.subr.mxu0 0.0
        %4948 = vmatpush1.msra.mxu0 0.0
        %4949 = vmatprep.subr.mxu0 0.0
        %4950 = vmatpush1.msra.mxu0 0.0
        %4951 = vmatprep.subr.mxu0 0.0
        %4952 = vmatpush1.msra.mxu0 0.0
        %4953 = vmatprep.subr.mxu0 0.0
        %4954 = vmatpush1.msra.mxu0 0.0
        %4955 = vmatprep.subr.mxu0 0.0
        %4956 = vmatpush1.msra.mxu0 0.0
        %4957 = vmatprep.subr.mxu0 0.0
        %4958 = vmatpush1.msra.mxu0 0.0
        %4959 = vmatprep.subr.mxu0 0.0
        %4960 = vmatpush1.msra.mxu0 0.0
        %4961 = vmatprep.subr.mxu0 0.0
        %4962 = vmatpush1.msra.mxu0 0.0
        %4963 = vmatprep.subr.mxu0 0.0
        %4964 = vmatpush1.msra.mxu0 0.0
        %4965 = vmatprep.subr.mxu0 0.0
        %4966 = vmatpush1.msra.mxu0 0.0
        %4967 = vmatprep.subr.mxu0 0.0
        %4968 = vmatpush1.msra.mxu0 0.0
        %4969 = vmatprep.subr.mxu0 0.0
        %4970 = vmatpush1.msra.mxu0 0.0
        %4971 = vmatprep.subr.mxu0 0.0
        %4972 = vmatpush1.msra.mxu0 0.0
        %4973 = vmatprep.subr.mxu0 0.0
        %4974 = vmatpush1.msra.mxu0 0.0
        %4975 = vmatprep.subr.mxu0 0.0
        %4976 = vmatpush1.msra.mxu0 0.0
        %4977 = vmatprep.subr.mxu0 0.0
        %4978 = vmatpush1.msra.mxu0 0.0
        %4979 = vmatprep.mubr.f32.mxu0 0.0
        %4980 = vmatmul.mubr.f32.gmra.mrb[0].mxu0 %v4724
        %v4981 = vpop.f32.mrb[0].mxu0
        %v4982 = vadd.f32 0.0, %v4981
        %v4983 = vpop.f32.mrb[0].mxu0
        %4984 = vmatprep.mubr.f32.mxu0 0.0
        %4985 = vmatmul.mubr.f32.gmra.mrb[0].mxu0 %v4727
        %v4986 = vpop.f32.mrb[0].mxu0
        %v4987 = vadd.f32 0.0, %v4986
        %v4988 = vpop.f32.mrb[0].mxu0
        %4989 = vmatprep.mubr.f32.mxu0 0.0
        %4990 = vmatmul.mubr.f32.gmra.mrb[0].mxu0 %v4730
        %v4991 = vpop.f32.mrb[0].mxu0
        %v4992 = vadd.f32 0.0, %v4991
        %v4993 = vpop.f32.mrb[0].mxu0
        %4994 = vmatprep.mubr.f32.mxu0 0.0
        %4995 = vmatmul.mubr.f32.gmra.mrb[0].mxu0 %v4733
        %v4996 = vpop.f32.mrb[0].mxu0
        %v4997 = vadd.f32 0.0, %v4996
        %v4998 = vpop.f32.mrb[0].mxu0
        %4999 = vmatprep.mubr.f32.mxu0 0.0
        %5000 = vmatmul.mubr.f32.gmra.mrb[0].mxu0 %v4736
        %v5001 = vpop.f32.mrb[0].mxu0
        %v5002 = vadd.f32 0.0, %v5001
        %v5003 = vpop.f32.mrb[0].mxu0
        %5004 = vmatprep.mubr.f32.mxu0 0.0
        %5005 = vmatmul.mubr.f32.gmra.mrb[0].mxu0 %v4739
        %v5006 = vpop.f32.mrb[0].mxu0
        %v5007 = vadd.f32 0.0, %v5006
        %v5008 = vpop.f32.mrb[0].mxu0
        %5009 = vmatprep.mubr.f32.mxu0 0.0
        %5010 = vmatmul.mubr.f32.gmra.mrb[0].mxu0 %v4742
        %v5011 = vpop.f32.mrb[0].mxu0
        %v5012 = vadd.f32 0.0, %v5011
        %v5013 = vpop.f32.mrb[0].mxu0
        %5014 = vmatprep.mubr.f32.mxu0 0.0
        %5015 = vmatmul.mubr.f32.gmra.mrb[0].mxu0 %v4745
        %v5016 = vpop.f32.mrb[0].mxu0
        %v5017 = vadd.f32 0.0, %v5016
        %v5018 = vpop.f32.mrb[0].mxu0
        %5019 = vmatprep.mubr.f32.mxu0 0.0
        %5020 = vmatmul.mubr.f32.gmra.mrb[0].mxu0 %v4748
        %v5021 = vpop.f32.mrb[0].mxu0
        %v5022 = vadd.f32 0.0, %v5021
        %v5023 = vpop.f32.mrb[0].mxu0
        %5024 = vmatprep.mubr.f32.mxu0 0.0
        %5025 = vmatmul.mubr.f32.gmra.mrb[0].mxu0 %v4751
        %v5026 = vpop.f32.mrb[0].mxu0
        %v5027 = vadd.f32 0.0, %v5026
        %v5028 = vpop.f32.mrb[0].mxu0
        %5029 = vmatprep.mubr.f32.mxu0 0.0
        %5030 = vmatmul.mubr.f32.gmra.mrb[0].mxu0 %v4754
        %v5031 = vpop.f32.mrb[0].mxu0
        %v5032 = vadd.f32 0.0, %v5031
        %v5033 = vpop.f32.mrb[0].mxu0
        %5034 = vmatprep.mubr.f32.mxu0 0.0
        %5035 = vmatmul.mubr.f32.gmra.mrb[0].mxu0 %v4757
        %v5036 = vpop.f32.mrb[0].mxu0
        %v5037 = vadd.f32 0.0, %v5036
        %v5038 = vpop.f32.mrb[0].mxu0
        %5039 = vmatprep.mubr.f32.mxu0 0.0
        %5040 = vmatmul.mubr.f32.gmra.mrb[0].mxu0 %v4760
        %v5041 = vpop.f32.mrb[0].mxu0
        %v5042 = vadd.f32 0.0, %v5041
        %v5043 = vpop.f32.mrb[0].mxu0
        %5044 = vmatprep.mubr.f32.mxu0 0.0
        %5045 = vmatmul.mubr.f32.gmra.mrb[0].mxu0 %v4763
        %v5046 = vpop.f32.mrb[0].mxu0
        %v5047 = vadd.f32 0.0, %v5046
        %v5048 = vpop.f32.mrb[0].mxu0
        %5049 = vmatprep.mubr.f32.mxu0 0.0
        %5050 = vmatmul.mubr.f32.gmra.mrb[0].mxu0 %v4766
        %v5051 = vpop.f32.mrb[0].mxu0
        %v5052 = vadd.f32 0.0, %v5051
        %v5053 = vpop.f32.mrb[0].mxu0
        %5054 = vmatprep.mubr.f32.mxu0 0.0
        %5055 = vmatmul.mubr.f32.gmra.mrb[0].mxu0 %v4769
        %v5056 = vpop.f32.mrb[0].mxu0
        %v5057 = vadd.f32 0.0, %v5056
        %v5058 = vpop.f32.mrb[0].mxu0
        %5059 = vmatprep.mubr.f32.mxu0 0.0
        %5060 = vmatmul.mubr.f32.gmra.mrb[0].mxu0 %v4772
        %v5061 = vpop.f32.mrb[0].mxu0
        %v5062 = vadd.f32 0.0, %v5061
        %v5063 = vpop.f32.mrb[0].mxu0
        %5064 = vmatprep.mubr.f32.mxu0 0.0
        %5065 = vmatmul.mubr.f32.gmra.mrb[0].mxu0 %v4775
        %v5066 = vpop.f32.mrb[0].mxu0
        %v5067 = vadd.f32 0.0, %v5066
        %v5068 = vpop.f32.mrb[0].mxu0
        %5069 = vmatprep.mubr.f32.mxu0 0.0
        %5070 = vmatmul.mubr.f32.gmra.mrb[0].mxu0 %v4778
        %v5071 = vpop.f32.mrb[0].mxu0
        %v5072 = vadd.f32 0.0, %v5071
        %v5073 = vpop.f32.mrb[0].mxu0
        %5074 = vmatprep.mubr.f32.mxu0 0.0
        %5075 = vmatmul.mubr.f32.gmra.mrb[0].mxu0 %v4781
        %v5076 = vpop.f32.mrb[0].mxu0
        %v5077 = vadd.f32 0.0, %v5076
        %v5078 = vpop.f32.mrb[0].mxu0
        %5079 = vmatprep.mubr.f32.mxu0 0.0
        %5080 = vmatmul.mubr.f32.gmra.mrb[0].mxu0 %v4784
        %v5081 = vpop.f32.mrb[0].mxu0
        %v5082 = vadd.f32 0.0, %v5081
        %v5083 = vpop.f32.mrb[0].mxu0
        %5084 = vmatprep.mubr.f32.mxu0 0.0
        %5085 = vmatmul.mubr.f32.gmra.mrb[0].mxu0 %v4787
        %v5086 = vpop.f32.mrb[0].mxu0
        %v5087 = vadd.f32 0.0, %v5086
        %v5088 = vpop.f32.mrb[0].mxu0
        %5089 = vmatprep.mubr.f32.mxu0 0.0
        %5090 = vmatmul.mubr.f32.gmra.mrb[0].mxu0 %v4790
        %v5091 = vpop.f32.mrb[0].mxu0
        %v5092 = vadd.f32 0.0, %v5091
        %v5093 = vpop.f32.mrb[0].mxu0
        %5094 = vmatprep.mubr.f32.mxu0 0.0
        %5095 = vmatmul.mubr.f32.gmra.mrb[0].mxu0 %v4793
        %v5096 = vpop.f32.mrb[0].mxu0
        %v5097 = vadd.f32 0.0, %v5096
        %v5098 = vpop.f32.mrb[0].mxu0
        %5099 = vmatprep.mubr.f32.mxu0 0.0
        %5100 = vmatmul.mubr.f32.gmra.mrb[0].mxu0 %v4796
        %v5101 = vpop.f32.mrb[0].mxu0
        %v5102 = vadd.f32 0.0, %v5101
        %v5103 = vpop.f32.mrb[0].mxu0
        %5104 = vmatprep.mubr.f32.mxu0 0.0
        %5105 = vmatmul.mubr.f32.gmra.mrb[0].mxu0 %v4799
        %v5106 = vpop.f32.mrb[0].mxu0
        %v5107 = vadd.f32 0.0, %v5106
        %v5108 = vpop.f32.mrb[0].mxu0
        %5109 = vmatprep.mubr.f32.mxu0 0.0
        %5110 = vmatmul.mubr.f32.gmra.mrb[0].mxu0 %v4802
        %v5111 = vpop.f32.mrb[0].mxu0
        %v5112 = vadd.f32 0.0, %v5111
        %v5113 = vpop.f32.mrb[0].mxu0
        %5114 = vmatprep.mubr.f32.mxu0 0.0
        %5115 = vmatmul.mubr.f32.gmra.mrb[0].mxu0 %v4805
        %v5116 = vpop.f32.mrb[0].mxu0
        %v5117 = vadd.f32 0.0, %v5116
        %v5118 = vpop.f32.mrb[0].mxu0
        %5119 = vmatprep.mubr.f32.mxu0 0.0
        %5120 = vmatmul.mubr.f32.gmra.mrb[0].mxu0 %v4808
        %v5121 = vpop.f32.mrb[0].mxu0
        %v5122 = vadd.f32 0.0, %v5121
        %v5123 = vpop.f32.mrb[0].mxu0
        %5124 = vmatprep.mubr.f32.mxu0 0.0
        %5125 = vmatmul.mubr.f32.gmra.mrb[0].mxu0 %v4811
        %v5126 = vpop.f32.mrb[0].mxu0
        %v5127 = vadd.f32 0.0, %v5126
        %v5128 = vpop.f32.mrb[0].mxu0
        %5129 = vmatprep.mubr.f32.mxu0 0.0
        %5130 = vmatmul.mubr.f32.gmra.mrb[0].mxu0 %v4814
        %v5131 = vpop.f32.mrb[0].mxu0
        %v5132 = vadd.f32 0.0, %v5131
        %v5133 = vpop.f32.mrb[0].mxu0
        %5134 = vmatprep.mubr.f32.mxu0 0.0
        %5135 = vmatmul.mubr.f32.gmra.mrb[0].mxu0 %v4817
        %v5136 = vpop.f32.mrb[0].mxu0
        %v5137 = vadd.f32 0.0, %v5136
        %v5138 = vpop.f32.mrb[0].mxu0
        %5139 = vmatprep.mubr.f32.mxu0 0.0
        %5140 = vmatmul.mubr.f32.gmra.mrb[0].mxu0 %v4820
        %v5141 = vpop.f32.mrb[0].mxu0
        %v5142 = vadd.f32 0.0, %v5141
        %v5143 = vpop.f32.mrb[0].mxu0
        %5144 = vmatprep.mubr.f32.mxu0 0.0
        %5145 = vmatmul.mubr.f32.gmra.mrb[0].mxu0 %v4823
        %v5146 = vpop.f32.mrb[0].mxu0
        %v5147 = vadd.f32 0.0, %v5146
        %v5148 = vpop.f32.mrb[0].mxu0
        %5149 = vmatprep.mubr.f32.mxu0 0.0
        %5150 = vmatmul.mubr.f32.gmra.mrb[0].mxu0 %v4826
        %v5151 = vpop.f32.mrb[0].mxu0
        %v5152 = vadd.f32 0.0, %v5151
        %v5153 = vpop.f32.mrb[0].mxu0
        %5154 = vmatprep.mubr.f32.mxu0 0.0
        %5155 = vmatmul.mubr.f32.gmra.mrb[0].mxu0 %v4829
        %v5156 = vpop.f32.mrb[0].mxu0
        %v5157 = vadd.f32 0.0, %v5156
        %v5158 = vpop.f32.mrb[0].mxu0
        %5159 = vmatprep.mubr.f32.mxu0 0.0
        %5160 = vmatmul.mubr.f32.gmra.mrb[0].mxu0 %v4832
        %v5161 = vpop.f32.mrb[0].mxu0
        %v5162 = vadd.f32 0.0, %v5161
        %v5163 = vpop.f32.mrb[0].mxu0
        %5164 = vmatprep.mubr.f32.mxu0 0.0
        %5165 = vmatmul.mubr.f32.gmra.mrb[0].mxu0 %v4835
        %v5166 = vpop.f32.mrb[0].mxu0
        %v5167 = vadd.f32 0.0, %v5166
        %v5168 = vpop.f32.mrb[0].mxu0
        %5169 = vmatprep.mubr.f32.mxu0 0.0
        %5170 = vmatmul.mubr.f32.gmra.mrb[0].mxu0 %v4838
        %v5171 = vpop.f32.mrb[0].mxu0
        %v5172 = vadd.f32 0.0, %v5171
        %v5173 = vpop.f32.mrb[0].mxu0
        %5174 = vmatprep.mubr.f32.mxu0 0.0
        %5175 = vmatmul.mubr.f32.gmra.mrb[0].mxu0 %v4841
        %v5176 = vpop.f32.mrb[0].mxu0
        %v5177 = vadd.f32 0.0, %v5176
        %v5178 = vpop.f32.mrb[0].mxu0
        %5179 = vmatprep.mubr.f32.mxu0 0.0
        %5180 = vmatmul.mubr.f32.gmra.mrb[0].mxu0 %v4844
        %v5181 = vpop.f32.mrb[0].mxu0
        %v5182 = vadd.f32 0.0, %v5181
        %v5183 = vpop.f32.mrb[0].mxu0
        %5184 = vmatprep.mubr.f32.mxu0 0.0
        %5185 = vmatmul.mubr.f32.gmra.mrb[0].mxu0 %v4847
        %v5186 = vpop.f32.mrb[0].mxu0
        %v5187 = vadd.f32 0.0, %v5186
        %v5188 = vpop.f32.mrb[0].mxu0
        %5189 = vmatprep.mubr.f32.mxu0 0.0
        %5190 = vmatmul.mubr.f32.gmra.mrb[0].mxu0 %v4850
        %v5191 = vpop.f32.mrb[0].mxu0
        %v5192 = vadd.f32 0.0, %v5191
        %v5193 = vpop.f32.mrb[0].mxu0
        %5194 = vmatprep.mubr.f32.mxu0 0.0
        %5195 = vmatmul.mubr.f32.gmra.mrb[0].mxu0 %v4853
        %v5196 = vpop.f32.mrb[0].mxu0
        %v5197 = vadd.f32 0.0, %v5196
        %v5198 = vpop.f32.mrb[0].mxu0
        %5199 = vmatprep.mubr.f32.mxu0 0.0
        %5200 = vmatmul.mubr.f32.gmra.mrb[0].mxu0 %v4856
        %v5201 = vpop.f32.mrb[0].mxu0
        %v5202 = vadd.f32 0.0, %v5201
        %v5203 = vpop.f32.mrb[0].mxu0
        %5204 = vmatprep.mubr.f32.mxu0 0.0
        %5205 = vmatmul.mubr.f32.gmra.mrb[0].mxu0 %v4859
        %v5206 = vpop.f32.mrb[0].mxu0
        %v5207 = vadd.f32 0.0, %v5206
        %v5208 = vpop.f32.mrb[0].mxu0
        %5209 = vmatprep.mubr.f32.mxu0 0.0
        %5210 = vmatmul.mubr.f32.gmra.mrb[0].mxu0 %v4862
        %v5211 = vpop.f32.mrb[0].mxu0
        %v5212 = vadd.f32 0.0, %v5211
        %v5213 = vpop.f32.mrb[0].mxu0
        %5214 = vmatprep.mubr.f32.mxu0 0.0
        %5215 = vmatmul.mubr.f32.gmra.mrb[0].mxu0 %v4865
        %v5216 = vpop.f32.mrb[0].mxu0
        %v5217 = vadd.f32 0.0, %v5216
        %v5218 = vpop.f32.mrb[0].mxu0
        %5219 = vmatprep.mubr.f32.mxu0 0.0
        %5220 = vmatmul.mubr.f32.gmra.mrb[0].mxu0 %v4868
        %v5221 = vpop.f32.mrb[0].mxu0
        %v5222 = vadd.f32 0.0, %v5221
        %v5223 = vpop.f32.mrb[0].mxu0
        %5224 = vmatprep.mubr.f32.mxu0 0.0
        %5225 = vmatmul.mubr.f32.gmra.mrb[0].mxu0 %v4871
        %v5226 = vpop.f32.mrb[0].mxu0
        %v5227 = vadd.f32 0.0, %v5226
        %v5228 = vpop.f32.mrb[0].mxu0
        %5229 = vmatprep.mubr.f32.mxu0 0.0
        %5230 = vmatmul.mubr.f32.gmra.mrb[0].mxu0 %v4874
        %v5231 = vpop.f32.mrb[0].mxu0
        %v5232 = vadd.f32 0.0, %v5231
        %v5233 = vpop.f32.mrb[0].mxu0
        %5234 = vmatprep.mubr.f32.mxu0 0.0
        %5235 = vmatmul.mubr.f32.gmra.mrb[0].mxu0 %v4877
        %v5236 = vpop.f32.mrb[0].mxu0
        %v5237 = vadd.f32 0.0, %v5236
        %v5238 = vpop.f32.mrb[0].mxu0
        %5239 = vmatprep.mubr.f32.mxu0 0.0
        %5240 = vmatmul.mubr.f32.gmra.mrb[0].mxu0 %v4880
        %v5241 = vpop.f32.mrb[0].mxu0
        %v5242 = vadd.f32 0.0, %v5241
        %v5243 = vpop.f32.mrb[0].mxu0
        %5244 = vmatprep.mubr.f32.mxu0 0.0
        %5245 = vmatmul.mubr.f32.gmra.mrb[0].mxu0 %v4883
        %v5246 = vpop.f32.mrb[0].mxu0
        %v5247 = vadd.f32 0.0, %v5246
        %v5248 = vpop.f32.mrb[0].mxu0
        %5249 = vmatprep.mubr.f32.mxu0 0.0
        %5250 = vmatmul.mubr.f32.gmra.mrb[0].mxu0 %v4886
        %v5251 = vpop.f32.mrb[0].mxu0
        %v5252 = vadd.f32 0.0, %v5251
        %v5253 = vpop.f32.mrb[0].mxu0
        %5254 = vmatprep.mubr.f32.mxu0 0.0
        %5255 = vmatmul.mubr.f32.gmra.mrb[0].mxu0 %v4889
        %v5256 = vpop.f32.mrb[0].mxu0
        %v5257 = vadd.f32 0.0, %v5256
        %v5258 = vpop.f32.mrb[0].mxu0
        %5259 = vmatprep.mubr.f32.mxu0 0.0
        %5260 = vmatmul.mubr.f32.gmra.mrb[0].mxu0 %v4892
        %v5261 = vpop.f32.mrb[0].mxu0
        %v5262 = vadd.f32 0.0, %v5261
        %v5263 = vpop.f32.mrb[0].mxu0
        %5264 = vmatprep.mubr.f32.mxu0 0.0
        %5265 = vmatmul.mubr.f32.gmra.mrb[0].mxu0 %v4895
        %v5266 = vpop.f32.mrb[0].mxu0
        %v5267 = vadd.f32 0.0, %v5266
        %v5268 = vpop.f32.mrb[0].mxu0
        %5269 = vmatprep.mubr.f32.mxu0 0.0
        %5270 = vmatmul.mubr.f32.gmra.mrb[0].mxu0 %v4898
        %v5271 = vpop.f32.mrb[0].mxu0
        %v5272 = vadd.f32 0.0, %v5271
        %v5273 = vpop.f32.mrb[0].mxu0
        %5274 = vmatprep.mubr.f32.mxu0 0.0
        %5275 = vmatmul.mubr.f32.gmra.mrb[0].mxu0 %v4901
        %v5276 = vpop.f32.mrb[0].mxu0
        %v5277 = vadd.f32 0.0, %v5276
        %v5278 = vpop.f32.mrb[0].mxu0
        %5279 = vmatprep.mubr.f32.mxu0 0.0
        %5280 = vmatmul.mubr.f32.gmra.mrb[0].mxu0 %v4904
        %v5281 = vpop.f32.mrb[0].mxu0
        %v5282 = vadd.f32 0.0, %v5281
        %v5283 = vpop.f32.mrb[0].mxu0
        %5284 = vmatprep.mubr.f32.mxu0 0.0
        %5285 = vmatmul.mubr.f32.gmra.mrb[0].mxu0 %v4907
        %v5286 = vpop.f32.mrb[0].mxu0
        %v5287 = vadd.f32 0.0, %v5286
        %v5288 = vpop.f32.mrb[0].mxu0
        %5289 = vmatprep.mubr.f32.mxu0 0.0
        %5290 = vmatmul.mubr.f32.gmra.mrb[0].mxu0 %v4910
        %v5291 = vpop.f32.mrb[0].mxu0
        %v5292 = vadd.f32 0.0, %v5291
        %v5293 = vpop.f32.mrb[0].mxu0
        %5294 = vmatprep.mubr.f32.mxu0 0.0
        %5295 = vmatmul.mubr.f32.gmra.mrb[0].mxu0 %v4913
        %v5296 = vpop.f32.mrb[0].mxu0
        %v5297 = vadd.f32 0.0, %v5296
        %v5298 = vpop.f32.mrb[0].mxu0
        %5299 = vdwg.mxu0
        %v5300 = vadd.f32 %v4592, %v4982
        %v5301 = vadd.f32 %v4593, %v4987
        %v5302 = vadd.f32 %v4594, %v4992
        %v5303 = vadd.f32 %v4595, %v4997
        %v5304 = vadd.f32 %v4596, %v5002
        %v5305 = vadd.f32 %v4597, %v5007
        %v5306 = vadd.f32 %v4598, %v5012
        %v5307 = vadd.f32 %v4599, %v5017
        %v5308 = vadd.f32 %v4600, %v5022
        %v5309 = vadd.f32 %v4601, %v5027
        %v5310 = vadd.f32 %v4602, %v5032
        %v5311 = vadd.f32 %v4603, %v5037
        %v5312 = vadd.f32 %v4604, %v5042
        %v5313 = vadd.f32 %v4605, %v5047
        %v5314 = vadd.f32 %v4606, %v5052
        %v5315 = vadd.f32 %v4607, %v5057
        %v5316 = vadd.f32 %v4608, %v5062
        %v5317 = vadd.f32 %v4609, %v5067
        %v5318 = vadd.f32 %v4610, %v5072
        %v5319 = vadd.f32 %v4611, %v5077
        %v5320 = vadd.f32 %v4612, %v5082
        %v5321 = vadd.f32 %v4613, %v5087
        %v5322 = vadd.f32 %v4614, %v5092
        %v5323 = vadd.f32 %v4615, %v5097
        %v5324 = vadd.f32 %v4616, %v5102
        %v5325 = vadd.f32 %v4617, %v5107
        %v5326 = vadd.f32 %v4618, %v5112
        %v5327 = vadd.f32 %v4619, %v5117
        %v5328 = vadd.f32 %v4620, %v5122
        %v5329 = vadd.f32 %v4621, %v5127
        %v5330 = vadd.f32 %v4622, %v5132
        %v5331 = vadd.f32 %v4623, %v5137
        %v5332 = vadd.f32 %v4624, %v5142
        %v5333 = vadd.f32 %v4625, %v5147
        %v5334 = vadd.f32 %v4626, %v5152
        %v5335 = vadd.f32 %v4627, %v5157
        %v5336 = vadd.f32 %v4628, %v5162
        %v5337 = vadd.f32 %v4629, %v5167
        %v5338 = vadd.f32 %v4630, %v5172
        %v5339 = vadd.f32 %v4631, %v5177
        %v5340 = vadd.f32 %v4632, %v5182
        %v5341 = vadd.f32 %v4633, %v5187
        %v5342 = vadd.f32 %v4634, %v5192
        %v5343 = vadd.f32 %v4635, %v5197
        %v5344 = vadd.f32 %v4636, %v5202
        %v5345 = vadd.f32 %v4637, %v5207
        %v5346 = vadd.f32 %v4638, %v5212
        %v5347 = vadd.f32 %v4639, %v5217
        %v5348 = vadd.f32 %v4640, %v5222
        %v5349 = vadd.f32 %v4641, %v5227
        %v5350 = vadd.f32 %v4642, %v5232
        %v5351 = vadd.f32 %v4643, %v5237
        %v5352 = vadd.f32 %v4644, %v5242
        %v5353 = vadd.f32 %v4645, %v5247
        %v5354 = vadd.f32 %v4646, %v5252
        %v5355 = vadd.f32 %v4647, %v5257
        %v5356 = vadd.f32 %v4648, %v5262
        %v5357 = vadd.f32 %v4649, %v5267
        %v5358 = vadd.f32 %v4650, %v5272
        %v5359 = vadd.f32 %v4651, %v5277
        %v5360 = vadd.f32 %v4652, %v5282
        %v5361 = vadd.f32 %v4653, %v5287
        %v5362 = vadd.f32 %v4654, %v5292
        %v5363 = vadd.f32 %v4655, %v5297
        %v5364 = vld [vmem:[%s4656 + $0x1] sm:$0xff]
        %v5365 = vld [vmem:[%s4656 + $0x9] sm:$0xff]
        %v5366 = vld [vmem:[%s4656 + $0x19] sm:$0xff]
        %v5367 = vld [vmem:[%s4656 + $0x21] sm:$0xff]
        %v5368 = vld [vmem:[%s4656 + $0x31] sm:$0xff]
        %v5369 = vld [vmem:[%s4656 + $0x39] sm:$0xff]
        %v5370 = vld [vmem:[%s4656 + $0x49] sm:$0xff]
        %v5371 = vld [vmem:[%s4656 + $0x51] sm:$0xff]
        %v5372 = vld [vmem:[%s4656 + $0x61] sm:$0xff]
        %v5373 = vld [vmem:[%s4656 + $0x69] sm:$0xff]
        %v5374 = vld [vmem:[%s4656 + $0x79] sm:$0xff]
        %v5375 = vld [vmem:[%s4656 + $0x81] sm:$0xff]
        %v5376 = vld [vmem:[%s4656 + $0x91] sm:$0xff]
        %v5377 = vld [vmem:[%s4656 + $0x99] sm:$0xff]
        %v5378 = vld [vmem:[%s4656 + $0xa9] sm:$0xff]
        %v5379 = vld [vmem:[%s4656 + $0xb1] sm:$0xff]
        %v5380 = vld [vmem:[%s4656 + $0xc1] sm:$0xff]
        %v5381 = vld [vmem:[%s4656 + $0xc9] sm:$0xff]
        %v5382 = vld [vmem:[%s4656 + $0xd9] sm:$0xff]
        %v5383 = vld [vmem:[%s4656 + $0xe1] sm:$0xff]
        %v5384 = vld [vmem:[%s4656 + $0xf1] sm:$0xff]
        %v5385 = vld [vmem:[%s4656 + $0xf9] sm:$0xff]
        %v5386 = vld [vmem:[%s4656 + $0x109] sm:$0xff]
        %v5387 = vld [vmem:[%s4656 + $0x111] sm:$0xff]
        %v5388 = vld [vmem:[%s4656 + $0x121] sm:$0xff]
        %v5389 = vld [vmem:[%s4656 + $0x129] sm:$0xff]
        %v5390 = vld [vmem:[%s4656 + $0x139] sm:$0xff]
        %v5391 = vld [vmem:[%s4656 + $0x141] sm:$0xff]
        %v5392 = vld [vmem:[%s4656 + $0x151] sm:$0xff]
        %v5393 = vld [vmem:[%s4656 + $0x159] sm:$0xff]
        %v5394 = vld [vmem:[%s4656 + $0x169] sm:$0xff]
        %v5395 = vld [vmem:[%s4656 + $0x171] sm:$0xff]
        %v5396 = vld [vmem:[%s4689 + $0x1] sm:$0xff]
        %v5397 = vld [vmem:[%s4689 + $0x9] sm:$0xff]
        %v5398 = vld [vmem:[%s4689 + $0x19] sm:$0xff]
        %v5399 = vld [vmem:[%s4689 + $0x21] sm:$0xff]
        %v5400 = vld [vmem:[%s4689 + $0x31] sm:$0xff]
        %v5401 = vld [vmem:[%s4689 + $0x39] sm:$0xff]
        %v5402 = vld [vmem:[%s4689 + $0x49] sm:$0xff]
        %v5403 = vld [vmem:[%s4689 + $0x51] sm:$0xff]
        %v5404 = vld [vmem:[%s4689 + $0x61] sm:$0xff]
        %v5405 = vld [vmem:[%s4689 + $0x69] sm:$0xff]
        %v5406 = vld [vmem:[%s4689 + $0x79] sm:$0xff]
        %v5407 = vld [vmem:[%s4689 + $0x81] sm:$0xff]
        %v5408 = vld [vmem:[%s4689 + $0x91] sm:$0xff]
        %v5409 = vld [vmem:[%s4689 + $0x99] sm:$0xff]
        %v5410 = vld [vmem:[%s4689 + $0xa9] sm:$0xff]
        %v5411 = vld [vmem:[%s4689 + $0xb1] sm:$0xff]
        %v5412 = vld [vmem:[%s4689 + $0xc1] sm:$0xff]
        %v5413 = vld [vmem:[%s4689 + $0xc9] sm:$0xff]
        %v5414 = vld [vmem:[%s4689 + $0xd9] sm:$0xff]
        %v5415 = vld [vmem:[%s4689 + $0xe1] sm:$0xff]
        %v5416 = vld [vmem:[%s4689 + $0xf1] sm:$0xff]
        %v5417 = vld [vmem:[%s4689 + $0xf9] sm:$0xff]
        %v5418 = vld [vmem:[%s4689 + $0x109] sm:$0xff]
        %v5419 = vld [vmem:[%s4689 + $0x111] sm:$0xff]
        %v5420 = vld [vmem:[%s4689 + $0x121] sm:$0xff]
        %v5421 = vld [vmem:[%s4689 + $0x129] sm:$0xff]
        %v5422 = vld [vmem:[%s4689 + $0x139] sm:$0xff]
        %v5423 = vld [vmem:[%s4689 + $0x141] sm:$0xff]
        %v5424 = vld [vmem:[%s4689 + $0x151] sm:$0xff]
        %v5425 = vld [vmem:[%s4689 + $0x159] sm:$0xff]
        %v5426 = vld [vmem:[%s4689 + $0x169] sm:$0xff]
        %v5427 = vld [vmem:[%s4689 + $0x171] sm:$0xff]
        %v5428 = vld [vmem:[%s2 + $0x38] sm:$0xff]
        %v5430 = vsel %vm335, %v5364, 0
        %v5433 = vsel %vm335, %v5365, 0
        %v5436 = vsel %vm335, %v5366, 0
        %v5439 = vsel %vm335, %v5367, 0
        %v5442 = vsel %vm335, %v5368, 0
        %v5445 = vsel %vm335, %v5369, 0
        %v5448 = vsel %vm335, %v5370, 0
        %v5451 = vsel %vm335, %v5371, 0
        %v5454 = vsel %vm335, %v5372, 0
        %v5457 = vsel %vm335, %v5373, 0
        %v5460 = vsel %vm335, %v5374, 0
        %v5463 = vsel %vm335, %v5375, 0
        %v5466 = vsel %vm335, %v5376, 0
        %v5469 = vsel %vm335, %v5377, 0
        %v5472 = vsel %vm335, %v5378, 0
        %v5475 = vsel %vm335, %v5379, 0
        %v5478 = vsel %vm335, %v5380, 0
        %v5481 = vsel %vm335, %v5381, 0
        %v5484 = vsel %vm335, %v5382, 0
        %v5487 = vsel %vm335, %v5383, 0
        %v5490 = vsel %vm335, %v5384, 0
        %v5493 = vsel %vm335, %v5385, 0
        %v5496 = vsel %vm335, %v5386, 0
        %v5499 = vsel %vm335, %v5387, 0
        %v5502 = vsel %vm335, %v5388, 0
        %v5505 = vsel %vm335, %v5389, 0
        %v5508 = vsel %vm335, %v5390, 0
        %v5511 = vsel %vm335, %v5391, 0
        %v5514 = vsel %vm335, %v5392, 0
        %v5517 = vsel %vm335, %v5393, 0
        %v5520 = vsel %vm335, %v5394, 0
        %v5523 = vsel %vm335, %v5395, 0
        %v5526 = vsel %vm335, %v5396, 0
        %v5529 = vsel %vm335, %v5397, 0
        %v5532 = vsel %vm335, %v5398, 0
        %v5535 = vsel %vm335, %v5399, 0
        %v5538 = vsel %vm335, %v5400, 0
        %v5541 = vsel %vm335, %v5401, 0
        %v5544 = vsel %vm335, %v5402, 0
        %v5547 = vsel %vm335, %v5403, 0
        %v5550 = vsel %vm335, %v5404, 0
        %v5553 = vsel %vm335, %v5405, 0
        %v5556 = vsel %vm335, %v5406, 0
        %v5559 = vsel %vm335, %v5407, 0
        %v5562 = vsel %vm335, %v5408, 0
        %v5565 = vsel %vm335, %v5409, 0
        %v5568 = vsel %vm335, %v5410, 0
        %v5571 = vsel %vm335, %v5411, 0
        %v5574 = vsel %vm335, %v5412, 0
        %v5577 = vsel %vm335, %v5413, 0
        %v5580 = vsel %vm335, %v5414, 0
        %v5583 = vsel %vm335, %v5415, 0
        %v5586 = vsel %vm335, %v5416, 0
        %v5589 = vsel %vm335, %v5417, 0
        %v5592 = vsel %vm335, %v5418, 0
        %v5595 = vsel %vm335, %v5419, 0
        %v5598 = vsel %vm335, %v5420, 0
        %v5601 = vsel %vm335, %v5421, 0
        %v5604 = vsel %vm335, %v5422, 0
        %v5607 = vsel %vm335, %v5423, 0
        %v5610 = vsel %vm335, %v5424, 0
        %v5613 = vsel %vm335, %v5425, 0
        %v5616 = vsel %vm335, %v5426, 0
        %v5619 = vsel %vm335, %v5427, 0
        %5621 = vmatprep.subr.mxu0 0.0
        %5622 = vmatpush1.msra.mxu0 %v5428
        %5623 = vmatprep.subr.mxu0 0.0
        %5624 = vmatpush1.msra.mxu0 0.0
        %5625 = vmatprep.subr.mxu0 0.0
        %5626 = vmatpush1.msra.mxu0 0.0
        %5627 = vmatprep.subr.mxu0 0.0
        %5628 = vmatpush1.msra.mxu0 0.0
        %5629 = vmatprep.subr.mxu0 0.0
        %5630 = vmatpush1.msra.mxu0 0.0
        %5631 = vmatprep.subr.mxu0 0.0
        %5632 = vmatpush1.msra.mxu0 0.0
        %5633 = vmatprep.subr.mxu0 0.0
        %5634 = vmatpush1.msra.mxu0 0.0
        %5635 = vmatprep.subr.mxu0 0.0
        %5636 = vmatpush1.msra.mxu0 0.0
        %5637 = vmatprep.subr.mxu0 0.0
        %5638 = vmatpush1.msra.mxu0 0.0
        %5639 = vmatprep.subr.mxu0 0.0
        %5640 = vmatpush1.msra.mxu0 0.0
        %5641 = vmatprep.subr.mxu0 0.0
        %5642 = vmatpush1.msra.mxu0 0.0
        %5643 = vmatprep.subr.mxu0 0.0
        %5644 = vmatpush1.msra.mxu0 0.0
        %5645 = vmatprep.subr.mxu0 0.0
        %5646 = vmatpush1.msra.mxu0 0.0
        %5647 = vmatprep.subr.mxu0 0.0
        %5648 = vmatpush1.msra.mxu0 0.0
        %5649 = vmatprep.subr.mxu0 0.0
        %5650 = vmatpush1.msra.mxu0 0.0
        %5651 = vmatprep.subr.mxu0 0.0
        %5652 = vmatpush1.msra.mxu0 0.0
        %5653 = vmatprep.subr.mxu0 0.0
        %5654 = vmatpush1.msra.mxu0 0.0
        %5655 = vmatprep.subr.mxu0 0.0
        %5656 = vmatpush1.msra.mxu0 0.0
        %5657 = vmatprep.subr.mxu0 0.0
        %5658 = vmatpush1.msra.mxu0 0.0
        %5659 = vmatprep.subr.mxu0 0.0
        %5660 = vmatpush1.msra.mxu0 0.0
        %5661 = vmatprep.subr.mxu0 0.0
        %5662 = vmatpush1.msra.mxu0 0.0
        %5663 = vmatprep.subr.mxu0 0.0
        %5664 = vmatpush1.msra.mxu0 0.0
        %5665 = vmatprep.subr.mxu0 0.0
        %5666 = vmatpush1.msra.mxu0 0.0
        %5667 = vmatprep.subr.mxu0 0.0
        %5668 = vmatpush1.msra.mxu0 0.0
        %5669 = vmatprep.subr.mxu0 0.0
        %5670 = vmatpush1.msra.mxu0 0.0
        %5671 = vmatprep.subr.mxu0 0.0
        %5672 = vmatpush1.msra.mxu0 0.0
        %5673 = vmatprep.subr.mxu0 0.0
        %5674 = vmatpush1.msra.mxu0 0.0
        %5675 = vmatprep.subr.mxu0 0.0
        %5676 = vmatpush1.msra.mxu0 0.0
        %5677 = vmatprep.subr.mxu0 0.0
        %5678 = vmatpush1.msra.mxu0 0.0
        %5679 = vmatprep.subr.mxu0 0.0
        %5680 = vmatpush1.msra.mxu0 0.0
        %5681 = vmatprep.subr.mxu0 0.0
        %5682 = vmatpush1.msra.mxu0 0.0
        %5683 = vmatprep.subr.mxu0 0.0
        %5684 = vmatpush1.msra.mxu0 0.0
        %5685 = vmatprep.mubr.f32.mxu0 0.0
        %5686 = vmatmul.mubr.f32.gmra.mrb[0].mxu0 %v5430
        %v5687 = vpop.f32.mrb[0].mxu0
        %v5688 = vadd.f32 0.0, %v5687
        %v5689 = vpop.f32.mrb[0].mxu0
        %5690 = vmatprep.mubr.f32.mxu0 0.0
        %5691 = vmatmul.mubr.f32.gmra.mrb[0].mxu0 %v5433
        %v5692 = vpop.f32.mrb[0].mxu0
        %v5693 = vadd.f32 0.0, %v5692
        %v5694 = vpop.f32.mrb[0].mxu0
        %5695 = vmatprep.mubr.f32.mxu0 0.0
        %5696 = vmatmul.mubr.f32.gmra.mrb[0].mxu0 %v5436
        %v5697 = vpop.f32.mrb[0].mxu0
        %v5698 = vadd.f32 0.0, %v5697
        %v5699 = vpop.f32.mrb[0].mxu0
        %5700 = vmatprep.mubr.f32.mxu0 0.0
        %5701 = vmatmul.mubr.f32.gmra.mrb[0].mxu0 %v5439
        %v5702 = vpop.f32.mrb[0].mxu0
        %v5703 = vadd.f32 0.0, %v5702
        %v5704 = vpop.f32.mrb[0].mxu0
        %5705 = vmatprep.mubr.f32.mxu0 0.0
        %5706 = vmatmul.mubr.f32.gmra.mrb[0].mxu0 %v5442
        %v5707 = vpop.f32.mrb[0].mxu0
        %v5708 = vadd.f32 0.0, %v5707
        %v5709 = vpop.f32.mrb[0].mxu0
        %5710 = vmatprep.mubr.f32.mxu0 0.0
        %5711 = vmatmul.mubr.f32.gmra.mrb[0].mxu0 %v5445
        %v5712 = vpop.f32.mrb[0].mxu0
        %v5713 = vadd.f32 0.0, %v5712
        %v5714 = vpop.f32.mrb[0].mxu0
        %5715 = vmatprep.mubr.f32.mxu0 0.0
        %5716 = vmatmul.mubr.f32.gmra.mrb[0].mxu0 %v5448
        %v5717 = vpop.f32.mrb[0].mxu0
        %v5718 = vadd.f32 0.0, %v5717
        %v5719 = vpop.f32.mrb[0].mxu0
        %5720 = vmatprep.mubr.f32.mxu0 0.0
        %5721 = vmatmul.mubr.f32.gmra.mrb[0].mxu0 %v5451
        %v5722 = vpop.f32.mrb[0].mxu0
        %v5723 = vadd.f32 0.0, %v5722
        %v5724 = vpop.f32.mrb[0].mxu0
        %5725 = vmatprep.mubr.f32.mxu0 0.0
        %5726 = vmatmul.mubr.f32.gmra.mrb[0].mxu0 %v5454
        %v5727 = vpop.f32.mrb[0].mxu0
        %v5728 = vadd.f32 0.0, %v5727
        %v5729 = vpop.f32.mrb[0].mxu0
        %5730 = vmatprep.mubr.f32.mxu0 0.0
        %5731 = vmatmul.mubr.f32.gmra.mrb[0].mxu0 %v5457
        %v5732 = vpop.f32.mrb[0].mxu0
        %v5733 = vadd.f32 0.0, %v5732
        %v5734 = vpop.f32.mrb[0].mxu0
        %5735 = vmatprep.mubr.f32.mxu0 0.0
        %5736 = vmatmul.mubr.f32.gmra.mrb[0].mxu0 %v5460
        %v5737 = vpop.f32.mrb[0].mxu0
        %v5738 = vadd.f32 0.0, %v5737
        %v5739 = vpop.f32.mrb[0].mxu0
        %5740 = vmatprep.mubr.f32.mxu0 0.0
        %5741 = vmatmul.mubr.f32.gmra.mrb[0].mxu0 %v5463
        %v5742 = vpop.f32.mrb[0].mxu0
        %v5743 = vadd.f32 0.0, %v5742
        %v5744 = vpop.f32.mrb[0].mxu0
        %5745 = vmatprep.mubr.f32.mxu0 0.0
        %5746 = vmatmul.mubr.f32.gmra.mrb[0].mxu0 %v5466
        %v5747 = vpop.f32.mrb[0].mxu0
        %v5748 = vadd.f32 0.0, %v5747
        %v5749 = vpop.f32.mrb[0].mxu0
        %5750 = vmatprep.mubr.f32.mxu0 0.0
        %5751 = vmatmul.mubr.f32.gmra.mrb[0].mxu0 %v5469
        %v5752 = vpop.f32.mrb[0].mxu0
        %v5753 = vadd.f32 0.0, %v5752
        %v5754 = vpop.f32.mrb[0].mxu0
        %5755 = vmatprep.mubr.f32.mxu0 0.0
        %5756 = vmatmul.mubr.f32.gmra.mrb[0].mxu0 %v5472
        %v5757 = vpop.f32.mrb[0].mxu0
        %v5758 = vadd.f32 0.0, %v5757
        %v5759 = vpop.f32.mrb[0].mxu0
        %5760 = vmatprep.mubr.f32.mxu0 0.0
        %5761 = vmatmul.mubr.f32.gmra.mrb[0].mxu0 %v5475
        %v5762 = vpop.f32.mrb[0].mxu0
        %v5763 = vadd.f32 0.0, %v5762
        %v5764 = vpop.f32.mrb[0].mxu0
        %5765 = vmatprep.mubr.f32.mxu0 0.0
        %5766 = vmatmul.mubr.f32.gmra.mrb[0].mxu0 %v5478
        %v5767 = vpop.f32.mrb[0].mxu0
        %v5768 = vadd.f32 0.0, %v5767
        %v5769 = vpop.f32.mrb[0].mxu0
        %5770 = vmatprep.mubr.f32.mxu0 0.0
        %5771 = vmatmul.mubr.f32.gmra.mrb[0].mxu0 %v5481
        %v5772 = vpop.f32.mrb[0].mxu0
        %v5773 = vadd.f32 0.0, %v5772
        %v5774 = vpop.f32.mrb[0].mxu0
        %5775 = vmatprep.mubr.f32.mxu0 0.0
        %5776 = vmatmul.mubr.f32.gmra.mrb[0].mxu0 %v5484
        %v5777 = vpop.f32.mrb[0].mxu0
        %v5778 = vadd.f32 0.0, %v5777
        %v5779 = vpop.f32.mrb[0].mxu0
        %5780 = vmatprep.mubr.f32.mxu0 0.0
        %5781 = vmatmul.mubr.f32.gmra.mrb[0].mxu0 %v5487
        %v5782 = vpop.f32.mrb[0].mxu0
        %v5783 = vadd.f32 0.0, %v5782
        %v5784 = vpop.f32.mrb[0].mxu0
        %5785 = vmatprep.mubr.f32.mxu0 0.0
        %5786 = vmatmul.mubr.f32.gmra.mrb[0].mxu0 %v5490
        %v5787 = vpop.f32.mrb[0].mxu0
        %v5788 = vadd.f32 0.0, %v5787
        %v5789 = vpop.f32.mrb[0].mxu0
        %5790 = vmatprep.mubr.f32.mxu0 0.0
        %5791 = vmatmul.mubr.f32.gmra.mrb[0].mxu0 %v5493
        %v5792 = vpop.f32.mrb[0].mxu0
        %v5793 = vadd.f32 0.0, %v5792
        %v5794 = vpop.f32.mrb[0].mxu0
        %5795 = vmatprep.mubr.f32.mxu0 0.0
        %5796 = vmatmul.mubr.f32.gmra.mrb[0].mxu0 %v5496
        %v5797 = vpop.f32.mrb[0].mxu0
        %v5798 = vadd.f32 0.0, %v5797
        %v5799 = vpop.f32.mrb[0].mxu0
        %5800 = vmatprep.mubr.f32.mxu0 0.0
        %5801 = vmatmul.mubr.f32.gmra.mrb[0].mxu0 %v5499
        %v5802 = vpop.f32.mrb[0].mxu0
        %v5803 = vadd.f32 0.0, %v5802
        %v5804 = vpop.f32.mrb[0].mxu0
        %5805 = vmatprep.mubr.f32.mxu0 0.0
        %5806 = vmatmul.mubr.f32.gmra.mrb[0].mxu0 %v5502
        %v5807 = vpop.f32.mrb[0].mxu0
        %v5808 = vadd.f32 0.0, %v5807
        %v5809 = vpop.f32.mrb[0].mxu0
        %5810 = vmatprep.mubr.f32.mxu0 0.0
        %5811 = vmatmul.mubr.f32.gmra.mrb[0].mxu0 %v5505
        %v5812 = vpop.f32.mrb[0].mxu0
        %v5813 = vadd.f32 0.0, %v5812
        %v5814 = vpop.f32.mrb[0].mxu0
        %5815 = vmatprep.mubr.f32.mxu0 0.0
        %5816 = vmatmul.mubr.f32.gmra.mrb[0].mxu0 %v5508
        %v5817 = vpop.f32.mrb[0].mxu0
        %v5818 = vadd.f32 0.0, %v5817
        %v5819 = vpop.f32.mrb[0].mxu0
        %5820 = vmatprep.mubr.f32.mxu0 0.0
        %5821 = vmatmul.mubr.f32.gmra.mrb[0].mxu0 %v5511
        %v5822 = vpop.f32.mrb[0].mxu0
        %v5823 = vadd.f32 0.0, %v5822
        %v5824 = vpop.f32.mrb[0].mxu0
        %5825 = vmatprep.mubr.f32.mxu0 0.0
        %5826 = vmatmul.mubr.f32.gmra.mrb[0].mxu0 %v5514
        %v5827 = vpop.f32.mrb[0].mxu0
        %v5828 = vadd.f32 0.0, %v5827
        %v5829 = vpop.f32.mrb[0].mxu0
        %5830 = vmatprep.mubr.f32.mxu0 0.0
        %5831 = vmatmul.mubr.f32.gmra.mrb[0].mxu0 %v5517
        %v5832 = vpop.f32.mrb[0].mxu0
        %v5833 = vadd.f32 0.0, %v5832
        %v5834 = vpop.f32.mrb[0].mxu0
        %5835 = vmatprep.mubr.f32.mxu0 0.0
        %5836 = vmatmul.mubr.f32.gmra.mrb[0].mxu0 %v5520
        %v5837 = vpop.f32.mrb[0].mxu0
        %v5838 = vadd.f32 0.0, %v5837
        %v5839 = vpop.f32.mrb[0].mxu0
        %5840 = vmatprep.mubr.f32.mxu0 0.0
        %5841 = vmatmul.mubr.f32.gmra.mrb[0].mxu0 %v5523
        %v5842 = vpop.f32.mrb[0].mxu0
        %v5843 = vadd.f32 0.0, %v5842
        %v5844 = vpop.f32.mrb[0].mxu0
        %5845 = vmatprep.mubr.f32.mxu0 0.0
        %5846 = vmatmul.mubr.f32.gmra.mrb[0].mxu0 %v5526
        %v5847 = vpop.f32.mrb[0].mxu0
        %v5848 = vadd.f32 0.0, %v5847
        %v5849 = vpop.f32.mrb[0].mxu0
        %5850 = vmatprep.mubr.f32.mxu0 0.0
        %5851 = vmatmul.mubr.f32.gmra.mrb[0].mxu0 %v5529
        %v5852 = vpop.f32.mrb[0].mxu0
        %v5853 = vadd.f32 0.0, %v5852
        %v5854 = vpop.f32.mrb[0].mxu0
        %5855 = vmatprep.mubr.f32.mxu0 0.0
        %5856 = vmatmul.mubr.f32.gmra.mrb[0].mxu0 %v5532
        %v5857 = vpop.f32.mrb[0].mxu0
        %v5858 = vadd.f32 0.0, %v5857
        %v5859 = vpop.f32.mrb[0].mxu0
        %5860 = vmatprep.mubr.f32.mxu0 0.0
        %5861 = vmatmul.mubr.f32.gmra.mrb[0].mxu0 %v5535
        %v5862 = vpop.f32.mrb[0].mxu0
        %v5863 = vadd.f32 0.0, %v5862
        %v5864 = vpop.f32.mrb[0].mxu0
        %5865 = vmatprep.mubr.f32.mxu0 0.0
        %5866 = vmatmul.mubr.f32.gmra.mrb[0].mxu0 %v5538
        %v5867 = vpop.f32.mrb[0].mxu0
        %v5868 = vadd.f32 0.0, %v5867
        %v5869 = vpop.f32.mrb[0].mxu0
        %5870 = vmatprep.mubr.f32.mxu0 0.0
        %5871 = vmatmul.mubr.f32.gmra.mrb[0].mxu0 %v5541
        %v5872 = vpop.f32.mrb[0].mxu0
        %v5873 = vadd.f32 0.0, %v5872
        %v5874 = vpop.f32.mrb[0].mxu0
        %5875 = vmatprep.mubr.f32.mxu0 0.0
        %5876 = vmatmul.mubr.f32.gmra.mrb[0].mxu0 %v5544
        %v5877 = vpop.f32.mrb[0].mxu0
        %v5878 = vadd.f32 0.0, %v5877
        %v5879 = vpop.f32.mrb[0].mxu0
        %5880 = vmatprep.mubr.f32.mxu0 0.0
        %5881 = vmatmul.mubr.f32.gmra.mrb[0].mxu0 %v5547
        %v5882 = vpop.f32.mrb[0].mxu0
        %v5883 = vadd.f32 0.0, %v5882
        %v5884 = vpop.f32.mrb[0].mxu0
        %5885 = vmatprep.mubr.f32.mxu0 0.0
        %5886 = vmatmul.mubr.f32.gmra.mrb[0].mxu0 %v5550
        %v5887 = vpop.f32.mrb[0].mxu0
        %v5888 = vadd.f32 0.0, %v5887
        %v5889 = vpop.f32.mrb[0].mxu0
        %5890 = vmatprep.mubr.f32.mxu0 0.0
        %5891 = vmatmul.mubr.f32.gmra.mrb[0].mxu0 %v5553
        %v5892 = vpop.f32.mrb[0].mxu0
        %v5893 = vadd.f32 0.0, %v5892
        %v5894 = vpop.f32.mrb[0].mxu0
        %5895 = vmatprep.mubr.f32.mxu0 0.0
        %5896 = vmatmul.mubr.f32.gmra.mrb[0].mxu0 %v5556
        %v5897 = vpop.f32.mrb[0].mxu0
        %v5898 = vadd.f32 0.0, %v5897
        %v5899 = vpop.f32.mrb[0].mxu0
        %5900 = vmatprep.mubr.f32.mxu0 0.0
        %5901 = vmatmul.mubr.f32.gmra.mrb[0].mxu0 %v5559
        %v5902 = vpop.f32.mrb[0].mxu0
        %v5903 = vadd.f32 0.0, %v5902
        %v5904 = vpop.f32.mrb[0].mxu0
        %5905 = vmatprep.mubr.f32.mxu0 0.0
        %5906 = vmatmul.mubr.f32.gmra.mrb[0].mxu0 %v5562
        %v5907 = vpop.f32.mrb[0].mxu0
        %v5908 = vadd.f32 0.0, %v5907
        %v5909 = vpop.f32.mrb[0].mxu0
        %5910 = vmatprep.mubr.f32.mxu0 0.0
        %5911 = vmatmul.mubr.f32.gmra.mrb[0].mxu0 %v5565
        %v5912 = vpop.f32.mrb[0].mxu0
        %v5913 = vadd.f32 0.0, %v5912
        %v5914 = vpop.f32.mrb[0].mxu0
        %5915 = vmatprep.mubr.f32.mxu0 0.0
        %5916 = vmatmul.mubr.f32.gmra.mrb[0].mxu0 %v5568
        %v5917 = vpop.f32.mrb[0].mxu0
        %v5918 = vadd.f32 0.0, %v5917
        %v5919 = vpop.f32.mrb[0].mxu0
        %5920 = vmatprep.mubr.f32.mxu0 0.0
        %5921 = vmatmul.mubr.f32.gmra.mrb[0].mxu0 %v5571
        %v5922 = vpop.f32.mrb[0].mxu0
        %v5923 = vadd.f32 0.0, %v5922
        %v5924 = vpop.f32.mrb[0].mxu0
        %5925 = vmatprep.mubr.f32.mxu0 0.0
        %5926 = vmatmul.mubr.f32.gmra.mrb[0].mxu0 %v5574
        %v5927 = vpop.f32.mrb[0].mxu0
        %v5928 = vadd.f32 0.0, %v5927
        %v5929 = vpop.f32.mrb[0].mxu0
        %5930 = vmatprep.mubr.f32.mxu0 0.0
        %5931 = vmatmul.mubr.f32.gmra.mrb[0].mxu0 %v5577
        %v5932 = vpop.f32.mrb[0].mxu0
        %v5933 = vadd.f32 0.0, %v5932
        %v5934 = vpop.f32.mrb[0].mxu0
        %5935 = vmatprep.mubr.f32.mxu0 0.0
        %5936 = vmatmul.mubr.f32.gmra.mrb[0].mxu0 %v5580
        %v5937 = vpop.f32.mrb[0].mxu0
        %v5938 = vadd.f32 0.0, %v5937
        %v5939 = vpop.f32.mrb[0].mxu0
        %5940 = vmatprep.mubr.f32.mxu0 0.0
        %5941 = vmatmul.mubr.f32.gmra.mrb[0].mxu0 %v5583
        %v5942 = vpop.f32.mrb[0].mxu0
        %v5943 = vadd.f32 0.0, %v5942
        %v5944 = vpop.f32.mrb[0].mxu0
        %5945 = vmatprep.mubr.f32.mxu0 0.0
        %5946 = vmatmul.mubr.f32.gmra.mrb[0].mxu0 %v5586
        %v5947 = vpop.f32.mrb[0].mxu0
        %v5948 = vadd.f32 0.0, %v5947
        %v5949 = vpop.f32.mrb[0].mxu0
        %5950 = vmatprep.mubr.f32.mxu0 0.0
        %5951 = vmatmul.mubr.f32.gmra.mrb[0].mxu0 %v5589
        %v5952 = vpop.f32.mrb[0].mxu0
        %v5953 = vadd.f32 0.0, %v5952
        %v5954 = vpop.f32.mrb[0].mxu0
        %5955 = vmatprep.mubr.f32.mxu0 0.0
        %5956 = vmatmul.mubr.f32.gmra.mrb[0].mxu0 %v5592
        %v5957 = vpop.f32.mrb[0].mxu0
        %v5958 = vadd.f32 0.0, %v5957
        %v5959 = vpop.f32.mrb[0].mxu0
        %5960 = vmatprep.mubr.f32.mxu0 0.0
        %5961 = vmatmul.mubr.f32.gmra.mrb[0].mxu0 %v5595
        %v5962 = vpop.f32.mrb[0].mxu0
        %v5963 = vadd.f32 0.0, %v5962
        %v5964 = vpop.f32.mrb[0].mxu0
        %5965 = vmatprep.mubr.f32.mxu0 0.0
        %5966 = vmatmul.mubr.f32.gmra.mrb[0].mxu0 %v5598
        %v5967 = vpop.f32.mrb[0].mxu0
        %v5968 = vadd.f32 0.0, %v5967
        %v5969 = vpop.f32.mrb[0].mxu0
        %5970 = vmatprep.mubr.f32.mxu0 0.0
        %5971 = vmatmul.mubr.f32.gmra.mrb[0].mxu0 %v5601
        %v5972 = vpop.f32.mrb[0].mxu0
        %v5973 = vadd.f32 0.0, %v5972
        %v5974 = vpop.f32.mrb[0].mxu0
        %5975 = vmatprep.mubr.f32.mxu0 0.0
        %5976 = vmatmul.mubr.f32.gmra.mrb[0].mxu0 %v5604
        %v5977 = vpop.f32.mrb[0].mxu0
        %v5978 = vadd.f32 0.0, %v5977
        %v5979 = vpop.f32.mrb[0].mxu0
        %5980 = vmatprep.mubr.f32.mxu0 0.0
        %5981 = vmatmul.mubr.f32.gmra.mrb[0].mxu0 %v5607
        %v5982 = vpop.f32.mrb[0].mxu0
        %v5983 = vadd.f32 0.0, %v5982
        %v5984 = vpop.f32.mrb[0].mxu0
        %5985 = vmatprep.mubr.f32.mxu0 0.0
        %5986 = vmatmul.mubr.f32.gmra.mrb[0].mxu0 %v5610
        %v5987 = vpop.f32.mrb[0].mxu0
        %v5988 = vadd.f32 0.0, %v5987
        %v5989 = vpop.f32.mrb[0].mxu0
        %5990 = vmatprep.mubr.f32.mxu0 0.0
        %5991 = vmatmul.mubr.f32.gmra.mrb[0].mxu0 %v5613
        %v5992 = vpop.f32.mrb[0].mxu0
        %v5993 = vadd.f32 0.0, %v5992
        %v5994 = vpop.f32.mrb[0].mxu0
        %5995 = vmatprep.mubr.f32.mxu0 0.0
        %5996 = vmatmul.mubr.f32.gmra.mrb[0].mxu0 %v5616
        %v5997 = vpop.f32.mrb[0].mxu0
        %v5998 = vadd.f32 0.0, %v5997
        %v5999 = vpop.f32.mrb[0].mxu0
        %6000 = vmatprep.mubr.f32.mxu0 0.0
        %6001 = vmatmul.mubr.f32.gmra.mrb[0].mxu0 %v5619
        %v6002 = vpop.f32.mrb[0].mxu0
        %v6003 = vadd.f32 0.0, %v6002
        %v6004 = vpop.f32.mrb[0].mxu0
        %6005 = vdwg.mxu0
        %v6006 = vadd.f32 %v5300, %v5688
        %v6007 = vadd.f32 %v5301, %v5693
        %v6008 = vadd.f32 %v5302, %v5698
        %v6009 = vadd.f32 %v5303, %v5703
        %v6010 = vadd.f32 %v5304, %v5708
        %v6011 = vadd.f32 %v5305, %v5713
        %v6012 = vadd.f32 %v5306, %v5718
        %v6013 = vadd.f32 %v5307, %v5723
        %v6014 = vadd.f32 %v5308, %v5728
        %v6015 = vadd.f32 %v5309, %v5733
        %v6016 = vadd.f32 %v5310, %v5738
        %v6017 = vadd.f32 %v5311, %v5743
        %v6018 = vadd.f32 %v5312, %v5748
        %v6019 = vadd.f32 %v5313, %v5753
        %v6020 = vadd.f32 %v5314, %v5758
        %v6021 = vadd.f32 %v5315, %v5763
        %v6022 = vadd.f32 %v5316, %v5768
        %v6023 = vadd.f32 %v5317, %v5773
        %v6024 = vadd.f32 %v5318, %v5778
        %v6025 = vadd.f32 %v5319, %v5783
        %v6026 = vadd.f32 %v5320, %v5788
        %v6027 = vadd.f32 %v5321, %v5793
        %v6028 = vadd.f32 %v5322, %v5798
        %v6029 = vadd.f32 %v5323, %v5803
        %v6030 = vadd.f32 %v5324, %v5808
        %v6031 = vadd.f32 %v5325, %v5813
        %v6032 = vadd.f32 %v5326, %v5818
        %v6033 = vadd.f32 %v5327, %v5823
        %v6034 = vadd.f32 %v5328, %v5828
        %v6035 = vadd.f32 %v5329, %v5833
        %v6036 = vadd.f32 %v5330, %v5838
        %v6037 = vadd.f32 %v5331, %v5843
        %v6038 = vadd.f32 %v5332, %v5848
        %v6039 = vadd.f32 %v5333, %v5853
        %v6040 = vadd.f32 %v5334, %v5858
        %v6041 = vadd.f32 %v5335, %v5863
        %v6042 = vadd.f32 %v5336, %v5868
        %v6043 = vadd.f32 %v5337, %v5873
        %v6044 = vadd.f32 %v5338, %v5878
        %v6045 = vadd.f32 %v5339, %v5883
        %v6046 = vadd.f32 %v5340, %v5888
        %v6047 = vadd.f32 %v5341, %v5893
        %v6048 = vadd.f32 %v5342, %v5898
        %v6049 = vadd.f32 %v5343, %v5903
        %v6050 = vadd.f32 %v5344, %v5908
        %v6051 = vadd.f32 %v5345, %v5913
        %v6052 = vadd.f32 %v5346, %v5918
        %v6053 = vadd.f32 %v5347, %v5923
        %v6054 = vadd.f32 %v5348, %v5928
        %v6055 = vadd.f32 %v5349, %v5933
        %v6056 = vadd.f32 %v5350, %v5938
        %v6057 = vadd.f32 %v5351, %v5943
        %v6058 = vadd.f32 %v5352, %v5948
        %v6059 = vadd.f32 %v5353, %v5953
        %v6060 = vadd.f32 %v5354, %v5958
        %v6061 = vadd.f32 %v5355, %v5963
        %v6062 = vadd.f32 %v5356, %v5968
        %v6063 = vadd.f32 %v5357, %v5973
        %v6064 = vadd.f32 %v5358, %v5978
        %v6065 = vadd.f32 %v5359, %v5983
        %v6066 = vadd.f32 %v5360, %v5988
        %v6067 = vadd.f32 %v5361, %v5993
        %v6068 = vadd.f32 %v5362, %v5998
        %v6069 = vadd.f32 %v5363, %v6003
        %v6070 = vld [vmem:[%s4656 + $0x2] sm:$0xff]
        %v6071 = vld [vmem:[%s4656 + $0xa] sm:$0xff]
        %v6072 = vld [vmem:[%s4656 + $0x1a] sm:$0xff]
        %v6073 = vld [vmem:[%s4656 + $0x22] sm:$0xff]
        %v6074 = vld [vmem:[%s4656 + $0x32] sm:$0xff]
        %v6075 = vld [vmem:[%s4656 + $0x3a] sm:$0xff]
        %v6076 = vld [vmem:[%s4656 + $0x4a] sm:$0xff]
        %v6077 = vld [vmem:[%s4656 + $0x52] sm:$0xff]
        %v6078 = vld [vmem:[%s4656 + $0x62] sm:$0xff]
        %v6079 = vld [vmem:[%s4656 + $0x6a] sm:$0xff]
        %v6080 = vld [vmem:[%s4656 + $0x7a] sm:$0xff]
        %v6081 = vld [vmem:[%s4656 + $0x82] sm:$0xff]
        %v6082 = vld [vmem:[%s4656 + $0x92] sm:$0xff]
        %v6083 = vld [vmem:[%s4656 + $0x9a] sm:$0xff]
        %v6084 = vld [vmem:[%s4656 + $0xaa] sm:$0xff]
        %v6085 = vld [vmem:[%s4656 + $0xb2] sm:$0xff]
        %v6086 = vld [vmem:[%s4656 + $0xc2] sm:$0xff]
        %v6087 = vld [vmem:[%s4656 + $0xca] sm:$0xff]
        %v6088 = vld [vmem:[%s4656 + $0xda] sm:$0xff]
        %v6089 = vld [vmem:[%s4656 + $0xe2] sm:$0xff]
        %v6090 = vld [vmem:[%s4656 + $0xf2] sm:$0xff]
        %v6091 = vld [vmem:[%s4656 + $0xfa] sm:$0xff]
        %v6092 = vld [vmem:[%s4656 + $0x10a] sm:$0xff]
        %v6093 = vld [vmem:[%s4656 + $0x112] sm:$0xff]
        %v6094 = vld [vmem:[%s4656 + $0x122] sm:$0xff]
        %v6095 = vld [vmem:[%s4656 + $0x12a] sm:$0xff]
        %v6096 = vld [vmem:[%s4656 + $0x13a] sm:$0xff]
        %v6097 = vld [vmem:[%s4656 + $0x142] sm:$0xff]
        %v6098 = vld [vmem:[%s4656 + $0x152] sm:$0xff]
        %v6099 = vld [vmem:[%s4656 + $0x15a] sm:$0xff]
        %v6100 = vld [vmem:[%s4656 + $0x16a] sm:$0xff]
        %v6101 = vld [vmem:[%s4656 + $0x172] sm:$0xff]
        %v6102 = vld [vmem:[%s4689 + $0x2] sm:$0xff]
        %v6103 = vld [vmem:[%s4689 + $0xa] sm:$0xff]
        %v6104 = vld [vmem:[%s4689 + $0x1a] sm:$0xff]
        %v6105 = vld [vmem:[%s4689 + $0x22] sm:$0xff]
        %v6106 = vld [vmem:[%s4689 + $0x32] sm:$0xff]
        %v6107 = vld [vmem:[%s4689 + $0x3a] sm:$0xff]
        %v6108 = vld [vmem:[%s4689 + $0x4a] sm:$0xff]
        %v6109 = vld [vmem:[%s4689 + $0x52] sm:$0xff]
        %v6110 = vld [vmem:[%s4689 + $0x62] sm:$0xff]
        %v6111 = vld [vmem:[%s4689 + $0x6a] sm:$0xff]
        %v6112 = vld [vmem:[%s4689 + $0x7a] sm:$0xff]
        %v6113 = vld [vmem:[%s4689 + $0x82] sm:$0xff]
        %v6114 = vld [vmem:[%s4689 + $0x92] sm:$0xff]
        %v6115 = vld [vmem:[%s4689 + $0x9a] sm:$0xff]
        %v6116 = vld [vmem:[%s4689 + $0xaa] sm:$0xff]
        %v6117 = vld [vmem:[%s4689 + $0xb2] sm:$0xff]
        %v6118 = vld [vmem:[%s4689 + $0xc2] sm:$0xff]
        %v6119 = vld [vmem:[%s4689 + $0xca] sm:$0xff]
        %v6120 = vld [vmem:[%s4689 + $0xda] sm:$0xff]
        %v6121 = vld [vmem:[%s4689 + $0xe2] sm:$0xff]
        %v6122 = vld [vmem:[%s4689 + $0xf2] sm:$0xff]
        %v6123 = vld [vmem:[%s4689 + $0xfa] sm:$0xff]
        %v6124 = vld [vmem:[%s4689 + $0x10a] sm:$0xff]
        %v6125 = vld [vmem:[%s4689 + $0x112] sm:$0xff]
        %v6126 = vld [vmem:[%s4689 + $0x122] sm:$0xff]
        %v6127 = vld [vmem:[%s4689 + $0x12a] sm:$0xff]
        %v6128 = vld [vmem:[%s4689 + $0x13a] sm:$0xff]
        %v6129 = vld [vmem:[%s4689 + $0x142] sm:$0xff]
        %v6130 = vld [vmem:[%s4689 + $0x152] sm:$0xff]
        %v6131 = vld [vmem:[%s4689 + $0x15a] sm:$0xff]
        %v6132 = vld [vmem:[%s4689 + $0x16a] sm:$0xff]
        %v6133 = vld [vmem:[%s4689 + $0x172] sm:$0xff]
        %v6134 = vld [vmem:[%s2 + $0x40] sm:$0xff]
        %v6136 = vsel %vm335, %v6070, 0
        %v6139 = vsel %vm335, %v6071, 0
        %v6142 = vsel %vm335, %v6072, 0
        %v6145 = vsel %vm335, %v6073, 0
        %v6148 = vsel %vm335, %v6074, 0
        %v6151 = vsel %vm335, %v6075, 0
        %v6154 = vsel %vm335, %v6076, 0
        %v6157 = vsel %vm335, %v6077, 0
        %v6160 = vsel %vm335, %v6078, 0
        %v6163 = vsel %vm335, %v6079, 0
        %v6166 = vsel %vm335, %v6080, 0
        %v6169 = vsel %vm335, %v6081, 0
        %v6172 = vsel %vm335, %v6082, 0
        %v6175 = vsel %vm335, %v6083, 0
        %v6178 = vsel %vm335, %v6084, 0
        %v6181 = vsel %vm335, %v6085, 0
        %v6184 = vsel %vm335, %v6086, 0
        %v6187 = vsel %vm335, %v6087, 0
        %v6190 = vsel %vm335, %v6088, 0
        %v6193 = vsel %vm335, %v6089, 0
        %v6196 = vsel %vm335, %v6090, 0
        %v6199 = vsel %vm335, %v6091, 0
        %v6202 = vsel %vm335, %v6092, 0
        %v6205 = vsel %vm335, %v6093, 0
        %v6208 = vsel %vm335, %v6094, 0
        %v6211 = vsel %vm335, %v6095, 0
        %v6214 = vsel %vm335, %v6096, 0
        %v6217 = vsel %vm335, %v6097, 0
        %v6220 = vsel %vm335, %v6098, 0
        %v6223 = vsel %vm335, %v6099, 0
        %v6226 = vsel %vm335, %v6100, 0
        %v6229 = vsel %vm335, %v6101, 0
        %v6232 = vsel %vm335, %v6102, 0
        %v6235 = vsel %vm335, %v6103, 0
        %v6238 = vsel %vm335, %v6104, 0
        %v6241 = vsel %vm335, %v6105, 0
        %v6244 = vsel %vm335, %v6106, 0
        %v6247 = vsel %vm335, %v6107, 0
        %v6250 = vsel %vm335, %v6108, 0
        %v6253 = vsel %vm335, %v6109, 0
        %v6256 = vsel %vm335, %v6110, 0
        %v6259 = vsel %vm335, %v6111, 0
        %v6262 = vsel %vm335, %v6112, 0
        %v6265 = vsel %vm335, %v6113, 0
        %v6268 = vsel %vm335, %v6114, 0
        %v6271 = vsel %vm335, %v6115, 0
        %v6274 = vsel %vm335, %v6116, 0
        %v6277 = vsel %vm335, %v6117, 0
        %v6280 = vsel %vm335, %v6118, 0
        %v6283 = vsel %vm335, %v6119, 0
        %v6286 = vsel %vm335, %v6120, 0
        %v6289 = vsel %vm335, %v6121, 0
        %v6292 = vsel %vm335, %v6122, 0
        %v6295 = vsel %vm335, %v6123, 0
        %v6298 = vsel %vm335, %v6124, 0
        %v6301 = vsel %vm335, %v6125, 0
        %v6304 = vsel %vm335, %v6126, 0
        %v6307 = vsel %vm335, %v6127, 0
        %v6310 = vsel %vm335, %v6128, 0
        %v6313 = vsel %vm335, %v6129, 0
        %v6316 = vsel %vm335, %v6130, 0
        %v6319 = vsel %vm335, %v6131, 0
        %v6322 = vsel %vm335, %v6132, 0
        %v6325 = vsel %vm335, %v6133, 0
        %6327 = vmatprep.subr.mxu0 0.0
        %6328 = vmatpush1.msra.mxu0 %v6134
        %6329 = vmatprep.subr.mxu0 0.0
        %6330 = vmatpush1.msra.mxu0 0.0
        %6331 = vmatprep.subr.mxu0 0.0
        %6332 = vmatpush1.msra.mxu0 0.0
        %6333 = vmatprep.subr.mxu0 0.0
        %6334 = vmatpush1.msra.mxu0 0.0
        %6335 = vmatprep.subr.mxu0 0.0
        %6336 = vmatpush1.msra.mxu0 0.0
        %6337 = vmatprep.subr.mxu0 0.0
        %6338 = vmatpush1.msra.mxu0 0.0
        %6339 = vmatprep.subr.mxu0 0.0
        %6340 = vmatpush1.msra.mxu0 0.0
        %6341 = vmatprep.subr.mxu0 0.0
        %6342 = vmatpush1.msra.mxu0 0.0
        %6343 = vmatprep.subr.mxu0 0.0
        %6344 = vmatpush1.msra.mxu0 0.0
        %6345 = vmatprep.subr.mxu0 0.0
        %6346 = vmatpush1.msra.mxu0 0.0
        %6347 = vmatprep.subr.mxu0 0.0
        %6348 = vmatpush1.msra.mxu0 0.0
        %6349 = vmatprep.subr.mxu0 0.0
        %6350 = vmatpush1.msra.mxu0 0.0
        %6351 = vmatprep.subr.mxu0 0.0
        %6352 = vmatpush1.msra.mxu0 0.0
        %6353 = vmatprep.subr.mxu0 0.0
        %6354 = vmatpush1.msra.mxu0 0.0
        %6355 = vmatprep.subr.mxu0 0.0
        %6356 = vmatpush1.msra.mxu0 0.0
        %6357 = vmatprep.subr.mxu0 0.0
        %6358 = vmatpush1.msra.mxu0 0.0
        %6359 = vmatprep.subr.mxu0 0.0
        %6360 = vmatpush1.msra.mxu0 0.0
        %6361 = vmatprep.subr.mxu0 0.0
        %6362 = vmatpush1.msra.mxu0 0.0
        %6363 = vmatprep.subr.mxu0 0.0
        %6364 = vmatpush1.msra.mxu0 0.0
        %6365 = vmatprep.subr.mxu0 0.0
        %6366 = vmatpush1.msra.mxu0 0.0
        %6367 = vmatprep.subr.mxu0 0.0
        %6368 = vmatpush1.msra.mxu0 0.0
        %6369 = vmatprep.subr.mxu0 0.0
        %6370 = vmatpush1.msra.mxu0 0.0
        %6371 = vmatprep.subr.mxu0 0.0
        %6372 = vmatpush1.msra.mxu0 0.0
        %6373 = vmatprep.subr.mxu0 0.0
        %6374 = vmatpush1.msra.mxu0 0.0
        %6375 = vmatprep.subr.mxu0 0.0
        %6376 = vmatpush1.msra.mxu0 0.0
        %6377 = vmatprep.subr.mxu0 0.0
        %6378 = vmatpush1.msra.mxu0 0.0
        %6379 = vmatprep.subr.mxu0 0.0
        %6380 = vmatpush1.msra.mxu0 0.0
        %6381 = vmatprep.subr.mxu0 0.0
        %6382 = vmatpush1.msra.mxu0 0.0
        %6383 = vmatprep.subr.mxu0 0.0
        %6384 = vmatpush1.msra.mxu0 0.0
        %6385 = vmatprep.subr.mxu0 0.0
        %6386 = vmatpush1.msra.mxu0 0.0
        %6387 = vmatprep.subr.mxu0 0.0
        %6388 = vmatpush1.msra.mxu0 0.0
        %6389 = vmatprep.subr.mxu0 0.0
        %6390 = vmatpush1.msra.mxu0 0.0
        %6391 = vmatprep.mubr.f32.mxu0 0.0
        %6392 = vmatmul.mubr.f32.gmra.mrb[0].mxu0 %v6136
        %v6393 = vpop.f32.mrb[0].mxu0
        %v6394 = vadd.f32 0.0, %v6393
        %v6395 = vpop.f32.mrb[0].mxu0
        %6396 = vmatprep.mubr.f32.mxu0 0.0
        %6397 = vmatmul.mubr.f32.gmra.mrb[0].mxu0 %v6139
        %v6398 = vpop.f32.mrb[0].mxu0
        %v6399 = vadd.f32 0.0, %v6398
        %v6400 = vpop.f32.mrb[0].mxu0
        %6401 = vmatprep.mubr.f32.mxu0 0.0
        %6402 = vmatmul.mubr.f32.gmra.mrb[0].mxu0 %v6142
        %v6403 = vpop.f32.mrb[0].mxu0
        %v6404 = vadd.f32 0.0, %v6403
        %v6405 = vpop.f32.mrb[0].mxu0
        %6406 = vmatprep.mubr.f32.mxu0 0.0
        %6407 = vmatmul.mubr.f32.gmra.mrb[0].mxu0 %v6145
        %v6408 = vpop.f32.mrb[0].mxu0
        %v6409 = vadd.f32 0.0, %v6408
        %v6410 = vpop.f32.mrb[0].mxu0
        %6411 = vmatprep.mubr.f32.mxu0 0.0
        %6412 = vmatmul.mubr.f32.gmra.mrb[0].mxu0 %v6148
        %v6413 = vpop.f32.mrb[0].mxu0
        %v6414 = vadd.f32 0.0, %v6413
        %v6415 = vpop.f32.mrb[0].mxu0
        %6416 = vmatprep.mubr.f32.mxu0 0.0
        %6417 = vmatmul.mubr.f32.gmra.mrb[0].mxu0 %v6151
        %v6418 = vpop.f32.mrb[0].mxu0
        %v6419 = vadd.f32 0.0, %v6418
        %v6420 = vpop.f32.mrb[0].mxu0
        %6421 = vmatprep.mubr.f32.mxu0 0.0
        %6422 = vmatmul.mubr.f32.gmra.mrb[0].mxu0 %v6154
        %v6423 = vpop.f32.mrb[0].mxu0
        %v6424 = vadd.f32 0.0, %v6423
        %v6425 = vpop.f32.mrb[0].mxu0
        %6426 = vmatprep.mubr.f32.mxu0 0.0
        %6427 = vmatmul.mubr.f32.gmra.mrb[0].mxu0 %v6157
        %v6428 = vpop.f32.mrb[0].mxu0
        %v6429 = vadd.f32 0.0, %v6428
        %v6430 = vpop.f32.mrb[0].mxu0
        %6431 = vmatprep.mubr.f32.mxu0 0.0
        %6432 = vmatmul.mubr.f32.gmra.mrb[0].mxu0 %v6160
        %v6433 = vpop.f32.mrb[0].mxu0
        %v6434 = vadd.f32 0.0, %v6433
        %v6435 = vpop.f32.mrb[0].mxu0
        %6436 = vmatprep.mubr.f32.mxu0 0.0
        %6437 = vmatmul.mubr.f32.gmra.mrb[0].mxu0 %v6163
        %v6438 = vpop.f32.mrb[0].mxu0
        %v6439 = vadd.f32 0.0, %v6438
        %v6440 = vpop.f32.mrb[0].mxu0
        %6441 = vmatprep.mubr.f32.mxu0 0.0
        %6442 = vmatmul.mubr.f32.gmra.mrb[0].mxu0 %v6166
        %v6443 = vpop.f32.mrb[0].mxu0
        %v6444 = vadd.f32 0.0, %v6443
        %v6445 = vpop.f32.mrb[0].mxu0
        %6446 = vmatprep.mubr.f32.mxu0 0.0
        %6447 = vmatmul.mubr.f32.gmra.mrb[0].mxu0 %v6169
        %v6448 = vpop.f32.mrb[0].mxu0
        %v6449 = vadd.f32 0.0, %v6448
        %v6450 = vpop.f32.mrb[0].mxu0
        %6451 = vmatprep.mubr.f32.mxu0 0.0
        %6452 = vmatmul.mubr.f32.gmra.mrb[0].mxu0 %v6172
        %v6453 = vpop.f32.mrb[0].mxu0
        %v6454 = vadd.f32 0.0, %v6453
        %v6455 = vpop.f32.mrb[0].mxu0
        %6456 = vmatprep.mubr.f32.mxu0 0.0
        %6457 = vmatmul.mubr.f32.gmra.mrb[0].mxu0 %v6175
        %v6458 = vpop.f32.mrb[0].mxu0
        %v6459 = vadd.f32 0.0, %v6458
        %v6460 = vpop.f32.mrb[0].mxu0
        %6461 = vmatprep.mubr.f32.mxu0 0.0
        %6462 = vmatmul.mubr.f32.gmra.mrb[0].mxu0 %v6178
        %v6463 = vpop.f32.mrb[0].mxu0
        %v6464 = vadd.f32 0.0, %v6463
        %v6465 = vpop.f32.mrb[0].mxu0
        %6466 = vmatprep.mubr.f32.mxu0 0.0
        %6467 = vmatmul.mubr.f32.gmra.mrb[0].mxu0 %v6181
        %v6468 = vpop.f32.mrb[0].mxu0
        %v6469 = vadd.f32 0.0, %v6468
        %v6470 = vpop.f32.mrb[0].mxu0
        %6471 = vmatprep.mubr.f32.mxu0 0.0
        %6472 = vmatmul.mubr.f32.gmra.mrb[0].mxu0 %v6184
        %v6473 = vpop.f32.mrb[0].mxu0
        %v6474 = vadd.f32 0.0, %v6473
        %v6475 = vpop.f32.mrb[0].mxu0
        %6476 = vmatprep.mubr.f32.mxu0 0.0
        %6477 = vmatmul.mubr.f32.gmra.mrb[0].mxu0 %v6187
        %v6478 = vpop.f32.mrb[0].mxu0
        %v6479 = vadd.f32 0.0, %v6478
        %v6480 = vpop.f32.mrb[0].mxu0
        %6481 = vmatprep.mubr.f32.mxu0 0.0
        %6482 = vmatmul.mubr.f32.gmra.mrb[0].mxu0 %v6190
        %v6483 = vpop.f32.mrb[0].mxu0
        %v6484 = vadd.f32 0.0, %v6483
        %v6485 = vpop.f32.mrb[0].mxu0
        %6486 = vmatprep.mubr.f32.mxu0 0.0
        %6487 = vmatmul.mubr.f32.gmra.mrb[0].mxu0 %v6193
        %v6488 = vpop.f32.mrb[0].mxu0
        %v6489 = vadd.f32 0.0, %v6488
        %v6490 = vpop.f32.mrb[0].mxu0
        %6491 = vmatprep.mubr.f32.mxu0 0.0
        %6492 = vmatmul.mubr.f32.gmra.mrb[0].mxu0 %v6196
        %v6493 = vpop.f32.mrb[0].mxu0
        %v6494 = vadd.f32 0.0, %v6493
        %v6495 = vpop.f32.mrb[0].mxu0
        %6496 = vmatprep.mubr.f32.mxu0 0.0
        %6497 = vmatmul.mubr.f32.gmra.mrb[0].mxu0 %v6199
        %v6498 = vpop.f32.mrb[0].mxu0
        %v6499 = vadd.f32 0.0, %v6498
        %v6500 = vpop.f32.mrb[0].mxu0
        %6501 = vmatprep.mubr.f32.mxu0 0.0
        %6502 = vmatmul.mubr.f32.gmra.mrb[0].mxu0 %v6202
        %v6503 = vpop.f32.mrb[0].mxu0
        %v6504 = vadd.f32 0.0, %v6503
        %v6505 = vpop.f32.mrb[0].mxu0
        %6506 = vmatprep.mubr.f32.mxu0 0.0
        %6507 = vmatmul.mubr.f32.gmra.mrb[0].mxu0 %v6205
        %v6508 = vpop.f32.mrb[0].mxu0
        %v6509 = vadd.f32 0.0, %v6508
        %v6510 = vpop.f32.mrb[0].mxu0
        %6511 = vmatprep.mubr.f32.mxu0 0.0
        %6512 = vmatmul.mubr.f32.gmra.mrb[0].mxu0 %v6208
        %v6513 = vpop.f32.mrb[0].mxu0
        %v6514 = vadd.f32 0.0, %v6513
        %v6515 = vpop.f32.mrb[0].mxu0
        %6516 = vmatprep.mubr.f32.mxu0 0.0
        %6517 = vmatmul.mubr.f32.gmra.mrb[0].mxu0 %v6211
        %v6518 = vpop.f32.mrb[0].mxu0
        %v6519 = vadd.f32 0.0, %v6518
        %v6520 = vpop.f32.mrb[0].mxu0
        %6521 = vmatprep.mubr.f32.mxu0 0.0
        %6522 = vmatmul.mubr.f32.gmra.mrb[0].mxu0 %v6214
        %v6523 = vpop.f32.mrb[0].mxu0
        %v6524 = vadd.f32 0.0, %v6523
        %v6525 = vpop.f32.mrb[0].mxu0
        %6526 = vmatprep.mubr.f32.mxu0 0.0
        %6527 = vmatmul.mubr.f32.gmra.mrb[0].mxu0 %v6217
        %v6528 = vpop.f32.mrb[0].mxu0
        %v6529 = vadd.f32 0.0, %v6528
        %v6530 = vpop.f32.mrb[0].mxu0
        %6531 = vmatprep.mubr.f32.mxu0 0.0
        %6532 = vmatmul.mubr.f32.gmra.mrb[0].mxu0 %v6220
        %v6533 = vpop.f32.mrb[0].mxu0
        %v6534 = vadd.f32 0.0, %v6533
        %v6535 = vpop.f32.mrb[0].mxu0
        %6536 = vmatprep.mubr.f32.mxu0 0.0
        %6537 = vmatmul.mubr.f32.gmra.mrb[0].mxu0 %v6223
        %v6538 = vpop.f32.mrb[0].mxu0
        %v6539 = vadd.f32 0.0, %v6538
        %v6540 = vpop.f32.mrb[0].mxu0
        %6541 = vmatprep.mubr.f32.mxu0 0.0
        %6542 = vmatmul.mubr.f32.gmra.mrb[0].mxu0 %v6226
        %v6543 = vpop.f32.mrb[0].mxu0
        %v6544 = vadd.f32 0.0, %v6543
        %v6545 = vpop.f32.mrb[0].mxu0
        %6546 = vmatprep.mubr.f32.mxu0 0.0
        %6547 = vmatmul.mubr.f32.gmra.mrb[0].mxu0 %v6229
        %v6548 = vpop.f32.mrb[0].mxu0
        %v6549 = vadd.f32 0.0, %v6548
        %v6550 = vpop.f32.mrb[0].mxu0
        %6551 = vmatprep.mubr.f32.mxu0 0.0
        %6552 = vmatmul.mubr.f32.gmra.mrb[0].mxu0 %v6232
        %v6553 = vpop.f32.mrb[0].mxu0
        %v6554 = vadd.f32 0.0, %v6553
        %v6555 = vpop.f32.mrb[0].mxu0
        %6556 = vmatprep.mubr.f32.mxu0 0.0
        %6557 = vmatmul.mubr.f32.gmra.mrb[0].mxu0 %v6235
        %v6558 = vpop.f32.mrb[0].mxu0
        %v6559 = vadd.f32 0.0, %v6558
        %v6560 = vpop.f32.mrb[0].mxu0
        %6561 = vmatprep.mubr.f32.mxu0 0.0
        %6562 = vmatmul.mubr.f32.gmra.mrb[0].mxu0 %v6238
        %v6563 = vpop.f32.mrb[0].mxu0
        %v6564 = vadd.f32 0.0, %v6563
        %v6565 = vpop.f32.mrb[0].mxu0
        %6566 = vmatprep.mubr.f32.mxu0 0.0
        %6567 = vmatmul.mubr.f32.gmra.mrb[0].mxu0 %v6241
        %v6568 = vpop.f32.mrb[0].mxu0
        %v6569 = vadd.f32 0.0, %v6568
        %v6570 = vpop.f32.mrb[0].mxu0
        %6571 = vmatprep.mubr.f32.mxu0 0.0
        %6572 = vmatmul.mubr.f32.gmra.mrb[0].mxu0 %v6244
        %v6573 = vpop.f32.mrb[0].mxu0
        %v6574 = vadd.f32 0.0, %v6573
        %v6575 = vpop.f32.mrb[0].mxu0
        %6576 = vmatprep.mubr.f32.mxu0 0.0
        %6577 = vmatmul.mubr.f32.gmra.mrb[0].mxu0 %v6247
        %v6578 = vpop.f32.mrb[0].mxu0
        %v6579 = vadd.f32 0.0, %v6578
        %v6580 = vpop.f32.mrb[0].mxu0
        %6581 = vmatprep.mubr.f32.mxu0 0.0
        %6582 = vmatmul.mubr.f32.gmra.mrb[0].mxu0 %v6250
        %v6583 = vpop.f32.mrb[0].mxu0
        %v6584 = vadd.f32 0.0, %v6583
        %v6585 = vpop.f32.mrb[0].mxu0
        %6586 = vmatprep.mubr.f32.mxu0 0.0
        %6587 = vmatmul.mubr.f32.gmra.mrb[0].mxu0 %v6253
        %v6588 = vpop.f32.mrb[0].mxu0
        %v6589 = vadd.f32 0.0, %v6588
        %v6590 = vpop.f32.mrb[0].mxu0
        %6591 = vmatprep.mubr.f32.mxu0 0.0
        %6592 = vmatmul.mubr.f32.gmra.mrb[0].mxu0 %v6256
        %v6593 = vpop.f32.mrb[0].mxu0
        %v6594 = vadd.f32 0.0, %v6593
        %v6595 = vpop.f32.mrb[0].mxu0
        %6596 = vmatprep.mubr.f32.mxu0 0.0
        %6597 = vmatmul.mubr.f32.gmra.mrb[0].mxu0 %v6259
        %v6598 = vpop.f32.mrb[0].mxu0
        %v6599 = vadd.f32 0.0, %v6598
        %v6600 = vpop.f32.mrb[0].mxu0
        %6601 = vmatprep.mubr.f32.mxu0 0.0
        %6602 = vmatmul.mubr.f32.gmra.mrb[0].mxu0 %v6262
        %v6603 = vpop.f32.mrb[0].mxu0
        %v6604 = vadd.f32 0.0, %v6603
        %v6605 = vpop.f32.mrb[0].mxu0
        %6606 = vmatprep.mubr.f32.mxu0 0.0
        %6607 = vmatmul.mubr.f32.gmra.mrb[0].mxu0 %v6265
        %v6608 = vpop.f32.mrb[0].mxu0
        %v6609 = vadd.f32 0.0, %v6608
        %v6610 = vpop.f32.mrb[0].mxu0
        %6611 = vmatprep.mubr.f32.mxu0 0.0
        %6612 = vmatmul.mubr.f32.gmra.mrb[0].mxu0 %v6268
        %v6613 = vpop.f32.mrb[0].mxu0
        %v6614 = vadd.f32 0.0, %v6613
        %v6615 = vpop.f32.mrb[0].mxu0
        %6616 = vmatprep.mubr.f32.mxu0 0.0
        %6617 = vmatmul.mubr.f32.gmra.mrb[0].mxu0 %v6271
        %v6618 = vpop.f32.mrb[0].mxu0
        %v6619 = vadd.f32 0.0, %v6618
        %v6620 = vpop.f32.mrb[0].mxu0
        %6621 = vmatprep.mubr.f32.mxu0 0.0
        %6622 = vmatmul.mubr.f32.gmra.mrb[0].mxu0 %v6274
        %v6623 = vpop.f32.mrb[0].mxu0
        %v6624 = vadd.f32 0.0, %v6623
        %v6625 = vpop.f32.mrb[0].mxu0
        %6626 = vmatprep.mubr.f32.mxu0 0.0
        %6627 = vmatmul.mubr.f32.gmra.mrb[0].mxu0 %v6277
        %v6628 = vpop.f32.mrb[0].mxu0
        %v6629 = vadd.f32 0.0, %v6628
        %v6630 = vpop.f32.mrb[0].mxu0
        %6631 = vmatprep.mubr.f32.mxu0 0.0
        %6632 = vmatmul.mubr.f32.gmra.mrb[0].mxu0 %v6280
        %v6633 = vpop.f32.mrb[0].mxu0
        %v6634 = vadd.f32 0.0, %v6633
        %v6635 = vpop.f32.mrb[0].mxu0
        %6636 = vmatprep.mubr.f32.mxu0 0.0
        %6637 = vmatmul.mubr.f32.gmra.mrb[0].mxu0 %v6283
        %v6638 = vpop.f32.mrb[0].mxu0
        %v6639 = vadd.f32 0.0, %v6638
        %v6640 = vpop.f32.mrb[0].mxu0
        %6641 = vmatprep.mubr.f32.mxu0 0.0
        %6642 = vmatmul.mubr.f32.gmra.mrb[0].mxu0 %v6286
        %v6643 = vpop.f32.mrb[0].mxu0
        %v6644 = vadd.f32 0.0, %v6643
        %v6645 = vpop.f32.mrb[0].mxu0
        %6646 = vmatprep.mubr.f32.mxu0 0.0
        %6647 = vmatmul.mubr.f32.gmra.mrb[0].mxu0 %v6289
        %v6648 = vpop.f32.mrb[0].mxu0
        %v6649 = vadd.f32 0.0, %v6648
        %v6650 = vpop.f32.mrb[0].mxu0
        %6651 = vmatprep.mubr.f32.mxu0 0.0
        %6652 = vmatmul.mubr.f32.gmra.mrb[0].mxu0 %v6292
        %v6653 = vpop.f32.mrb[0].mxu0
        %v6654 = vadd.f32 0.0, %v6653
        %v6655 = vpop.f32.mrb[0].mxu0
        %6656 = vmatprep.mubr.f32.mxu0 0.0
        %6657 = vmatmul.mubr.f32.gmra.mrb[0].mxu0 %v6295
        %v6658 = vpop.f32.mrb[0].mxu0
        %v6659 = vadd.f32 0.0, %v6658
        %v6660 = vpop.f32.mrb[0].mxu0
        %6661 = vmatprep.mubr.f32.mxu0 0.0
        %6662 = vmatmul.mubr.f32.gmra.mrb[0].mxu0 %v6298
        %v6663 = vpop.f32.mrb[0].mxu0
        %v6664 = vadd.f32 0.0, %v6663
        %v6665 = vpop.f32.mrb[0].mxu0
        %6666 = vmatprep.mubr.f32.mxu0 0.0
        %6667 = vmatmul.mubr.f32.gmra.mrb[0].mxu0 %v6301
        %v6668 = vpop.f32.mrb[0].mxu0
        %v6669 = vadd.f32 0.0, %v6668
        %v6670 = vpop.f32.mrb[0].mxu0
        %6671 = vmatprep.mubr.f32.mxu0 0.0
        %6672 = vmatmul.mubr.f32.gmra.mrb[0].mxu0 %v6304
        %v6673 = vpop.f32.mrb[0].mxu0
        %v6674 = vadd.f32 0.0, %v6673
        %v6675 = vpop.f32.mrb[0].mxu0
        %6676 = vmatprep.mubr.f32.mxu0 0.0
        %6677 = vmatmul.mubr.f32.gmra.mrb[0].mxu0 %v6307
        %v6678 = vpop.f32.mrb[0].mxu0
        %v6679 = vadd.f32 0.0, %v6678
        %v6680 = vpop.f32.mrb[0].mxu0
        %6681 = vmatprep.mubr.f32.mxu0 0.0
        %6682 = vmatmul.mubr.f32.gmra.mrb[0].mxu0 %v6310
        %v6683 = vpop.f32.mrb[0].mxu0
        %v6684 = vadd.f32 0.0, %v6683
        %v6685 = vpop.f32.mrb[0].mxu0
        %6686 = vmatprep.mubr.f32.mxu0 0.0
        %6687 = vmatmul.mubr.f32.gmra.mrb[0].mxu0 %v6313
        %v6688 = vpop.f32.mrb[0].mxu0
        %v6689 = vadd.f32 0.0, %v6688
        %v6690 = vpop.f32.mrb[0].mxu0
        %6691 = vmatprep.mubr.f32.mxu0 0.0
        %6692 = vmatmul.mubr.f32.gmra.mrb[0].mxu0 %v6316
        %v6693 = vpop.f32.mrb[0].mxu0
        %v6694 = vadd.f32 0.0, %v6693
        %v6695 = vpop.f32.mrb[0].mxu0
        %6696 = vmatprep.mubr.f32.mxu0 0.0
        %6697 = vmatmul.mubr.f32.gmra.mrb[0].mxu0 %v6319
        %v6698 = vpop.f32.mrb[0].mxu0
        %v6699 = vadd.f32 0.0, %v6698
        %v6700 = vpop.f32.mrb[0].mxu0
        %6701 = vmatprep.mubr.f32.mxu0 0.0
        %6702 = vmatmul.mubr.f32.gmra.mrb[0].mxu0 %v6322
        %v6703 = vpop.f32.mrb[0].mxu0
        %v6704 = vadd.f32 0.0, %v6703
        %v6705 = vpop.f32.mrb[0].mxu0
        %6706 = vmatprep.mubr.f32.mxu0 0.0
        %6707 = vmatmul.mubr.f32.gmra.mrb[0].mxu0 %v6325
        %v6708 = vpop.f32.mrb[0].mxu0
        %v6709 = vadd.f32 0.0, %v6708
        %v6710 = vpop.f32.mrb[0].mxu0
        %6711 = vdwg.mxu0
        %v6712 = vadd.f32 %v6006, %v6394
        %v6713 = vadd.f32 %v6007, %v6399
        %v6714 = vadd.f32 %v6008, %v6404
        %v6715 = vadd.f32 %v6009, %v6409
        %v6716 = vadd.f32 %v6010, %v6414
        %v6717 = vadd.f32 %v6011, %v6419
        %v6718 = vadd.f32 %v6012, %v6424
        %v6719 = vadd.f32 %v6013, %v6429
        %v6720 = vadd.f32 %v6014, %v6434
        %v6721 = vadd.f32 %v6015, %v6439
        %v6722 = vadd.f32 %v6016, %v6444
        %v6723 = vadd.f32 %v6017, %v6449
        %v6724 = vadd.f32 %v6018, %v6454
        %v6725 = vadd.f32 %v6019, %v6459
        %v6726 = vadd.f32 %v6020, %v6464
        %v6727 = vadd.f32 %v6021, %v6469
        %v6728 = vadd.f32 %v6022, %v6474
        %v6729 = vadd.f32 %v6023, %v6479
        %v6730 = vadd.f32 %v6024, %v6484
        %v6731 = vadd.f32 %v6025, %v6489
        %v6732 = vadd.f32 %v6026, %v6494
        %v6733 = vadd.f32 %v6027, %v6499
        %v6734 = vadd.f32 %v6028, %v6504
        %v6735 = vadd.f32 %v6029, %v6509
        %v6736 = vadd.f32 %v6030, %v6514
        %v6737 = vadd.f32 %v6031, %v6519
        %v6738 = vadd.f32 %v6032, %v6524
        %v6739 = vadd.f32 %v6033, %v6529
        %v6740 = vadd.f32 %v6034, %v6534
        %v6741 = vadd.f32 %v6035, %v6539
        %v6742 = vadd.f32 %v6036, %v6544
        %v6743 = vadd.f32 %v6037, %v6549
        %v6744 = vadd.f32 %v6038, %v6554
        %v6745 = vadd.f32 %v6039, %v6559
        %v6746 = vadd.f32 %v6040, %v6564
        %v6747 = vadd.f32 %v6041, %v6569
        %v6748 = vadd.f32 %v6042, %v6574
        %v6749 = vadd.f32 %v6043, %v6579
        %v6750 = vadd.f32 %v6044, %v6584
        %v6751 = vadd.f32 %v6045, %v6589
        %v6752 = vadd.f32 %v6046, %v6594
        %v6753 = vadd.f32 %v6047, %v6599
        %v6754 = vadd.f32 %v6048, %v6604
        %v6755 = vadd.f32 %v6049, %v6609
        %v6756 = vadd.f32 %v6050, %v6614
        %v6757 = vadd.f32 %v6051, %v6619
        %v6758 = vadd.f32 %v6052, %v6624
        %v6759 = vadd.f32 %v6053, %v6629
        %v6760 = vadd.f32 %v6054, %v6634
        %v6761 = vadd.f32 %v6055, %v6639
        %v6762 = vadd.f32 %v6056, %v6644
        %v6763 = vadd.f32 %v6057, %v6649
        %v6764 = vadd.f32 %v6058, %v6654
        %v6765 = vadd.f32 %v6059, %v6659
        %v6766 = vadd.f32 %v6060, %v6664
        %v6767 = vadd.f32 %v6061, %v6669
        %v6768 = vadd.f32 %v6062, %v6674
        %v6769 = vadd.f32 %v6063, %v6679
        %v6770 = vadd.f32 %v6064, %v6684
        %v6771 = vadd.f32 %v6065, %v6689
        %v6772 = vadd.f32 %v6066, %v6694
        %v6773 = vadd.f32 %v6067, %v6699
        %v6774 = vadd.f32 %v6068, %v6704
        %v6775 = vadd.f32 %v6069, %v6709
        %v6776 = vld [vmem:[%s3] sm:$0x1]
        %v6777 = vlaneseq
        %v6778 = vshrl.u32 %v6777, 7
        %v6779 = vsub.s32 0, %v6778
        %v6780 = vrot.slane %v6776, %v6779
        %v6781 = vmul.f32 %v6712, %v6780
        %v6782 = vmul.f32 %v6713, %v6780
        %v6783 = vmul.f32 %v6714, %v6780
        %v6784 = vmul.f32 %v6715, %v6780
        %v6785 = vmul.f32 %v6716, %v6780
        %v6786 = vmul.f32 %v6717, %v6780
        %v6787 = vmul.f32 %v6718, %v6780
        %v6788 = vmul.f32 %v6719, %v6780
        %v6789 = vmul.f32 %v6720, %v6780
        %v6790 = vmul.f32 %v6721, %v6780
        %v6791 = vmul.f32 %v6722, %v6780
        %v6792 = vmul.f32 %v6723, %v6780
        %v6793 = vmul.f32 %v6724, %v6780
        %v6794 = vmul.f32 %v6725, %v6780
        %v6795 = vmul.f32 %v6726, %v6780
        %v6796 = vmul.f32 %v6727, %v6780
        %v6797 = vmul.f32 %v6728, %v6780
        %v6798 = vmul.f32 %v6729, %v6780
        %v6799 = vmul.f32 %v6730, %v6780
        %v6800 = vmul.f32 %v6731, %v6780
        %v6801 = vmul.f32 %v6732, %v6780
        %v6802 = vmul.f32 %v6733, %v6780
        %v6803 = vmul.f32 %v6734, %v6780
        %v6804 = vmul.f32 %v6735, %v6780
        %v6805 = vmul.f32 %v6736, %v6780
        %v6806 = vmul.f32 %v6737, %v6780
        %v6807 = vmul.f32 %v6738, %v6780
        %v6808 = vmul.f32 %v6739, %v6780
        %v6809 = vmul.f32 %v6740, %v6780
        %v6810 = vmul.f32 %v6741, %v6780
        %v6811 = vmul.f32 %v6742, %v6780
        %v6812 = vmul.f32 %v6743, %v6780
        %v6813 = vmul.f32 %v6744, %v6780
        %v6814 = vmul.f32 %v6745, %v6780
        %v6815 = vmul.f32 %v6746, %v6780
        %v6816 = vmul.f32 %v6747, %v6780
        %v6817 = vmul.f32 %v6748, %v6780
        %v6818 = vmul.f32 %v6749, %v6780
        %v6819 = vmul.f32 %v6750, %v6780
        %v6820 = vmul.f32 %v6751, %v6780
        %v6821 = vmul.f32 %v6752, %v6780
        %v6822 = vmul.f32 %v6753, %v6780
        %v6823 = vmul.f32 %v6754, %v6780
        %v6824 = vmul.f32 %v6755, %v6780
        %v6825 = vmul.f32 %v6756, %v6780
        %v6826 = vmul.f32 %v6757, %v6780
        %v6827 = vmul.f32 %v6758, %v6780
        %v6828 = vmul.f32 %v6759, %v6780
        %v6829 = vmul.f32 %v6760, %v6780
        %v6830 = vmul.f32 %v6761, %v6780
        %v6831 = vmul.f32 %v6762, %v6780
        %v6832 = vmul.f32 %v6763, %v6780
        %v6833 = vmul.f32 %v6764, %v6780
        %v6834 = vmul.f32 %v6765, %v6780
        %v6835 = vmul.f32 %v6766, %v6780
        %v6836 = vmul.f32 %v6767, %v6780
        %v6837 = vmul.f32 %v6768, %v6780
        %v6838 = vmul.f32 %v6769, %v6780
        %v6839 = vmul.f32 %v6770, %v6780
        %v6840 = vmul.f32 %v6771, %v6780
        %v6841 = vmul.f32 %v6772, %v6780
        %v6842 = vmul.f32 %v6773, %v6780
        %v6843 = vmul.f32 %v6774, %v6780
        %v6844 = vmul.f32 %v6775, %v6780
        %v6845 = vld [vmem:[%s3 + $0x1] sm:$0x1]
        %v6846 = vlaneseq
        %v6847 = vshrl.u32 %v6846, 7
        %v6848 = vsub.s32 0, %v6847
        %v6849 = vrot.slane %v6845, %v6848
        %v6850 = vadd.f32 %v6781, %v6849
        %v6851 = vadd.f32 %v6782, %v6849
        %v6852 = vadd.f32 %v6783, %v6849
        %v6853 = vadd.f32 %v6784, %v6849
        %v6854 = vadd.f32 %v6785, %v6849
        %v6855 = vadd.f32 %v6786, %v6849
        %v6856 = vadd.f32 %v6787, %v6849
        %v6857 = vadd.f32 %v6788, %v6849
        %v6858 = vadd.f32 %v6789, %v6849
        %v6859 = vadd.f32 %v6790, %v6849
        %v6860 = vadd.f32 %v6791, %v6849
        %v6861 = vadd.f32 %v6792, %v6849
        %v6862 = vadd.f32 %v6793, %v6849
        %v6863 = vadd.f32 %v6794, %v6849
        %v6864 = vadd.f32 %v6795, %v6849
        %v6865 = vadd.f32 %v6796, %v6849
        %v6866 = vadd.f32 %v6797, %v6849
        %v6867 = vadd.f32 %v6798, %v6849
        %v6868 = vadd.f32 %v6799, %v6849
        %v6869 = vadd.f32 %v6800, %v6849
        %v6870 = vadd.f32 %v6801, %v6849
        %v6871 = vadd.f32 %v6802, %v6849
        %v6872 = vadd.f32 %v6803, %v6849
        %v6873 = vadd.f32 %v6804, %v6849
        %v6874 = vadd.f32 %v6805, %v6849
        %v6875 = vadd.f32 %v6806, %v6849
        %v6876 = vadd.f32 %v6807, %v6849
        %v6877 = vadd.f32 %v6808, %v6849
        %v6878 = vadd.f32 %v6809, %v6849
        %v6879 = vadd.f32 %v6810, %v6849
        %v6880 = vadd.f32 %v6811, %v6849
        %v6881 = vadd.f32 %v6812, %v6849
        %v6882 = vadd.f32 %v6813, %v6849
        %v6883 = vadd.f32 %v6814, %v6849
        %v6884 = vadd.f32 %v6815, %v6849
        %v6885 = vadd.f32 %v6816, %v6849
        %v6886 = vadd.f32 %v6817, %v6849
        %v6887 = vadd.f32 %v6818, %v6849
        %v6888 = vadd.f32 %v6819, %v6849
        %v6889 = vadd.f32 %v6820, %v6849
        %v6890 = vadd.f32 %v6821, %v6849
        %v6891 = vadd.f32 %v6822, %v6849
        %v6892 = vadd.f32 %v6823, %v6849
        %v6893 = vadd.f32 %v6824, %v6849
        %v6894 = vadd.f32 %v6825, %v6849
        %v6895 = vadd.f32 %v6826, %v6849
        %v6896 = vadd.f32 %v6827, %v6849
        %v6897 = vadd.f32 %v6828, %v6849
        %v6898 = vadd.f32 %v6829, %v6849
        %v6899 = vadd.f32 %v6830, %v6849
        %v6900 = vadd.f32 %v6831, %v6849
        %v6901 = vadd.f32 %v6832, %v6849
        %v6902 = vadd.f32 %v6833, %v6849
        %v6903 = vadd.f32 %v6834, %v6849
        %v6904 = vadd.f32 %v6835, %v6849
        %v6905 = vadd.f32 %v6836, %v6849
        %v6906 = vadd.f32 %v6837, %v6849
        %v6907 = vadd.f32 %v6838, %v6849
        %v6908 = vadd.f32 %v6839, %v6849
        %v6909 = vadd.f32 %v6840, %v6849
        %v6910 = vadd.f32 %v6841, %v6849
        %v6911 = vadd.f32 %v6842, %v6849
        %v6912 = vadd.f32 %v6843, %v6849
        %v6913 = vadd.f32 %v6844, %v6849
        %v6914 = vxor.u32 %v6850, 2147483648
        %v6915 = vxor.u32 %v6851, 2147483648
        %v6916 = vxor.u32 %v6852, 2147483648
        %v6917 = vxor.u32 %v6853, 2147483648
        %v6918 = vxor.u32 %v6854, 2147483648
        %v6919 = vxor.u32 %v6855, 2147483648
        %v6920 = vxor.u32 %v6856, 2147483648
        %v6921 = vxor.u32 %v6857, 2147483648
        %v6922 = vxor.u32 %v6858, 2147483648
        %v6923 = vxor.u32 %v6859, 2147483648
        %v6924 = vxor.u32 %v6860, 2147483648
        %v6925 = vxor.u32 %v6861, 2147483648
        %v6926 = vxor.u32 %v6862, 2147483648
        %v6927 = vxor.u32 %v6863, 2147483648
        %v6928 = vxor.u32 %v6864, 2147483648
        %v6929 = vxor.u32 %v6865, 2147483648
        %v6930 = vxor.u32 %v6866, 2147483648
        %v6931 = vxor.u32 %v6867, 2147483648
        %v6932 = vxor.u32 %v6868, 2147483648
        %v6933 = vxor.u32 %v6869, 2147483648
        %v6934 = vxor.u32 %v6870, 2147483648
        %v6935 = vxor.u32 %v6871, 2147483648
        %v6936 = vxor.u32 %v6872, 2147483648
        %v6937 = vxor.u32 %v6873, 2147483648
        %v6938 = vxor.u32 %v6874, 2147483648
        %v6939 = vxor.u32 %v6875, 2147483648
        %v6940 = vxor.u32 %v6876, 2147483648
        %v6941 = vxor.u32 %v6877, 2147483648
        %v6942 = vxor.u32 %v6878, 2147483648
        %v6943 = vxor.u32 %v6879, 2147483648
        %v6944 = vxor.u32 %v6880, 2147483648
        %v6945 = vxor.u32 %v6881, 2147483648
        %v6946 = vxor.u32 %v6882, 2147483648
        %v6947 = vxor.u32 %v6883, 2147483648
        %v6948 = vxor.u32 %v6884, 2147483648
        %v6949 = vxor.u32 %v6885, 2147483648
        %v6950 = vxor.u32 %v6886, 2147483648
        %v6951 = vxor.u32 %v6887, 2147483648
        %v6952 = vxor.u32 %v6888, 2147483648
        %v6953 = vxor.u32 %v6889, 2147483648
        %v6954 = vxor.u32 %v6890, 2147483648
        %v6955 = vxor.u32 %v6891, 2147483648
        %v6956 = vxor.u32 %v6892, 2147483648
        %v6957 = vxor.u32 %v6893, 2147483648
        %v6958 = vxor.u32 %v6894, 2147483648
        %v6959 = vxor.u32 %v6895, 2147483648
        %v6960 = vxor.u32 %v6896, 2147483648
        %v6961 = vxor.u32 %v6897, 2147483648
        %v6962 = vxor.u32 %v6898, 2147483648
        %v6963 = vxor.u32 %v6899, 2147483648
        %v6964 = vxor.u32 %v6900, 2147483648
        %v6965 = vxor.u32 %v6901, 2147483648
        %v6966 = vxor.u32 %v6902, 2147483648
        %v6967 = vxor.u32 %v6903, 2147483648
        %v6968 = vxor.u32 %v6904, 2147483648
        %v6969 = vxor.u32 %v6905, 2147483648
        %v6970 = vxor.u32 %v6906, 2147483648
        %v6971 = vxor.u32 %v6907, 2147483648
        %v6972 = vxor.u32 %v6908, 2147483648
        %v6973 = vxor.u32 %v6909, 2147483648
        %v6974 = vxor.u32 %v6910, 2147483648
        %v6975 = vxor.u32 %v6911, 2147483648
        %v6976 = vxor.u32 %v6912, 2147483648
        %v6977 = vxor.u32 %v6913, 2147483648
        %v6978 = vmul.f32 %v6914, 1.442695
        %v6979 = vpow.pop %v6978
        %v6980 = vmul.f32 %v6915, 1.442695
        %v6981 = vpow.pop %v6980
        %v6982 = vmul.f32 %v6916, 1.442695
        %v6983 = vpow.pop %v6982
        %v6984 = vmul.f32 %v6917, 1.442695
        %v6985 = vpow.pop %v6984
        %v6986 = vmul.f32 %v6918, 1.442695
        %v6987 = vpow.pop %v6986
        %v6988 = vmul.f32 %v6919, 1.442695
        %v6989 = vpow.pop %v6988
        %v6990 = vmul.f32 %v6920, 1.442695
        %v6991 = vpow.pop %v6990
        %v6992 = vmul.f32 %v6921, 1.442695
        %v6993 = vpow.pop %v6992
        %v6994 = vmul.f32 %v6922, 1.442695
        %v6995 = vpow.pop %v6994
        %v6996 = vmul.f32 %v6923, 1.442695
        %v6997 = vpow.pop %v6996
        %v6998 = vmul.f32 %v6924, 1.442695
        %v6999 = vpow.pop %v6998
        %v7000 = vmul.f32 %v6925, 1.442695
        %v7001 = vpow.pop %v7000
        %v7002 = vmul.f32 %v6926, 1.442695
        %v7003 = vpow.pop %v7002
        %v7004 = vmul.f32 %v6927, 1.442695
        %v7005 = vpow.pop %v7004
        %v7006 = vmul.f32 %v6928, 1.442695
        %v7007 = vpow.pop %v7006
        %v7008 = vmul.f32 %v6929, 1.442695
        %v7009 = vpow.pop %v7008
        %v7010 = vmul.f32 %v6930, 1.442695
        %v7011 = vpow.pop %v7010
        %v7012 = vmul.f32 %v6931, 1.442695
        %v7013 = vpow.pop %v7012
        %v7014 = vmul.f32 %v6932, 1.442695
        %v7015 = vpow.pop %v7014
        %v7016 = vmul.f32 %v6933, 1.442695
        %v7017 = vpow.pop %v7016
        %v7018 = vmul.f32 %v6934, 1.442695
        %v7019 = vpow.pop %v7018
        %v7020 = vmul.f32 %v6935, 1.442695
        %v7021 = vpow.pop %v7020
        %v7022 = vmul.f32 %v6936, 1.442695
        %v7023 = vpow.pop %v7022
        %v7024 = vmul.f32 %v6937, 1.442695
        %v7025 = vpow.pop %v7024
        %v7026 = vmul.f32 %v6938, 1.442695
        %v7027 = vpow.pop %v7026
        %v7028 = vmul.f32 %v6939, 1.442695
        %v7029 = vpow.pop %v7028
        %v7030 = vmul.f32 %v6940, 1.442695
        %v7031 = vpow.pop %v7030
        %v7032 = vmul.f32 %v6941, 1.442695
        %v7033 = vpow.pop %v7032
        %v7034 = vmul.f32 %v6942, 1.442695
        %v7035 = vpow.pop %v7034
        %v7036 = vmul.f32 %v6943, 1.442695
        %v7037 = vpow.pop %v7036
        %v7038 = vmul.f32 %v6944, 1.442695
        %v7039 = vpow.pop %v7038
        %v7040 = vmul.f32 %v6945, 1.442695
        %v7041 = vpow.pop %v7040
        %v7042 = vmul.f32 %v6946, 1.442695
        %v7043 = vpow.pop %v7042
        %v7044 = vmul.f32 %v6947, 1.442695
        %v7045 = vpow.pop %v7044
        %v7046 = vmul.f32 %v6948, 1.442695
        %v7047 = vpow.pop %v7046
        %v7048 = vmul.f32 %v6949, 1.442695
        %v7049 = vpow.pop %v7048
        %v7050 = vmul.f32 %v6950, 1.442695
        %v7051 = vpow.pop %v7050
        %v7052 = vmul.f32 %v6951, 1.442695
        %v7053 = vpow.pop %v7052
        %v7054 = vmul.f32 %v6952, 1.442695
        %v7055 = vpow.pop %v7054
        %v7056 = vmul.f32 %v6953, 1.442695
        %v7057 = vpow.pop %v7056
        %v7058 = vmul.f32 %v6954, 1.442695
        %v7059 = vpow.pop %v7058
        %v7060 = vmul.f32 %v6955, 1.442695
        %v7061 = vpow.pop %v7060
        %v7062 = vmul.f32 %v6956, 1.442695
        %v7063 = vpow.pop %v7062
        %v7064 = vmul.f32 %v6957, 1.442695
        %v7065 = vpow.pop %v7064
        %v7066 = vmul.f32 %v6958, 1.442695
        %v7067 = vpow.pop %v7066
        %v7068 = vmul.f32 %v6959, 1.442695
        %v7069 = vpow.pop %v7068
        %v7070 = vmul.f32 %v6960, 1.442695
        %v7071 = vpow.pop %v7070
        %v7072 = vmul.f32 %v6961, 1.442695
        %v7073 = vpow.pop %v7072
        %v7074 = vmul.f32 %v6962, 1.442695
        %v7075 = vpow.pop %v7074
        %v7076 = vmul.f32 %v6963, 1.442695
        %v7077 = vpow.pop %v7076
        %v7078 = vmul.f32 %v6964, 1.442695
        %v7079 = vpow.pop %v7078
        %v7080 = vmul.f32 %v6965, 1.442695
        %v7081 = vpow.pop %v7080
        %v7082 = vmul.f32 %v6966, 1.442695
        %v7083 = vpow.pop %v7082
        %v7084 = vmul.f32 %v6967, 1.442695
        %v7085 = vpow.pop %v7084
        %v7086 = vmul.f32 %v6968, 1.442695
        %v7087 = vpow.pop %v7086
        %v7088 = vmul.f32 %v6969, 1.442695
        %v7089 = vpow.pop %v7088
        %v7090 = vmul.f32 %v6970, 1.442695
        %v7091 = vpow.pop %v7090
        %v7092 = vmul.f32 %v6971, 1.442695
        %v7093 = vpow.pop %v7092
        %v7094 = vmul.f32 %v6972, 1.442695
        %v7095 = vpow.pop %v7094
        %v7096 = vmul.f32 %v6973, 1.442695
        %v7097 = vpow.pop %v7096
        %v7098 = vmul.f32 %v6974, 1.442695
        %v7099 = vpow.pop %v7098
        %v7100 = vmul.f32 %v6975, 1.442695
        %v7101 = vpow.pop %v7100
        %v7102 = vmul.f32 %v6976, 1.442695
        %v7103 = vpow.pop %v7102
        %v7104 = vmul.f32 %v6977, 1.442695
        %v7105 = vpow.pop %v7104
        %v7106 = vadd.f32 %v6979, 1.0
        %v7107 = vadd.f32 %v6981, 1.0
        %v7108 = vadd.f32 %v6983, 1.0
        %v7109 = vadd.f32 %v6985, 1.0
        %v7110 = vadd.f32 %v6987, 1.0
        %v7111 = vadd.f32 %v6989, 1.0
        %v7112 = vadd.f32 %v6991, 1.0
        %v7113 = vadd.f32 %v6993, 1.0
        %v7114 = vadd.f32 %v6995, 1.0
        %v7115 = vadd.f32 %v6997, 1.0
        %v7116 = vadd.f32 %v6999, 1.0
        %v7117 = vadd.f32 %v7001, 1.0
        %v7118 = vadd.f32 %v7003, 1.0
        %v7119 = vadd.f32 %v7005, 1.0
        %v7120 = vadd.f32 %v7007, 1.0
        %v7121 = vadd.f32 %v7009, 1.0
        %v7122 = vadd.f32 %v7011, 1.0
        %v7123 = vadd.f32 %v7013, 1.0
        %v7124 = vadd.f32 %v7015, 1.0
        %v7125 = vadd.f32 %v7017, 1.0
        %v7126 = vadd.f32 %v7019, 1.0
        %v7127 = vadd.f32 %v7021, 1.0
        %v7128 = vadd.f32 %v7023, 1.0
        %v7129 = vadd.f32 %v7025, 1.0
        %v7130 = vadd.f32 %v7027, 1.0
        %v7131 = vadd.f32 %v7029, 1.0
        %v7132 = vadd.f32 %v7031, 1.0
        %v7133 = vadd.f32 %v7033, 1.0
        %v7134 = vadd.f32 %v7035, 1.0
        %v7135 = vadd.f32 %v7037, 1.0
        %v7136 = vadd.f32 %v7039, 1.0
        %v7137 = vadd.f32 %v7041, 1.0
        %v7138 = vadd.f32 %v7043, 1.0
        %v7139 = vadd.f32 %v7045, 1.0
        %v7140 = vadd.f32 %v7047, 1.0
        %v7141 = vadd.f32 %v7049, 1.0
        %v7142 = vadd.f32 %v7051, 1.0
        %v7143 = vadd.f32 %v7053, 1.0
        %v7144 = vadd.f32 %v7055, 1.0
        %v7145 = vadd.f32 %v7057, 1.0
        %v7146 = vadd.f32 %v7059, 1.0
        %v7147 = vadd.f32 %v7061, 1.0
        %v7148 = vadd.f32 %v7063, 1.0
        %v7149 = vadd.f32 %v7065, 1.0
        %v7150 = vadd.f32 %v7067, 1.0
        %v7151 = vadd.f32 %v7069, 1.0
        %v7152 = vadd.f32 %v7071, 1.0
        %v7153 = vadd.f32 %v7073, 1.0
        %v7154 = vadd.f32 %v7075, 1.0
        %v7155 = vadd.f32 %v7077, 1.0
        %v7156 = vadd.f32 %v7079, 1.0
        %v7157 = vadd.f32 %v7081, 1.0
        %v7158 = vadd.f32 %v7083, 1.0
        %v7159 = vadd.f32 %v7085, 1.0
        %v7160 = vadd.f32 %v7087, 1.0
        %v7161 = vadd.f32 %v7089, 1.0
        %v7162 = vadd.f32 %v7091, 1.0
        %v7163 = vadd.f32 %v7093, 1.0
        %v7164 = vadd.f32 %v7095, 1.0
        %v7165 = vadd.f32 %v7097, 1.0
        %v7166 = vadd.f32 %v7099, 1.0
        %v7167 = vadd.f32 %v7101, 1.0
        %v7168 = vadd.f32 %v7103, 1.0
        %v7169 = vadd.f32 %v7105, 1.0
        %v7170 = vrcp.pop %v7106
        %v7171 = vmul.f32 1.0, %v7170
        %v7172 = vrcp.pop %v7107
        %v7173 = vmul.f32 1.0, %v7172
        %v7174 = vrcp.pop %v7108
        %v7175 = vmul.f32 1.0, %v7174
        %v7176 = vrcp.pop %v7109
        %v7177 = vmul.f32 1.0, %v7176
        %v7178 = vrcp.pop %v7110
        %v7179 = vmul.f32 1.0, %v7178
        %v7180 = vrcp.pop %v7111
        %v7181 = vmul.f32 1.0, %v7180
        %v7182 = vrcp.pop %v7112
        %v7183 = vmul.f32 1.0, %v7182
        %v7184 = vrcp.pop %v7113
        %v7185 = vmul.f32 1.0, %v7184
        %v7186 = vrcp.pop %v7114
        %v7187 = vmul.f32 1.0, %v7186
        %v7188 = vrcp.pop %v7115
        %v7189 = vmul.f32 1.0, %v7188
        %v7190 = vrcp.pop %v7116
        %v7191 = vmul.f32 1.0, %v7190
        %v7192 = vrcp.pop %v7117
        %v7193 = vmul.f32 1.0, %v7192
        %v7194 = vrcp.pop %v7118
        %v7195 = vmul.f32 1.0, %v7194
        %v7196 = vrcp.pop %v7119
        %v7197 = vmul.f32 1.0, %v7196
        %v7198 = vrcp.pop %v7120
        %v7199 = vmul.f32 1.0, %v7198
        %v7200 = vrcp.pop %v7121
        %v7201 = vmul.f32 1.0, %v7200
        %v7202 = vrcp.pop %v7122
        %v7203 = vmul.f32 1.0, %v7202
        %v7204 = vrcp.pop %v7123
        %v7205 = vmul.f32 1.0, %v7204
        %v7206 = vrcp.pop %v7124
        %v7207 = vmul.f32 1.0, %v7206
        %v7208 = vrcp.pop %v7125
        %v7209 = vmul.f32 1.0, %v7208
        %v7210 = vrcp.pop %v7126
        %v7211 = vmul.f32 1.0, %v7210
        %v7212 = vrcp.pop %v7127
        %v7213 = vmul.f32 1.0, %v7212
        %v7214 = vrcp.pop %v7128
        %v7215 = vmul.f32 1.0, %v7214
        %v7216 = vrcp.pop %v7129
        %v7217 = vmul.f32 1.0, %v7216
        %v7218 = vrcp.pop %v7130
        %v7219 = vmul.f32 1.0, %v7218
        %v7220 = vrcp.pop %v7131
        %v7221 = vmul.f32 1.0, %v7220
        %v7222 = vrcp.pop %v7132
        %v7223 = vmul.f32 1.0, %v7222
        %v7224 = vrcp.pop %v7133
        %v7225 = vmul.f32 1.0, %v7224
        %v7226 = vrcp.pop %v7134
        %v7227 = vmul.f32 1.0, %v7226
        %v7228 = vrcp.pop %v7135
        %v7229 = vmul.f32 1.0, %v7228
        %v7230 = vrcp.pop %v7136
        %v7231 = vmul.f32 1.0, %v7230
        %v7232 = vrcp.pop %v7137
        %v7233 = vmul.f32 1.0, %v7232
        %v7234 = vrcp.pop %v7138
        %v7235 = vmul.f32 1.0, %v7234
        %v7236 = vrcp.pop %v7139
        %v7237 = vmul.f32 1.0, %v7236
        %v7238 = vrcp.pop %v7140
        %v7239 = vmul.f32 1.0, %v7238
        %v7240 = vrcp.pop %v7141
        %v7241 = vmul.f32 1.0, %v7240
        %v7242 = vrcp.pop %v7142
        %v7243 = vmul.f32 1.0, %v7242
        %v7244 = vrcp.pop %v7143
        %v7245 = vmul.f32 1.0, %v7244
        %v7246 = vrcp.pop %v7144
        %v7247 = vmul.f32 1.0, %v7246
        %v7248 = vrcp.pop %v7145
        %v7249 = vmul.f32 1.0, %v7248
        %v7250 = vrcp.pop %v7146
        %v7251 = vmul.f32 1.0, %v7250
        %v7252 = vrcp.pop %v7147
        %v7253 = vmul.f32 1.0, %v7252
        %v7254 = vrcp.pop %v7148
        %v7255 = vmul.f32 1.0, %v7254
        %v7256 = vrcp.pop %v7149
        %v7257 = vmul.f32 1.0, %v7256
        %v7258 = vrcp.pop %v7150
        %v7259 = vmul.f32 1.0, %v7258
        %v7260 = vrcp.pop %v7151
        %v7261 = vmul.f32 1.0, %v7260
        %v7262 = vrcp.pop %v7152
        %v7263 = vmul.f32 1.0, %v7262
        %v7264 = vrcp.pop %v7153
        %v7265 = vmul.f32 1.0, %v7264
        %v7266 = vrcp.pop %v7154
        %v7267 = vmul.f32 1.0, %v7266
        %v7268 = vrcp.pop %v7155
        %v7269 = vmul.f32 1.0, %v7268
        %v7270 = vrcp.pop %v7156
        %v7271 = vmul.f32 1.0, %v7270
        %v7272 = vrcp.pop %v7157
        %v7273 = vmul.f32 1.0, %v7272
        %v7274 = vrcp.pop %v7158
        %v7275 = vmul.f32 1.0, %v7274
        %v7276 = vrcp.pop %v7159
        %v7277 = vmul.f32 1.0, %v7276
        %v7278 = vrcp.pop %v7160
        %v7279 = vmul.f32 1.0, %v7278
        %v7280 = vrcp.pop %v7161
        %v7281 = vmul.f32 1.0, %v7280
        %v7282 = vrcp.pop %v7162
        %v7283 = vmul.f32 1.0, %v7282
        %v7284 = vrcp.pop %v7163
        %v7285 = vmul.f32 1.0, %v7284
        %v7286 = vrcp.pop %v7164
        %v7287 = vmul.f32 1.0, %v7286
        %v7288 = vrcp.pop %v7165
        %v7289 = vmul.f32 1.0, %v7288
        %v7290 = vrcp.pop %v7166
        %v7291 = vmul.f32 1.0, %v7290
        %v7292 = vrcp.pop %v7167
        %v7293 = vmul.f32 1.0, %v7292
        %v7294 = vrcp.pop %v7168
        %v7295 = vmul.f32 1.0, %v7294
        %v7296 = vrcp.pop %v7169
        %v7297 = vmul.f32 1.0, %v7296
        %v7298 = vmul.f32 %v6850, %v7171
        %v7299 = vmul.f32 %v6851, %v7173
        %v7300 = vmul.f32 %v6852, %v7175
        %v7301 = vmul.f32 %v6853, %v7177
        %v7302 = vmul.f32 %v6854, %v7179
        %v7303 = vmul.f32 %v6855, %v7181
        %v7304 = vmul.f32 %v6856, %v7183
        %v7305 = vmul.f32 %v6857, %v7185
        %v7306 = vmul.f32 %v6858, %v7187
        %v7307 = vmul.f32 %v6859, %v7189
        %v7308 = vmul.f32 %v6860, %v7191
        %v7309 = vmul.f32 %v6861, %v7193
        %v7310 = vmul.f32 %v6862, %v7195
        %v7311 = vmul.f32 %v6863, %v7197
        %v7312 = vmul.f32 %v6864, %v7199
        %v7313 = vmul.f32 %v6865, %v7201
        %v7314 = vmul.f32 %v6866, %v7203
        %v7315 = vmul.f32 %v6867, %v7205
        %v7316 = vmul.f32 %v6868, %v7207
        %v7317 = vmul.f32 %v6869, %v7209
        %v7318 = vmul.f32 %v6870, %v7211
        %v7319 = vmul.f32 %v6871, %v7213
        %v7320 = vmul.f32 %v6872, %v7215
        %v7321 = vmul.f32 %v6873, %v7217
        %v7322 = vmul.f32 %v6874, %v7219
        %v7323 = vmul.f32 %v6875, %v7221
        %v7324 = vmul.f32 %v6876, %v7223
        %v7325 = vmul.f32 %v6877, %v7225
        %v7326 = vmul.f32 %v6878, %v7227
        %v7327 = vmul.f32 %v6879, %v7229
        %v7328 = vmul.f32 %v6880, %v7231
        %v7329 = vmul.f32 %v6881, %v7233
        %v7330 = vmul.f32 %v6882, %v7235
        %v7331 = vmul.f32 %v6883, %v7237
        %v7332 = vmul.f32 %v6884, %v7239
        %v7333 = vmul.f32 %v6885, %v7241
        %v7334 = vmul.f32 %v6886, %v7243
        %v7335 = vmul.f32 %v6887, %v7245
        %v7336 = vmul.f32 %v6888, %v7247
        %v7337 = vmul.f32 %v6889, %v7249
        %v7338 = vmul.f32 %v6890, %v7251
        %v7339 = vmul.f32 %v6891, %v7253
        %v7340 = vmul.f32 %v6892, %v7255
        %v7341 = vmul.f32 %v6893, %v7257
        %v7342 = vmul.f32 %v6894, %v7259
        %v7343 = vmul.f32 %v6895, %v7261
        %v7344 = vmul.f32 %v6896, %v7263
        %v7345 = vmul.f32 %v6897, %v7265
        %v7346 = vmul.f32 %v6898, %v7267
        %v7347 = vmul.f32 %v6899, %v7269
        %v7348 = vmul.f32 %v6900, %v7271
        %v7349 = vmul.f32 %v6901, %v7273
        %v7350 = vmul.f32 %v6902, %v7275
        %v7351 = vmul.f32 %v6903, %v7277
        %v7352 = vmul.f32 %v6904, %v7279
        %v7353 = vmul.f32 %v6905, %v7281
        %v7354 = vmul.f32 %v6906, %v7283
        %v7355 = vmul.f32 %v6907, %v7285
        %v7356 = vmul.f32 %v6908, %v7287
        %v7357 = vmul.f32 %v6909, %v7289
        %v7358 = vmul.f32 %v6910, %v7291
        %v7359 = vmul.f32 %v6911, %v7293
        %v7360 = vmul.f32 %v6912, %v7295
        %v7361 = vmul.f32 %v6913, %v7297
        %v7362 = vld [vmem:[%s3 + $0x2] sm:$0x1]
        %v7363 = vld [vmem:[%s3 + $0x3] sm:$0x1]
        %v7364 = vld [vmem:[%s3 + $0x4] sm:$0x1]
        %v7365 = vld [vmem:[%s4] sm:$0xff]
        %v7366 = vld [vmem:[%s4 + $0x8] sm:$0x1]
        %v7367 = vld [vmem:[%s5] sm:$0x3]
        %v7368 = vld [vmem:[%s5 + $0x2] sm:$0x3]
        %vm7369 = vcmask 261120
        %7370 = vst.msk [vmem:[#allocation3] sm:$0xff] %vm7369, 0.0
        %7371 = vst.msk [vmem:[#allocation3 + $0x8] sm:$0xff] %vm7369, 0.0
        %vm7372 = vcmask 254976
        %7373 = vst.msk [vmem:[#allocation3 + $0x10] sm:$0x3] %vm7372, 0.0
        %s7374 = scalar_lea.vmem [#allocation3], 408
        %7375 = vst.msk [vmem:[%s7374] sm:$0xff] %vm7369, 0.0
        %7376 = vst.msk [vmem:[%s7374 + $0x8] sm:$0xff] %vm7369, 0.0
        %7377 = vst.msk [vmem:[%s7374 + $0x10] sm:$0x3] %vm7372, 0.0
        %s7378 = scalar_lea.vmem [#allocation3], 24
        %vm7379 = vcmask 253952
        %7380 = vst.msk [vmem:[%s7378] sm:$0x1] %vm7379, 0.0
        %7381 = vst.msk [vmem:[%s7378 + $0x18] sm:$0x1] %vm7379, 0.0
        %7382 = vst.msk [vmem:[%s7378 + $0x30] sm:$0x1] %vm7379, 0.0
        %7383 = vst.msk [vmem:[%s7378 + $0x48] sm:$0x1] %vm7379, 0.0
        %7384 = vst.msk [vmem:[%s7378 + $0x60] sm:$0x1] %vm7379, 0.0
        %7385 = vst.msk [vmem:[%s7378 + $0x78] sm:$0x1] %vm7379, 0.0
        %7386 = vst.msk [vmem:[%s7378 + $0x90] sm:$0x1] %vm7379, 0.0
        %7387 = vst.msk [vmem:[%s7378 + $0xa8] sm:$0x1] %vm7379, 0.0
        %7388 = vst.msk [vmem:[%s7378 + $0xc0] sm:$0x1] %vm7379, 0.0
        %7389 = vst.msk [vmem:[%s7378 + $0xd8] sm:$0x1] %vm7379, 0.0
        %7390 = vst.msk [vmem:[%s7378 + $0xf0] sm:$0x1] %vm7379, 0.0
        %7391 = vst.msk [vmem:[%s7378 + $0x108] sm:$0x1] %vm7379, 0.0
        %7392 = vst.msk [vmem:[%s7378 + $0x120] sm:$0x1] %vm7379, 0.0
        %7393 = vst.msk [vmem:[%s7378 + $0x138] sm:$0x1] %vm7379, 0.0
        %7394 = vst.msk [vmem:[%s7378 + $0x150] sm:$0x1] %vm7379, 0.0
        %7395 = vst.msk [vmem:[%s7378 + $0x168] sm:$0x1] %vm7379, 0.0
        %7396 = vst.msk [vmem:[%s7378 + $0x11] sm:$0x1] %vm7379, 0.0
        %7397 = vst.msk [vmem:[%s7378 + $0x29] sm:$0x1] %vm7379, 0.0
        %7398 = vst.msk [vmem:[%s7378 + $0x41] sm:$0x1] %vm7379, 0.0
        %7399 = vst.msk [vmem:[%s7378 + $0x59] sm:$0x1] %vm7379, 0.0
        %7400 = vst.msk [vmem:[%s7378 + $0x71] sm:$0x1] %vm7379, 0.0
        %7401 = vst.msk [vmem:[%s7378 + $0x89] sm:$0x1] %vm7379, 0.0
        %7402 = vst.msk [vmem:[%s7378 + $0xa1] sm:$0x1] %vm7379, 0.0
        %7403 = vst.msk [vmem:[%s7378 + $0xb9] sm:$0x1] %vm7379, 0.0
        %7404 = vst.msk [vmem:[%s7378 + $0xd1] sm:$0x1] %vm7379, 0.0
        %7405 = vst.msk [vmem:[%s7378 + $0xe9] sm:$0x1] %vm7379, 0.0
        %7406 = vst.msk [vmem:[%s7378 + $0x101] sm:$0x1] %vm7379, 0.0
        %7407 = vst.msk [vmem:[%s7378 + $0x119] sm:$0x1] %vm7379, 0.0
        %7408 = vst.msk [vmem:[%s7378 + $0x131] sm:$0x1] %vm7379, 0.0
        %7409 = vst.msk [vmem:[%s7378 + $0x149] sm:$0x1] %vm7379, 0.0
        %7410 = vst.msk [vmem:[%s7378 + $0x161] sm:$0x1] %vm7379, 0.0
        %7411 = vst.msk [vmem:[%s7378 + $0x179] sm:$0x1] %vm7379, 0.0
        %7412 = vst.msk [vmem:[%s7378 + $0x1] sm:$0xff] %vm7369, %v7298
        %7413 = vst.msk [vmem:[%s7378 + $0x9] sm:$0xff] %vm7369, %v7299
        %7414 = vst.msk [vmem:[%s7378 + $0x19] sm:$0xff] %vm7369, %v7300
        %7415 = vst.msk [vmem:[%s7378 + $0x21] sm:$0xff] %vm7369, %v7301
        %7416 = vst.msk [vmem:[%s7378 + $0x31] sm:$0xff] %vm7369, %v7302
        %7417 = vst.msk [vmem:[%s7378 + $0x39] sm:$0xff] %vm7369, %v7303
        %7418 = vst.msk [vmem:[%s7378 + $0x49] sm:$0xff] %vm7369, %v7304
        %7419 = vst.msk [vmem:[%s7378 + $0x51] sm:$0xff] %vm7369, %v7305
        %7420 = vst.msk [vmem:[%s7378 + $0x61] sm:$0xff] %vm7369, %v7306
        %7421 = vst.msk [vmem:[%s7378 + $0x69] sm:$0xff] %vm7369, %v7307
        %7422 = vst.msk [vmem:[%s7378 + $0x79] sm:$0xff] %vm7369, %v7308
        %7423 = vst.msk [vmem:[%s7378 + $0x81] sm:$0xff] %vm7369, %v7309
        %7424 = vst.msk [vmem:[%s7378 + $0x91] sm:$0xff] %vm7369, %v7310
        %7425 = vst.msk [vmem:[%s7378 + $0x99] sm:$0xff] %vm7369, %v7311
        %7426 = vst.msk [vmem:[%s7378 + $0xa9] sm:$0xff] %vm7369, %v7312
        %7427 = vst.msk [vmem:[%s7378 + $0xb1] sm:$0xff] %vm7369, %v7313
        %7428 = vst.msk [vmem:[%s7378 + $0xc1] sm:$0xff] %vm7369, %v7314
        %7429 = vst.msk [vmem:[%s7378 + $0xc9] sm:$0xff] %vm7369, %v7315
        %7430 = vst.msk [vmem:[%s7378 + $0xd9] sm:$0xff] %vm7369, %v7316
        %7431 = vst.msk [vmem:[%s7378 + $0xe1] sm:$0xff] %vm7369, %v7317
        %7432 = vst.msk [vmem:[%s7378 + $0xf1] sm:$0xff] %vm7369, %v7318
        %7433 = vst.msk [vmem:[%s7378 + $0xf9] sm:$0xff] %vm7369, %v7319
        %7434 = vst.msk [vmem:[%s7378 + $0x109] sm:$0xff] %vm7369, %v7320
        %7435 = vst.msk [vmem:[%s7378 + $0x111] sm:$0xff] %vm7369, %v7321
        %7436 = vst.msk [vmem:[%s7378 + $0x121] sm:$0xff] %vm7369, %v7322
        %7437 = vst.msk [vmem:[%s7378 + $0x129] sm:$0xff] %vm7369, %v7323
        %7438 = vst.msk [vmem:[%s7378 + $0x139] sm:$0xff] %vm7369, %v7324
        %7439 = vst.msk [vmem:[%s7378 + $0x141] sm:$0xff] %vm7369, %v7325
        %7440 = vst.msk [vmem:[%s7378 + $0x151] sm:$0xff] %vm7369, %v7326
        %7441 = vst.msk [vmem:[%s7378 + $0x159] sm:$0xff] %vm7369, %v7327
        %7442 = vst.msk [vmem:[%s7378 + $0x169] sm:$0xff] %vm7369, %v7328
        %7443 = vst.msk [vmem:[%s7378 + $0x171] sm:$0xff] %vm7369, %v7329
        %v7444 = vld [vmem:[#allocation3] sm:$0xff]
        %v7445 = vld [vmem:[#allocation3 + $0x8] sm:$0xff]
        %v7446 = vld [vmem:[#allocation3 + $0x18] sm:$0xff]
        %v7447 = vld [vmem:[#allocation3 + $0x20] sm:$0xff]
        %v7448 = vld [vmem:[#allocation3 + $0x30] sm:$0xff]
        %v7449 = vld [vmem:[#allocation3 + $0x38] sm:$0xff]
        %v7450 = vld [vmem:[#allocation3 + $0x48] sm:$0xff]
        %v7451 = vld [vmem:[#allocation3 + $0x50] sm:$0xff]
        %v7452 = vld [vmem:[#allocation3 + $0x60] sm:$0xff]
        %v7453 = vld [vmem:[#allocation3 + $0x68] sm:$0xff]
        %v7454 = vld [vmem:[#allocation3 + $0x78] sm:$0xff]
        %v7455 = vld [vmem:[#allocation3 + $0x80] sm:$0xff]
        %v7456 = vld [vmem:[#allocation3 + $0x90] sm:$0xff]
        %v7457 = vld [vmem:[#allocation3 + $0x98] sm:$0xff]
        %v7458 = vld [vmem:[#allocation3 + $0xa8] sm:$0xff]
        %v7459 = vld [vmem:[#allocation3 + $0xb0] sm:$0xff]
        %v7460 = vld [vmem:[#allocation3 + $0xc0] sm:$0xff]
        %v7461 = vld [vmem:[#allocation3 + $0xc8] sm:$0xff]
        %v7462 = vld [vmem:[#allocation3 + $0xd8] sm:$0xff]
        %v7463 = vld [vmem:[#allocation3 + $0xe0] sm:$0xff]
        %v7464 = vld [vmem:[#allocation3 + $0xf0] sm:$0xff]
        %v7465 = vld [vmem:[#allocation3 + $0xf8] sm:$0xff]
        %v7466 = vld [vmem:[#allocation3 + $0x108] sm:$0xff]
        %v7467 = vld [vmem:[#allocation3 + $0x110] sm:$0xff]
        %v7468 = vld [vmem:[#allocation3 + $0x120] sm:$0xff]
        %v7469 = vld [vmem:[#allocation3 + $0x128] sm:$0xff]
        %v7470 = vld [vmem:[#allocation3 + $0x138] sm:$0xff]
        %v7471 = vld [vmem:[#allocation3 + $0x140] sm:$0xff]
        %v7472 = vld [vmem:[#allocation3 + $0x150] sm:$0xff]
        %v7473 = vld [vmem:[#allocation3 + $0x158] sm:$0xff]
        %v7474 = vld [vmem:[#allocation3 + $0x168] sm:$0xff]
        %v7475 = vld [vmem:[#allocation3 + $0x170] sm:$0xff]
        %v7476 = vlaneseq
        %v7477 = vshrl.u32 %v7476, 7
        %v7478 = vsub.s32 0, %v7477
        %v7479 = vrot.slane %v7365, %v7478
        %v7480 = vmul.f32 %v7444, %v7479
        %v7481 = vmul.f32 %v7445, %v7479
        %v7482 = vmul.f32 %v7446, %v7479
        %v7483 = vmul.f32 %v7447, %v7479
        %v7484 = vmul.f32 %v7448, %v7479
        %v7485 = vmul.f32 %v7449, %v7479
        %v7486 = vmul.f32 %v7450, %v7479
        %v7487 = vmul.f32 %v7451, %v7479
        %v7488 = vmul.f32 %v7452, %v7479
        %v7489 = vmul.f32 %v7453, %v7479
        %v7490 = vmul.f32 %v7454, %v7479
        %v7491 = vmul.f32 %v7455, %v7479
        %v7492 = vmul.f32 %v7456, %v7479
        %v7493 = vmul.f32 %v7457, %v7479
        %v7494 = vmul.f32 %v7458, %v7479
        %v7495 = vmul.f32 %v7459, %v7479
        %v7496 = vmul.f32 %v7460, %v7479
        %v7497 = vmul.f32 %v7461, %v7479
        %v7498 = vmul.f32 %v7462, %v7479
        %v7499 = vmul.f32 %v7463, %v7479
        %v7500 = vmul.f32 %v7464, %v7479
        %v7501 = vmul.f32 %v7465, %v7479
        %v7502 = vmul.f32 %v7466, %v7479
        %v7503 = vmul.f32 %v7467, %v7479
        %v7504 = vmul.f32 %v7468, %v7479
        %v7505 = vmul.f32 %v7469, %v7479
        %v7506 = vmul.f32 %v7470, %v7479
        %v7507 = vmul.f32 %v7471, %v7479
        %v7508 = vmul.f32 %v7472, %v7479
        %v7509 = vmul.f32 %v7473, %v7479
        %v7510 = vmul.f32 %v7474, %v7479
        %v7511 = vmul.f32 %v7475, %v7479
        %v7512 = vadd.f32 %v7480, 0.0
        %v7513 = vadd.f32 %v7481, 0.0
        %v7514 = vadd.f32 %v7482, 0.0
        %v7515 = vadd.f32 %v7483, 0.0
        %v7516 = vadd.f32 %v7484, 0.0
        %v7517 = vadd.f32 %v7485, 0.0
        %v7518 = vadd.f32 %v7486, 0.0
        %v7519 = vadd.f32 %v7487, 0.0
        %v7520 = vadd.f32 %v7488, 0.0
        %v7521 = vadd.f32 %v7489, 0.0
        %v7522 = vadd.f32 %v7490, 0.0
        %v7523 = vadd.f32 %v7491, 0.0
        %v7524 = vadd.f32 %v7492, 0.0
        %v7525 = vadd.f32 %v7493, 0.0
        %v7526 = vadd.f32 %v7494, 0.0
        %v7527 = vadd.f32 %v7495, 0.0
        %v7528 = vadd.f32 %v7496, 0.0
        %v7529 = vadd.f32 %v7497, 0.0
        %v7530 = vadd.f32 %v7498, 0.0
        %v7531 = vadd.f32 %v7499, 0.0
        %v7532 = vadd.f32 %v7500, 0.0
        %v7533 = vadd.f32 %v7501, 0.0
        %v7534 = vadd.f32 %v7502, 0.0
        %v7535 = vadd.f32 %v7503, 0.0
        %v7536 = vadd.f32 %v7504, 0.0
        %v7537 = vadd.f32 %v7505, 0.0
        %v7538 = vadd.f32 %v7506, 0.0
        %v7539 = vadd.f32 %v7507, 0.0
        %v7540 = vadd.f32 %v7508, 0.0
        %v7541 = vadd.f32 %v7509, 0.0
        %v7542 = vadd.f32 %v7510, 0.0
        %v7543 = vadd.f32 %v7511, 0.0
        %v7544 = vld [vmem:[#allocation3 + $0x1] sm:$0xff]
        %v7545 = vld [vmem:[#allocation3 + $0x9] sm:$0xff]
        %v7546 = vld [vmem:[#allocation3 + $0x19] sm:$0xff]
        %v7547 = vld [vmem:[#allocation3 + $0x21] sm:$0xff]
        %v7548 = vld [vmem:[#allocation3 + $0x31] sm:$0xff]
        %v7549 = vld [vmem:[#allocation3 + $0x39] sm:$0xff]
        %v7550 = vld [vmem:[#allocation3 + $0x49] sm:$0xff]
        %v7551 = vld [vmem:[#allocation3 + $0x51] sm:$0xff]
        %v7552 = vld [vmem:[#allocation3 + $0x61] sm:$0xff]
        %v7553 = vld [vmem:[#allocation3 + $0x69] sm:$0xff]
        %v7554 = vld [vmem:[#allocation3 + $0x79] sm:$0xff]
        %v7555 = vld [vmem:[#allocation3 + $0x81] sm:$0xff]
        %v7556 = vld [vmem:[#allocation3 + $0x91] sm:$0xff]
        %v7557 = vld [vmem:[#allocation3 + $0x99] sm:$0xff]
        %v7558 = vld [vmem:[#allocation3 + $0xa9] sm:$0xff]
        %v7559 = vld [vmem:[#allocation3 + $0xb1] sm:$0xff]
        %v7560 = vld [vmem:[#allocation3 + $0xc1] sm:$0xff]
        %v7561 = vld [vmem:[#allocation3 + $0xc9] sm:$0xff]
        %v7562 = vld [vmem:[#allocation3 + $0xd9] sm:$0xff]
        %v7563 = vld [vmem:[#allocation3 + $0xe1] sm:$0xff]
        %v7564 = vld [vmem:[#allocation3 + $0xf1] sm:$0xff]
        %v7565 = vld [vmem:[#allocation3 + $0xf9] sm:$0xff]
        %v7566 = vld [vmem:[#allocation3 + $0x109] sm:$0xff]
        %v7567 = vld [vmem:[#allocation3 + $0x111] sm:$0xff]
        %v7568 = vld [vmem:[#allocation3 + $0x121] sm:$0xff]
        %v7569 = vld [vmem:[#allocation3 + $0x129] sm:$0xff]
        %v7570 = vld [vmem:[#allocation3 + $0x139] sm:$0xff]
        %v7571 = vld [vmem:[#allocation3 + $0x141] sm:$0xff]
        %v7572 = vld [vmem:[#allocation3 + $0x151] sm:$0xff]
        %v7573 = vld [vmem:[#allocation3 + $0x159] sm:$0xff]
        %v7574 = vld [vmem:[#allocation3 + $0x169] sm:$0xff]
        %v7575 = vld [vmem:[#allocation3 + $0x171] sm:$0xff]
        %v7576 = vlaneseq
        %v7577 = vshrl.u32 %v7576, 7
        %v7578 = vsub.s32 1, %v7577
        %v7579 = vrot.slane %v7365, %v7578
        %v7580 = vmul.f32 %v7544, %v7579
        %v7581 = vmul.f32 %v7545, %v7579
        %v7582 = vmul.f32 %v7546, %v7579
        %v7583 = vmul.f32 %v7547, %v7579
        %v7584 = vmul.f32 %v7548, %v7579
        %v7585 = vmul.f32 %v7549, %v7579
        %v7586 = vmul.f32 %v7550, %v7579
        %v7587 = vmul.f32 %v7551, %v7579
        %v7588 = vmul.f32 %v7552, %v7579
        %v7589 = vmul.f32 %v7553, %v7579
        %v7590 = vmul.f32 %v7554, %v7579
        %v7591 = vmul.f32 %v7555, %v7579
        %v7592 = vmul.f32 %v7556, %v7579
        %v7593 = vmul.f32 %v7557, %v7579
        %v7594 = vmul.f32 %v7558, %v7579
        %v7595 = vmul.f32 %v7559, %v7579
        %v7596 = vmul.f32 %v7560, %v7579
        %v7597 = vmul.f32 %v7561, %v7579
        %v7598 = vmul.f32 %v7562, %v7579
        %v7599 = vmul.f32 %v7563, %v7579
        %v7600 = vmul.f32 %v7564, %v7579
        %v7601 = vmul.f32 %v7565, %v7579
        %v7602 = vmul.f32 %v7566, %v7579
        %v7603 = vmul.f32 %v7567, %v7579
        %v7604 = vmul.f32 %v7568, %v7579
        %v7605 = vmul.f32 %v7569, %v7579
        %v7606 = vmul.f32 %v7570, %v7579
        %v7607 = vmul.f32 %v7571, %v7579
        %v7608 = vmul.f32 %v7572, %v7579
        %v7609 = vmul.f32 %v7573, %v7579
        %v7610 = vmul.f32 %v7574, %v7579
        %v7611 = vmul.f32 %v7575, %v7579
        %v7612 = vadd.f32 %v7512, %v7580
        %v7613 = vadd.f32 %v7513, %v7581
        %v7614 = vadd.f32 %v7514, %v7582
        %v7615 = vadd.f32 %v7515, %v7583
        %v7616 = vadd.f32 %v7516, %v7584
        %v7617 = vadd.f32 %v7517, %v7585
        %v7618 = vadd.f32 %v7518, %v7586
        %v7619 = vadd.f32 %v7519, %v7587
        %v7620 = vadd.f32 %v7520, %v7588
        %v7621 = vadd.f32 %v7521, %v7589
        %v7622 = vadd.f32 %v7522, %v7590
        %v7623 = vadd.f32 %v7523, %v7591
        %v7624 = vadd.f32 %v7524, %v7592
        %v7625 = vadd.f32 %v7525, %v7593
        %v7626 = vadd.f32 %v7526, %v7594
        %v7627 = vadd.f32 %v7527, %v7595
        %v7628 = vadd.f32 %v7528, %v7596
        %v7629 = vadd.f32 %v7529, %v7597
        %v7630 = vadd.f32 %v7530, %v7598
        %v7631 = vadd.f32 %v7531, %v7599
        %v7632 = vadd.f32 %v7532, %v7600
        %v7633 = vadd.f32 %v7533, %v7601
        %v7634 = vadd.f32 %v7534, %v7602
        %v7635 = vadd.f32 %v7535, %v7603
        %v7636 = vadd.f32 %v7536, %v7604
        %v7637 = vadd.f32 %v7537, %v7605
        %v7638 = vadd.f32 %v7538, %v7606
        %v7639 = vadd.f32 %v7539, %v7607
        %v7640 = vadd.f32 %v7540, %v7608
        %v7641 = vadd.f32 %v7541, %v7609
        %v7642 = vadd.f32 %v7542, %v7610
        %v7643 = vadd.f32 %v7543, %v7611
        %v7644 = vld [vmem:[#allocation3 + $0x2] sm:$0xff]
        %v7645 = vld [vmem:[#allocation3 + $0xa] sm:$0xff]
        %v7646 = vld [vmem:[#allocation3 + $0x1a] sm:$0xff]
        %v7647 = vld [vmem:[#allocation3 + $0x22] sm:$0xff]
        %v7648 = vld [vmem:[#allocation3 + $0x32] sm:$0xff]
        %v7649 = vld [vmem:[#allocation3 + $0x3a] sm:$0xff]
        %v7650 = vld [vmem:[#allocation3 + $0x4a] sm:$0xff]
        %v7651 = vld [vmem:[#allocation3 + $0x52] sm:$0xff]
        %v7652 = vld [vmem:[#allocation3 + $0x62] sm:$0xff]
        %v7653 = vld [vmem:[#allocation3 + $0x6a] sm:$0xff]
        %v7654 = vld [vmem:[#allocation3 + $0x7a] sm:$0xff]
        %v7655 = vld [vmem:[#allocation3 + $0x82] sm:$0xff]
        %v7656 = vld [vmem:[#allocation3 + $0x92] sm:$0xff]
        %v7657 = vld [vmem:[#allocation3 + $0x9a] sm:$0xff]
        %v7658 = vld [vmem:[#allocation3 + $0xaa] sm:$0xff]
        %v7659 = vld [vmem:[#allocation3 + $0xb2] sm:$0xff]
        %v7660 = vld [vmem:[#allocation3 + $0xc2] sm:$0xff]
        %v7661 = vld [vmem:[#allocation3 + $0xca] sm:$0xff]
        %v7662 = vld [vmem:[#allocation3 + $0xda] sm:$0xff]
        %v7663 = vld [vmem:[#allocation3 + $0xe2] sm:$0xff]
        %v7664 = vld [vmem:[#allocation3 + $0xf2] sm:$0xff]
        %v7665 = vld [vmem:[#allocation3 + $0xfa] sm:$0xff]
        %v7666 = vld [vmem:[#allocation3 + $0x10a] sm:$0xff]
        %v7667 = vld [vmem:[#allocation3 + $0x112] sm:$0xff]
        %v7668 = vld [vmem:[#allocation3 + $0x122] sm:$0xff]
        %v7669 = vld [vmem:[#allocation3 + $0x12a] sm:$0xff]
        %v7670 = vld [vmem:[#allocation3 + $0x13a] sm:$0xff]
        %v7671 = vld [vmem:[#allocation3 + $0x142] sm:$0xff]
        %v7672 = vld [vmem:[#allocation3 + $0x152] sm:$0xff]
        %v7673 = vld [vmem:[#allocation3 + $0x15a] sm:$0xff]
        %v7674 = vld [vmem:[#allocation3 + $0x16a] sm:$0xff]
        %v7675 = vld [vmem:[#allocation3 + $0x172] sm:$0xff]
        %v7676 = vlaneseq
        %v7677 = vshrl.u32 %v7676, 7
        %v7678 = vsub.s32 2, %v7677
        %v7679 = vrot.slane %v7365, %v7678
        %v7680 = vmul.f32 %v7644, %v7679
        %v7681 = vmul.f32 %v7645, %v7679
        %v7682 = vmul.f32 %v7646, %v7679
        %v7683 = vmul.f32 %v7647, %v7679
        %v7684 = vmul.f32 %v7648, %v7679
        %v7685 = vmul.f32 %v7649, %v7679
        %v7686 = vmul.f32 %v7650, %v7679
        %v7687 = vmul.f32 %v7651, %v7679
        %v7688 = vmul.f32 %v7652, %v7679
        %v7689 = vmul.f32 %v7653, %v7679
        %v7690 = vmul.f32 %v7654, %v7679
        %v7691 = vmul.f32 %v7655, %v7679
        %v7692 = vmul.f32 %v7656, %v7679
        %v7693 = vmul.f32 %v7657, %v7679
        %v7694 = vmul.f32 %v7658, %v7679
        %v7695 = vmul.f32 %v7659, %v7679
        %v7696 = vmul.f32 %v7660, %v7679
        %v7697 = vmul.f32 %v7661, %v7679
        %v7698 = vmul.f32 %v7662, %v7679
        %v7699 = vmul.f32 %v7663, %v7679
        %v7700 = vmul.f32 %v7664, %v7679
        %v7701 = vmul.f32 %v7665, %v7679
        %v7702 = vmul.f32 %v7666, %v7679
        %v7703 = vmul.f32 %v7667, %v7679
        %v7704 = vmul.f32 %v7668, %v7679
        %v7705 = vmul.f32 %v7669, %v7679
        %v7706 = vmul.f32 %v7670, %v7679
        %v7707 = vmul.f32 %v7671, %v7679
        %v7708 = vmul.f32 %v7672, %v7679
        %v7709 = vmul.f32 %v7673, %v7679
        %v7710 = vmul.f32 %v7674, %v7679
        %v7711 = vmul.f32 %v7675, %v7679
        %v7712 = vadd.f32 %v7612, %v7680
        %v7713 = vadd.f32 %v7613, %v7681
        %v7714 = vadd.f32 %v7614, %v7682
        %v7715 = vadd.f32 %v7615, %v7683
        %v7716 = vadd.f32 %v7616, %v7684
        %v7717 = vadd.f32 %v7617, %v7685
        %v7718 = vadd.f32 %v7618, %v7686
        %v7719 = vadd.f32 %v7619, %v7687
        %v7720 = vadd.f32 %v7620, %v7688
        %v7721 = vadd.f32 %v7621, %v7689
        %v7722 = vadd.f32 %v7622, %v7690
        %v7723 = vadd.f32 %v7623, %v7691
        %v7724 = vadd.f32 %v7624, %v7692
        %v7725 = vadd.f32 %v7625, %v7693
        %v7726 = vadd.f32 %v7626, %v7694
        %v7727 = vadd.f32 %v7627, %v7695
        %v7728 = vadd.f32 %v7628, %v7696
        %v7729 = vadd.f32 %v7629, %v7697
        %v7730 = vadd.f32 %v7630, %v7698
        %v7731 = vadd.f32 %v7631, %v7699
        %v7732 = vadd.f32 %v7632, %v7700
        %v7733 = vadd.f32 %v7633, %v7701
        %v7734 = vadd.f32 %v7634, %v7702
        %v7735 = vadd.f32 %v7635, %v7703
        %v7736 = vadd.f32 %v7636, %v7704
        %v7737 = vadd.f32 %v7637, %v7705
        %v7738 = vadd.f32 %v7638, %v7706
        %v7739 = vadd.f32 %v7639, %v7707
        %v7740 = vadd.f32 %v7640, %v7708
        %v7741 = vadd.f32 %v7641, %v7709
        %v7742 = vadd.f32 %v7642, %v7710
        %v7743 = vadd.f32 %v7643, %v7711
        %v7744 = vld [vmem:[%s7378] sm:$0xff]
        %v7745 = vld [vmem:[%s7378 + $0x8] sm:$0xff]
        %v7746 = vld [vmem:[%s7378 + $0x18] sm:$0xff]
        %v7747 = vld [vmem:[%s7378 + $0x20] sm:$0xff]
        %v7748 = vld [vmem:[%s7378 + $0x30] sm:$0xff]
        %v7749 = vld [vmem:[%s7378 + $0x38] sm:$0xff]
        %v7750 = vld [vmem:[%s7378 + $0x48] sm:$0xff]
        %v7751 = vld [vmem:[%s7378 + $0x50] sm:$0xff]
        %v7752 = vld [vmem:[%s7378 + $0x60] sm:$0xff]
        %v7753 = vld [vmem:[%s7378 + $0x68] sm:$0xff]
        %v7754 = vld [vmem:[%s7378 + $0x78] sm:$0xff]
        %v7755 = vld [vmem:[%s7378 + $0x80] sm:$0xff]
        %v7756 = vld [vmem:[%s7378 + $0x90] sm:$0xff]
        %v7757 = vld [vmem:[%s7378 + $0x98] sm:$0xff]
        %v7758 = vld [vmem:[%s7378 + $0xa8] sm:$0xff]
        %v7759 = vld [vmem:[%s7378 + $0xb0] sm:$0xff]
        %v7760 = vld [vmem:[%s7378 + $0xc0] sm:$0xff]
        %v7761 = vld [vmem:[%s7378 + $0xc8] sm:$0xff]
        %v7762 = vld [vmem:[%s7378 + $0xd8] sm:$0xff]
        %v7763 = vld [vmem:[%s7378 + $0xe0] sm:$0xff]
        %v7764 = vld [vmem:[%s7378 + $0xf0] sm:$0xff]
        %v7765 = vld [vmem:[%s7378 + $0xf8] sm:$0xff]
        %v7766 = vld [vmem:[%s7378 + $0x108] sm:$0xff]
        %v7767 = vld [vmem:[%s7378 + $0x110] sm:$0xff]
        %v7768 = vld [vmem:[%s7378 + $0x120] sm:$0xff]
        %v7769 = vld [vmem:[%s7378 + $0x128] sm:$0xff]
        %v7770 = vld [vmem:[%s7378 + $0x138] sm:$0xff]
        %v7771 = vld [vmem:[%s7378 + $0x140] sm:$0xff]
        %v7772 = vld [vmem:[%s7378 + $0x150] sm:$0xff]
        %v7773 = vld [vmem:[%s7378 + $0x158] sm:$0xff]
        %v7774 = vld [vmem:[%s7378 + $0x168] sm:$0xff]
        %v7775 = vld [vmem:[%s7378 + $0x170] sm:$0xff]
        %v7776 = vlaneseq
        %v7777 = vshrl.u32 %v7776, 7
        %v7778 = vsub.s32 3, %v7777
        %v7779 = vrot.slane %v7365, %v7778
        %v7780 = vmul.f32 %v7744, %v7779
        %v7781 = vmul.f32 %v7745, %v7779
        %v7782 = vmul.f32 %v7746, %v7779
        %v7783 = vmul.f32 %v7747, %v7779
        %v7784 = vmul.f32 %v7748, %v7779
        %v7785 = vmul.f32 %v7749, %v7779
        %v7786 = vmul.f32 %v7750, %v7779
        %v7787 = vmul.f32 %v7751, %v7779
        %v7788 = vmul.f32 %v7752, %v7779
        %v7789 = vmul.f32 %v7753, %v7779
        %v7790 = vmul.f32 %v7754, %v7779
        %v7791 = vmul.f32 %v7755, %v7779
        %v7792 = vmul.f32 %v7756, %v7779
        %v7793 = vmul.f32 %v7757, %v7779
        %v7794 = vmul.f32 %v7758, %v7779
        %v7795 = vmul.f32 %v7759, %v7779
        %v7796 = vmul.f32 %v7760, %v7779
        %v7797 = vmul.f32 %v7761, %v7779
        %v7798 = vmul.f32 %v7762, %v7779
        %v7799 = vmul.f32 %v7763, %v7779
        %v7800 = vmul.f32 %v7764, %v7779
        %v7801 = vmul.f32 %v7765, %v7779
        %v7802 = vmul.f32 %v7766, %v7779
        %v7803 = vmul.f32 %v7767, %v7779
        %v7804 = vmul.f32 %v7768, %v7779
        %v7805 = vmul.f32 %v7769, %v7779
        %v7806 = vmul.f32 %v7770, %v7779
        %v7807 = vmul.f32 %v7771, %v7779
        %v7808 = vmul.f32 %v7772, %v7779
        %v7809 = vmul.f32 %v7773, %v7779
        %v7810 = vmul.f32 %v7774, %v7779
        %v7811 = vmul.f32 %v7775, %v7779
        %v7812 = vadd.f32 %v7712, %v7780
        %v7813 = vadd.f32 %v7713, %v7781
        %v7814 = vadd.f32 %v7714, %v7782
        %v7815 = vadd.f32 %v7715, %v7783
        %v7816 = vadd.f32 %v7716, %v7784
        %v7817 = vadd.f32 %v7717, %v7785
        %v7818 = vadd.f32 %v7718, %v7786
        %v7819 = vadd.f32 %v7719, %v7787
        %v7820 = vadd.f32 %v7720, %v7788
        %v7821 = vadd.f32 %v7721, %v7789
        %v7822 = vadd.f32 %v7722, %v7790
        %v7823 = vadd.f32 %v7723, %v7791
        %v7824 = vadd.f32 %v7724, %v7792
        %v7825 = vadd.f32 %v7725, %v7793
        %v7826 = vadd.f32 %v7726, %v7794
        %v7827 = vadd.f32 %v7727, %v7795
        %v7828 = vadd.f32 %v7728, %v7796
        %v7829 = vadd.f32 %v7729, %v7797
        %v7830 = vadd.f32 %v7730, %v7798
        %v7831 = vadd.f32 %v7731, %v7799
        %v7832 = vadd.f32 %v7732, %v7800
        %v7833 = vadd.f32 %v7733, %v7801
        %v7834 = vadd.f32 %v7734, %v7802
        %v7835 = vadd.f32 %v7735, %v7803
        %v7836 = vadd.f32 %v7736, %v7804
        %v7837 = vadd.f32 %v7737, %v7805
        %v7838 = vadd.f32 %v7738, %v7806
        %v7839 = vadd.f32 %v7739, %v7807
        %v7840 = vadd.f32 %v7740, %v7808
        %v7841 = vadd.f32 %v7741, %v7809
        %v7842 = vadd.f32 %v7742, %v7810
        %v7843 = vadd.f32 %v7743, %v7811
        %v7844 = vld [vmem:[%s7378 + $0x1] sm:$0xff]
        %v7845 = vld [vmem:[%s7378 + $0x9] sm:$0xff]
        %v7846 = vld [vmem:[%s7378 + $0x19] sm:$0xff]
        %v7847 = vld [vmem:[%s7378 + $0x21] sm:$0xff]
        %v7848 = vld [vmem:[%s7378 + $0x31] sm:$0xff]
        %v7849 = vld [vmem:[%s7378 + $0x39] sm:$0xff]
        %v7850 = vld [vmem:[%s7378 + $0x49] sm:$0xff]
        %v7851 = vld [vmem:[%s7378 + $0x51] sm:$0xff]
        %v7852 = vld [vmem:[%s7378 + $0x61] sm:$0xff]
        %v7853 = vld [vmem:[%s7378 + $0x69] sm:$0xff]
        %v7854 = vld [vmem:[%s7378 + $0x79] sm:$0xff]
        %v7855 = vld [vmem:[%s7378 + $0x81] sm:$0xff]
        %v7856 = vld [vmem:[%s7378 + $0x91] sm:$0xff]
        %v7857 = vld [vmem:[%s7378 + $0x99] sm:$0xff]
        %v7858 = vld [vmem:[%s7378 + $0xa9] sm:$0xff]
        %v7859 = vld [vmem:[%s7378 + $0xb1] sm:$0xff]
        %v7860 = vld [vmem:[%s7378 + $0xc1] sm:$0xff]
        %v7861 = vld [vmem:[%s7378 + $0xc9] sm:$0xff]
        %v7862 = vld [vmem:[%s7378 + $0xd9] sm:$0xff]
        %v7863 = vld [vmem:[%s7378 + $0xe1] sm:$0xff]
        %v7864 = vld [vmem:[%s7378 + $0xf1] sm:$0xff]
        %v7865 = vld [vmem:[%s7378 + $0xf9] sm:$0xff]
        %v7866 = vld [vmem:[%s7378 + $0x109] sm:$0xff]
        %v7867 = vld [vmem:[%s7378 + $0x111] sm:$0xff]
        %v7868 = vld [vmem:[%s7378 + $0x121] sm:$0xff]
        %v7869 = vld [vmem:[%s7378 + $0x129] sm:$0xff]
        %v7870 = vld [vmem:[%s7378 + $0x139] sm:$0xff]
        %v7871 = vld [vmem:[%s7378 + $0x141] sm:$0xff]
        %v7872 = vld [vmem:[%s7378 + $0x151] sm:$0xff]
        %v7873 = vld [vmem:[%s7378 + $0x159] sm:$0xff]
        %v7874 = vld [vmem:[%s7378 + $0x169] sm:$0xff]
        %v7875 = vld [vmem:[%s7378 + $0x171] sm:$0xff]
        %v7876 = vlaneseq
        %v7877 = vshrl.u32 %v7876, 7
        %v7878 = vsub.s32 4, %v7877
        %v7879 = vrot.slane %v7365, %v7878
        %v7880 = vmul.f32 %v7844, %v7879
        %v7881 = vmul.f32 %v7845, %v7879
        %v7882 = vmul.f32 %v7846, %v7879
        %v7883 = vmul.f32 %v7847, %v7879
        %v7884 = vmul.f32 %v7848, %v7879
        %v7885 = vmul.f32 %v7849, %v7879
        %v7886 = vmul.f32 %v7850, %v7879
        %v7887 = vmul.f32 %v7851, %v7879
        %v7888 = vmul.f32 %v7852, %v7879
        %v7889 = vmul.f32 %v7853, %v7879
        %v7890 = vmul.f32 %v7854, %v7879
        %v7891 = vmul.f32 %v7855, %v7879
        %v7892 = vmul.f32 %v7856, %v7879
        %v7893 = vmul.f32 %v7857, %v7879
        %v7894 = vmul.f32 %v7858, %v7879
        %v7895 = vmul.f32 %v7859, %v7879
        %v7896 = vmul.f32 %v7860, %v7879
        %v7897 = vmul.f32 %v7861, %v7879
        %v7898 = vmul.f32 %v7862, %v7879
        %v7899 = vmul.f32 %v7863, %v7879
        %v7900 = vmul.f32 %v7864, %v7879
        %v7901 = vmul.f32 %v7865, %v7879
        %v7902 = vmul.f32 %v7866, %v7879
        %v7903 = vmul.f32 %v7867, %v7879
        %v7904 = vmul.f32 %v7868, %v7879
        %v7905 = vmul.f32 %v7869, %v7879
        %v7906 = vmul.f32 %v7870, %v7879
        %v7907 = vmul.f32 %v7871, %v7879
        %v7908 = vmul.f32 %v7872, %v7879
        %v7909 = vmul.f32 %v7873, %v7879
        %v7910 = vmul.f32 %v7874, %v7879
        %v7911 = vmul.f32 %v7875, %v7879
        %v7912 = vadd.f32 %v7812, %v7880
        %v7913 = vadd.f32 %v7813, %v7881
        %v7914 = vadd.f32 %v7814, %v7882
        %v7915 = vadd.f32 %v7815, %v7883
        %v7916 = vadd.f32 %v7816, %v7884
        %v7917 = vadd.f32 %v7817, %v7885
        %v7918 = vadd.f32 %v7818, %v7886
        %v7919 = vadd.f32 %v7819, %v7887
        %v7920 = vadd.f32 %v7820, %v7888
        %v7921 = vadd.f32 %v7821, %v7889
        %v7922 = vadd.f32 %v7822, %v7890
        %v7923 = vadd.f32 %v7823, %v7891
        %v7924 = vadd.f32 %v7824, %v7892
        %v7925 = vadd.f32 %v7825, %v7893
        %v7926 = vadd.f32 %v7826, %v7894
        %v7927 = vadd.f32 %v7827, %v7895
        %v7928 = vadd.f32 %v7828, %v7896
        %v7929 = vadd.f32 %v7829, %v7897
        %v7930 = vadd.f32 %v7830, %v7898
        %v7931 = vadd.f32 %v7831, %v7899
        %v7932 = vadd.f32 %v7832, %v7900
        %v7933 = vadd.f32 %v7833, %v7901
        %v7934 = vadd.f32 %v7834, %v7902
        %v7935 = vadd.f32 %v7835, %v7903
        %v7936 = vadd.f32 %v7836, %v7904
        %v7937 = vadd.f32 %v7837, %v7905
        %v7938 = vadd.f32 %v7838, %v7906
        %v7939 = vadd.f32 %v7839, %v7907
        %v7940 = vadd.f32 %v7840, %v7908
        %v7941 = vadd.f32 %v7841, %v7909
        %v7942 = vadd.f32 %v7842, %v7910
        %v7943 = vadd.f32 %v7843, %v7911
        %v7944 = vld [vmem:[%s7378 + $0x2] sm:$0xff]
        %v7945 = vld [vmem:[%s7378 + $0xa] sm:$0xff]
        %v7946 = vld [vmem:[%s7378 + $0x1a] sm:$0xff]
        %v7947 = vld [vmem:[%s7378 + $0x22] sm:$0xff]
        %v7948 = vld [vmem:[%s7378 + $0x32] sm:$0xff]
        %v7949 = vld [vmem:[%s7378 + $0x3a] sm:$0xff]
        %v7950 = vld [vmem:[%s7378 + $0x4a] sm:$0xff]
        %v7951 = vld [vmem:[%s7378 + $0x52] sm:$0xff]
        %v7952 = vld [vmem:[%s7378 + $0x62] sm:$0xff]
        %v7953 = vld [vmem:[%s7378 + $0x6a] sm:$0xff]
        %v7954 = vld [vmem:[%s7378 + $0x7a] sm:$0xff]
        %v7955 = vld [vmem:[%s7378 + $0x82] sm:$0xff]
        %v7956 = vld [vmem:[%s7378 + $0x92] sm:$0xff]
        %v7957 = vld [vmem:[%s7378 + $0x9a] sm:$0xff]
        %v7958 = vld [vmem:[%s7378 + $0xaa] sm:$0xff]
        %v7959 = vld [vmem:[%s7378 + $0xb2] sm:$0xff]
        %v7960 = vld [vmem:[%s7378 + $0xc2] sm:$0xff]
        %v7961 = vld [vmem:[%s7378 + $0xca] sm:$0xff]
        %v7962 = vld [vmem:[%s7378 + $0xda] sm:$0xff]
        %v7963 = vld [vmem:[%s7378 + $0xe2] sm:$0xff]
        %v7964 = vld [vmem:[%s7378 + $0xf2] sm:$0xff]
        %v7965 = vld [vmem:[%s7378 + $0xfa] sm:$0xff]
        %v7966 = vld [vmem:[%s7378 + $0x10a] sm:$0xff]
        %v7967 = vld [vmem:[%s7378 + $0x112] sm:$0xff]
        %v7968 = vld [vmem:[%s7378 + $0x122] sm:$0xff]
        %v7969 = vld [vmem:[%s7378 + $0x12a] sm:$0xff]
        %v7970 = vld [vmem:[%s7378 + $0x13a] sm:$0xff]
        %v7971 = vld [vmem:[%s7378 + $0x142] sm:$0xff]
        %v7972 = vld [vmem:[%s7378 + $0x152] sm:$0xff]
        %v7973 = vld [vmem:[%s7378 + $0x15a] sm:$0xff]
        %v7974 = vld [vmem:[%s7378 + $0x16a] sm:$0xff]
        %v7975 = vld [vmem:[%s7378 + $0x172] sm:$0xff]
        %v7976 = vlaneseq
        %v7977 = vshrl.u32 %v7976, 7
        %v7978 = vsub.s32 5, %v7977
        %v7979 = vrot.slane %v7365, %v7978
        %v7980 = vmul.f32 %v7944, %v7979
        %v7981 = vmul.f32 %v7945, %v7979
        %v7982 = vmul.f32 %v7946, %v7979
        %v7983 = vmul.f32 %v7947, %v7979
        %v7984 = vmul.f32 %v7948, %v7979
        %v7985 = vmul.f32 %v7949, %v7979
        %v7986 = vmul.f32 %v7950, %v7979
        %v7987 = vmul.f32 %v7951, %v7979
        %v7988 = vmul.f32 %v7952, %v7979
        %v7989 = vmul.f32 %v7953, %v7979
        %v7990 = vmul.f32 %v7954, %v7979
        %v7991 = vmul.f32 %v7955, %v7979
        %v7992 = vmul.f32 %v7956, %v7979
        %v7993 = vmul.f32 %v7957, %v7979
        %v7994 = vmul.f32 %v7958, %v7979
        %v7995 = vmul.f32 %v7959, %v7979
        %v7996 = vmul.f32 %v7960, %v7979
        %v7997 = vmul.f32 %v7961, %v7979
        %v7998 = vmul.f32 %v7962, %v7979
        %v7999 = vmul.f32 %v7963, %v7979
        %v8000 = vmul.f32 %v7964, %v7979
        %v8001 = vmul.f32 %v7965, %v7979
        %v8002 = vmul.f32 %v7966, %v7979
        %v8003 = vmul.f32 %v7967, %v7979
        %v8004 = vmul.f32 %v7968, %v7979
        %v8005 = vmul.f32 %v7969, %v7979
        %v8006 = vmul.f32 %v7970, %v7979
        %v8007 = vmul.f32 %v7971, %v7979
        %v8008 = vmul.f32 %v7972, %v7979
        %v8009 = vmul.f32 %v7973, %v7979
        %v8010 = vmul.f32 %v7974, %v7979
        %v8011 = vmul.f32 %v7975, %v7979
        %v8012 = vadd.f32 %v7912, %v7980
        %v8013 = vadd.f32 %v7913, %v7981
        %v8014 = vadd.f32 %v7914, %v7982
        %v8015 = vadd.f32 %v7915, %v7983
        %v8016 = vadd.f32 %v7916, %v7984
        %v8017 = vadd.f32 %v7917, %v7985
        %v8018 = vadd.f32 %v7918, %v7986
        %v8019 = vadd.f32 %v7919, %v7987
        %v8020 = vadd.f32 %v7920, %v7988
        %v8021 = vadd.f32 %v7921, %v7989
        %v8022 = vadd.f32 %v7922, %v7990
        %v8023 = vadd.f32 %v7923, %v7991
        %v8024 = vadd.f32 %v7924, %v7992
        %v8025 = vadd.f32 %v7925, %v7993
        %v8026 = vadd.f32 %v7926, %v7994
        %v8027 = vadd.f32 %v7927, %v7995
        %v8028 = vadd.f32 %v7928, %v7996
        %v8029 = vadd.f32 %v7929, %v7997
        %v8030 = vadd.f32 %v7930, %v7998
        %v8031 = vadd.f32 %v7931, %v7999
        %v8032 = vadd.f32 %v7932, %v8000
        %v8033 = vadd.f32 %v7933, %v8001
        %v8034 = vadd.f32 %v7934, %v8002
        %v8035 = vadd.f32 %v7935, %v8003
        %v8036 = vadd.f32 %v7936, %v8004
        %v8037 = vadd.f32 %v7937, %v8005
        %v8038 = vadd.f32 %v7938, %v8006
        %v8039 = vadd.f32 %v7939, %v8007
        %v8040 = vadd.f32 %v7940, %v8008
        %v8041 = vadd.f32 %v7941, %v8009
        %v8042 = vadd.f32 %v7942, %v8010
        %v8043 = vadd.f32 %v7943, %v8011
        %s8044 = scalar_lea.vmem [#allocation3], 48
        %v8045 = vld [vmem:[%s8044] sm:$0xff]
        %v8046 = vld [vmem:[%s8044 + $0x8] sm:$0xff]
        %v8047 = vld [vmem:[%s8044 + $0x18] sm:$0xff]
        %v8048 = vld [vmem:[%s8044 + $0x20] sm:$0xff]
        %v8049 = vld [vmem:[%s8044 + $0x30] sm:$0xff]
        %v8050 = vld [vmem:[%s8044 + $0x38] sm:$0xff]
        %v8051 = vld [vmem:[%s8044 + $0x48] sm:$0xff]
        %v8052 = vld [vmem:[%s8044 + $0x50] sm:$0xff]
        %v8053 = vld [vmem:[%s8044 + $0x60] sm:$0xff]
        %v8054 = vld [vmem:[%s8044 + $0x68] sm:$0xff]
        %v8055 = vld [vmem:[%s8044 + $0x78] sm:$0xff]
        %v8056 = vld [vmem:[%s8044 + $0x80] sm:$0xff]
        %v8057 = vld [vmem:[%s8044 + $0x90] sm:$0xff]
        %v8058 = vld [vmem:[%s8044 + $0x98] sm:$0xff]
        %v8059 = vld [vmem:[%s8044 + $0xa8] sm:$0xff]
        %v8060 = vld [vmem:[%s8044 + $0xb0] sm:$0xff]
        %v8061 = vld [vmem:[%s8044 + $0xc0] sm:$0xff]
        %v8062 = vld [vmem:[%s8044 + $0xc8] sm:$0xff]
        %v8063 = vld [vmem:[%s8044 + $0xd8] sm:$0xff]
        %v8064 = vld [vmem:[%s8044 + $0xe0] sm:$0xff]
        %v8065 = vld [vmem:[%s8044 + $0xf0] sm:$0xff]
        %v8066 = vld [vmem:[%s8044 + $0xf8] sm:$0xff]
        %v8067 = vld [vmem:[%s8044 + $0x108] sm:$0xff]
        %v8068 = vld [vmem:[%s8044 + $0x110] sm:$0xff]
        %v8069 = vld [vmem:[%s8044 + $0x120] sm:$0xff]
        %v8070 = vld [vmem:[%s8044 + $0x128] sm:$0xff]
        %v8071 = vld [vmem:[%s8044 + $0x138] sm:$0xff]
        %v8072 = vld [vmem:[%s8044 + $0x140] sm:$0xff]
        %v8073 = vld [vmem:[%s8044 + $0x150] sm:$0xff]
        %v8074 = vld [vmem:[%s8044 + $0x158] sm:$0xff]
        %v8075 = vld [vmem:[%s8044 + $0x168] sm:$0xff]
        %v8076 = vld [vmem:[%s8044 + $0x170] sm:$0xff]
        %v8077 = vlaneseq
        %v8078 = vshrl.u32 %v8077, 7
        %v8079 = vsub.s32 6, %v8078
        %v8080 = vrot.slane %v7365, %v8079
        %v8081 = vmul.f32 %v8045, %v8080
        %v8082 = vmul.f32 %v8046, %v8080
        %v8083 = vmul.f32 %v8047, %v8080
        %v8084 = vmul.f32 %v8048, %v8080
        %v8085 = vmul.f32 %v8049, %v8080
        %v8086 = vmul.f32 %v8050, %v8080
        %v8087 = vmul.f32 %v8051, %v8080
        %v8088 = vmul.f32 %v8052, %v8080
        %v8089 = vmul.f32 %v8053, %v8080
        %v8090 = vmul.f32 %v8054, %v8080
        %v8091 = vmul.f32 %v8055, %v8080
        %v8092 = vmul.f32 %v8056, %v8080
        %v8093 = vmul.f32 %v8057, %v8080
        %v8094 = vmul.f32 %v8058, %v8080
        %v8095 = vmul.f32 %v8059, %v8080
        %v8096 = vmul.f32 %v8060, %v8080
        %v8097 = vmul.f32 %v8061, %v8080
        %v8098 = vmul.f32 %v8062, %v8080
        %v8099 = vmul.f32 %v8063, %v8080
        %v8100 = vmul.f32 %v8064, %v8080
        %v8101 = vmul.f32 %v8065, %v8080
        %v8102 = vmul.f32 %v8066, %v8080
        %v8103 = vmul.f32 %v8067, %v8080
        %v8104 = vmul.f32 %v8068, %v8080
        %v8105 = vmul.f32 %v8069, %v8080
        %v8106 = vmul.f32 %v8070, %v8080
        %v8107 = vmul.f32 %v8071, %v8080
        %v8108 = vmul.f32 %v8072, %v8080
        %v8109 = vmul.f32 %v8073, %v8080
        %v8110 = vmul.f32 %v8074, %v8080
        %v8111 = vmul.f32 %v8075, %v8080
        %v8112 = vmul.f32 %v8076, %v8080
        %v8113 = vadd.f32 %v8012, %v8081
        %v8114 = vadd.f32 %v8013, %v8082
        %v8115 = vadd.f32 %v8014, %v8083
        %v8116 = vadd.f32 %v8015, %v8084
        %v8117 = vadd.f32 %v8016, %v8085
        %v8118 = vadd.f32 %v8017, %v8086
        %v8119 = vadd.f32 %v8018, %v8087
        %v8120 = vadd.f32 %v8019, %v8088
        %v8121 = vadd.f32 %v8020, %v8089
        %v8122 = vadd.f32 %v8021, %v8090
        %v8123 = vadd.f32 %v8022, %v8091
        %v8124 = vadd.f32 %v8023, %v8092
        %v8125 = vadd.f32 %v8024, %v8093
        %v8126 = vadd.f32 %v8025, %v8094
        %v8127 = vadd.f32 %v8026, %v8095
        %v8128 = vadd.f32 %v8027, %v8096
        %v8129 = vadd.f32 %v8028, %v8097
        %v8130 = vadd.f32 %v8029, %v8098
        %v8131 = vadd.f32 %v8030, %v8099
        %v8132 = vadd.f32 %v8031, %v8100
        %v8133 = vadd.f32 %v8032, %v8101
        %v8134 = vadd.f32 %v8033, %v8102
        %v8135 = vadd.f32 %v8034, %v8103
        %v8136 = vadd.f32 %v8035, %v8104
        %v8137 = vadd.f32 %v8036, %v8105
        %v8138 = vadd.f32 %v8037, %v8106
        %v8139 = vadd.f32 %v8038, %v8107
        %v8140 = vadd.f32 %v8039, %v8108
        %v8141 = vadd.f32 %v8040, %v8109
        %v8142 = vadd.f32 %v8041, %v8110
        %v8143 = vadd.f32 %v8042, %v8111
        %v8144 = vadd.f32 %v8043, %v8112
        %v8145 = vld [vmem:[%s8044 + $0x1] sm:$0xff]
        %v8146 = vld [vmem:[%s8044 + $0x9] sm:$0xff]
        %v8147 = vld [vmem:[%s8044 + $0x19] sm:$0xff]
        %v8148 = vld [vmem:[%s8044 + $0x21] sm:$0xff]
        %v8149 = vld [vmem:[%s8044 + $0x31] sm:$0xff]
        %v8150 = vld [vmem:[%s8044 + $0x39] sm:$0xff]
        %v8151 = vld [vmem:[%s8044 + $0x49] sm:$0xff]
        %v8152 = vld [vmem:[%s8044 + $0x51] sm:$0xff]
        %v8153 = vld [vmem:[%s8044 + $0x61] sm:$0xff]
        %v8154 = vld [vmem:[%s8044 + $0x69] sm:$0xff]
        %v8155 = vld [vmem:[%s8044 + $0x79] sm:$0xff]
        %v8156 = vld [vmem:[%s8044 + $0x81] sm:$0xff]
        %v8157 = vld [vmem:[%s8044 + $0x91] sm:$0xff]
        %v8158 = vld [vmem:[%s8044 + $0x99] sm:$0xff]
        %v8159 = vld [vmem:[%s8044 + $0xa9] sm:$0xff]
        %v8160 = vld [vmem:[%s8044 + $0xb1] sm:$0xff]
        %v8161 = vld [vmem:[%s8044 + $0xc1] sm:$0xff]
        %v8162 = vld [vmem:[%s8044 + $0xc9] sm:$0xff]
        %v8163 = vld [vmem:[%s8044 + $0xd9] sm:$0xff]
        %v8164 = vld [vmem:[%s8044 + $0xe1] sm:$0xff]
        %v8165 = vld [vmem:[%s8044 + $0xf1] sm:$0xff]
        %v8166 = vld [vmem:[%s8044 + $0xf9] sm:$0xff]
        %v8167 = vld [vmem:[%s8044 + $0x109] sm:$0xff]
        %v8168 = vld [vmem:[%s8044 + $0x111] sm:$0xff]
        %v8169 = vld [vmem:[%s8044 + $0x121] sm:$0xff]
        %v8170 = vld [vmem:[%s8044 + $0x129] sm:$0xff]
        %v8171 = vld [vmem:[%s8044 + $0x139] sm:$0xff]
        %v8172 = vld [vmem:[%s8044 + $0x141] sm:$0xff]
        %v8173 = vld [vmem:[%s8044 + $0x151] sm:$0xff]
        %v8174 = vld [vmem:[%s8044 + $0x159] sm:$0xff]
        %v8175 = vld [vmem:[%s8044 + $0x169] sm:$0xff]
        %v8176 = vld [vmem:[%s8044 + $0x171] sm:$0xff]
        %v8177 = vlaneseq
        %v8178 = vshrl.u32 %v8177, 7
        %v8179 = vsub.s32 7, %v8178
        %v8180 = vrot.slane %v7365, %v8179
        %v8181 = vmul.f32 %v8145, %v8180
        %v8182 = vmul.f32 %v8146, %v8180
        %v8183 = vmul.f32 %v8147, %v8180
        %v8184 = vmul.f32 %v8148, %v8180
        %v8185 = vmul.f32 %v8149, %v8180
        %v8186 = vmul.f32 %v8150, %v8180
        %v8187 = vmul.f32 %v8151, %v8180
        %v8188 = vmul.f32 %v8152, %v8180
        %v8189 = vmul.f32 %v8153, %v8180
        %v8190 = vmul.f32 %v8154, %v8180
        %v8191 = vmul.f32 %v8155, %v8180
        %v8192 = vmul.f32 %v8156, %v8180
        %v8193 = vmul.f32 %v8157, %v8180
        %v8194 = vmul.f32 %v8158, %v8180
        %v8195 = vmul.f32 %v8159, %v8180
        %v8196 = vmul.f32 %v8160, %v8180
        %v8197 = vmul.f32 %v8161, %v8180
        %v8198 = vmul.f32 %v8162, %v8180
        %v8199 = vmul.f32 %v8163, %v8180
        %v8200 = vmul.f32 %v8164, %v8180
        %v8201 = vmul.f32 %v8165, %v8180
        %v8202 = vmul.f32 %v8166, %v8180
        %v8203 = vmul.f32 %v8167, %v8180
        %v8204 = vmul.f32 %v8168, %v8180
        %v8205 = vmul.f32 %v8169, %v8180
        %v8206 = vmul.f32 %v8170, %v8180
        %v8207 = vmul.f32 %v8171, %v8180
        %v8208 = vmul.f32 %v8172, %v8180
        %v8209 = vmul.f32 %v8173, %v8180
        %v8210 = vmul.f32 %v8174, %v8180
        %v8211 = vmul.f32 %v8175, %v8180
        %v8212 = vmul.f32 %v8176, %v8180
        %v8213 = vadd.f32 %v8113, %v8181
        %v8214 = vadd.f32 %v8114, %v8182
        %v8215 = vadd.f32 %v8115, %v8183
        %v8216 = vadd.f32 %v8116, %v8184
        %v8217 = vadd.f32 %v8117, %v8185
        %v8218 = vadd.f32 %v8118, %v8186
        %v8219 = vadd.f32 %v8119, %v8187
        %v8220 = vadd.f32 %v8120, %v8188
        %v8221 = vadd.f32 %v8121, %v8189
        %v8222 = vadd.f32 %v8122, %v8190
        %v8223 = vadd.f32 %v8123, %v8191
        %v8224 = vadd.f32 %v8124, %v8192
        %v8225 = vadd.f32 %v8125, %v8193
        %v8226 = vadd.f32 %v8126, %v8194
        %v8227 = vadd.f32 %v8127, %v8195
        %v8228 = vadd.f32 %v8128, %v8196
        %v8229 = vadd.f32 %v8129, %v8197
        %v8230 = vadd.f32 %v8130, %v8198
        %v8231 = vadd.f32 %v8131, %v8199
        %v8232 = vadd.f32 %v8132, %v8200
        %v8233 = vadd.f32 %v8133, %v8201
        %v8234 = vadd.f32 %v8134, %v8202
        %v8235 = vadd.f32 %v8135, %v8203
        %v8236 = vadd.f32 %v8136, %v8204
        %v8237 = vadd.f32 %v8137, %v8205
        %v8238 = vadd.f32 %v8138, %v8206
        %v8239 = vadd.f32 %v8139, %v8207
        %v8240 = vadd.f32 %v8140, %v8208
        %v8241 = vadd.f32 %v8141, %v8209
        %v8242 = vadd.f32 %v8142, %v8210
        %v8243 = vadd.f32 %v8143, %v8211
        %v8244 = vadd.f32 %v8144, %v8212
        %v8245 = vld [vmem:[%s8044 + $0x2] sm:$0xff]
        %v8246 = vld [vmem:[%s8044 + $0xa] sm:$0xff]
        %v8247 = vld [vmem:[%s8044 + $0x1a] sm:$0xff]
        %v8248 = vld [vmem:[%s8044 + $0x22] sm:$0xff]
        %v8249 = vld [vmem:[%s8044 + $0x32] sm:$0xff]
        %v8250 = vld [vmem:[%s8044 + $0x3a] sm:$0xff]
        %v8251 = vld [vmem:[%s8044 + $0x4a] sm:$0xff]
        %v8252 = vld [vmem:[%s8044 + $0x52] sm:$0xff]
        %v8253 = vld [vmem:[%s8044 + $0x62] sm:$0xff]
        %v8254 = vld [vmem:[%s8044 + $0x6a] sm:$0xff]
        %v8255 = vld [vmem:[%s8044 + $0x7a] sm:$0xff]
        %v8256 = vld [vmem:[%s8044 + $0x82] sm:$0xff]
        %v8257 = vld [vmem:[%s8044 + $0x92] sm:$0xff]
        %v8258 = vld [vmem:[%s8044 + $0x9a] sm:$0xff]
        %v8259 = vld [vmem:[%s8044 + $0xaa] sm:$0xff]
        %v8260 = vld [vmem:[%s8044 + $0xb2] sm:$0xff]
        %v8261 = vld [vmem:[%s8044 + $0xc2] sm:$0xff]
        %v8262 = vld [vmem:[%s8044 + $0xca] sm:$0xff]
        %v8263 = vld [vmem:[%s8044 + $0xda] sm:$0xff]
        %v8264 = vld [vmem:[%s8044 + $0xe2] sm:$0xff]
        %v8265 = vld [vmem:[%s8044 + $0xf2] sm:$0xff]
        %v8266 = vld [vmem:[%s8044 + $0xfa] sm:$0xff]
        %v8267 = vld [vmem:[%s8044 + $0x10a] sm:$0xff]
        %v8268 = vld [vmem:[%s8044 + $0x112] sm:$0xff]
        %v8269 = vld [vmem:[%s8044 + $0x122] sm:$0xff]
        %v8270 = vld [vmem:[%s8044 + $0x12a] sm:$0xff]
        %v8271 = vld [vmem:[%s8044 + $0x13a] sm:$0xff]
        %v8272 = vld [vmem:[%s8044 + $0x142] sm:$0xff]
        %v8273 = vld [vmem:[%s8044 + $0x152] sm:$0xff]
        %v8274 = vld [vmem:[%s8044 + $0x15a] sm:$0xff]
        %v8275 = vld [vmem:[%s8044 + $0x16a] sm:$0xff]
        %v8276 = vld [vmem:[%s8044 + $0x172] sm:$0xff]
        %v8277 = vlaneseq
        %v8278 = vshrl.u32 %v8277, 7
        %v8279 = vsub.s32 0, %v8278
        %v8280 = vrot.slane %v7366, %v8279
        %v8281 = vmul.f32 %v8245, %v8280
        %v8282 = vmul.f32 %v8246, %v8280
        %v8283 = vmul.f32 %v8247, %v8280
        %v8284 = vmul.f32 %v8248, %v8280
        %v8285 = vmul.f32 %v8249, %v8280
        %v8286 = vmul.f32 %v8250, %v8280
        %v8287 = vmul.f32 %v8251, %v8280
        %v8288 = vmul.f32 %v8252, %v8280
        %v8289 = vmul.f32 %v8253, %v8280
        %v8290 = vmul.f32 %v8254, %v8280
        %v8291 = vmul.f32 %v8255, %v8280
        %v8292 = vmul.f32 %v8256, %v8280
        %v8293 = vmul.f32 %v8257, %v8280
        %v8294 = vmul.f32 %v8258, %v8280
        %v8295 = vmul.f32 %v8259, %v8280
        %v8296 = vmul.f32 %v8260, %v8280
        %v8297 = vmul.f32 %v8261, %v8280
        %v8298 = vmul.f32 %v8262, %v8280
        %v8299 = vmul.f32 %v8263, %v8280
        %v8300 = vmul.f32 %v8264, %v8280
        %v8301 = vmul.f32 %v8265, %v8280
        %v8302 = vmul.f32 %v8266, %v8280
        %v8303 = vmul.f32 %v8267, %v8280
        %v8304 = vmul.f32 %v8268, %v8280
        %v8305 = vmul.f32 %v8269, %v8280
        %v8306 = vmul.f32 %v8270, %v8280
        %v8307 = vmul.f32 %v8271, %v8280
        %v8308 = vmul.f32 %v8272, %v8280
        %v8309 = vmul.f32 %v8273, %v8280
        %v8310 = vmul.f32 %v8274, %v8280
        %v8311 = vmul.f32 %v8275, %v8280
        %v8312 = vmul.f32 %v8276, %v8280
        %v8313 = vadd.f32 %v8213, %v8281
        %v8314 = vadd.f32 %v8214, %v8282
        %v8315 = vadd.f32 %v8215, %v8283
        %v8316 = vadd.f32 %v8216, %v8284
        %v8317 = vadd.f32 %v8217, %v8285
        %v8318 = vadd.f32 %v8218, %v8286
        %v8319 = vadd.f32 %v8219, %v8287
        %v8320 = vadd.f32 %v8220, %v8288
        %v8321 = vadd.f32 %v8221, %v8289
        %v8322 = vadd.f32 %v8222, %v8290
        %v8323 = vadd.f32 %v8223, %v8291
        %v8324 = vadd.f32 %v8224, %v8292
        %v8325 = vadd.f32 %v8225, %v8293
        %v8326 = vadd.f32 %v8226, %v8294
        %v8327 = vadd.f32 %v8227, %v8295
        %v8328 = vadd.f32 %v8228, %v8296
        %v8329 = vadd.f32 %v8229, %v8297
        %v8330 = vadd.f32 %v8230, %v8298
        %v8331 = vadd.f32 %v8231, %v8299
        %v8332 = vadd.f32 %v8232, %v8300
        %v8333 = vadd.f32 %v8233, %v8301
        %v8334 = vadd.f32 %v8234, %v8302
        %v8335 = vadd.f32 %v8235, %v8303
        %v8336 = vadd.f32 %v8236, %v8304
        %v8337 = vadd.f32 %v8237, %v8305
        %v8338 = vadd.f32 %v8238, %v8306
        %v8339 = vadd.f32 %v8239, %v8307
        %v8340 = vadd.f32 %v8240, %v8308
        %v8341 = vadd.f32 %v8241, %v8309
        %v8342 = vadd.f32 %v8242, %v8310
        %v8343 = vadd.f32 %v8243, %v8311
        %v8344 = vadd.f32 %v8244, %v8312
        %v8345 = vlaneseq
        %v8346 = vshrl.u32 %v8345, 7
        %v8347 = vsub.s32 0, %v8346
        %v8348 = vrot.slane %v7362, %v8347
        %v8349 = vmul.f32 %v8313, %v8348
        %v8350 = vmul.f32 %v8314, %v8348
        %v8351 = vmul.f32 %v8315, %v8348
        %v8352 = vmul.f32 %v8316, %v8348
        %v8353 = vmul.f32 %v8317, %v8348
        %v8354 = vmul.f32 %v8318, %v8348
        %v8355 = vmul.f32 %v8319, %v8348
        %v8356 = vmul.f32 %v8320, %v8348
        %v8357 = vmul.f32 %v8321, %v8348
        %v8358 = vmul.f32 %v8322, %v8348
        %v8359 = vmul.f32 %v8323, %v8348
        %v8360 = vmul.f32 %v8324, %v8348
        %v8361 = vmul.f32 %v8325, %v8348
        %v8362 = vmul.f32 %v8326, %v8348
        %v8363 = vmul.f32 %v8327, %v8348
        %v8364 = vmul.f32 %v8328, %v8348
        %v8365 = vmul.f32 %v8329, %v8348
        %v8366 = vmul.f32 %v8330, %v8348
        %v8367 = vmul.f32 %v8331, %v8348
        %v8368 = vmul.f32 %v8332, %v8348
        %v8369 = vmul.f32 %v8333, %v8348
        %v8370 = vmul.f32 %v8334, %v8348
        %v8371 = vmul.f32 %v8335, %v8348
        %v8372 = vmul.f32 %v8336, %v8348
        %v8373 = vmul.f32 %v8337, %v8348
        %v8374 = vmul.f32 %v8338, %v8348
        %v8375 = vmul.f32 %v8339, %v8348
        %v8376 = vmul.f32 %v8340, %v8348
        %v8377 = vmul.f32 %v8341, %v8348
        %v8378 = vmul.f32 %v8342, %v8348
        %v8379 = vmul.f32 %v8343, %v8348
        %v8380 = vmul.f32 %v8344, %v8348
        %v8381 = vlaneseq
        %v8382 = vshrl.u32 %v8381, 7
        %v8383 = vsub.s32 0, %v8382
        %v8384 = vrot.slane %v7363, %v8383
        %v8385 = vadd.f32 %v8349, %v8384
        %v8386 = vadd.f32 %v8350, %v8384
        %v8387 = vadd.f32 %v8351, %v8384
        %v8388 = vadd.f32 %v8352, %v8384
        %v8389 = vadd.f32 %v8353, %v8384
        %v8390 = vadd.f32 %v8354, %v8384
        %v8391 = vadd.f32 %v8355, %v8384
        %v8392 = vadd.f32 %v8356, %v8384
        %v8393 = vadd.f32 %v8357, %v8384
        %v8394 = vadd.f32 %v8358, %v8384
        %v8395 = vadd.f32 %v8359, %v8384
        %v8396 = vadd.f32 %v8360, %v8384
        %v8397 = vadd.f32 %v8361, %v8384
        %v8398 = vadd.f32 %v8362, %v8384
        %v8399 = vadd.f32 %v8363, %v8384
        %v8400 = vadd.f32 %v8364, %v8384
        %v8401 = vadd.f32 %v8365, %v8384
        %v8402 = vadd.f32 %v8366, %v8384
        %v8403 = vadd.f32 %v8367, %v8384
        %v8404 = vadd.f32 %v8368, %v8384
        %v8405 = vadd.f32 %v8369, %v8384
        %v8406 = vadd.f32 %v8370, %v8384
        %v8407 = vadd.f32 %v8371, %v8384
        %v8408 = vadd.f32 %v8372, %v8384
        %v8409 = vadd.f32 %v8373, %v8384
        %v8410 = vadd.f32 %v8374, %v8384
        %v8411 = vadd.f32 %v8375, %v8384
        %v8412 = vadd.f32 %v8376, %v8384
        %v8413 = vadd.f32 %v8377, %v8384
        %v8414 = vadd.f32 %v8378, %v8384
        %v8415 = vadd.f32 %v8379, %v8384
        %v8416 = vadd.f32 %v8380, %v8384
        %v8417 = vxor.u32 %v8385, 2147483648
        %v8418 = vxor.u32 %v8386, 2147483648
        %v8419 = vxor.u32 %v8387, 2147483648
        %v8420 = vxor.u32 %v8388, 2147483648
        %v8421 = vxor.u32 %v8389, 2147483648
        %v8422 = vxor.u32 %v8390, 2147483648
        %v8423 = vxor.u32 %v8391, 2147483648
        %v8424 = vxor.u32 %v8392, 2147483648
        %v8425 = vxor.u32 %v8393, 2147483648
        %v8426 = vxor.u32 %v8394, 2147483648
        %v8427 = vxor.u32 %v8395, 2147483648
        %v8428 = vxor.u32 %v8396, 2147483648
        %v8429 = vxor.u32 %v8397, 2147483648
        %v8430 = vxor.u32 %v8398, 2147483648
        %v8431 = vxor.u32 %v8399, 2147483648
        %v8432 = vxor.u32 %v8400, 2147483648
        %v8433 = vxor.u32 %v8401, 2147483648
        %v8434 = vxor.u32 %v8402, 2147483648
        %v8435 = vxor.u32 %v8403, 2147483648
        %v8436 = vxor.u32 %v8404, 2147483648
        %v8437 = vxor.u32 %v8405, 2147483648
        %v8438 = vxor.u32 %v8406, 2147483648
        %v8439 = vxor.u32 %v8407, 2147483648
        %v8440 = vxor.u32 %v8408, 2147483648
        %v8441 = vxor.u32 %v8409, 2147483648
        %v8442 = vxor.u32 %v8410, 2147483648
        %v8443 = vxor.u32 %v8411, 2147483648
        %v8444 = vxor.u32 %v8412, 2147483648
        %v8445 = vxor.u32 %v8413, 2147483648
        %v8446 = vxor.u32 %v8414, 2147483648
        %v8447 = vxor.u32 %v8415, 2147483648
        %v8448 = vxor.u32 %v8416, 2147483648
        %v8449 = vmul.f32 %v8417, 1.442695
        %v8450 = vpow.pop %v8449
        %v8451 = vmul.f32 %v8418, 1.442695
        %v8452 = vpow.pop %v8451
        %v8453 = vmul.f32 %v8419, 1.442695
        %v8454 = vpow.pop %v8453
        %v8455 = vmul.f32 %v8420, 1.442695
        %v8456 = vpow.pop %v8455
        %v8457 = vmul.f32 %v8421, 1.442695
        %v8458 = vpow.pop %v8457
        %v8459 = vmul.f32 %v8422, 1.442695
        %v8460 = vpow.pop %v8459
        %v8461 = vmul.f32 %v8423, 1.442695
        %v8462 = vpow.pop %v8461
        %v8463 = vmul.f32 %v8424, 1.442695
        %v8464 = vpow.pop %v8463
        %v8465 = vmul.f32 %v8425, 1.442695
        %v8466 = vpow.pop %v8465
        %v8467 = vmul.f32 %v8426, 1.442695
        %v8468 = vpow.pop %v8467
        %v8469 = vmul.f32 %v8427, 1.442695
        %v8470 = vpow.pop %v8469
        %v8471 = vmul.f32 %v8428, 1.442695
        %v8472 = vpow.pop %v8471
        %v8473 = vmul.f32 %v8429, 1.442695
        %v8474 = vpow.pop %v8473
        %v8475 = vmul.f32 %v8430, 1.442695
        %v8476 = vpow.pop %v8475
        %v8477 = vmul.f32 %v8431, 1.442695
        %v8478 = vpow.pop %v8477
        %v8479 = vmul.f32 %v8432, 1.442695
        %v8480 = vpow.pop %v8479
        %v8481 = vmul.f32 %v8433, 1.442695
        %v8482 = vpow.pop %v8481
        %v8483 = vmul.f32 %v8434, 1.442695
        %v8484 = vpow.pop %v8483
        %v8485 = vmul.f32 %v8435, 1.442695
        %v8486 = vpow.pop %v8485
        %v8487 = vmul.f32 %v8436, 1.442695
        %v8488 = vpow.pop %v8487
        %v8489 = vmul.f32 %v8437, 1.442695
        %v8490 = vpow.pop %v8489
        %v8491 = vmul.f32 %v8438, 1.442695
        %v8492 = vpow.pop %v8491
        %v8493 = vmul.f32 %v8439, 1.442695
        %v8494 = vpow.pop %v8493
        %v8495 = vmul.f32 %v8440, 1.442695
        %v8496 = vpow.pop %v8495
        %v8497 = vmul.f32 %v8441, 1.442695
        %v8498 = vpow.pop %v8497
        %v8499 = vmul.f32 %v8442, 1.442695
        %v8500 = vpow.pop %v8499
        %v8501 = vmul.f32 %v8443, 1.442695
        %v8502 = vpow.pop %v8501
        %v8503 = vmul.f32 %v8444, 1.442695
        %v8504 = vpow.pop %v8503
        %v8505 = vmul.f32 %v8445, 1.442695
        %v8506 = vpow.pop %v8505
        %v8507 = vmul.f32 %v8446, 1.442695
        %v8508 = vpow.pop %v8507
        %v8509 = vmul.f32 %v8447, 1.442695
        %v8510 = vpow.pop %v8509
        %v8511 = vmul.f32 %v8448, 1.442695
        %v8512 = vpow.pop %v8511
        %v8513 = vadd.f32 %v8450, 1.0
        %v8514 = vadd.f32 %v8452, 1.0
        %v8515 = vadd.f32 %v8454, 1.0
        %v8516 = vadd.f32 %v8456, 1.0
        %v8517 = vadd.f32 %v8458, 1.0
        %v8518 = vadd.f32 %v8460, 1.0
        %v8519 = vadd.f32 %v8462, 1.0
        %v8520 = vadd.f32 %v8464, 1.0
        %v8521 = vadd.f32 %v8466, 1.0
        %v8522 = vadd.f32 %v8468, 1.0
        %v8523 = vadd.f32 %v8470, 1.0
        %v8524 = vadd.f32 %v8472, 1.0
        %v8525 = vadd.f32 %v8474, 1.0
        %v8526 = vadd.f32 %v8476, 1.0
        %v8527 = vadd.f32 %v8478, 1.0
        %v8528 = vadd.f32 %v8480, 1.0
        %v8529 = vadd.f32 %v8482, 1.0
        %v8530 = vadd.f32 %v8484, 1.0
        %v8531 = vadd.f32 %v8486, 1.0
        %v8532 = vadd.f32 %v8488, 1.0
        %v8533 = vadd.f32 %v8490, 1.0
        %v8534 = vadd.f32 %v8492, 1.0
        %v8535 = vadd.f32 %v8494, 1.0
        %v8536 = vadd.f32 %v8496, 1.0
        %v8537 = vadd.f32 %v8498, 1.0
        %v8538 = vadd.f32 %v8500, 1.0
        %v8539 = vadd.f32 %v8502, 1.0
        %v8540 = vadd.f32 %v8504, 1.0
        %v8541 = vadd.f32 %v8506, 1.0
        %v8542 = vadd.f32 %v8508, 1.0
        %v8543 = vadd.f32 %v8510, 1.0
        %v8544 = vadd.f32 %v8512, 1.0
        %v8545 = vrcp.pop %v8513
        %v8546 = vmul.f32 1.0, %v8545
        %v8547 = vrcp.pop %v8514
        %v8548 = vmul.f32 1.0, %v8547
        %v8549 = vrcp.pop %v8515
        %v8550 = vmul.f32 1.0, %v8549
        %v8551 = vrcp.pop %v8516
        %v8552 = vmul.f32 1.0, %v8551
        %v8553 = vrcp.pop %v8517
        %v8554 = vmul.f32 1.0, %v8553
        %v8555 = vrcp.pop %v8518
        %v8556 = vmul.f32 1.0, %v8555
        %v8557 = vrcp.pop %v8519
        %v8558 = vmul.f32 1.0, %v8557
        %v8559 = vrcp.pop %v8520
        %v8560 = vmul.f32 1.0, %v8559
        %v8561 = vrcp.pop %v8521
        %v8562 = vmul.f32 1.0, %v8561
        %v8563 = vrcp.pop %v8522
        %v8564 = vmul.f32 1.0, %v8563
        %v8565 = vrcp.pop %v8523
        %v8566 = vmul.f32 1.0, %v8565
        %v8567 = vrcp.pop %v8524
        %v8568 = vmul.f32 1.0, %v8567
        %v8569 = vrcp.pop %v8525
        %v8570 = vmul.f32 1.0, %v8569
        %v8571 = vrcp.pop %v8526
        %v8572 = vmul.f32 1.0, %v8571
        %v8573 = vrcp.pop %v8527
        %v8574 = vmul.f32 1.0, %v8573
        %v8575 = vrcp.pop %v8528
        %v8576 = vmul.f32 1.0, %v8575
        %v8577 = vrcp.pop %v8529
        %v8578 = vmul.f32 1.0, %v8577
        %v8579 = vrcp.pop %v8530
        %v8580 = vmul.f32 1.0, %v8579
        %v8581 = vrcp.pop %v8531
        %v8582 = vmul.f32 1.0, %v8581
        %v8583 = vrcp.pop %v8532
        %v8584 = vmul.f32 1.0, %v8583
        %v8585 = vrcp.pop %v8533
        %v8586 = vmul.f32 1.0, %v8585
        %v8587 = vrcp.pop %v8534
        %v8588 = vmul.f32 1.0, %v8587
        %v8589 = vrcp.pop %v8535
        %v8590 = vmul.f32 1.0, %v8589
        %v8591 = vrcp.pop %v8536
        %v8592 = vmul.f32 1.0, %v8591
        %v8593 = vrcp.pop %v8537
        %v8594 = vmul.f32 1.0, %v8593
        %v8595 = vrcp.pop %v8538
        %v8596 = vmul.f32 1.0, %v8595
        %v8597 = vrcp.pop %v8539
        %v8598 = vmul.f32 1.0, %v8597
        %v8599 = vrcp.pop %v8540
        %v8600 = vmul.f32 1.0, %v8599
        %v8601 = vrcp.pop %v8541
        %v8602 = vmul.f32 1.0, %v8601
        %v8603 = vrcp.pop %v8542
        %v8604 = vmul.f32 1.0, %v8603
        %v8605 = vrcp.pop %v8543
        %v8606 = vmul.f32 1.0, %v8605
        %v8607 = vrcp.pop %v8544
        %v8608 = vmul.f32 1.0, %v8607
        %v8609 = vmul.f32 %v8385, %v8546
        %v8610 = vmul.f32 %v8386, %v8548
        %v8611 = vmul.f32 %v8387, %v8550
        %v8612 = vmul.f32 %v8388, %v8552
        %v8613 = vmul.f32 %v8389, %v8554
        %v8614 = vmul.f32 %v8390, %v8556
        %v8615 = vmul.f32 %v8391, %v8558
        %v8616 = vmul.f32 %v8392, %v8560
        %v8617 = vmul.f32 %v8393, %v8562
        %v8618 = vmul.f32 %v8394, %v8564
        %v8619 = vmul.f32 %v8395, %v8566
        %v8620 = vmul.f32 %v8396, %v8568
        %v8621 = vmul.f32 %v8397, %v8570
        %v8622 = vmul.f32 %v8398, %v8572
        %v8623 = vmul.f32 %v8399, %v8574
        %v8624 = vmul.f32 %v8400, %v8576
        %v8625 = vmul.f32 %v8401, %v8578
        %v8626 = vmul.f32 %v8402, %v8580
        %v8627 = vmul.f32 %v8403, %v8582
        %v8628 = vmul.f32 %v8404, %v8584
        %v8629 = vmul.f32 %v8405, %v8586
        %v8630 = vmul.f32 %v8406, %v8588
        %v8631 = vmul.f32 %v8407, %v8590
        %v8632 = vmul.f32 %v8408, %v8592
        %v8633 = vmul.f32 %v8409, %v8594
        %v8634 = vmul.f32 %v8410, %v8596
        %v8635 = vmul.f32 %v8411, %v8598
        %v8636 = vmul.f32 %v8412, %v8600
        %v8637 = vmul.f32 %v8413, %v8602
        %v8638 = vmul.f32 %v8414, %v8604
        %v8639 = vmul.f32 %v8415, %v8606
        %v8640 = vmul.f32 %v8416, %v8608
        %v8641 = vsel %vm7369, %v8609, 0.0
        %v8642 = vsel %vm7369, %v8610, 0.0
        %v8643 = vadd.f32 %v8641, %v8642
        %v8644 = vsel %vm7369, %v8611, 0.0
        %v8645 = vadd.f32 %v8643, %v8644
        %v8646 = vsel %vm7369, %v8612, 0.0
        %v8647 = vadd.f32 %v8645, %v8646
        %v8648 = vsel %vm7369, %v8613, 0.0
        %v8649 = vadd.f32 %v8647, %v8648
        %v8650 = vsel %vm7369, %v8614, 0.0
        %v8651 = vadd.f32 %v8649, %v8650
        %v8652 = vsel %vm7369, %v8615, 0.0
        %v8653 = vadd.f32 %v8651, %v8652
        %v8654 = vsel %vm7369, %v8616, 0.0
        %v8655 = vadd.f32 %v8653, %v8654
        %v8656 = vsel %vm7369, %v8617, 0.0
        %v8657 = vadd.f32 %v8655, %v8656
        %v8658 = vsel %vm7369, %v8618, 0.0
        %v8659 = vadd.f32 %v8657, %v8658
        %v8660 = vsel %vm7369, %v8619, 0.0
        %v8661 = vadd.f32 %v8659, %v8660
        %v8662 = vsel %vm7369, %v8620, 0.0
        %v8663 = vadd.f32 %v8661, %v8662
        %v8664 = vsel %vm7369, %v8621, 0.0
        %v8665 = vadd.f32 %v8663, %v8664
        %v8666 = vsel %vm7369, %v8622, 0.0
        %v8667 = vadd.f32 %v8665, %v8666
        %v8668 = vsel %vm7369, %v8623, 0.0
        %v8669 = vadd.f32 %v8667, %v8668
        %v8670 = vsel %vm7369, %v8624, 0.0
        %v8671 = vadd.f32 %v8669, %v8670
        %v8672 = vsel %vm7369, %v8625, 0.0
        %v8673 = vadd.f32 %v8671, %v8672
        %v8674 = vsel %vm7369, %v8626, 0.0
        %v8675 = vadd.f32 %v8673, %v8674
        %v8676 = vsel %vm7369, %v8627, 0.0
        %v8677 = vadd.f32 %v8675, %v8676
        %v8678 = vsel %vm7369, %v8628, 0.0
        %v8679 = vadd.f32 %v8677, %v8678
        %v8680 = vsel %vm7369, %v8629, 0.0
        %v8681 = vadd.f32 %v8679, %v8680
        %v8682 = vsel %vm7369, %v8630, 0.0
        %v8683 = vadd.f32 %v8681, %v8682
        %v8684 = vsel %vm7369, %v8631, 0.0
        %v8685 = vadd.f32 %v8683, %v8684
        %v8686 = vsel %vm7369, %v8632, 0.0
        %v8687 = vadd.f32 %v8685, %v8686
        %v8688 = vsel %vm7369, %v8633, 0.0
        %v8689 = vadd.f32 %v8687, %v8688
        %v8690 = vsel %vm7369, %v8634, 0.0
        %v8691 = vadd.f32 %v8689, %v8690
        %v8692 = vsel %vm7369, %v8635, 0.0
        %v8693 = vadd.f32 %v8691, %v8692
        %v8694 = vsel %vm7369, %v8636, 0.0
        %v8695 = vadd.f32 %v8693, %v8694
        %v8696 = vsel %vm7369, %v8637, 0.0
        %v8697 = vadd.f32 %v8695, %v8696
        %v8698 = vsel %vm7369, %v8638, 0.0
        %v8699 = vadd.f32 %v8697, %v8698
        %v8700 = vsel %vm7369, %v8639, 0.0
        %v8701 = vadd.f32 %v8699, %v8700
        %v8702 = vsel %vm7369, %v8640, 0.0
        %v8703 = vadd.f32 %v8701, %v8702
        %v8704 = vrot.slane %v8703, 4
        %v8705 = vadd.f32 %v8703, %v8704
        %v8706 = vrot.slane %v8705, 2
        %v8707 = vadd.f32 %v8705, %v8706
        %v8708 = vrot.slane %v8707, 1
        %v8709 = vadd.f32 %v8707, %v8708
        %v8710 = vmul.f32 %v8709, 0.00390625
        %v8711 = vmul.f32 %v7367, %v8710
        %v8712 = vsel %vm7372, %v8711, 0.0
        %8713 = vadd.xlane.f32.xlu0 %v8712
        %v8714 = vpop.xlane.xlu0 %8713
        %v8715 = vadd.f32 %v8714, %v7367
        %v8716 = vxor.u32 %v8715, 2147483648
        %v8717 = vmul.f32 %v8716, 1.442695
        %v8718 = vpow.pop %v8717
        %v8719 = vadd.f32 %v8718, 1.0
        %v8720 = vrcp.pop %v8719
        %v8721 = vmul.f32 1.0, %v8720
        %v8722 = vmul.f32 %v8715, %v8721
        %8724 = vset.pattern.permute.xlu0 32
        %8725 = vperm.xlu0 %8724, %v8722
        %v8726 = vpop.permute.xlu0 %8725
        %v8728 = vmul.f32 %v7368, %v8726
        %v8729 = vsel %vm7372, %v8728, 0.0
        %v8730 = vrot.slane %v8729, 4
        %v8731 = vadd.f32 %v8729, %v8730
        %v8732 = vrot.slane %v8731, 2
        %v8733 = vadd.f32 %v8731, %v8732
        %v8734 = vrot.slane %v8733, 1
        %v8735 = vadd.f32 %v8733, %v8734
        %v8736 = vadd.f32 %v8735, %v7364
        %v8737 = vxor.u32 %v8736, 2147483648
        %v8738 = vmul.f32 %v8737, 1.442695
        %v8739 = vpow.pop %v8738
        %v8740 = vadd.f32 %v8739, 1.0
        %v8741 = vrcp.pop %v8740
        %v8742 = vmul.f32 1.0, %v8741
        %v8743 = vlaneseq
        %v8744 = vshrl.u32 %v8743, 7
        %v8745 = vsub.s32 0, %v8744
        %v8746 = vrot.slane %v8742, %v8745
        %v8747 = vmul.f32 %v8609, %v8746
        %v8748 = vmul.f32 %v8610, %v8746
        %v8749 = vmul.f32 %v8611, %v8746
        %v8750 = vmul.f32 %v8612, %v8746
        %v8751 = vmul.f32 %v8613, %v8746
        %v8752 = vmul.f32 %v8614, %v8746
        %v8753 = vmul.f32 %v8615, %v8746
        %v8754 = vmul.f32 %v8616, %v8746
        %v8755 = vmul.f32 %v8617, %v8746
        %v8756 = vmul.f32 %v8618, %v8746
        %v8757 = vmul.f32 %v8619, %v8746
        %v8758 = vmul.f32 %v8620, %v8746
        %v8759 = vmul.f32 %v8621, %v8746
        %v8760 = vmul.f32 %v8622, %v8746
        %v8761 = vmul.f32 %v8623, %v8746
        %v8762 = vmul.f32 %v8624, %v8746
        %v8763 = vmul.f32 %v8625, %v8746
        %v8764 = vmul.f32 %v8626, %v8746
        %v8765 = vmul.f32 %v8627, %v8746
        %v8766 = vmul.f32 %v8628, %v8746
        %v8767 = vmul.f32 %v8629, %v8746
        %v8768 = vmul.f32 %v8630, %v8746
        %v8769 = vmul.f32 %v8631, %v8746
        %v8770 = vmul.f32 %v8632, %v8746
        %v8771 = vmul.f32 %v8633, %v8746
        %v8772 = vmul.f32 %v8634, %v8746
        %v8773 = vmul.f32 %v8635, %v8746
        %v8774 = vmul.f32 %v8636, %v8746
        %v8775 = vmul.f32 %v8637, %v8746
        %v8776 = vmul.f32 %v8638, %v8746
        %v8777 = vmul.f32 %v8639, %v8746
        %v8778 = vmul.f32 %v8640, %v8746
        %s8779 = scalar_lea.vmem [#allocation3], 432
        %8780 = vst.msk [vmem:[%s8779] sm:$0xff] %vm7369, 0.0
        %8781 = vst.msk [vmem:[%s8779 + $0x8] sm:$0xff] %vm7369, 0.0
        %8782 = vst.msk [vmem:[%s8779 + $0x10] sm:$0x3] %vm7372, 0.0
        %s8783 = scalar_lea.vmem [#allocation3], 840
        %8784 = vst.msk [vmem:[%s8783] sm:$0xff] %vm7369, 0.0
        %8785 = vst.msk [vmem:[%s8783 + $0x8] sm:$0xff] %vm7369, 0.0
        %8786 = vst.msk [vmem:[%s8783 + $0x10] sm:$0x3] %vm7372, 0.0
        %s8787 = scalar_lea.vmem [#allocation3], 456
        %8788 = vst.msk [vmem:[%s8787] sm:$0x1] %vm7379, 0.0
        %8789 = vst.msk [vmem:[%s8787 + $0x18] sm:$0x1] %vm7379, 0.0
        %8790 = vst.msk [vmem:[%s8787 + $0x30] sm:$0x1] %vm7379, 0.0
        %8791 = vst.msk [vmem:[%s8787 + $0x48] sm:$0x1] %vm7379, 0.0
        %8792 = vst.msk [vmem:[%s8787 + $0x60] sm:$0x1] %vm7379, 0.0
        %8793 = vst.msk [vmem:[%s8787 + $0x78] sm:$0x1] %vm7379, 0.0
        %8794 = vst.msk [vmem:[%s8787 + $0x90] sm:$0x1] %vm7379, 0.0
        %8795 = vst.msk [vmem:[%s8787 + $0xa8] sm:$0x1] %vm7379, 0.0
        %8796 = vst.msk [vmem:[%s8787 + $0xc0] sm:$0x1] %vm7379, 0.0
        %8797 = vst.msk [vmem:[%s8787 + $0xd8] sm:$0x1] %vm7379, 0.0
        %8798 = vst.msk [vmem:[%s8787 + $0xf0] sm:$0x1] %vm7379, 0.0
        %8799 = vst.msk [vmem:[%s8787 + $0x108] sm:$0x1] %vm7379, 0.0
        %8800 = vst.msk [vmem:[%s8787 + $0x120] sm:$0x1] %vm7379, 0.0
        %8801 = vst.msk [vmem:[%s8787 + $0x138] sm:$0x1] %vm7379, 0.0
        %8802 = vst.msk [vmem:[%s8787 + $0x150] sm:$0x1] %vm7379, 0.0
        %8803 = vst.msk [vmem:[%s8787 + $0x168] sm:$0x1] %vm7379, 0.0
        %8804 = vst.msk [vmem:[%s8787 + $0x11] sm:$0x1] %vm7379, 0.0
        %8805 = vst.msk [vmem:[%s8787 + $0x29] sm:$0x1] %vm7379, 0.0
        %8806 = vst.msk [vmem:[%s8787 + $0x41] sm:$0x1] %vm7379, 0.0
        %8807 = vst.msk [vmem:[%s8787 + $0x59] sm:$0x1] %vm7379, 0.0
        %8808 = vst.msk [vmem:[%s8787 + $0x71] sm:$0x1] %vm7379, 0.0
        %8809 = vst.msk [vmem:[%s8787 + $0x89] sm:$0x1] %vm7379, 0.0
        %8810 = vst.msk [vmem:[%s8787 + $0xa1] sm:$0x1] %vm7379, 0.0
        %8811 = vst.msk [vmem:[%s8787 + $0xb9] sm:$0x1] %vm7379, 0.0
        %8812 = vst.msk [vmem:[%s8787 + $0xd1] sm:$0x1] %vm7379, 0.0
        %8813 = vst.msk [vmem:[%s8787 + $0xe9] sm:$0x1] %vm7379, 0.0
        %8814 = vst.msk [vmem:[%s8787 + $0x101] sm:$0x1] %vm7379, 0.0
        %8815 = vst.msk [vmem:[%s8787 + $0x119] sm:$0x1] %vm7379, 0.0
        %8816 = vst.msk [vmem:[%s8787 + $0x131] sm:$0x1] %vm7379, 0.0
        %8817 = vst.msk [vmem:[%s8787 + $0x149] sm:$0x1] %vm7379, 0.0
        %8818 = vst.msk [vmem:[%s8787 + $0x161] sm:$0x1] %vm7379, 0.0
        %8819 = vst.msk [vmem:[%s8787 + $0x179] sm:$0x1] %vm7379, 0.0
        %8820 = vst.msk [vmem:[%s8787 + $0x1] sm:$0xff] %vm7369, %v7330
        %8821 = vst.msk [vmem:[%s8787 + $0x9] sm:$0xff] %vm7369, %v7331
        %8822 = vst.msk [vmem:[%s8787 + $0x19] sm:$0xff] %vm7369, %v7332
        %8823 = vst.msk [vmem:[%s8787 + $0x21] sm:$0xff] %vm7369, %v7333
        %8824 = vst.msk [vmem:[%s8787 + $0x31] sm:$0xff] %vm7369, %v7334
        %8825 = vst.msk [vmem:[%s8787 + $0x39] sm:$0xff] %vm7369, %v7335
        %8826 = vst.msk [vmem:[%s8787 + $0x49] sm:$0xff] %vm7369, %v7336
        %8827 = vst.msk [vmem:[%s8787 + $0x51] sm:$0xff] %vm7369, %v7337
        %8828 = vst.msk [vmem:[%s8787 + $0x61] sm:$0xff] %vm7369, %v7338
        %8829 = vst.msk [vmem:[%s8787 + $0x69] sm:$0xff] %vm7369, %v7339
        %8830 = vst.msk [vmem:[%s8787 + $0x79] sm:$0xff] %vm7369, %v7340
        %8831 = vst.msk [vmem:[%s8787 + $0x81] sm:$0xff] %vm7369, %v7341
        %8832 = vst.msk [vmem:[%s8787 + $0x91] sm:$0xff] %vm7369, %v7342
        %8833 = vst.msk [vmem:[%s8787 + $0x99] sm:$0xff] %vm7369, %v7343
        %8834 = vst.msk [vmem:[%s8787 + $0xa9] sm:$0xff] %vm7369, %v7344
        %8835 = vst.msk [vmem:[%s8787 + $0xb1] sm:$0xff] %vm7369, %v7345
        %8836 = vst.msk [vmem:[%s8787 + $0xc1] sm:$0xff] %vm7369, %v7346
        %8837 = vst.msk [vmem:[%s8787 + $0xc9] sm:$0xff] %vm7369, %v7347
        %8838 = vst.msk [vmem:[%s8787 + $0xd9] sm:$0xff] %vm7369, %v7348
        %8839 = vst.msk [vmem:[%s8787 + $0xe1] sm:$0xff] %vm7369, %v7349
        %8840 = vst.msk [vmem:[%s8787 + $0xf1] sm:$0xff] %vm7369, %v7350
        %8841 = vst.msk [vmem:[%s8787 + $0xf9] sm:$0xff] %vm7369, %v7351
        %8842 = vst.msk [vmem:[%s8787 + $0x109] sm:$0xff] %vm7369, %v7352
        %8843 = vst.msk [vmem:[%s8787 + $0x111] sm:$0xff] %vm7369, %v7353
        %8844 = vst.msk [vmem:[%s8787 + $0x121] sm:$0xff] %vm7369, %v7354
        %8845 = vst.msk [vmem:[%s8787 + $0x129] sm:$0xff] %vm7369, %v7355
        %8846 = vst.msk [vmem:[%s8787 + $0x139] sm:$0xff] %vm7369, %v7356
        %8847 = vst.msk [vmem:[%s8787 + $0x141] sm:$0xff] %vm7369, %v7357
        %8848 = vst.msk [vmem:[%s8787 + $0x151] sm:$0xff] %vm7369, %v7358
        %8849 = vst.msk [vmem:[%s8787 + $0x159] sm:$0xff] %vm7369, %v7359
        %8850 = vst.msk [vmem:[%s8787 + $0x169] sm:$0xff] %vm7369, %v7360
        %8851 = vst.msk [vmem:[%s8787 + $0x171] sm:$0xff] %vm7369, %v7361
        %v8852 = vld [vmem:[%s8779] sm:$0xff]
        %v8853 = vld [vmem:[%s8779 + $0x8] sm:$0xff]
        %v8854 = vld [vmem:[%s8779 + $0x18] sm:$0xff]
        %v8855 = vld [vmem:[%s8779 + $0x20] sm:$0xff]
        %v8856 = vld [vmem:[%s8779 + $0x30] sm:$0xff]
        %v8857 = vld [vmem:[%s8779 + $0x38] sm:$0xff]
        %v8858 = vld [vmem:[%s8779 + $0x48] sm:$0xff]
        %v8859 = vld [vmem:[%s8779 + $0x50] sm:$0xff]
        %v8860 = vld [vmem:[%s8779 + $0x60] sm:$0xff]
        %v8861 = vld [vmem:[%s8779 + $0x68] sm:$0xff]
        %v8862 = vld [vmem:[%s8779 + $0x78] sm:$0xff]
        %v8863 = vld [vmem:[%s8779 + $0x80] sm:$0xff]
        %v8864 = vld [vmem:[%s8779 + $0x90] sm:$0xff]
        %v8865 = vld [vmem:[%s8779 + $0x98] sm:$0xff]
        %v8866 = vld [vmem:[%s8779 + $0xa8] sm:$0xff]
        %v8867 = vld [vmem:[%s8779 + $0xb0] sm:$0xff]
        %v8868 = vld [vmem:[%s8779 + $0xc0] sm:$0xff]
        %v8869 = vld [vmem:[%s8779 + $0xc8] sm:$0xff]
        %v8870 = vld [vmem:[%s8779 + $0xd8] sm:$0xff]
        %v8871 = vld [vmem:[%s8779 + $0xe0] sm:$0xff]
        %v8872 = vld [vmem:[%s8779 + $0xf0] sm:$0xff]
        %v8873 = vld [vmem:[%s8779 + $0xf8] sm:$0xff]
        %v8874 = vld [vmem:[%s8779 + $0x108] sm:$0xff]
        %v8875 = vld [vmem:[%s8779 + $0x110] sm:$0xff]
        %v8876 = vld [vmem:[%s8779 + $0x120] sm:$0xff]
        %v8877 = vld [vmem:[%s8779 + $0x128] sm:$0xff]
        %v8878 = vld [vmem:[%s8779 + $0x138] sm:$0xff]
        %v8879 = vld [vmem:[%s8779 + $0x140] sm:$0xff]
        %v8880 = vld [vmem:[%s8779 + $0x150] sm:$0xff]
        %v8881 = vld [vmem:[%s8779 + $0x158] sm:$0xff]
        %v8882 = vld [vmem:[%s8779 + $0x168] sm:$0xff]
        %v8883 = vld [vmem:[%s8779 + $0x170] sm:$0xff]
        %v8884 = vmul.f32 %v8852, %v7479
        %v8885 = vmul.f32 %v8853, %v7479
        %v8886 = vmul.f32 %v8854, %v7479
        %v8887 = vmul.f32 %v8855, %v7479
        %v8888 = vmul.f32 %v8856, %v7479
        %v8889 = vmul.f32 %v8857, %v7479
        %v8890 = vmul.f32 %v8858, %v7479
        %v8891 = vmul.f32 %v8859, %v7479
        %v8892 = vmul.f32 %v8860, %v7479
        %v8893 = vmul.f32 %v8861, %v7479
        %v8894 = vmul.f32 %v8862, %v7479
        %v8895 = vmul.f32 %v8863, %v7479
        %v8896 = vmul.f32 %v8864, %v7479
        %v8897 = vmul.f32 %v8865, %v7479
        %v8898 = vmul.f32 %v8866, %v7479
        %v8899 = vmul.f32 %v8867, %v7479
        %v8900 = vmul.f32 %v8868, %v7479
        %v8901 = vmul.f32 %v8869, %v7479
        %v8902 = vmul.f32 %v8870, %v7479
        %v8903 = vmul.f32 %v8871, %v7479
        %v8904 = vmul.f32 %v8872, %v7479
        %v8905 = vmul.f32 %v8873, %v7479
        %v8906 = vmul.f32 %v8874, %v7479
        %v8907 = vmul.f32 %v8875, %v7479
        %v8908 = vmul.f32 %v8876, %v7479
        %v8909 = vmul.f32 %v8877, %v7479
        %v8910 = vmul.f32 %v8878, %v7479
        %v8911 = vmul.f32 %v8879, %v7479
        %v8912 = vmul.f32 %v8880, %v7479
        %v8913 = vmul.f32 %v8881, %v7479
        %v8914 = vmul.f32 %v8882, %v7479
        %v8915 = vmul.f32 %v8883, %v7479
        %v8916 = vadd.f32 %v8884, 0.0
        %v8917 = vadd.f32 %v8885, 0.0
        %v8918 = vadd.f32 %v8886, 0.0
        %v8919 = vadd.f32 %v8887, 0.0
        %v8920 = vadd.f32 %v8888, 0.0
        %v8921 = vadd.f32 %v8889, 0.0
        %v8922 = vadd.f32 %v8890, 0.0
        %v8923 = vadd.f32 %v8891, 0.0
        %v8924 = vadd.f32 %v8892, 0.0
        %v8925 = vadd.f32 %v8893, 0.0
        %v8926 = vadd.f32 %v8894, 0.0
        %v8927 = vadd.f32 %v8895, 0.0
        %v8928 = vadd.f32 %v8896, 0.0
        %v8929 = vadd.f32 %v8897, 0.0
        %v8930 = vadd.f32 %v8898, 0.0
        %v8931 = vadd.f32 %v8899, 0.0
        %v8932 = vadd.f32 %v8900, 0.0
        %v8933 = vadd.f32 %v8901, 0.0
        %v8934 = vadd.f32 %v8902, 0.0
        %v8935 = vadd.f32 %v8903, 0.0
        %v8936 = vadd.f32 %v8904, 0.0
        %v8937 = vadd.f32 %v8905, 0.0
        %v8938 = vadd.f32 %v8906, 0.0
        %v8939 = vadd.f32 %v8907, 0.0
        %v8940 = vadd.f32 %v8908, 0.0
        %v8941 = vadd.f32 %v8909, 0.0
        %v8942 = vadd.f32 %v8910, 0.0
        %v8943 = vadd.f32 %v8911, 0.0
        %v8944 = vadd.f32 %v8912, 0.0
        %v8945 = vadd.f32 %v8913, 0.0
        %v8946 = vadd.f32 %v8914, 0.0
        %v8947 = vadd.f32 %v8915, 0.0
        %v8948 = vld [vmem:[%s8779 + $0x1] sm:$0xff]
        %v8949 = vld [vmem:[%s8779 + $0x9] sm:$0xff]
        %v8950 = vld [vmem:[%s8779 + $0x19] sm:$0xff]
        %v8951 = vld [vmem:[%s8779 + $0x21] sm:$0xff]
        %v8952 = vld [vmem:[%s8779 + $0x31] sm:$0xff]
        %v8953 = vld [vmem:[%s8779 + $0x39] sm:$0xff]
        %v8954 = vld [vmem:[%s8779 + $0x49] sm:$0xff]
        %v8955 = vld [vmem:[%s8779 + $0x51] sm:$0xff]
        %v8956 = vld [vmem:[%s8779 + $0x61] sm:$0xff]
        %v8957 = vld [vmem:[%s8779 + $0x69] sm:$0xff]
        %v8958 = vld [vmem:[%s8779 + $0x79] sm:$0xff]
        %v8959 = vld [vmem:[%s8779 + $0x81] sm:$0xff]
        %v8960 = vld [vmem:[%s8779 + $0x91] sm:$0xff]
        %v8961 = vld [vmem:[%s8779 + $0x99] sm:$0xff]
        %v8962 = vld [vmem:[%s8779 + $0xa9] sm:$0xff]
        %v8963 = vld [vmem:[%s8779 + $0xb1] sm:$0xff]
        %v8964 = vld [vmem:[%s8779 + $0xc1] sm:$0xff]
        %v8965 = vld [vmem:[%s8779 + $0xc9] sm:$0xff]
        %v8966 = vld [vmem:[%s8779 + $0xd9] sm:$0xff]
        %v8967 = vld [vmem:[%s8779 + $0xe1] sm:$0xff]
        %v8968 = vld [vmem:[%s8779 + $0xf1] sm:$0xff]
        %v8969 = vld [vmem:[%s8779 + $0xf9] sm:$0xff]
        %v8970 = vld [vmem:[%s8779 + $0x109] sm:$0xff]
        %v8971 = vld [vmem:[%s8779 + $0x111] sm:$0xff]
        %v8972 = vld [vmem:[%s8779 + $0x121] sm:$0xff]
        %v8973 = vld [vmem:[%s8779 + $0x129] sm:$0xff]
        %v8974 = vld [vmem:[%s8779 + $0x139] sm:$0xff]
        %v8975 = vld [vmem:[%s8779 + $0x141] sm:$0xff]
        %v8976 = vld [vmem:[%s8779 + $0x151] sm:$0xff]
        %v8977 = vld [vmem:[%s8779 + $0x159] sm:$0xff]
        %v8978 = vld [vmem:[%s8779 + $0x169] sm:$0xff]
        %v8979 = vld [vmem:[%s8779 + $0x171] sm:$0xff]
        %v8980 = vmul.f32 %v8948, %v7579
        %v8981 = vmul.f32 %v8949, %v7579
        %v8982 = vmul.f32 %v8950, %v7579
        %v8983 = vmul.f32 %v8951, %v7579
        %v8984 = vmul.f32 %v8952, %v7579
        %v8985 = vmul.f32 %v8953, %v7579
        %v8986 = vmul.f32 %v8954, %v7579
        %v8987 = vmul.f32 %v8955, %v7579
        %v8988 = vmul.f32 %v8956, %v7579
        %v8989 = vmul.f32 %v8957, %v7579
        %v8990 = vmul.f32 %v8958, %v7579
        %v8991 = vmul.f32 %v8959, %v7579
        %v8992 = vmul.f32 %v8960, %v7579
        %v8993 = vmul.f32 %v8961, %v7579
        %v8994 = vmul.f32 %v8962, %v7579
        %v8995 = vmul.f32 %v8963, %v7579
        %v8996 = vmul.f32 %v8964, %v7579
        %v8997 = vmul.f32 %v8965, %v7579
        %v8998 = vmul.f32 %v8966, %v7579
        %v8999 = vmul.f32 %v8967, %v7579
        %v9000 = vmul.f32 %v8968, %v7579
        %v9001 = vmul.f32 %v8969, %v7579
        %v9002 = vmul.f32 %v8970, %v7579
        %v9003 = vmul.f32 %v8971, %v7579
        %v9004 = vmul.f32 %v8972, %v7579
        %v9005 = vmul.f32 %v8973, %v7579
        %v9006 = vmul.f32 %v8974, %v7579
        %v9007 = vmul.f32 %v8975, %v7579
        %v9008 = vmul.f32 %v8976, %v7579
        %v9009 = vmul.f32 %v8977, %v7579
        %v9010 = vmul.f32 %v8978, %v7579
        %v9011 = vmul.f32 %v8979, %v7579
        %v9012 = vadd.f32 %v8916, %v8980
        %v9013 = vadd.f32 %v8917, %v8981
        %v9014 = vadd.f32 %v8918, %v8982
        %v9015 = vadd.f32 %v8919, %v8983
        %v9016 = vadd.f32 %v8920, %v8984
        %v9017 = vadd.f32 %v8921, %v8985
        %v9018 = vadd.f32 %v8922, %v8986
        %v9019 = vadd.f32 %v8923, %v8987
        %v9020 = vadd.f32 %v8924, %v8988
        %v9021 = vadd.f32 %v8925, %v8989
        %v9022 = vadd.f32 %v8926, %v8990
        %v9023 = vadd.f32 %v8927, %v8991
        %v9024 = vadd.f32 %v8928, %v8992
        %v9025 = vadd.f32 %v8929, %v8993
        %v9026 = vadd.f32 %v8930, %v8994
        %v9027 = vadd.f32 %v8931, %v8995
        %v9028 = vadd.f32 %v8932, %v8996
        %v9029 = vadd.f32 %v8933, %v8997
        %v9030 = vadd.f32 %v8934, %v8998
        %v9031 = vadd.f32 %v8935, %v8999
        %v9032 = vadd.f32 %v8936, %v9000
        %v9033 = vadd.f32 %v8937, %v9001
        %v9034 = vadd.f32 %v8938, %v9002
        %v9035 = vadd.f32 %v8939, %v9003
        %v9036 = vadd.f32 %v8940, %v9004
        %v9037 = vadd.f32 %v8941, %v9005
        %v9038 = vadd.f32 %v8942, %v9006
        %v9039 = vadd.f32 %v8943, %v9007
        %v9040 = vadd.f32 %v8944, %v9008
        %v9041 = vadd.f32 %v8945, %v9009
        %v9042 = vadd.f32 %v8946, %v9010
        %v9043 = vadd.f32 %v8947, %v9011
        %v9044 = vld [vmem:[%s8779 + $0x2] sm:$0xff]
        %v9045 = vld [vmem:[%s8779 + $0xa] sm:$0xff]
        %v9046 = vld [vmem:[%s8779 + $0x1a] sm:$0xff]
        %v9047 = vld [vmem:[%s8779 + $0x22] sm:$0xff]
        %v9048 = vld [vmem:[%s8779 + $0x32] sm:$0xff]
        %v9049 = vld [vmem:[%s8779 + $0x3a] sm:$0xff]
        %v9050 = vld [vmem:[%s8779 + $0x4a] sm:$0xff]
        %v9051 = vld [vmem:[%s8779 + $0x52] sm:$0xff]
        %v9052 = vld [vmem:[%s8779 + $0x62] sm:$0xff]
        %v9053 = vld [vmem:[%s8779 + $0x6a] sm:$0xff]
        %v9054 = vld [vmem:[%s8779 + $0x7a] sm:$0xff]
        %v9055 = vld [vmem:[%s8779 + $0x82] sm:$0xff]
        %v9056 = vld [vmem:[%s8779 + $0x92] sm:$0xff]
        %v9057 = vld [vmem:[%s8779 + $0x9a] sm:$0xff]
        %v9058 = vld [vmem:[%s8779 + $0xaa] sm:$0xff]
        %v9059 = vld [vmem:[%s8779 + $0xb2] sm:$0xff]
        %v9060 = vld [vmem:[%s8779 + $0xc2] sm:$0xff]
        %v9061 = vld [vmem:[%s8779 + $0xca] sm:$0xff]
        %v9062 = vld [vmem:[%s8779 + $0xda] sm:$0xff]
        %v9063 = vld [vmem:[%s8779 + $0xe2] sm:$0xff]
        %v9064 = vld [vmem:[%s8779 + $0xf2] sm:$0xff]
        %v9065 = vld [vmem:[%s8779 + $0xfa] sm:$0xff]
        %v9066 = vld [vmem:[%s8779 + $0x10a] sm:$0xff]
        %v9067 = vld [vmem:[%s8779 + $0x112] sm:$0xff]
        %v9068 = vld [vmem:[%s8779 + $0x122] sm:$0xff]
        %v9069 = vld [vmem:[%s8779 + $0x12a] sm:$0xff]
        %v9070 = vld [vmem:[%s8779 + $0x13a] sm:$0xff]
        %v9071 = vld [vmem:[%s8779 + $0x142] sm:$0xff]
        %v9072 = vld [vmem:[%s8779 + $0x152] sm:$0xff]
        %v9073 = vld [vmem:[%s8779 + $0x15a] sm:$0xff]
        %v9074 = vld [vmem:[%s8779 + $0x16a] sm:$0xff]
        %v9075 = vld [vmem:[%s8779 + $0x172] sm:$0xff]
        %v9076 = vmul.f32 %v9044, %v7679
        %v9077 = vmul.f32 %v9045, %v7679
        %v9078 = vmul.f32 %v9046, %v7679
        %v9079 = vmul.f32 %v9047, %v7679
        %v9080 = vmul.f32 %v9048, %v7679
        %v9081 = vmul.f32 %v9049, %v7679
        %v9082 = vmul.f32 %v9050, %v7679
        %v9083 = vmul.f32 %v9051, %v7679
        %v9084 = vmul.f32 %v9052, %v7679
        %v9085 = vmul.f32 %v9053, %v7679
        %v9086 = vmul.f32 %v9054, %v7679
        %v9087 = vmul.f32 %v9055, %v7679
        %v9088 = vmul.f32 %v9056, %v7679
        %v9089 = vmul.f32 %v9057, %v7679
        %v9090 = vmul.f32 %v9058, %v7679
        %v9091 = vmul.f32 %v9059, %v7679
        %v9092 = vmul.f32 %v9060, %v7679
        %v9093 = vmul.f32 %v9061, %v7679
        %v9094 = vmul.f32 %v9062, %v7679
        %v9095 = vmul.f32 %v9063, %v7679
        %v9096 = vmul.f32 %v9064, %v7679
        %v9097 = vmul.f32 %v9065, %v7679
        %v9098 = vmul.f32 %v9066, %v7679
        %v9099 = vmul.f32 %v9067, %v7679
        %v9100 = vmul.f32 %v9068, %v7679
        %v9101 = vmul.f32 %v9069, %v7679
        %v9102 = vmul.f32 %v9070, %v7679
        %v9103 = vmul.f32 %v9071, %v7679
        %v9104 = vmul.f32 %v9072, %v7679
        %v9105 = vmul.f32 %v9073, %v7679
        %v9106 = vmul.f32 %v9074, %v7679
        %v9107 = vmul.f32 %v9075, %v7679
        %v9108 = vadd.f32 %v9012, %v9076
        %v9109 = vadd.f32 %v9013, %v9077
        %v9110 = vadd.f32 %v9014, %v9078
        %v9111 = vadd.f32 %v9015, %v9079
        %v9112 = vadd.f32 %v9016, %v9080
        %v9113 = vadd.f32 %v9017, %v9081
        %v9114 = vadd.f32 %v9018, %v9082
        %v9115 = vadd.f32 %v9019, %v9083
        %v9116 = vadd.f32 %v9020, %v9084
        %v9117 = vadd.f32 %v9021, %v9085
        %v9118 = vadd.f32 %v9022, %v9086
        %v9119 = vadd.f32 %v9023, %v9087
        %v9120 = vadd.f32 %v9024, %v9088
        %v9121 = vadd.f32 %v9025, %v9089
        %v9122 = vadd.f32 %v9026, %v9090
        %v9123 = vadd.f32 %v9027, %v9091
        %v9124 = vadd.f32 %v9028, %v9092
        %v9125 = vadd.f32 %v9029, %v9093
        %v9126 = vadd.f32 %v9030, %v9094
        %v9127 = vadd.f32 %v9031, %v9095
        %v9128 = vadd.f32 %v9032, %v9096
        %v9129 = vadd.f32 %v9033, %v9097
        %v9130 = vadd.f32 %v9034, %v9098
        %v9131 = vadd.f32 %v9035, %v9099
        %v9132 = vadd.f32 %v9036, %v9100
        %v9133 = vadd.f32 %v9037, %v9101
        %v9134 = vadd.f32 %v9038, %v9102
        %v9135 = vadd.f32 %v9039, %v9103
        %v9136 = vadd.f32 %v9040, %v9104
        %v9137 = vadd.f32 %v9041, %v9105
        %v9138 = vadd.f32 %v9042, %v9106
        %v9139 = vadd.f32 %v9043, %v9107
        %v9140 = vld [vmem:[%s8787] sm:$0xff]
        %v9141 = vld [vmem:[%s8787 + $0x8] sm:$0xff]
        %v9142 = vld [vmem:[%s8787 + $0x18] sm:$0xff]
        %v9143 = vld [vmem:[%s8787 + $0x20] sm:$0xff]
        %v9144 = vld [vmem:[%s8787 + $0x30] sm:$0xff]
        %v9145 = vld [vmem:[%s8787 + $0x38] sm:$0xff]
        %v9146 = vld [vmem:[%s8787 + $0x48] sm:$0xff]
        %v9147 = vld [vmem:[%s8787 + $0x50] sm:$0xff]
        %v9148 = vld [vmem:[%s8787 + $0x60] sm:$0xff]
        %v9149 = vld [vmem:[%s8787 + $0x68] sm:$0xff]
        %v9150 = vld [vmem:[%s8787 + $0x78] sm:$0xff]
        %v9151 = vld [vmem:[%s8787 + $0x80] sm:$0xff]
        %v9152 = vld [vmem:[%s8787 + $0x90] sm:$0xff]
        %v9153 = vld [vmem:[%s8787 + $0x98] sm:$0xff]
        %v9154 = vld [vmem:[%s8787 + $0xa8] sm:$0xff]
        %v9155 = vld [vmem:[%s8787 + $0xb0] sm:$0xff]
        %v9156 = vld [vmem:[%s8787 + $0xc0] sm:$0xff]
        %v9157 = vld [vmem:[%s8787 + $0xc8] sm:$0xff]
        %v9158 = vld [vmem:[%s8787 + $0xd8] sm:$0xff]
        %v9159 = vld [vmem:[%s8787 + $0xe0] sm:$0xff]
        %v9160 = vld [vmem:[%s8787 + $0xf0] sm:$0xff]
        %v9161 = vld [vmem:[%s8787 + $0xf8] sm:$0xff]
        %v9162 = vld [vmem:[%s8787 + $0x108] sm:$0xff]
        %v9163 = vld [vmem:[%s8787 + $0x110] sm:$0xff]
        %v9164 = vld [vmem:[%s8787 + $0x120] sm:$0xff]
        %v9165 = vld [vmem:[%s8787 + $0x128] sm:$0xff]
        %v9166 = vld [vmem:[%s8787 + $0x138] sm:$0xff]
        %v9167 = vld [vmem:[%s8787 + $0x140] sm:$0xff]
        %v9168 = vld [vmem:[%s8787 + $0x150] sm:$0xff]
        %v9169 = vld [vmem:[%s8787 + $0x158] sm:$0xff]
        %v9170 = vld [vmem:[%s8787 + $0x168] sm:$0xff]
        %v9171 = vld [vmem:[%s8787 + $0x170] sm:$0xff]
        %v9172 = vmul.f32 %v9140, %v7779
        %v9173 = vmul.f32 %v9141, %v7779
        %v9174 = vmul.f32 %v9142, %v7779
        %v9175 = vmul.f32 %v9143, %v7779
        %v9176 = vmul.f32 %v9144, %v7779
        %v9177 = vmul.f32 %v9145, %v7779
        %v9178 = vmul.f32 %v9146, %v7779
        %v9179 = vmul.f32 %v9147, %v7779
        %v9180 = vmul.f32 %v9148, %v7779
        %v9181 = vmul.f32 %v9149, %v7779
        %v9182 = vmul.f32 %v9150, %v7779
        %v9183 = vmul.f32 %v9151, %v7779
        %v9184 = vmul.f32 %v9152, %v7779
        %v9185 = vmul.f32 %v9153, %v7779
        %v9186 = vmul.f32 %v9154, %v7779
        %v9187 = vmul.f32 %v9155, %v7779
        %v9188 = vmul.f32 %v9156, %v7779
        %v9189 = vmul.f32 %v9157, %v7779
        %v9190 = vmul.f32 %v9158, %v7779
        %v9191 = vmul.f32 %v9159, %v7779
        %v9192 = vmul.f32 %v9160, %v7779
        %v9193 = vmul.f32 %v9161, %v7779
        %v9194 = vmul.f32 %v9162, %v7779
        %v9195 = vmul.f32 %v9163, %v7779
        %v9196 = vmul.f32 %v9164, %v7779
        %v9197 = vmul.f32 %v9165, %v7779
        %v9198 = vmul.f32 %v9166, %v7779
        %v9199 = vmul.f32 %v9167, %v7779
        %v9200 = vmul.f32 %v9168, %v7779
        %v9201 = vmul.f32 %v9169, %v7779
        %v9202 = vmul.f32 %v9170, %v7779
        %v9203 = vmul.f32 %v9171, %v7779
        %v9204 = vadd.f32 %v9108, %v9172
        %v9205 = vadd.f32 %v9109, %v9173
        %v9206 = vadd.f32 %v9110, %v9174
        %v9207 = vadd.f32 %v9111, %v9175
        %v9208 = vadd.f32 %v9112, %v9176
        %v9209 = vadd.f32 %v9113, %v9177
        %v9210 = vadd.f32 %v9114, %v9178
        %v9211 = vadd.f32 %v9115, %v9179
        %v9212 = vadd.f32 %v9116, %v9180
        %v9213 = vadd.f32 %v9117, %v9181
        %v9214 = vadd.f32 %v9118, %v9182
        %v9215 = vadd.f32 %v9119, %v9183
        %v9216 = vadd.f32 %v9120, %v9184
        %v9217 = vadd.f32 %v9121, %v9185
        %v9218 = vadd.f32 %v9122, %v9186
        %v9219 = vadd.f32 %v9123, %v9187
        %v9220 = vadd.f32 %v9124, %v9188
        %v9221 = vadd.f32 %v9125, %v9189
        %v9222 = vadd.f32 %v9126, %v9190
        %v9223 = vadd.f32 %v9127, %v9191
        %v9224 = vadd.f32 %v9128, %v9192
        %v9225 = vadd.f32 %v9129, %v9193
        %v9226 = vadd.f32 %v9130, %v9194
        %v9227 = vadd.f32 %v9131, %v9195
        %v9228 = vadd.f32 %v9132, %v9196
        %v9229 = vadd.f32 %v9133, %v9197
        %v9230 = vadd.f32 %v9134, %v9198
        %v9231 = vadd.f32 %v9135, %v9199
        %v9232 = vadd.f32 %v9136, %v9200
        %v9233 = vadd.f32 %v9137, %v9201
        %v9234 = vadd.f32 %v9138, %v9202
        %v9235 = vadd.f32 %v9139, %v9203
        %v9236 = vld [vmem:[%s8787 + $0x1] sm:$0xff]
        %v9237 = vld [vmem:[%s8787 + $0x9] sm:$0xff]
        %v9238 = vld [vmem:[%s8787 + $0x19] sm:$0xff]
        %v9239 = vld [vmem:[%s8787 + $0x21] sm:$0xff]
        %v9240 = vld [vmem:[%s8787 + $0x31] sm:$0xff]
        %v9241 = vld [vmem:[%s8787 + $0x39] sm:$0xff]
        %v9242 = vld [vmem:[%s8787 + $0x49] sm:$0xff]
        %v9243 = vld [vmem:[%s8787 + $0x51] sm:$0xff]
        %v9244 = vld [vmem:[%s8787 + $0x61] sm:$0xff]
        %v9245 = vld [vmem:[%s8787 + $0x69] sm:$0xff]
        %v9246 = vld [vmem:[%s8787 + $0x79] sm:$0xff]
        %v9247 = vld [vmem:[%s8787 + $0x81] sm:$0xff]
        %v9248 = vld [vmem:[%s8787 + $0x91] sm:$0xff]
        %v9249 = vld [vmem:[%s8787 + $0x99] sm:$0xff]
        %v9250 = vld [vmem:[%s8787 + $0xa9] sm:$0xff]
        %v9251 = vld [vmem:[%s8787 + $0xb1] sm:$0xff]
        %v9252 = vld [vmem:[%s8787 + $0xc1] sm:$0xff]
        %v9253 = vld [vmem:[%s8787 + $0xc9] sm:$0xff]
        %v9254 = vld [vmem:[%s8787 + $0xd9] sm:$0xff]
        %v9255 = vld [vmem:[%s8787 + $0xe1] sm:$0xff]
        %v9256 = vld [vmem:[%s8787 + $0xf1] sm:$0xff]
        %v9257 = vld [vmem:[%s8787 + $0xf9] sm:$0xff]
        %v9258 = vld [vmem:[%s8787 + $0x109] sm:$0xff]
        %v9259 = vld [vmem:[%s8787 + $0x111] sm:$0xff]
        %v9260 = vld [vmem:[%s8787 + $0x121] sm:$0xff]
        %v9261 = vld [vmem:[%s8787 + $0x129] sm:$0xff]
        %v9262 = vld [vmem:[%s8787 + $0x139] sm:$0xff]
        %v9263 = vld [vmem:[%s8787 + $0x141] sm:$0xff]
        %v9264 = vld [vmem:[%s8787 + $0x151] sm:$0xff]
        %v9265 = vld [vmem:[%s8787 + $0x159] sm:$0xff]
        %v9266 = vld [vmem:[%s8787 + $0x169] sm:$0xff]
        %v9267 = vld [vmem:[%s8787 + $0x171] sm:$0xff]
        %v9268 = vmul.f32 %v9236, %v7879
        %v9269 = vmul.f32 %v9237, %v7879
        %v9270 = vmul.f32 %v9238, %v7879
        %v9271 = vmul.f32 %v9239, %v7879
        %v9272 = vmul.f32 %v9240, %v7879
        %v9273 = vmul.f32 %v9241, %v7879
        %v9274 = vmul.f32 %v9242, %v7879
        %v9275 = vmul.f32 %v9243, %v7879
        %v9276 = vmul.f32 %v9244, %v7879
        %v9277 = vmul.f32 %v9245, %v7879
        %v9278 = vmul.f32 %v9246, %v7879
        %v9279 = vmul.f32 %v9247, %v7879
        %v9280 = vmul.f32 %v9248, %v7879
        %v9281 = vmul.f32 %v9249, %v7879
        %v9282 = vmul.f32 %v9250, %v7879
        %v9283 = vmul.f32 %v9251, %v7879
        %v9284 = vmul.f32 %v9252, %v7879
        %v9285 = vmul.f32 %v9253, %v7879
        %v9286 = vmul.f32 %v9254, %v7879
        %v9287 = vmul.f32 %v9255, %v7879
        %v9288 = vmul.f32 %v9256, %v7879
        %v9289 = vmul.f32 %v9257, %v7879
        %v9290 = vmul.f32 %v9258, %v7879
        %v9291 = vmul.f32 %v9259, %v7879
        %v9292 = vmul.f32 %v9260, %v7879
        %v9293 = vmul.f32 %v9261, %v7879
        %v9294 = vmul.f32 %v9262, %v7879
        %v9295 = vmul.f32 %v9263, %v7879
        %v9296 = vmul.f32 %v9264, %v7879
        %v9297 = vmul.f32 %v9265, %v7879
        %v9298 = vmul.f32 %v9266, %v7879
        %v9299 = vmul.f32 %v9267, %v7879
        %v9300 = vadd.f32 %v9204, %v9268
        %v9301 = vadd.f32 %v9205, %v9269
        %v9302 = vadd.f32 %v9206, %v9270
        %v9303 = vadd.f32 %v9207, %v9271
        %v9304 = vadd.f32 %v9208, %v9272
        %v9305 = vadd.f32 %v9209, %v9273
        %v9306 = vadd.f32 %v9210, %v9274
        %v9307 = vadd.f32 %v9211, %v9275
        %v9308 = vadd.f32 %v9212, %v9276
        %v9309 = vadd.f32 %v9213, %v9277
        %v9310 = vadd.f32 %v9214, %v9278
        %v9311 = vadd.f32 %v9215, %v9279
        %v9312 = vadd.f32 %v9216, %v9280
        %v9313 = vadd.f32 %v9217, %v9281
        %v9314 = vadd.f32 %v9218, %v9282
        %v9315 = vadd.f32 %v9219, %v9283
        %v9316 = vadd.f32 %v9220, %v9284
        %v9317 = vadd.f32 %v9221, %v9285
        %v9318 = vadd.f32 %v9222, %v9286
        %v9319 = vadd.f32 %v9223, %v9287
        %v9320 = vadd.f32 %v9224, %v9288
        %v9321 = vadd.f32 %v9225, %v9289
        %v9322 = vadd.f32 %v9226, %v9290
        %v9323 = vadd.f32 %v9227, %v9291
        %v9324 = vadd.f32 %v9228, %v9292
        %v9325 = vadd.f32 %v9229, %v9293
        %v9326 = vadd.f32 %v9230, %v9294
        %v9327 = vadd.f32 %v9231, %v9295
        %v9328 = vadd.f32 %v9232, %v9296
        %v9329 = vadd.f32 %v9233, %v9297
        %v9330 = vadd.f32 %v9234, %v9298
        %v9331 = vadd.f32 %v9235, %v9299
        %v9332 = vld [vmem:[%s8787 + $0x2] sm:$0xff]
        %v9333 = vld [vmem:[%s8787 + $0xa] sm:$0xff]
        %v9334 = vld [vmem:[%s8787 + $0x1a] sm:$0xff]
        %v9335 = vld [vmem:[%s8787 + $0x22] sm:$0xff]
        %v9336 = vld [vmem:[%s8787 + $0x32] sm:$0xff]
        %v9337 = vld [vmem:[%s8787 + $0x3a] sm:$0xff]
        %v9338 = vld [vmem:[%s8787 + $0x4a] sm:$0xff]
        %v9339 = vld [vmem:[%s8787 + $0x52] sm:$0xff]
        %v9340 = vld [vmem:[%s8787 + $0x62] sm:$0xff]
        %v9341 = vld [vmem:[%s8787 + $0x6a] sm:$0xff]
        %v9342 = vld [vmem:[%s8787 + $0x7a] sm:$0xff]
        %v9343 = vld [vmem:[%s8787 + $0x82] sm:$0xff]
        %v9344 = vld [vmem:[%s8787 + $0x92] sm:$0xff]
        %v9345 = vld [vmem:[%s8787 + $0x9a] sm:$0xff]
        %v9346 = vld [vmem:[%s8787 + $0xaa] sm:$0xff]
        %v9347 = vld [vmem:[%s8787 + $0xb2] sm:$0xff]
        %v9348 = vld [vmem:[%s8787 + $0xc2] sm:$0xff]
        %v9349 = vld [vmem:[%s8787 + $0xca] sm:$0xff]
        %v9350 = vld [vmem:[%s8787 + $0xda] sm:$0xff]
        %v9351 = vld [vmem:[%s8787 + $0xe2] sm:$0xff]
        %v9352 = vld [vmem:[%s8787 + $0xf2] sm:$0xff]
        %v9353 = vld [vmem:[%s8787 + $0xfa] sm:$0xff]
        %v9354 = vld [vmem:[%s8787 + $0x10a] sm:$0xff]
        %v9355 = vld [vmem:[%s8787 + $0x112] sm:$0xff]
        %v9356 = vld [vmem:[%s8787 + $0x122] sm:$0xff]
        %v9357 = vld [vmem:[%s8787 + $0x12a] sm:$0xff]
        %v9358 = vld [vmem:[%s8787 + $0x13a] sm:$0xff]
        %v9359 = vld [vmem:[%s8787 + $0x142] sm:$0xff]
        %v9360 = vld [vmem:[%s8787 + $0x152] sm:$0xff]
        %v9361 = vld [vmem:[%s8787 + $0x15a] sm:$0xff]
        %v9362 = vld [vmem:[%s8787 + $0x16a] sm:$0xff]
        %v9363 = vld [vmem:[%s8787 + $0x172] sm:$0xff]
        %v9364 = vmul.f32 %v9332, %v7979
        %v9365 = vmul.f32 %v9333, %v7979
        %v9366 = vmul.f32 %v9334, %v7979
        %v9367 = vmul.f32 %v9335, %v7979
        %v9368 = vmul.f32 %v9336, %v7979
        %v9369 = vmul.f32 %v9337, %v7979
        %v9370 = vmul.f32 %v9338, %v7979
        %v9371 = vmul.f32 %v9339, %v7979
        %v9372 = vmul.f32 %v9340, %v7979
        %v9373 = vmul.f32 %v9341, %v7979
        %v9374 = vmul.f32 %v9342, %v7979
        %v9375 = vmul.f32 %v9343, %v7979
        %v9376 = vmul.f32 %v9344, %v7979
        %v9377 = vmul.f32 %v9345, %v7979
        %v9378 = vmul.f32 %v9346, %v7979
        %v9379 = vmul.f32 %v9347, %v7979
        %v9380 = vmul.f32 %v9348, %v7979
        %v9381 = vmul.f32 %v9349, %v7979
        %v9382 = vmul.f32 %v9350, %v7979
        %v9383 = vmul.f32 %v9351, %v7979
        %v9384 = vmul.f32 %v9352, %v7979
        %v9385 = vmul.f32 %v9353, %v7979
        %v9386 = vmul.f32 %v9354, %v7979
        %v9387 = vmul.f32 %v9355, %v7979
        %v9388 = vmul.f32 %v9356, %v7979
        %v9389 = vmul.f32 %v9357, %v7979
        %v9390 = vmul.f32 %v9358, %v7979
        %v9391 = vmul.f32 %v9359, %v7979
        %v9392 = vmul.f32 %v9360, %v7979
        %v9393 = vmul.f32 %v9361, %v7979
        %v9394 = vmul.f32 %v9362, %v7979
        %v9395 = vmul.f32 %v9363, %v7979
        %v9396 = vadd.f32 %v9300, %v9364
        %v9397 = vadd.f32 %v9301, %v9365
        %v9398 = vadd.f32 %v9302, %v9366
        %v9399 = vadd.f32 %v9303, %v9367
        %v9400 = vadd.f32 %v9304, %v9368
        %v9401 = vadd.f32 %v9305, %v9369
        %v9402 = vadd.f32 %v9306, %v9370
        %v9403 = vadd.f32 %v9307, %v9371
        %v9404 = vadd.f32 %v9308, %v9372
        %v9405 = vadd.f32 %v9309, %v9373
        %v9406 = vadd.f32 %v9310, %v9374
        %v9407 = vadd.f32 %v9311, %v9375
        %v9408 = vadd.f32 %v9312, %v9376
        %v9409 = vadd.f32 %v9313, %v9377
        %v9410 = vadd.f32 %v9314, %v9378
        %v9411 = vadd.f32 %v9315, %v9379
        %v9412 = vadd.f32 %v9316, %v9380
        %v9413 = vadd.f32 %v9317, %v9381
        %v9414 = vadd.f32 %v9318, %v9382
        %v9415 = vadd.f32 %v9319, %v9383
        %v9416 = vadd.f32 %v9320, %v9384
        %v9417 = vadd.f32 %v9321, %v9385
        %v9418 = vadd.f32 %v9322, %v9386
        %v9419 = vadd.f32 %v9323, %v9387
        %v9420 = vadd.f32 %v9324, %v9388
        %v9421 = vadd.f32 %v9325, %v9389
        %v9422 = vadd.f32 %v9326, %v9390
        %v9423 = vadd.f32 %v9327, %v9391
        %v9424 = vadd.f32 %v9328, %v9392
        %v9425 = vadd.f32 %v9329, %v9393
        %v9426 = vadd.f32 %v9330, %v9394
        %v9427 = vadd.f32 %v9331, %v9395
        %s9428 = scalar_lea.vmem [#allocation3], 480
        %v9429 = vld [vmem:[%s9428] sm:$0xff]
        %v9430 = vld [vmem:[%s9428 + $0x8] sm:$0xff]
        %v9431 = vld [vmem:[%s9428 + $0x18] sm:$0xff]
        %v9432 = vld [vmem:[%s9428 + $0x20] sm:$0xff]
        %v9433 = vld [vmem:[%s9428 + $0x30] sm:$0xff]
        %v9434 = vld [vmem:[%s9428 + $0x38] sm:$0xff]
        %v9435 = vld [vmem:[%s9428 + $0x48] sm:$0xff]
        %v9436 = vld [vmem:[%s9428 + $0x50] sm:$0xff]
        %v9437 = vld [vmem:[%s9428 + $0x60] sm:$0xff]
        %v9438 = vld [vmem:[%s9428 + $0x68] sm:$0xff]
        %v9439 = vld [vmem:[%s9428 + $0x78] sm:$0xff]
        %v9440 = vld [vmem:[%s9428 + $0x80] sm:$0xff]
        %v9441 = vld [vmem:[%s9428 + $0x90] sm:$0xff]
        %v9442 = vld [vmem:[%s9428 + $0x98] sm:$0xff]
        %v9443 = vld [vmem:[%s9428 + $0xa8] sm:$0xff]
        %v9444 = vld [vmem:[%s9428 + $0xb0] sm:$0xff]
        %v9445 = vld [vmem:[%s9428 + $0xc0] sm:$0xff]
        %v9446 = vld [vmem:[%s9428 + $0xc8] sm:$0xff]
        %v9447 = vld [vmem:[%s9428 + $0xd8] sm:$0xff]
        %v9448 = vld [vmem:[%s9428 + $0xe0] sm:$0xff]
        %v9449 = vld [vmem:[%s9428 + $0xf0] sm:$0xff]
        %v9450 = vld [vmem:[%s9428 + $0xf8] sm:$0xff]
        %v9451 = vld [vmem:[%s9428 + $0x108] sm:$0xff]
        %v9452 = vld [vmem:[%s9428 + $0x110] sm:$0xff]
        %v9453 = vld [vmem:[%s9428 + $0x120] sm:$0xff]
        %v9454 = vld [vmem:[%s9428 + $0x128] sm:$0xff]
        %v9455 = vld [vmem:[%s9428 + $0x138] sm:$0xff]
        %v9456 = vld [vmem:[%s9428 + $0x140] sm:$0xff]
        %v9457 = vld [vmem:[%s9428 + $0x150] sm:$0xff]
        %v9458 = vld [vmem:[%s9428 + $0x158] sm:$0xff]
        %v9459 = vld [vmem:[%s9428 + $0x168] sm:$0xff]
        %v9460 = vld [vmem:[%s9428 + $0x170] sm:$0xff]
        %v9461 = vmul.f32 %v9429, %v8080
        %v9462 = vmul.f32 %v9430, %v8080
        %v9463 = vmul.f32 %v9431, %v8080
        %v9464 = vmul.f32 %v9432, %v8080
        %v9465 = vmul.f32 %v9433, %v8080
        %v9466 = vmul.f32 %v9434, %v8080
        %v9467 = vmul.f32 %v9435, %v8080
        %v9468 = vmul.f32 %v9436, %v8080
        %v9469 = vmul.f32 %v9437, %v8080
        %v9470 = vmul.f32 %v9438, %v8080
        %v9471 = vmul.f32 %v9439, %v8080
        %v9472 = vmul.f32 %v9440, %v8080
        %v9473 = vmul.f32 %v9441, %v8080
        %v9474 = vmul.f32 %v9442, %v8080
        %v9475 = vmul.f32 %v9443, %v8080
        %v9476 = vmul.f32 %v9444, %v8080
        %v9477 = vmul.f32 %v9445, %v8080
        %v9478 = vmul.f32 %v9446, %v8080
        %v9479 = vmul.f32 %v9447, %v8080
        %v9480 = vmul.f32 %v9448, %v8080
        %v9481 = vmul.f32 %v9449, %v8080
        %v9482 = vmul.f32 %v9450, %v8080
        %v9483 = vmul.f32 %v9451, %v8080
        %v9484 = vmul.f32 %v9452, %v8080
        %v9485 = vmul.f32 %v9453, %v8080
        %v9486 = vmul.f32 %v9454, %v8080
        %v9487 = vmul.f32 %v9455, %v8080
        %v9488 = vmul.f32 %v9456, %v8080
        %v9489 = vmul.f32 %v9457, %v8080
        %v9490 = vmul.f32 %v9458, %v8080
        %v9491 = vmul.f32 %v9459, %v8080
        %v9492 = vmul.f32 %v9460, %v8080
        %v9493 = vadd.f32 %v9396, %v9461
        %v9494 = vadd.f32 %v9397, %v9462
        %v9495 = vadd.f32 %v9398, %v9463
        %v9496 = vadd.f32 %v9399, %v9464
        %v9497 = vadd.f32 %v9400, %v9465
        %v9498 = vadd.f32 %v9401, %v9466
        %v9499 = vadd.f32 %v9402, %v9467
        %v9500 = vadd.f32 %v9403, %v9468
        %v9501 = vadd.f32 %v9404, %v9469
        %v9502 = vadd.f32 %v9405, %v9470
        %v9503 = vadd.f32 %v9406, %v9471
        %v9504 = vadd.f32 %v9407, %v9472
        %v9505 = vadd.f32 %v9408, %v9473
        %v9506 = vadd.f32 %v9409, %v9474
        %v9507 = vadd.f32 %v9410, %v9475
        %v9508 = vadd.f32 %v9411, %v9476
        %v9509 = vadd.f32 %v9412, %v9477
        %v9510 = vadd.f32 %v9413, %v9478
        %v9511 = vadd.f32 %v9414, %v9479
        %v9512 = vadd.f32 %v9415, %v9480
        %v9513 = vadd.f32 %v9416, %v9481
        %v9514 = vadd.f32 %v9417, %v9482
        %v9515 = vadd.f32 %v9418, %v9483
        %v9516 = vadd.f32 %v9419, %v9484
        %v9517 = vadd.f32 %v9420, %v9485
        %v9518 = vadd.f32 %v9421, %v9486
        %v9519 = vadd.f32 %v9422, %v9487
        %v9520 = vadd.f32 %v9423, %v9488
        %v9521 = vadd.f32 %v9424, %v9489
        %v9522 = vadd.f32 %v9425, %v9490
        %v9523 = vadd.f32 %v9426, %v9491
        %v9524 = vadd.f32 %v9427, %v9492
        %v9525 = vld [vmem:[%s9428 + $0x1] sm:$0xff]
        %v9526 = vld [vmem:[%s9428 + $0x9] sm:$0xff]
        %v9527 = vld [vmem:[%s9428 + $0x19] sm:$0xff]
        %v9528 = vld [vmem:[%s9428 + $0x21] sm:$0xff]
        %v9529 = vld [vmem:[%s9428 + $0x31] sm:$0xff]
        %v9530 = vld [vmem:[%s9428 + $0x39] sm:$0xff]
        %v9531 = vld [vmem:[%s9428 + $0x49] sm:$0xff]
        %v9532 = vld [vmem:[%s9428 + $0x51] sm:$0xff]
        %v9533 = vld [vmem:[%s9428 + $0x61] sm:$0xff]
        %v9534 = vld [vmem:[%s9428 + $0x69] sm:$0xff]
        %v9535 = vld [vmem:[%s9428 + $0x79] sm:$0xff]
        %v9536 = vld [vmem:[%s9428 + $0x81] sm:$0xff]
        %v9537 = vld [vmem:[%s9428 + $0x91] sm:$0xff]
        %v9538 = vld [vmem:[%s9428 + $0x99] sm:$0xff]
        %v9539 = vld [vmem:[%s9428 + $0xa9] sm:$0xff]
        %v9540 = vld [vmem:[%s9428 + $0xb1] sm:$0xff]
        %v9541 = vld [vmem:[%s9428 + $0xc1] sm:$0xff]
        %v9542 = vld [vmem:[%s9428 + $0xc9] sm:$0xff]
        %v9543 = vld [vmem:[%s9428 + $0xd9] sm:$0xff]
        %v9544 = vld [vmem:[%s9428 + $0xe1] sm:$0xff]
        %v9545 = vld [vmem:[%s9428 + $0xf1] sm:$0xff]
        %v9546 = vld [vmem:[%s9428 + $0xf9] sm:$0xff]
        %v9547 = vld [vmem:[%s9428 + $0x109] sm:$0xff]
        %v9548 = vld [vmem:[%s9428 + $0x111] sm:$0xff]
        %v9549 = vld [vmem:[%s9428 + $0x121] sm:$0xff]
        %v9550 = vld [vmem:[%s9428 + $0x129] sm:$0xff]
        %v9551 = vld [vmem:[%s9428 + $0x139] sm:$0xff]
        %v9552 = vld [vmem:[%s9428 + $0x141] sm:$0xff]
        %v9553 = vld [vmem:[%s9428 + $0x151] sm:$0xff]
        %v9554 = vld [vmem:[%s9428 + $0x159] sm:$0xff]
        %v9555 = vld [vmem:[%s9428 + $0x169] sm:$0xff]
        %v9556 = vld [vmem:[%s9428 + $0x171] sm:$0xff]
        %v9557 = vmul.f32 %v9525, %v8180
        %v9558 = vmul.f32 %v9526, %v8180
        %v9559 = vmul.f32 %v9527, %v8180
        %v9560 = vmul.f32 %v9528, %v8180
        %v9561 = vmul.f32 %v9529, %v8180
        %v9562 = vmul.f32 %v9530, %v8180
        %v9563 = vmul.f32 %v9531, %v8180
        %v9564 = vmul.f32 %v9532, %v8180
        %v9565 = vmul.f32 %v9533, %v8180
        %v9566 = vmul.f32 %v9534, %v8180
        %v9567 = vmul.f32 %v9535, %v8180
        %v9568 = vmul.f32 %v9536, %v8180
        %v9569 = vmul.f32 %v9537, %v8180
        %v9570 = vmul.f32 %v9538, %v8180
        %v9571 = vmul.f32 %v9539, %v8180
        %v9572 = vmul.f32 %v9540, %v8180
        %v9573 = vmul.f32 %v9541, %v8180
        %v9574 = vmul.f32 %v9542, %v8180
        %v9575 = vmul.f32 %v9543, %v8180
        %v9576 = vmul.f32 %v9544, %v8180
        %v9577 = vmul.f32 %v9545, %v8180
        %v9578 = vmul.f32 %v9546, %v8180
        %v9579 = vmul.f32 %v9547, %v8180
        %v9580 = vmul.f32 %v9548, %v8180
        %v9581 = vmul.f32 %v9549, %v8180
        %v9582 = vmul.f32 %v9550, %v8180
        %v9583 = vmul.f32 %v9551, %v8180
        %v9584 = vmul.f32 %v9552, %v8180
        %v9585 = vmul.f32 %v9553, %v8180
        %v9586 = vmul.f32 %v9554, %v8180
        %v9587 = vmul.f32 %v9555, %v8180
        %v9588 = vmul.f32 %v9556, %v8180
        %v9589 = vadd.f32 %v9493, %v9557
        %v9590 = vadd.f32 %v9494, %v9558
        %v9591 = vadd.f32 %v9495, %v9559
        %v9592 = vadd.f32 %v9496, %v9560
        %v9593 = vadd.f32 %v9497, %v9561
        %v9594 = vadd.f32 %v9498, %v9562
        %v9595 = vadd.f32 %v9499, %v9563
        %v9596 = vadd.f32 %v9500, %v9564
        %v9597 = vadd.f32 %v9501, %v9565
        %v9598 = vadd.f32 %v9502, %v9566
        %v9599 = vadd.f32 %v9503, %v9567
        %v9600 = vadd.f32 %v9504, %v9568
        %v9601 = vadd.f32 %v9505, %v9569
        %v9602 = vadd.f32 %v9506, %v9570
        %v9603 = vadd.f32 %v9507, %v9571
        %v9604 = vadd.f32 %v9508, %v9572
        %v9605 = vadd.f32 %v9509, %v9573
        %v9606 = vadd.f32 %v9510, %v9574
        %v9607 = vadd.f32 %v9511, %v9575
        %v9608 = vadd.f32 %v9512, %v9576
        %v9609 = vadd.f32 %v9513, %v9577
        %v9610 = vadd.f32 %v9514, %v9578
        %v9611 = vadd.f32 %v9515, %v9579
        %v9612 = vadd.f32 %v9516, %v9580
        %v9613 = vadd.f32 %v9517, %v9581
        %v9614 = vadd.f32 %v9518, %v9582
        %v9615 = vadd.f32 %v9519, %v9583
        %v9616 = vadd.f32 %v9520, %v9584
        %v9617 = vadd.f32 %v9521, %v9585
        %v9618 = vadd.f32 %v9522, %v9586
        %v9619 = vadd.f32 %v9523, %v9587
        %v9620 = vadd.f32 %v9524, %v9588
        %v9621 = vld [vmem:[%s9428 + $0x2] sm:$0xff]
        %v9622 = vld [vmem:[%s9428 + $0xa] sm:$0xff]
        %v9623 = vld [vmem:[%s9428 + $0x1a] sm:$0xff]
        %v9624 = vld [vmem:[%s9428 + $0x22] sm:$0xff]
        %v9625 = vld [vmem:[%s9428 + $0x32] sm:$0xff]
        %v9626 = vld [vmem:[%s9428 + $0x3a] sm:$0xff]
        %v9627 = vld [vmem:[%s9428 + $0x4a] sm:$0xff]
        %v9628 = vld [vmem:[%s9428 + $0x52] sm:$0xff]
        %v9629 = vld [vmem:[%s9428 + $0x62] sm:$0xff]
        %v9630 = vld [vmem:[%s9428 + $0x6a] sm:$0xff]
        %v9631 = vld [vmem:[%s9428 + $0x7a] sm:$0xff]
        %v9632 = vld [vmem:[%s9428 + $0x82] sm:$0xff]
        %v9633 = vld [vmem:[%s9428 + $0x92] sm:$0xff]
        %v9634 = vld [vmem:[%s9428 + $0x9a] sm:$0xff]
        %v9635 = vld [vmem:[%s9428 + $0xaa] sm:$0xff]
        %v9636 = vld [vmem:[%s9428 + $0xb2] sm:$0xff]
        %v9637 = vld [vmem:[%s9428 + $0xc2] sm:$0xff]
        %v9638 = vld [vmem:[%s9428 + $0xca] sm:$0xff]
        %v9639 = vld [vmem:[%s9428 + $0xda] sm:$0xff]
        %v9640 = vld [vmem:[%s9428 + $0xe2] sm:$0xff]
        %v9641 = vld [vmem:[%s9428 + $0xf2] sm:$0xff]
        %v9642 = vld [vmem:[%s9428 + $0xfa] sm:$0xff]
        %v9643 = vld [vmem:[%s9428 + $0x10a] sm:$0xff]
        %v9644 = vld [vmem:[%s9428 + $0x112] sm:$0xff]
        %v9645 = vld [vmem:[%s9428 + $0x122] sm:$0xff]
        %v9646 = vld [vmem:[%s9428 + $0x12a] sm:$0xff]
        %v9647 = vld [vmem:[%s9428 + $0x13a] sm:$0xff]
        %v9648 = vld [vmem:[%s9428 + $0x142] sm:$0xff]
        %v9649 = vld [vmem:[%s9428 + $0x152] sm:$0xff]
        %v9650 = vld [vmem:[%s9428 + $0x15a] sm:$0xff]
        %v9651 = vld [vmem:[%s9428 + $0x16a] sm:$0xff]
        %v9652 = vld [vmem:[%s9428 + $0x172] sm:$0xff]
        %v9653 = vmul.f32 %v9621, %v8280
        %v9654 = vmul.f32 %v9622, %v8280
        %v9655 = vmul.f32 %v9623, %v8280
        %v9656 = vmul.f32 %v9624, %v8280
        %v9657 = vmul.f32 %v9625, %v8280
        %v9658 = vmul.f32 %v9626, %v8280
        %v9659 = vmul.f32 %v9627, %v8280
        %v9660 = vmul.f32 %v9628, %v8280
        %v9661 = vmul.f32 %v9629, %v8280
        %v9662 = vmul.f32 %v9630, %v8280
        %v9663 = vmul.f32 %v9631, %v8280
        %v9664 = vmul.f32 %v9632, %v8280
        %v9665 = vmul.f32 %v9633, %v8280
        %v9666 = vmul.f32 %v9634, %v8280
        %v9667 = vmul.f32 %v9635, %v8280
        %v9668 = vmul.f32 %v9636, %v8280
        %v9669 = vmul.f32 %v9637, %v8280
        %v9670 = vmul.f32 %v9638, %v8280
        %v9671 = vmul.f32 %v9639, %v8280
        %v9672 = vmul.f32 %v9640, %v8280
        %v9673 = vmul.f32 %v9641, %v8280
        %v9674 = vmul.f32 %v9642, %v8280
        %v9675 = vmul.f32 %v9643, %v8280
        %v9676 = vmul.f32 %v9644, %v8280
        %v9677 = vmul.f32 %v9645, %v8280
        %v9678 = vmul.f32 %v9646, %v8280
        %v9679 = vmul.f32 %v9647, %v8280
        %v9680 = vmul.f32 %v9648, %v8280
        %v9681 = vmul.f32 %v9649, %v8280
        %v9682 = vmul.f32 %v9650, %v8280
        %v9683 = vmul.f32 %v9651, %v8280
        %v9684 = vmul.f32 %v9652, %v8280
        %v9685 = vadd.f32 %v9589, %v9653
        %v9686 = vadd.f32 %v9590, %v9654
        %v9687 = vadd.f32 %v9591, %v9655
        %v9688 = vadd.f32 %v9592, %v9656
        %v9689 = vadd.f32 %v9593, %v9657
        %v9690 = vadd.f32 %v9594, %v9658
        %v9691 = vadd.f32 %v9595, %v9659
        %v9692 = vadd.f32 %v9596, %v9660
        %v9693 = vadd.f32 %v9597, %v9661
        %v9694 = vadd.f32 %v9598, %v9662
        %v9695 = vadd.f32 %v9599, %v9663
        %v9696 = vadd.f32 %v9600, %v9664
        %v9697 = vadd.f32 %v9601, %v9665
        %v9698 = vadd.f32 %v9602, %v9666
        %v9699 = vadd.f32 %v9603, %v9667
        %v9700 = vadd.f32 %v9604, %v9668
        %v9701 = vadd.f32 %v9605, %v9669
        %v9702 = vadd.f32 %v9606, %v9670
        %v9703 = vadd.f32 %v9607, %v9671
        %v9704 = vadd.f32 %v9608, %v9672
        %v9705 = vadd.f32 %v9609, %v9673
        %v9706 = vadd.f32 %v9610, %v9674
        %v9707 = vadd.f32 %v9611, %v9675
        %v9708 = vadd.f32 %v9612, %v9676
        %v9709 = vadd.f32 %v9613, %v9677
        %v9710 = vadd.f32 %v9614, %v9678
        %v9711 = vadd.f32 %v9615, %v9679
        %v9712 = vadd.f32 %v9616, %v9680
        %v9713 = vadd.f32 %v9617, %v9681
        %v9714 = vadd.f32 %v9618, %v9682
        %v9715 = vadd.f32 %v9619, %v9683
        %v9716 = vadd.f32 %v9620, %v9684
        %v9717 = vmul.f32 %v9685, %v8348
        %v9718 = vmul.f32 %v9686, %v8348
        %v9719 = vmul.f32 %v9687, %v8348
        %v9720 = vmul.f32 %v9688, %v8348
        %v9721 = vmul.f32 %v9689, %v8348
        %v9722 = vmul.f32 %v9690, %v8348
        %v9723 = vmul.f32 %v9691, %v8348
        %v9724 = vmul.f32 %v9692, %v8348
        %v9725 = vmul.f32 %v9693, %v8348
        %v9726 = vmul.f32 %v9694, %v8348
        %v9727 = vmul.f32 %v9695, %v8348
        %v9728 = vmul.f32 %v9696, %v8348
        %v9729 = vmul.f32 %v9697, %v8348
        %v9730 = vmul.f32 %v9698, %v8348
        %v9731 = vmul.f32 %v9699, %v8348
        %v9732 = vmul.f32 %v9700, %v8348
        %v9733 = vmul.f32 %v9701, %v8348
        %v9734 = vmul.f32 %v9702, %v8348
        %v9735 = vmul.f32 %v9703, %v8348
        %v9736 = vmul.f32 %v9704, %v8348
        %v9737 = vmul.f32 %v9705, %v8348
        %v9738 = vmul.f32 %v9706, %v8348
        %v9739 = vmul.f32 %v9707, %v8348
        %v9740 = vmul.f32 %v9708, %v8348
        %v9741 = vmul.f32 %v9709, %v8348
        %v9742 = vmul.f32 %v9710, %v8348
        %v9743 = vmul.f32 %v9711, %v8348
        %v9744 = vmul.f32 %v9712, %v8348
        %v9745 = vmul.f32 %v9713, %v8348
        %v9746 = vmul.f32 %v9714, %v8348
        %v9747 = vmul.f32 %v9715, %v8348
        %v9748 = vmul.f32 %v9716, %v8348
        %v9749 = vadd.f32 %v9717, %v8384
        %v9750 = vadd.f32 %v9718, %v8384
        %v9751 = vadd.f32 %v9719, %v8384
        %v9752 = vadd.f32 %v9720, %v8384
        %v9753 = vadd.f32 %v9721, %v8384
        %v9754 = vadd.f32 %v9722, %v8384
        %v9755 = vadd.f32 %v9723, %v8384
        %v9756 = vadd.f32 %v9724, %v8384
        %v9757 = vadd.f32 %v9725, %v8384
        %v9758 = vadd.f32 %v9726, %v8384
        %v9759 = vadd.f32 %v9727, %v8384
        %v9760 = vadd.f32 %v9728, %v8384
        %v9761 = vadd.f32 %v9729, %v8384
        %v9762 = vadd.f32 %v9730, %v8384
        %v9763 = vadd.f32 %v9731, %v8384
        %v9764 = vadd.f32 %v9732, %v8384
        %v9765 = vadd.f32 %v9733, %v8384
        %v9766 = vadd.f32 %v9734, %v8384
        %v9767 = vadd.f32 %v9735, %v8384
        %v9768 = vadd.f32 %v9736, %v8384
        %v9769 = vadd.f32 %v9737, %v8384
        %v9770 = vadd.f32 %v9738, %v8384
        %v9771 = vadd.f32 %v9739, %v8384
        %v9772 = vadd.f32 %v9740, %v8384
        %v9773 = vadd.f32 %v9741, %v8384
        %v9774 = vadd.f32 %v9742, %v8384
        %v9775 = vadd.f32 %v9743, %v8384
        %v9776 = vadd.f32 %v9744, %v8384
        %v9777 = vadd.f32 %v9745, %v8384
        %v9778 = vadd.f32 %v9746, %v8384
        %v9779 = vadd.f32 %v9747, %v8384
        %v9780 = vadd.f32 %v9748, %v8384
        %v9781 = vxor.u32 %v9749, 2147483648
        %v9782 = vxor.u32 %v9750, 2147483648
        %v9783 = vxor.u32 %v9751, 2147483648
        %v9784 = vxor.u32 %v9752, 2147483648
        %v9785 = vxor.u32 %v9753, 2147483648
        %v9786 = vxor.u32 %v9754, 2147483648
        %v9787 = vxor.u32 %v9755, 2147483648
        %v9788 = vxor.u32 %v9756, 2147483648
        %v9789 = vxor.u32 %v9757, 2147483648
        %v9790 = vxor.u32 %v9758, 2147483648
        %v9791 = vxor.u32 %v9759, 2147483648
        %v9792 = vxor.u32 %v9760, 2147483648
        %v9793 = vxor.u32 %v9761, 2147483648
        %v9794 = vxor.u32 %v9762, 2147483648
        %v9795 = vxor.u32 %v9763, 2147483648
        %v9796 = vxor.u32 %v9764, 2147483648
        %v9797 = vxor.u32 %v9765, 2147483648
        %v9798 = vxor.u32 %v9766, 2147483648
        %v9799 = vxor.u32 %v9767, 2147483648
        %v9800 = vxor.u32 %v9768, 2147483648
        %v9801 = vxor.u32 %v9769, 2147483648
        %v9802 = vxor.u32 %v9770, 2147483648
        %v9803 = vxor.u32 %v9771, 2147483648
        %v9804 = vxor.u32 %v9772, 2147483648
        %v9805 = vxor.u32 %v9773, 2147483648
        %v9806 = vxor.u32 %v9774, 2147483648
        %v9807 = vxor.u32 %v9775, 2147483648
        %v9808 = vxor.u32 %v9776, 2147483648
        %v9809 = vxor.u32 %v9777, 2147483648
        %v9810 = vxor.u32 %v9778, 2147483648
        %v9811 = vxor.u32 %v9779, 2147483648
        %v9812 = vxor.u32 %v9780, 2147483648
        %v9813 = vmul.f32 %v9781, 1.442695
        %v9814 = vpow.pop %v9813
        %v9815 = vmul.f32 %v9782, 1.442695
        %v9816 = vpow.pop %v9815
        %v9817 = vmul.f32 %v9783, 1.442695
        %v9818 = vpow.pop %v9817
        %v9819 = vmul.f32 %v9784, 1.442695
        %v9820 = vpow.pop %v9819
        %v9821 = vmul.f32 %v9785, 1.442695
        %v9822 = vpow.pop %v9821
        %v9823 = vmul.f32 %v9786, 1.442695
        %v9824 = vpow.pop %v9823
        %v9825 = vmul.f32 %v9787, 1.442695
        %v9826 = vpow.pop %v9825
        %v9827 = vmul.f32 %v9788, 1.442695
        %v9828 = vpow.pop %v9827
        %v9829 = vmul.f32 %v9789, 1.442695
        %v9830 = vpow.pop %v9829
        %v9831 = vmul.f32 %v9790, 1.442695
        %v9832 = vpow.pop %v9831
        %v9833 = vmul.f32 %v9791, 1.442695
        %v9834 = vpow.pop %v9833
        %v9835 = vmul.f32 %v9792, 1.442695
        %v9836 = vpow.pop %v9835
        %v9837 = vmul.f32 %v9793, 1.442695
        %v9838 = vpow.pop %v9837
        %v9839 = vmul.f32 %v9794, 1.442695
        %v9840 = vpow.pop %v9839
        %v9841 = vmul.f32 %v9795, 1.442695
        %v9842 = vpow.pop %v9841
        %v9843 = vmul.f32 %v9796, 1.442695
        %v9844 = vpow.pop %v9843
        %v9845 = vmul.f32 %v9797, 1.442695
        %v9846 = vpow.pop %v9845
        %v9847 = vmul.f32 %v9798, 1.442695
        %v9848 = vpow.pop %v9847
        %v9849 = vmul.f32 %v9799, 1.442695
        %v9850 = vpow.pop %v9849
        %v9851 = vmul.f32 %v9800, 1.442695
        %v9852 = vpow.pop %v9851
        %v9853 = vmul.f32 %v9801, 1.442695
        %v9854 = vpow.pop %v9853
        %v9855 = vmul.f32 %v9802, 1.442695
        %v9856 = vpow.pop %v9855
        %v9857 = vmul.f32 %v9803, 1.442695
        %v9858 = vpow.pop %v9857
        %v9859 = vmul.f32 %v9804, 1.442695
        %v9860 = vpow.pop %v9859
        %v9861 = vmul.f32 %v9805, 1.442695
        %v9862 = vpow.pop %v9861
        %v9863 = vmul.f32 %v9806, 1.442695
        %v9864 = vpow.pop %v9863
        %v9865 = vmul.f32 %v9807, 1.442695
        %v9866 = vpow.pop %v9865
        %v9867 = vmul.f32 %v9808, 1.442695
        %v9868 = vpow.pop %v9867
        %v9869 = vmul.f32 %v9809, 1.442695
        %v9870 = vpow.pop %v9869
        %v9871 = vmul.f32 %v9810, 1.442695
        %v9872 = vpow.pop %v9871
        %v9873 = vmul.f32 %v9811, 1.442695
        %v9874 = vpow.pop %v9873
        %v9875 = vmul.f32 %v9812, 1.442695
        %v9876 = vpow.pop %v9875
        %v9877 = vadd.f32 %v9814, 1.0
        %v9878 = vadd.f32 %v9816, 1.0
        %v9879 = vadd.f32 %v9818, 1.0
        %v9880 = vadd.f32 %v9820, 1.0
        %v9881 = vadd.f32 %v9822, 1.0
        %v9882 = vadd.f32 %v9824, 1.0
        %v9883 = vadd.f32 %v9826, 1.0
        %v9884 = vadd.f32 %v9828, 1.0
        %v9885 = vadd.f32 %v9830, 1.0
        %v9886 = vadd.f32 %v9832, 1.0
        %v9887 = vadd.f32 %v9834, 1.0
        %v9888 = vadd.f32 %v9836, 1.0
        %v9889 = vadd.f32 %v9838, 1.0
        %v9890 = vadd.f32 %v9840, 1.0
        %v9891 = vadd.f32 %v9842, 1.0
        %v9892 = vadd.f32 %v9844, 1.0
        %v9893 = vadd.f32 %v9846, 1.0
        %v9894 = vadd.f32 %v9848, 1.0
        %v9895 = vadd.f32 %v9850, 1.0
        %v9896 = vadd.f32 %v9852, 1.0
        %v9897 = vadd.f32 %v9854, 1.0
        %v9898 = vadd.f32 %v9856, 1.0
        %v9899 = vadd.f32 %v9858, 1.0
        %v9900 = vadd.f32 %v9860, 1.0
        %v9901 = vadd.f32 %v9862, 1.0
        %v9902 = vadd.f32 %v9864, 1.0
        %v9903 = vadd.f32 %v9866, 1.0
        %v9904 = vadd.f32 %v9868, 1.0
        %v9905 = vadd.f32 %v9870, 1.0
        %v9906 = vadd.f32 %v9872, 1.0
        %v9907 = vadd.f32 %v9874, 1.0
        %v9908 = vadd.f32 %v9876, 1.0
        %v9909 = vrcp.pop %v9877
        %v9910 = vmul.f32 1.0, %v9909
        %v9911 = vrcp.pop %v9878
        %v9912 = vmul.f32 1.0, %v9911
        %v9913 = vrcp.pop %v9879
        %v9914 = vmul.f32 1.0, %v9913
        %v9915 = vrcp.pop %v9880
        %v9916 = vmul.f32 1.0, %v9915
        %v9917 = vrcp.pop %v9881
        %v9918 = vmul.f32 1.0, %v9917
        %v9919 = vrcp.pop %v9882
        %v9920 = vmul.f32 1.0, %v9919
        %v9921 = vrcp.pop %v9883
        %v9922 = vmul.f32 1.0, %v9921
        %v9923 = vrcp.pop %v9884
        %v9924 = vmul.f32 1.0, %v9923
        %v9925 = vrcp.pop %v9885
        %v9926 = vmul.f32 1.0, %v9925
        %v9927 = vrcp.pop %v9886
        %v9928 = vmul.f32 1.0, %v9927
        %v9929 = vrcp.pop %v9887
        %v9930 = vmul.f32 1.0, %v9929
        %v9931 = vrcp.pop %v9888
        %v9932 = vmul.f32 1.0, %v9931
        %v9933 = vrcp.pop %v9889
        %v9934 = vmul.f32 1.0, %v9933
        %v9935 = vrcp.pop %v9890
        %v9936 = vmul.f32 1.0, %v9935
        %v9937 = vrcp.pop %v9891
        %v9938 = vmul.f32 1.0, %v9937
        %v9939 = vrcp.pop %v9892
        %v9940 = vmul.f32 1.0, %v9939
        %v9941 = vrcp.pop %v9893
        %v9942 = vmul.f32 1.0, %v9941
        %v9943 = vrcp.pop %v9894
        %v9944 = vmul.f32 1.0, %v9943
        %v9945 = vrcp.pop %v9895
        %v9946 = vmul.f32 1.0, %v9945
        %v9947 = vrcp.pop %v9896
        %v9948 = vmul.f32 1.0, %v9947
        %v9949 = vrcp.pop %v9897
        %v9950 = vmul.f32 1.0, %v9949
        %v9951 = vrcp.pop %v9898
        %v9952 = vmul.f32 1.0, %v9951
        %v9953 = vrcp.pop %v9899
        %v9954 = vmul.f32 1.0, %v9953
        %v9955 = vrcp.pop %v9900
        %v9956 = vmul.f32 1.0, %v9955
        %v9957 = vrcp.pop %v9901
        %v9958 = vmul.f32 1.0, %v9957
        %v9959 = vrcp.pop %v9902
        %v9960 = vmul.f32 1.0, %v9959
        %v9961 = vrcp.pop %v9903
        %v9962 = vmul.f32 1.0, %v9961
        %v9963 = vrcp.pop %v9904
        %v9964 = vmul.f32 1.0, %v9963
        %v9965 = vrcp.pop %v9905
        %v9966 = vmul.f32 1.0, %v9965
        %v9967 = vrcp.pop %v9906
        %v9968 = vmul.f32 1.0, %v9967
        %v9969 = vrcp.pop %v9907
        %v9970 = vmul.f32 1.0, %v9969
        %v9971 = vrcp.pop %v9908
        %v9972 = vmul.f32 1.0, %v9971
        %v9973 = vmul.f32 %v9749, %v9910
        %v9974 = vmul.f32 %v9750, %v9912
        %v9975 = vmul.f32 %v9751, %v9914
        %v9976 = vmul.f32 %v9752, %v9916
        %v9977 = vmul.f32 %v9753, %v9918
        %v9978 = vmul.f32 %v9754, %v9920
        %v9979 = vmul.f32 %v9755, %v9922
        %v9980 = vmul.f32 %v9756, %v9924
        %v9981 = vmul.f32 %v9757, %v9926
        %v9982 = vmul.f32 %v9758, %v9928
        %v9983 = vmul.f32 %v9759, %v9930
        %v9984 = vmul.f32 %v9760, %v9932
        %v9985 = vmul.f32 %v9761, %v9934
        %v9986 = vmul.f32 %v9762, %v9936
        %v9987 = vmul.f32 %v9763, %v9938
        %v9988 = vmul.f32 %v9764, %v9940
        %v9989 = vmul.f32 %v9765, %v9942
        %v9990 = vmul.f32 %v9766, %v9944
        %v9991 = vmul.f32 %v9767, %v9946
        %v9992 = vmul.f32 %v9768, %v9948
        %v9993 = vmul.f32 %v9769, %v9950
        %v9994 = vmul.f32 %v9770, %v9952
        %v9995 = vmul.f32 %v9771, %v9954
        %v9996 = vmul.f32 %v9772, %v9956
        %v9997 = vmul.f32 %v9773, %v9958
        %v9998 = vmul.f32 %v9774, %v9960
        %v9999 = vmul.f32 %v9775, %v9962
        %v10000 = vmul.f32 %v9776, %v9964
        %v10001 = vmul.f32 %v9777, %v9966
        %v10002 = vmul.f32 %v9778, %v9968
        %v10003 = vmul.f32 %v9779, %v9970
        %v10004 = vmul.f32 %v9780, %v9972
        %v10005 = vsel %vm7369, %v9973, 0.0
        %v10006 = vsel %vm7369, %v9974, 0.0
        %v10007 = vadd.f32 %v10005, %v10006
        %v10008 = vsel %vm7369, %v9975, 0.0
        %v10009 = vadd.f32 %v10007, %v10008
        %v10010 = vsel %vm7369, %v9976, 0.0
        %v10011 = vadd.f32 %v10009, %v10010
        %v10012 = vsel %vm7369, %v9977, 0.0
        %v10013 = vadd.f32 %v10011, %v10012
        %v10014 = vsel %vm7369, %v9978, 0.0
        %v10015 = vadd.f32 %v10013, %v10014
        %v10016 = vsel %vm7369, %v9979, 0.0
        %v10017 = vadd.f32 %v10015, %v10016
        %v10018 = vsel %vm7369, %v9980, 0.0
        %v10019 = vadd.f32 %v10017, %v10018
        %v10020 = vsel %vm7369, %v9981, 0.0
        %v10021 = vadd.f32 %v10019, %v10020
        %v10022 = vsel %vm7369, %v9982, 0.0
        %v10023 = vadd.f32 %v10021, %v10022
        %v10024 = vsel %vm7369, %v9983, 0.0
        %v10025 = vadd.f32 %v10023, %v10024
        %v10026 = vsel %vm7369, %v9984, 0.0
        %v10027 = vadd.f32 %v10025, %v10026
        %v10028 = vsel %vm7369, %v9985, 0.0
        %v10029 = vadd.f32 %v10027, %v10028
        %v10030 = vsel %vm7369, %v9986, 0.0
        %v10031 = vadd.f32 %v10029, %v10030
        %v10032 = vsel %vm7369, %v9987, 0.0
        %v10033 = vadd.f32 %v10031, %v10032
        %v10034 = vsel %vm7369, %v9988, 0.0
        %v10035 = vadd.f32 %v10033, %v10034
        %v10036 = vsel %vm7369, %v9989, 0.0
        %v10037 = vadd.f32 %v10035, %v10036
        %v10038 = vsel %vm7369, %v9990, 0.0
        %v10039 = vadd.f32 %v10037, %v10038
        %v10040 = vsel %vm7369, %v9991, 0.0
        %v10041 = vadd.f32 %v10039, %v10040
        %v10042 = vsel %vm7369, %v9992, 0.0
        %v10043 = vadd.f32 %v10041, %v10042
        %v10044 = vsel %vm7369, %v9993, 0.0
        %v10045 = vadd.f32 %v10043, %v10044
        %v10046 = vsel %vm7369, %v9994, 0.0
        %v10047 = vadd.f32 %v10045, %v10046
        %v10048 = vsel %vm7369, %v9995, 0.0
        %v10049 = vadd.f32 %v10047, %v10048
        %v10050 = vsel %vm7369, %v9996, 0.0
        %v10051 = vadd.f32 %v10049, %v10050
        %v10052 = vsel %vm7369, %v9997, 0.0
        %v10053 = vadd.f32 %v10051, %v10052
        %v10054 = vsel %vm7369, %v9998, 0.0
        %v10055 = vadd.f32 %v10053, %v10054
        %v10056 = vsel %vm7369, %v9999, 0.0
        %v10057 = vadd.f32 %v10055, %v10056
        %v10058 = vsel %vm7369, %v10000, 0.0
        %v10059 = vadd.f32 %v10057, %v10058
        %v10060 = vsel %vm7369, %v10001, 0.0
        %v10061 = vadd.f32 %v10059, %v10060
        %v10062 = vsel %vm7369, %v10002, 0.0
        %v10063 = vadd.f32 %v10061, %v10062
        %v10064 = vsel %vm7369, %v10003, 0.0
        %v10065 = vadd.f32 %v10063, %v10064
        %v10066 = vsel %vm7369, %v10004, 0.0
        %v10067 = vadd.f32 %v10065, %v10066
        %v10068 = vrot.slane %v10067, 4
        %v10069 = vadd.f32 %v10067, %v10068
        %v10070 = vrot.slane %v10069, 2
        %v10071 = vadd.f32 %v10069, %v10070
        %v10072 = vrot.slane %v10071, 1
        %v10073 = vadd.f32 %v10071, %v10072
        %v10074 = vmul.f32 %v10073, 0.00390625
        %v10075 = vmul.f32 %v7367, %v10074
        %v10076 = vsel %vm7372, %v10075, 0.0
        %10077 = vadd.xlane.f32.xlu0 %v10076
        %v10078 = vpop.xlane.xlu0 %10077
        %v10079 = vadd.f32 %v10078, %v7367
        %v10080 = vxor.u32 %v10079, 2147483648
        %v10081 = vmul.f32 %v10080, 1.442695
        %v10082 = vpow.pop %v10081
        %v10083 = vadd.f32 %v10082, 1.0
        %v10084 = vrcp.pop %v10083
        %v10085 = vmul.f32 1.0, %v10084
        %v10086 = vmul.f32 %v10079, %v10085
        %10088 = vset.pattern.permute.xlu0 32
        %10089 = vperm.xlu0 %10088, %v10086
        %v10090 = vpop.permute.xlu0 %10089
        %v10092 = vmul.f32 %v7368, %v10090
        %v10093 = vsel %vm7372, %v10092, 0.0
        %v10094 = vrot.slane %v10093, 4
        %v10095 = vadd.f32 %v10093, %v10094
        %v10096 = vrot.slane %v10095, 2
        %v10097 = vadd.f32 %v10095, %v10096
        %v10098 = vrot.slane %v10097, 1
        %v10099 = vadd.f32 %v10097, %v10098
        %v10100 = vadd.f32 %v10099, %v7364
        %v10101 = vxor.u32 %v10100, 2147483648
        %v10102 = vmul.f32 %v10101, 1.442695
        %v10103 = vpow.pop %v10102
        %v10104 = vadd.f32 %v10103, 1.0
        %v10105 = vrcp.pop %v10104
        %v10106 = vmul.f32 1.0, %v10105
        %v10107 = vlaneseq
        %v10108 = vshrl.u32 %v10107, 7
        %v10109 = vsub.s32 0, %v10108
        %v10110 = vrot.slane %v10106, %v10109
        %v10111 = vmul.f32 %v9973, %v10110
        %v10112 = vmul.f32 %v9974, %v10110
        %v10113 = vmul.f32 %v9975, %v10110
        %v10114 = vmul.f32 %v9976, %v10110
        %v10115 = vmul.f32 %v9977, %v10110
        %v10116 = vmul.f32 %v9978, %v10110
        %v10117 = vmul.f32 %v9979, %v10110
        %v10118 = vmul.f32 %v9980, %v10110
        %v10119 = vmul.f32 %v9981, %v10110
        %v10120 = vmul.f32 %v9982, %v10110
        %v10121 = vmul.f32 %v9983, %v10110
        %v10122 = vmul.f32 %v9984, %v10110
        %v10123 = vmul.f32 %v9985, %v10110
        %v10124 = vmul.f32 %v9986, %v10110
        %v10125 = vmul.f32 %v9987, %v10110
        %v10126 = vmul.f32 %v9988, %v10110
        %v10127 = vmul.f32 %v9989, %v10110
        %v10128 = vmul.f32 %v9990, %v10110
        %v10129 = vmul.f32 %v9991, %v10110
        %v10130 = vmul.f32 %v9992, %v10110
        %v10131 = vmul.f32 %v9993, %v10110
        %v10132 = vmul.f32 %v9994, %v10110
        %v10133 = vmul.f32 %v9995, %v10110
        %v10134 = vmul.f32 %v9996, %v10110
        %v10135 = vmul.f32 %v9997, %v10110
        %v10136 = vmul.f32 %v9998, %v10110
        %v10137 = vmul.f32 %v9999, %v10110
        %v10138 = vmul.f32 %v10000, %v10110
        %v10139 = vmul.f32 %v10001, %v10110
        %v10140 = vmul.f32 %v10002, %v10110
        %v10141 = vmul.f32 %v10003, %v10110
        %v10142 = vmul.f32 %v10004, %v10110
        %v10143 = vld [vmem:[%s6] sm:$0xff]
        %v10145 = vsel %vm7369, %v10143, 0
        %v10148 = vsel %vm7369, %v8747, 0
        %v10151 = vsel %vm7369, %v8748, 0
        %v10154 = vsel %vm7369, %v8749, 0
        %v10157 = vsel %vm7369, %v8750, 0
        %v10160 = vsel %vm7369, %v8751, 0
        %v10163 = vsel %vm7369, %v8752, 0
        %v10166 = vsel %vm7369, %v8753, 0
        %v10169 = vsel %vm7369, %v8754, 0
        %v10172 = vsel %vm7369, %v8755, 0
        %v10175 = vsel %vm7369, %v8756, 0
        %v10178 = vsel %vm7369, %v8757, 0
        %v10181 = vsel %vm7369, %v8758, 0
        %v10184 = vsel %vm7369, %v8759, 0
        %v10187 = vsel %vm7369, %v8760, 0
        %v10190 = vsel %vm7369, %v8761, 0
        %v10193 = vsel %vm7369, %v8762, 0
        %v10196 = vsel %vm7369, %v8763, 0
        %v10199 = vsel %vm7369, %v8764, 0
        %v10202 = vsel %vm7369, %v8765, 0
        %v10205 = vsel %vm7369, %v8766, 0
        %v10208 = vsel %vm7369, %v8767, 0
        %v10211 = vsel %vm7369, %v8768, 0
        %v10214 = vsel %vm7369, %v8769, 0
        %v10217 = vsel %vm7369, %v8770, 0
        %v10220 = vsel %vm7369, %v8771, 0
        %v10223 = vsel %vm7369, %v8772, 0
        %v10226 = vsel %vm7369, %v8773, 0
        %v10229 = vsel %vm7369, %v8774, 0
        %v10232 = vsel %vm7369, %v8775, 0
        %v10235 = vsel %vm7369, %v8776, 0
        %v10238 = vsel %vm7369, %v8777, 0
        %v10241 = vsel %vm7369, %v8778, 0
        %v10244 = vsel %vm7369, %v10111, 0
        %v10247 = vsel %vm7369, %v10112, 0
        %v10250 = vsel %vm7369, %v10113, 0
        %v10253 = vsel %vm7369, %v10114, 0
        %v10256 = vsel %vm7369, %v10115, 0
        %v10259 = vsel %vm7369, %v10116, 0
        %v10262 = vsel %vm7369, %v10117, 0
        %v10265 = vsel %vm7369, %v10118, 0
        %v10268 = vsel %vm7369, %v10119, 0
        %v10271 = vsel %vm7369, %v10120, 0
        %v10274 = vsel %vm7369, %v10121, 0
        %v10277 = vsel %vm7369, %v10122, 0
        %v10280 = vsel %vm7369, %v10123, 0
        %v10283 = vsel %vm7369, %v10124, 0
        %v10286 = vsel %vm7369, %v10125, 0
        %v10289 = vsel %vm7369, %v10126, 0
        %v10292 = vsel %vm7369, %v10127, 0
        %v10295 = vsel %vm7369, %v10128, 0
        %v10298 = vsel %vm7369, %v10129, 0
        %v10301 = vsel %vm7369, %v10130, 0
        %v10304 = vsel %vm7369, %v10131, 0
        %v10307 = vsel %vm7369, %v10132, 0
        %v10310 = vsel %vm7369, %v10133, 0
        %v10313 = vsel %vm7369, %v10134, 0
        %v10316 = vsel %vm7369, %v10135, 0
        %v10319 = vsel %vm7369, %v10136, 0
        %v10322 = vsel %vm7369, %v10137, 0
        %v10325 = vsel %vm7369, %v10138, 0
        %v10328 = vsel %vm7369, %v10139, 0
        %v10331 = vsel %vm7369, %v10140, 0
        %v10334 = vsel %vm7369, %v10141, 0
        %v10337 = vsel %vm7369, %v10142, 0
        %10339 = vmatprep.subr.mxu0 0.0
        %10340 = vmatpush1.xpose.msra.mxu0 %v10148
        %10341 = vmatprep.subr.mxu0 0.0
        %10342 = vmatpush1.xpose.msra.mxu0 %v10151
        %10343 = vmatprep.subr.mxu0 0.0
        %10344 = vmatpush1.xpose.msra.mxu0 %v10154
        %10345 = vmatprep.subr.mxu0 0.0
        %10346 = vmatpush1.xpose.msra.mxu0 %v10157
        %10347 = vmatprep.subr.mxu0 0.0
        %10348 = vmatpush1.xpose.msra.mxu0 %v10160
        %10349 = vmatprep.subr.mxu0 0.0
        %10350 = vmatpush1.xpose.msra.mxu0 %v10163
        %10351 = vmatprep.subr.mxu0 0.0
        %10352 = vmatpush1.xpose.msra.mxu0 %v10166
        %10353 = vmatprep.subr.mxu0 0.0
        %10354 = vmatpush1.xpose.msra.mxu0 %v10169
        %10355 = vmatprep.subr.mxu0 0.0
        %10356 = vmatpush1.xpose.msra.mxu0 %v10172
        %10357 = vmatprep.subr.mxu0 0.0
        %10358 = vmatpush1.xpose.msra.mxu0 %v10175
        %10359 = vmatprep.subr.mxu0 0.0
        %10360 = vmatpush1.xpose.msra.mxu0 %v10178
        %10361 = vmatprep.subr.mxu0 0.0
        %10362 = vmatpush1.xpose.msra.mxu0 %v10181
        %10363 = vmatprep.subr.mxu0 0.0
        %10364 = vmatpush1.xpose.msra.mxu0 %v10184
        %10365 = vmatprep.subr.mxu0 0.0
        %10366 = vmatpush1.xpose.msra.mxu0 %v10187
        %10367 = vmatprep.subr.mxu0 0.0
        %10368 = vmatpush1.xpose.msra.mxu0 %v10190
        %10369 = vmatprep.subr.mxu0 0.0
        %10370 = vmatpush1.xpose.msra.mxu0 %v10193
        %10371 = vmatprep.subr.mxu0 0.0
        %10372 = vmatpush1.xpose.msra.mxu0 %v10196
        %10373 = vmatprep.subr.mxu0 0.0
        %10374 = vmatpush1.xpose.msra.mxu0 %v10199
        %10375 = vmatprep.subr.mxu0 0.0
        %10376 = vmatpush1.xpose.msra.mxu0 %v10202
        %10377 = vmatprep.subr.mxu0 0.0
        %10378 = vmatpush1.xpose.msra.mxu0 %v10205
        %10379 = vmatprep.subr.mxu0 0.0
        %10380 = vmatpush1.xpose.msra.mxu0 %v10208
        %10381 = vmatprep.subr.mxu0 0.0
        %10382 = vmatpush1.xpose.msra.mxu0 %v10211
        %10383 = vmatprep.subr.mxu0 0.0
        %10384 = vmatpush1.xpose.msra.mxu0 %v10214
        %10385 = vmatprep.subr.mxu0 0.0
        %10386 = vmatpush1.xpose.msra.mxu0 %v10217
        %10387 = vmatprep.subr.mxu0 0.0
        %10388 = vmatpush1.xpose.msra.mxu0 %v10220
        %10389 = vmatprep.subr.mxu0 0.0
        %10390 = vmatpush1.xpose.msra.mxu0 %v10223
        %10391 = vmatprep.subr.mxu0 0.0
        %10392 = vmatpush1.xpose.msra.mxu0 %v10226
        %10393 = vmatprep.subr.mxu0 0.0
        %10394 = vmatpush1.xpose.msra.mxu0 %v10229
        %10395 = vmatprep.subr.mxu0 0.0
        %10396 = vmatpush1.xpose.msra.mxu0 %v10232
        %10397 = vmatprep.subr.mxu0 0.0
        %10398 = vmatpush1.xpose.msra.mxu0 %v10235
        %10399 = vmatprep.subr.mxu0 0.0
        %10400 = vmatpush1.xpose.msra.mxu0 %v10238
        %10401 = vmatprep.subr.mxu0 0.0
        %10402 = vmatpush1.xpose.msra.mxu0 %v10241
        %10403 = vmatprep.mubr.f32.mxu0 0.0
        %10404 = vmatmul.mubr.f32.gmra.mrb[0].mxu0 %v10145
        %v10405 = vpop.f32.mrb[0].mxu0
        %v10406 = vadd.f32 0.0, %v10405
        %v10407 = vpop.f32.mrb[0].mxu0
        %v10408 = vadd.f32 0.0, %v10407
        %10409 = vdwg.mxu0
        %10410 = vmatprep.subr.mxu0 0.0
        %10411 = vmatpush1.xpose.msra.mxu0 %v10244
        %10412 = vmatprep.subr.mxu0 0.0
        %10413 = vmatpush1.xpose.msra.mxu0 %v10247
        %10414 = vmatprep.subr.mxu0 0.0
        %10415 = vmatpush1.xpose.msra.mxu0 %v10250
        %10416 = vmatprep.subr.mxu0 0.0
        %10417 = vmatpush1.xpose.msra.mxu0 %v10253
        %10418 = vmatprep.subr.mxu0 0.0
        %10419 = vmatpush1.xpose.msra.mxu0 %v10256
        %10420 = vmatprep.subr.mxu0 0.0
        %10421 = vmatpush1.xpose.msra.mxu0 %v10259
        %10422 = vmatprep.subr.mxu0 0.0
        %10423 = vmatpush1.xpose.msra.mxu0 %v10262
        %10424 = vmatprep.subr.mxu0 0.0
        %10425 = vmatpush1.xpose.msra.mxu0 %v10265
        %10426 = vmatprep.subr.mxu0 0.0
        %10427 = vmatpush1.xpose.msra.mxu0 %v10268
        %10428 = vmatprep.subr.mxu0 0.0
        %10429 = vmatpush1.xpose.msra.mxu0 %v10271
        %10430 = vmatprep.subr.mxu0 0.0
        %10431 = vmatpush1.xpose.msra.mxu0 %v10274
        %10432 = vmatprep.subr.mxu0 0.0
        %10433 = vmatpush1.xpose.msra.mxu0 %v10277
        %10434 = vmatprep.subr.mxu0 0.0
        %10435 = vmatpush1.xpose.msra.mxu0 %v10280
        %10436 = vmatprep.subr.mxu0 0.0
        %10437 = vmatpush1.xpose.msra.mxu0 %v10283
        %10438 = vmatprep.subr.mxu0 0.0
        %10439 = vmatpush1.xpose.msra.mxu0 %v10286
        %10440 = vmatprep.subr.mxu0 0.0
        %10441 = vmatpush1.xpose.msra.mxu0 %v10289
        %10442 = vmatprep.subr.mxu0 0.0
        %10443 = vmatpush1.xpose.msra.mxu0 %v10292
        %10444 = vmatprep.subr.mxu0 0.0
        %10445 = vmatpush1.xpose.msra.mxu0 %v10295
        %10446 = vmatprep.subr.mxu0 0.0
        %10447 = vmatpush1.xpose.msra.mxu0 %v10298
        %10448 = vmatprep.subr.mxu0 0.0
        %10449 = vmatpush1.xpose.msra.mxu0 %v10301
        %10450 = vmatprep.subr.mxu0 0.0
        %10451 = vmatpush1.xpose.msra.mxu0 %v10304
        %10452 = vmatprep.subr.mxu0 0.0
        %10453 = vmatpush1.xpose.msra.mxu0 %v10307
        %10454 = vmatprep.subr.mxu0 0.0
        %10455 = vmatpush1.xpose.msra.mxu0 %v10310
        %10456 = vmatprep.subr.mxu0 0.0
        %10457 = vmatpush1.xpose.msra.mxu0 %v10313
        %10458 = vmatprep.subr.mxu0 0.0
        %10459 = vmatpush1.xpose.msra.mxu0 %v10316
        %10460 = vmatprep.subr.mxu0 0.0
        %10461 = vmatpush1.xpose.msra.mxu0 %v10319
        %10462 = vmatprep.subr.mxu0 0.0
        %10463 = vmatpush1.xpose.msra.mxu0 %v10322
        %10464 = vmatprep.subr.mxu0 0.0
        %10465 = vmatpush1.xpose.msra.mxu0 %v10325
        %10466 = vmatprep.subr.mxu0 0.0
        %10467 = vmatpush1.xpose.msra.mxu0 %v10328
        %10468 = vmatprep.subr.mxu0 0.0
        %10469 = vmatpush1.xpose.msra.mxu0 %v10331
        %10470 = vmatprep.subr.mxu0 0.0
        %10471 = vmatpush1.xpose.msra.mxu0 %v10334
        %10472 = vmatprep.subr.mxu0 0.0
        %10473 = vmatpush1.xpose.msra.mxu0 %v10337
        %10474 = vmatprep.mubr.f32.mxu0 0.0
        %10475 = vmatmul.mubr.f32.gmra.mrb[0].mxu0 %v10145
        %v10476 = vpop.f32.mrb[0].mxu0
        %v10477 = vadd.f32 0.0, %v10476
        %v10478 = vpop.f32.mrb[0].mxu0
        %v10479 = vadd.f32 0.0, %v10478
        %10480 = vdwg.mxu0
        %v10481 = vld [vmem:[%s7] sm:$0xff]
        %10483 = vset.pattern.permute.xlu0 0
        %10484 = vperm.xlu0 %10483, %v10481
        %v10485 = vpop.permute.xlu0 %10484
        %v10487 = vmul.f32 %v10406, %v10485
        %v10488 = vmul.f32 %v10408, %v10485
        %v10489 = vmul.f32 %v10477, %v10485
        %v10490 = vmul.f32 %v10479, %v10485
        %10491 = vset.pattern.permute.xlu0 1
        %10492 = vperm.xlu0 %10491, %v10481
        %v10493 = vpop.permute.xlu0 %10492
        %v10495 = vadd.f32 %v10487, %v10493
        %v10496 = vadd.f32 %v10488, %v10493
        %v10497 = vadd.f32 %v10489, %v10493
        %v10498 = vadd.f32 %v10490, %v10493
        %v10499 = vld [vmem:[%s332] sm:$0xff]
        %v10500 = vld [vmem:[%s332 + $0x8] sm:$0xff]
        %v10501 = vadd.f32 %v10495, %v10499
        %v10502 = vadd.f32 %v10496, %v10500
        %10503 = vst [vmem:[%s319] sm:$0xff] %v10501
        %10504 = vst [vmem:[%s319 + $0x8] sm:$0xff] %v10502
        %s10505 = scalar_lea.vmem %s332, 16
        %v10506 = vld [vmem:[%s10505] sm:$0xff]
        %v10507 = vld [vmem:[%s10505 + $0x8] sm:$0xff]
        %v10508 = vadd.f32 %v10497, %v10506
        %v10509 = vadd.f32 %v10498, %v10507
        %s10510 = scalar_lea.vmem %s319, 16 [#allocation4]
        %10511 = vst [vmem:[%s10510] sm:$0xff] %v10508
        %10512 = vst [vmem:[%s10510 + $0x8] sm:$0xff] %v10509
        %s10513 = sand.u32 %s208, 1
        %s10514 = scalar_lea.sflag [#allocation5], %s10513
        %s10515 = sand.u32 %s208, 1
        %s10516 = smul.addr %s10515, 32
        %s10517 = scalar_lea.vmem [#allocation4], %s10516
        // Predicated region
        $region53: #{tpu_custom_call.1} parent=51 // pred_check
          %p10518 = pneg %p218
        $region54: #{tpu_custom_call.1} parent=51 // pred_check_branch
          %10520 = sbr.rel (%p10518) target = $region56
        $region55: #{tpu_custom_call.1} parent=51 // pred_region
          %s10521 = smul.u32 2, %s22
          %s10523 = ssub.s32 512, 512
          %10524 = vsyncadd %s10514, %s10523
          %s10525 = smul.addr %s10521, 2
          %s10526 = smul.addr %s10525, 128
          %s10527 = scalar_lea.hbm %s8, %s10526
          %s10528 = sshll.u32 %s10517, 4
          %s10529 = int_to_ptr.vmem [resolvable:$true] %s10528
          %10534 = dma.vmem_to_hbm [thread:$0]  %s10529, 512, %s10527, %s10514, 256, 256, 16
        $region56: #{tpu_custom_call.1} parent=51 // pred_fallthru
          _
      $region52: #{tpu_custom_call.1} parent=5 // pred_fallthru
        _
      %p10535 = scmp.le.s32.totalorder 2, %s17
      // Predicated region
      $region57: #{tpu_custom_call.1} parent=5 // pred_check
        %p10536 = pneg %p10535
      $region58: #{tpu_custom_call.1} parent=5 // pred_check_branch
        %10538 = sbr.rel (%p10536) target = $region60
      $region59: #{tpu_custom_call.1} parent=5 // pred_region
        %s10539 = ssub.s32 %s17, 2
        // Predicated region
        $region61: #{tpu_custom_call.1} parent=59 // pred_check
          %p10540 = pneg %p224
        $region62: #{tpu_custom_call.1} parent=59 // pred_check_branch
          %10542 = sbr.rel (%p10540) target = $region64
        $region63: #{tpu_custom_call.1} parent=59 // pred_region
          %s10543 = sand.u32 %s209, 1
          %s10544 = scalar_lea.sflag [#allocation5], %s10543
          %s10545 = sand.u32 %s209, 1
          %s10546 = smul.addr %s10545, 32
          %s10547 = scalar_lea.vmem [#allocation4], %s10546
          %10548 = dma.done %s10544, 512
        $region64: #{tpu_custom_call.1} parent=59 // pred_fallthru
          _
      $region60: #{tpu_custom_call.1} parent=5 // pred_fallthru
        _
    $region6: #{tpu_custom_call.1} parent=1 // loop_footer
      %s21 = sadd.s32 1, %s17
    $region7: #{tpu_custom_call.1} parent=1 // loop_footer_branch
      %16 = sbr.rel target = $region3
    $region8: #{tpu_custom_call.1} parent=1 // loop_exit
      _
    %10549 = vsyncpa [#allocation5], 1
    %s10550 = scalar_lea.sflag [#allocation5], 1
    %10551 = vsyncpa %s10550, 1

</llo_original>
